<compile_context>
chip_gen: v5e
topology: v5e:2x2
jax: 0.10.0
libtpu: 0.0.40
codegen_flags: <defaults>
</compile_context>

<pallas_src>
import jax
import jax.numpy as jnp
from jax.experimental import pallas as pl
from jax.experimental.pallas import tpu as pltpu


def resblock_kernel(x_ref, w1_ref, s1_ref, b1_ref, w2_ref, s2_ref, b2_ref,
                    out_ref, xpad_ref, hpad_ref):
    H, W, C = x_ref.shape            # unpadded image tile, lane-dense C
    Hp, Wp = H + 2, W + 2
    M = H * W

    # Zero only the 1-pixel border of the padded scratches (interiors are fully
    # overwritten every grid step).
    zrow = jnp.zeros((1, Wp, C), xpad_ref.dtype)
    zcol = jnp.zeros((Hp, 1, C), xpad_ref.dtype)
    for ref in (xpad_ref, hpad_ref):
        ref[0:1, :, :] = zrow
        ref[Hp - 1:Hp, :, :] = zrow
        ref[:, 0:1, :] = zcol
        ref[:, Wp - 1:Wp, :] = zcol

    # Stage the input once into the zero-bordered scratch, casting to bf16 for the MXU.
    xpad_ref[1:H + 1, 1:W + 1, :] = x_ref[...].astype(jnp.bfloat16)

    def conv3x3(src_ref, w_ref):
        # 9 per-tap MXU matmuls accumulated in f32 (no (M, 9C) concat buffer).
        acc = jnp.zeros((M, C), jnp.float32)
        for dy in range(3):
            for dx in range(3):
                tap = src_ref[dy:dy + H, dx:dx + W, :].reshape(M, C)
                acc += jnp.dot(tap, w_ref[dy * 3 + dx],
                               preferred_element_type=jnp.float32)
        return acc

    # ---- conv1 -> folded inference BatchNorm -> SiLU (f32 on VPU/EUP) ----
    h = conv3x3(xpad_ref, w1_ref) * s1_ref[...] + b1_ref[...]
    # SiLU = x * sigmoid(x).  Exact reciprocal kept so numerics match the reference;
    # approx=True would move it fully onto the (idle) EUP slot if tolerance allows.
    h = h * pl.reciprocal(1.0 + jnp.exp(-h), approx=False)

    # Padded intermediate activation for conv2 (bf16 scratch, interior only).
    hpad_ref[1:H + 1, 1:W + 1, :] = h.reshape(H, W, C).astype(jnp.bfloat16)

    # ---- conv2 -> folded inference BatchNorm ----
    y = conv3x3(hpad_ref, w2_ref) * s2_ref[...] + b2_ref[...]

    # Residual add with the f32 input (no center slice needed).
    out_ref[...] = (x_ref[...] + y.reshape(H, W, C)).astype(out_ref.dtype)


def resblock_forward(x_nchw, params, eps=1e-5):
    """x_nchw: (B, C, H, W) float32 (PyTorch convention). Returns (B, C, H, W)."""
    (w1, bc1, g1, be1, m1, v1, w2, bc2, g2, be2, m2, v2) = params
    B, C, H, W = x_nchw.shape
    Cp = ((C + 127) // 128) * 128                      # lane-dense channel padding

    # NCHW -> NHWC.  (If the surrounding model were NHWC/channel-padded these relayouts
    # would be elided.)
    x = jnp.transpose(x_nchw, (0, 2, 3, 1)).astype(jnp.float32)
    if Cp != C:
        x = jnp.pad(x, ((0, 0), (0, 0), (0, 0), (0, Cp - C)))

    def taps(w):
        # PyTorch (Cout, Cin, 3, 3) -> (9, Cin, Cout), tap-major (dy*3+dx), bf16 for MXU.
        if Cp != C:
            w = jnp.pad(w, ((0, Cp - C), (0, Cp - C), (0, 0), (0, 0)))
        return jnp.transpose(w, (2, 3, 1, 0)).reshape(9, Cp, Cp).astype(jnp.bfloat16)

    def fold(gamma, beta, mean, var, bconv):
        # inference BatchNorm folded with the conv bias -> per-channel scale/bias
        scale = gamma / jnp.sqrt(var + eps)
        bias = beta + scale * (bconv - mean)
        if Cp != C:
            scale = jnp.pad(scale, (0, Cp - C))
            bias = jnp.pad(bias, (0, Cp - C))
        return (scale.reshape(1, Cp).astype(jnp.float32),
                bias.reshape(1, Cp).astype(jnp.float32))

    s1, b1 = fold(g1, be1, m1, v1, bc1)
    s2, b2 = fold(g2, be2, m2, v2, bc2)

    const3 = lambda b: (0, 0, 0)   # weights stay VMEM-resident across grid steps
    const2 = lambda b: (0, 0)      # scales/biases stay VMEM-resident across grid steps

    out = pl.pallas_call(
        resblock_kernel,
        out_shape=jax.ShapeDtypeStruct((B, H, W, Cp), jnp.float32),
        grid=(B,),
        in_specs=[
            pl.BlockSpec((None, H, W, Cp), lambda b: (b, 0, 0, 0)),
            pl.BlockSpec((9, Cp, Cp), const3),
            pl.BlockSpec((1, Cp), const2),
            pl.BlockSpec((1, Cp), const2),
            pl.BlockSpec((9, Cp, Cp), const3),
            pl.BlockSpec((1, Cp), const2),
            pl.BlockSpec((1, Cp), const2),
        ],
        out_specs=pl.BlockSpec((None, H, W, Cp), lambda b: (b, 0, 0, 0)),
        scratch_shapes=[pltpu.VMEM((H + 2, W + 2, Cp), jnp.bfloat16),   # padded x (bf16)
                        pltpu.VMEM((H + 2, W + 2, Cp), jnp.bfloat16)],  # padded h (bf16)
        compiler_params=pltpu.CompilerParams(
            dimension_semantics=("parallel",),
            vmem_limit_bytes=32 * 1024 * 1024),
    )(x, taps(w1), s1, b1, taps(w2), s2, b2)

    if Cp != C:
        out = out[..., :C]
    return jnp.transpose(out, (0, 3, 1, 2)).astype(x_nchw.dtype)


def reference_forward(x_nchw, params, eps=1e-5):
    """Pure-JAX reference (inference-mode BN).  Conv operands cast to bf16 with f32
    accumulation so its MXU precision matches the kernel."""
    (w1, bc1, g1, be1, m1, v1, w2, bc2, g2, be2, m2, v2) = params

    def conv(x, w, b):
        y = jax.lax.conv_general_dilated(
            x.astype(jnp.bfloat16), w.astype(jnp.bfloat16),
            window_strides=(1, 1), padding=((1, 1), (1, 1)),
            dimension_numbers=("NCHW", "OIHW", "NCHW"),
            preferred_element_type=jnp.float32)
        return y + b[None, :, None, None]

    def bn(x, g, be, m, v):
        return (x - m[None, :, None, None]) / jnp.sqrt(v[None, :, None, None] + eps) \
            * g[None, :, None, None] + be[None, :, None, None]

    h = bn(conv(x_nchw, w1, bc1), g1, be1, m1, v1)
    h = h * jax.nn.sigmoid(h)
    h = bn(conv(h, w2, bc2), g2, be2, m2, v2)
    return x_nchw + h


def make_params(key, C):
    ks = jax.random.split(key, 8)
    w1 = jax.random.normal(ks[0], (C, C, 3, 3), jnp.float32) * 0.05
    bc1 = jax.random.normal(ks[1], (C,), jnp.float32) * 0.05
    g1 = 1.0 + 0.1 * jax.random.normal(ks[2], (C,), jnp.float32)
    be1 = 0.1 * jax.random.normal(ks[3], (C,), jnp.float32)
    m1 = 0.1 * jax.random.normal(ks[4], (C,), jnp.float32)
    v1 = jax.random.uniform(ks[5], (C,), jnp.float32, 0.5, 1.5)
    w2 = jax.random.normal(ks[6], (C, C, 3, 3), jnp.float32) * 0.05
    bc2 = jax.random.normal(ks[7], (C,), jnp.float32) * 0.05
    g2 = 1.0 + 0.1 * jax.random.normal(ks[0], (C,), jnp.float32)
    be2 = 0.1 * jax.random.normal(ks[1], (C,), jnp.float32)
    m2 = 0.1 * jax.random.normal(ks[2], (C,), jnp.float32)
    v2 = jax.random.uniform(ks[3], (C,), jnp.float32, 0.5, 1.5)
    return (w1, bc1, g1, be1, m1, v1, w2, bc2, g2, be2, m2, v2)


if __name__ == "__main__":
    B, C, H, W = 2, 128, 16, 16   # channels = 128 -> lane-dense (module default is 256)
    key = jax.random.PRNGKey(0)
    kx, kp = jax.random.split(key)
    x = jax.random.normal(kx, (B, C, H, W), jnp.float32)
    params = make_params(kp, C)

    out = jax.block_until_ready(resblock_forward(x, params))
    ref = jax.block_until_ready(reference_forward(x, params))

    assert out.shape == (B, C, H, W)
    max_err = float(jnp.max(jnp.abs(out - ref)))
    assert jnp.allclose(out, ref, rtol=2e-2, atol=2e-2), max_err
    print("KERNEL_OK")
</pallas_src>

<mosaic_0001>
module attributes {stable_mosaic.version = 11 : i64} {
  func.func @resblock_kernel(%arg0: i32, %arg1: memref<1x16x16x128xf32, #tpu.memory_space<vmem>>, %arg2: memref<9x128x128xbf16, #tpu.memory_space<vmem>>, %arg3: memref<1x128xf32, #tpu.memory_space<vmem>>, %arg4: memref<1x128xf32, #tpu.memory_space<vmem>>, %arg5: memref<9x128x128xbf16, #tpu.memory_space<vmem>>, %arg6: memref<1x128xf32, #tpu.memory_space<vmem>>, %arg7: memref<1x128xf32, #tpu.memory_space<vmem>>, %arg8: memref<1x16x16x128xf32, #tpu.memory_space<vmem>>, %arg9: memref<18x18x128xbf16, #tpu.memory_space<vmem>>, %arg10: memref<18x18x128xbf16, #tpu.memory_space<vmem>>) attributes {dimension_semantics = [#tpu.dimension_semantics<parallel>], iteration_bounds = array<i64: 2>, scalar_prefetch = 0 : i64, scratch_operands = 2 : i64, tpu.core_type = #tpu.core_type<tc>, window_params = [{transform_indices = @transform_0, window_bounds = array<i64: 1, 16, 16, 128>}, {pipeline_mode = #tpu.pipeline_mode<synchronous>, transform_indices = @transform_1, window_bounds = array<i64: 9, 128, 128>}, {pipeline_mode = #tpu.pipeline_mode<synchronous>, transform_indices = @transform_2, window_bounds = array<i64: 1, 128>}, {pipeline_mode = #tpu.pipeline_mode<synchronous>, transform_indices = @transform_3, window_bounds = array<i64: 1, 128>}, {pipeline_mode = #tpu.pipeline_mode<synchronous>, transform_indices = @transform_4, window_bounds = array<i64: 9, 128, 128>}, {pipeline_mode = #tpu.pipeline_mode<synchronous>, transform_indices = @transform_5, window_bounds = array<i64: 1, 128>}, {pipeline_mode = #tpu.pipeline_mode<synchronous>, transform_indices = @transform_6, window_bounds = array<i64: 1, 128>}, {transform_indices = @transform_7, window_bounds = array<i64: 1, 16, 16, 128>}]} {
    %cst = arith.constant 0.000000e+00 : bf16
    %0 = vector.broadcast %cst : bf16 to vector<1x18x128xbf16>
    %cst_0 = arith.constant 0.000000e+00 : bf16
    %1 = vector.broadcast %cst_0 : bf16 to vector<18x1x128xbf16>
    %c0 = arith.constant 0 : index
    %c0_1 = arith.constant 0 : index
    %c0_2 = arith.constant 0 : index
    %2 = vector.load %arg9[%c0, %c0_1, %c0_2] : memref<18x18x128xbf16, #tpu.memory_space<vmem>>, vector<1x18x128xbf16>
    tpu.vector_store %arg9[%c0, %c0_1, %c0_2], %0 {strides = array<i32>} : memref<18x18x128xbf16, #tpu.memory_space<vmem>>, vector<1x18x128xbf16>,
    %c17 = arith.constant 17 : index
    %c0_3 = arith.constant 0 : index
    %c0_4 = arith.constant 0 : index
    %3 = vector.load %arg9[%c17, %c0_3, %c0_4] : memref<18x18x128xbf16, #tpu.memory_space<vmem>>, vector<1x18x128xbf16>
    tpu.vector_store %arg9[%c17, %c0_3, %c0_4], %0 {strides = array<i32>} : memref<18x18x128xbf16, #tpu.memory_space<vmem>>, vector<1x18x128xbf16>,
    %c0_5 = arith.constant 0 : index
    %c0_6 = arith.constant 0 : index
    %c0_7 = arith.constant 0 : index
    %4 = vector.load %arg9[%c0_5, %c0_6, %c0_7] : memref<18x18x128xbf16, #tpu.memory_space<vmem>>, vector<18x1x128xbf16>
    tpu.vector_store %arg9[%c0_5, %c0_6, %c0_7], %1 {strides = array<i32>} : memref<18x18x128xbf16, #tpu.memory_space<vmem>>, vector<18x1x128xbf16>,
    %c0_8 = arith.constant 0 : index
    %c17_9 = arith.constant 17 : index
    %c0_10 = arith.constant 0 : index
    %5 = vector.load %arg9[%c0_8, %c17_9, %c0_10] : memref<18x18x128xbf16, #tpu.memory_space<vmem>>, vector<18x1x128xbf16>
    tpu.vector_store %arg9[%c0_8, %c17_9, %c0_10], %1 {strides = array<i32>} : memref<18x18x128xbf16, #tpu.memory_space<vmem>>, vector<18x1x128xbf16>,
    %c0_11 = arith.constant 0 : index
    %c0_12 = arith.constant 0 : index
    %c0_13 = arith.constant 0 : index
    %6 = vector.load %arg10[%c0_11, %c0_12, %c0_13] : memref<18x18x128xbf16, #tpu.memory_space<vmem>>, vector<1x18x128xbf16>
    tpu.vector_store %arg10[%c0_11, %c0_12, %c0_13], %0 {strides = array<i32>} : memref<18x18x128xbf16, #tpu.memory_space<vmem>>, vector<1x18x128xbf16>,
    %c17_14 = arith.constant 17 : index
    %c0_15 = arith.constant 0 : index
    %c0_16 = arith.constant 0 : index
    %7 = vector.load %arg10[%c17_14, %c0_15, %c0_16] : memref<18x18x128xbf16, #tpu.memory_space<vmem>>, vector<1x18x128xbf16>
    tpu.vector_store %arg10[%c17_14, %c0_15, %c0_16], %0 {strides = array<i32>} : memref<18x18x128xbf16, #tpu.memory_space<vmem>>, vector<1x18x128xbf16>,
    %c0_17 = arith.constant 0 : index
    %c0_18 = arith.constant 0 : index
    %c0_19 = arith.constant 0 : index
    %8 = vector.load %arg10[%c0_17, %c0_18, %c0_19] : memref<18x18x128xbf16, #tpu.memory_space<vmem>>, vector<18x1x128xbf16>
    tpu.vector_store %arg10[%c0_17, %c0_18, %c0_19], %1 {strides = array<i32>} : memref<18x18x128xbf16, #tpu.memory_space<vmem>>, vector<18x1x128xbf16>,
    %c0_20 = arith.constant 0 : index
    %c17_21 = arith.constant 17 : index
    %c0_22 = arith.constant 0 : index
    %9 = vector.load %arg10[%c0_20, %c17_21, %c0_22] : memref<18x18x128xbf16, #tpu.memory_space<vmem>>, vector<18x1x128xbf16>
    tpu.vector_store %arg10[%c0_20, %c17_21, %c0_22], %1 {strides = array<i32>} : memref<18x18x128xbf16, #tpu.memory_space<vmem>>, vector<18x1x128xbf16>,
    %c0_23 = arith.constant 0 : index
    %c0_24 = arith.constant 0 : index
    %c0_25 = arith.constant 0 : index
    %c0_26 = arith.constant 0 : index
    %10 = vector.load %arg1[%c0_23, %c0_24, %c0_25, %c0_26] : memref<1x16x16x128xf32, #tpu.memory_space<vmem>>, vector<1x16x16x128xf32>
    %11 = vector.shape_cast %10 : vector<1x16x16x128xf32> to vector<16x16x128xf32>
    %12 = arith.truncf %11 : vector<16x16x128xf32> to vector<16x16x128xbf16>
    %c1 = arith.constant 1 : index
    %c1_27 = arith.constant 1 : index
    %c0_28 = arith.constant 0 : index
    %13 = vector.load %arg9[%c1, %c1_27, %c0_28] : memref<18x18x128xbf16, #tpu.memory_space<vmem>>, vector<16x16x128xbf16>
    tpu.vector_store %arg9[%c1, %c1_27, %c0_28], %12 {strides = array<i32>} : memref<18x18x128xbf16, #tpu.memory_space<vmem>>, vector<16x16x128xbf16>,
    %cst_29 = arith.constant 0.000000e+00 : f32
    %14 = vector.broadcast %cst_29 : f32 to vector<256x128xf32>
    %c0_30 = arith.constant 0 : index
    %c0_31 = arith.constant 0 : index
    %c0_32 = arith.constant 0 : index
    %15 = vector.load %arg9[%c0_30, %c0_31, %c0_32] : memref<18x18x128xbf16, #tpu.memory_space<vmem>>, vector<16x16x128xbf16>
    %16 = vector.shape_cast %15 : vector<16x16x128xbf16> to vector<256x128xbf16>
    %c0_33 = arith.constant 0 : index
    %c0_34 = arith.constant 0 : index
    %c0_35 = arith.constant 0 : index
    %17 = vector.load %arg2[%c0_33, %c0_34, %c0_35] : memref<9x128x128xbf16, #tpu.memory_space<vmem>>, vector<1x128x128xbf16>
    %18 = vector.shape_cast %17 : vector<1x128x128xbf16> to vector<128x128xbf16>
    %cst_36 = arith.constant dense<0.000000e+00> : vector<256x128xf32>
    %19 = tpu.matmul %16, %18, %cst_36 {dimension_numbers = #tpu.dot_dimension_numbers<[1], [0], [0], [1], [0, 0, 1, 1], [], []>} : vector<256x128xbf16>, vector<128x128xbf16>, vector<256x128xf32> -> vector<256x128xf32>
    %20 = arith.addf %14, %19 : vector<256x128xf32>
    %c0_37 = arith.constant 0 : index
    %c1_38 = arith.constant 1 : index
    %c0_39 = arith.constant 0 : index
    %21 = vector.load %arg9[%c0_37, %c1_38, %c0_39] : memref<18x18x128xbf16, #tpu.memory_space<vmem>>, vector<16x16x128xbf16>
    %22 = vector.shape_cast %21 : vector<16x16x128xbf16> to vector<256x128xbf16>
    %c1_40 = arith.constant 1 : index
    %c0_41 = arith.constant 0 : index
    %c0_42 = arith.constant 0 : index
    %23 = vector.load %arg2[%c1_40, %c0_41, %c0_42] : memref<9x128x128xbf16, #tpu.memory_space<vmem>>, vector<1x128x128xbf16>
    %24 = vector.shape_cast %23 : vector<1x128x128xbf16> to vector<128x128xbf16>
    %cst_43 = arith.constant dense<0.000000e+00> : vector<256x128xf32>
    %25 = tpu.matmul %22, %24, %cst_43 {dimension_numbers = #tpu.dot_dimension_numbers<[1], [0], [0], [1], [0, 0, 1, 1], [], []>} : vector<256x128xbf16>, vector<128x128xbf16>, vector<256x128xf32> -> vector<256x128xf32>
    %26 = arith.addf %20, %25 : vector<256x128xf32>
    %c0_44 = arith.constant 0 : index
    %c2 = arith.constant 2 : index
    %c0_45 = arith.constant 0 : index
    %27 = vector.load %arg9[%c0_44, %c2, %c0_45] : memref<18x18x128xbf16, #tpu.memory_space<vmem>>, vector<16x16x128xbf16>
    %28 = vector.shape_cast %27 : vector<16x16x128xbf16> to vector<256x128xbf16>
    %c2_46 = arith.constant 2 : index
    %c0_47 = arith.constant 0 : index
    %c0_48 = arith.constant 0 : index
    %29 = vector.load %arg2[%c2_46, %c0_47, %c0_48] : memref<9x128x128xbf16, #tpu.memory_space<vmem>>, vector<1x128x128xbf16>
    %30 = vector.shape_cast %29 : vector<1x128x128xbf16> to vector<128x128xbf16>
    %cst_49 = arith.constant dense<0.000000e+00> : vector<256x128xf32>
    %31 = tpu.matmul %28, %30, %cst_49 {dimension_numbers = #tpu.dot_dimension_numbers<[1], [0], [0], [1], [0, 0, 1, 1], [], []>} : vector<256x128xbf16>, vector<128x128xbf16>, vector<256x128xf32> -> vector<256x128xf32>
    %32 = arith.addf %26, %31 : vector<256x128xf32>
    %c1_50 = arith.constant 1 : index
    %c0_51 = arith.constant 0 : index
    %c0_52 = arith.constant 0 : index
    %33 = vector.load %arg9[%c1_50, %c0_51, %c0_52] : memref<18x18x128xbf16, #tpu.memory_space<vmem>>, vector<16x16x128xbf16>
    %34 = vector.shape_cast %33 : vector<16x16x128xbf16> to vector<256x128xbf16>
    %c3 = arith.constant 3 : index
    %c0_53 = arith.constant 0 : index
    %c0_54 = arith.constant 0 : index
    %35 = vector.load %arg2[%c3, %c0_53, %c0_54] : memref<9x128x128xbf16, #tpu.memory_space<vmem>>, vector<1x128x128xbf16>
    %36 = vector.shape_cast %35 : vector<1x128x128xbf16> to vector<128x128xbf16>
    %cst_55 = arith.constant dense<0.000000e+00> : vector<256x128xf32>
    %37 = tpu.matmul %34, %36, %cst_55 {dimension_numbers = #tpu.dot_dimension_numbers<[1], [0], [0], [1], [0, 0, 1, 1], [], []>} : vector<256x128xbf16>, vector<128x128xbf16>, vector<256x128xf32> -> vector<256x128xf32>
    %38 = arith.addf %32, %37 : vector<256x128xf32>
    %c1_56 = arith.constant 1 : index
    %c1_57 = arith.constant 1 : index
    %c0_58 = arith.constant 0 : index
    %39 = vector.load %arg9[%c1_56, %c1_57, %c0_58] : memref<18x18x128xbf16, #tpu.memory_space<vmem>>, vector<16x16x128xbf16>
    %40 = vector.shape_cast %39 : vector<16x16x128xbf16> to vector<256x128xbf16>
    %c4 = arith.constant 4 : index
    %c0_59 = arith.constant 0 : index
    %c0_60 = arith.constant 0 : index
    %41 = vector.load %arg2[%c4, %c0_59, %c0_60] : memref<9x128x128xbf16, #tpu.memory_space<vmem>>, vector<1x128x128xbf16>
    %42 = vector.shape_cast %41 : vector<1x128x128xbf16> to vector<128x128xbf16>
    %cst_61 = arith.constant dense<0.000000e+00> : vector<256x128xf32>
    %43 = tpu.matmul %40, %42, %cst_61 {dimension_numbers = #tpu.dot_dimension_numbers<[1], [0], [0], [1], [0, 0, 1, 1], [], []>} : vector<256x128xbf16>, vector<128x128xbf16>, vector<256x128xf32> -> vector<256x128xf32>
    %44 = arith.addf %38, %43 : vector<256x128xf32>
    %c1_62 = arith.constant 1 : index
    %c2_63 = arith.constant 2 : index
    %c0_64 = arith.constant 0 : index
    %45 = vector.load %arg9[%c1_62, %c2_63, %c0_64] : memref<18x18x128xbf16, #tpu.memory_space<vmem>>, vector<16x16x128xbf16>
    %46 = vector.shape_cast %45 : vector<16x16x128xbf16> to vector<256x128xbf16>
    %c5 = arith.constant 5 : index
    %c0_65 = arith.constant 0 : index
    %c0_66 = arith.constant 0 : index
    %47 = vector.load %arg2[%c5, %c0_65, %c0_66] : memref<9x128x128xbf16, #tpu.memory_space<vmem>>, vector<1x128x128xbf16>
    %48 = vector.shape_cast %47 : vector<1x128x128xbf16> to vector<128x128xbf16>
    %cst_67 = arith.constant dense<0.000000e+00> : vector<256x128xf32>
    %49 = tpu.matmul %46, %48, %cst_67 {dimension_numbers = #tpu.dot_dimension_numbers<[1], [0], [0], [1], [0, 0, 1, 1], [], []>} : vector<256x128xbf16>, vector<128x128xbf16>, vector<256x128xf32> -> vector<256x128xf32>
    %50 = arith.addf %44, %49 : vector<256x128xf32>
    %c2_68 = arith.constant 2 : index
    %c0_69 = arith.constant 0 : index
    %c0_70 = arith.constant 0 : index
    %51 = vector.load %arg9[%c2_68, %c0_69, %c0_70] : memref<18x18x128xbf16, #tpu.memory_space<vmem>>, vector<16x16x128xbf16>
    %52 = vector.shape_cast %51 : vector<16x16x128xbf16> to vector<256x128xbf16>
    %c6 = arith.constant 6 : index
    %c0_71 = arith.constant 0 : index
    %c0_72 = arith.constant 0 : index
    %53 = vector.load %arg2[%c6, %c0_71, %c0_72] : memref<9x128x128xbf16, #tpu.memory_space<vmem>>, vector<1x128x128xbf16>
    %54 = vector.shape_cast %53 : vector<1x128x128xbf16> to vector<128x128xbf16>
    %cst_73 = arith.constant dense<0.000000e+00> : vector<256x128xf32>
    %55 = tpu.matmul %52, %54, %cst_73 {dimension_numbers = #tpu.dot_dimension_numbers<[1], [0], [0], [1], [0, 0, 1, 1], [], []>} : vector<256x128xbf16>, vector<128x128xbf16>, vector<256x128xf32> -> vector<256x128xf32>
    %56 = arith.addf %50, %55 : vector<256x128xf32>
    %c2_74 = arith.constant 2 : index
    %c1_75 = arith.constant 1 : index
    %c0_76 = arith.constant 0 : index
    %57 = vector.load %arg9[%c2_74, %c1_75, %c0_76] : memref<18x18x128xbf16, #tpu.memory_space<vmem>>, vector<16x16x128xbf16>
    %58 = vector.shape_cast %57 : vector<16x16x128xbf16> to vector<256x128xbf16>
    %c7 = arith.constant 7 : index
    %c0_77 = arith.constant 0 : index
    %c0_78 = arith.constant 0 : index
    %59 = vector.load %arg2[%c7, %c0_77, %c0_78] : memref<9x128x128xbf16, #tpu.memory_space<vmem>>, vector<1x128x128xbf16>
    %60 = vector.shape_cast %59 : vector<1x128x128xbf16> to vector<128x128xbf16>
    %cst_79 = arith.constant dense<0.000000e+00> : vector<256x128xf32>
    %61 = tpu.matmul %58, %60, %cst_79 {dimension_numbers = #tpu.dot_dimension_numbers<[1], [0], [0], [1], [0, 0, 1, 1], [], []>} : vector<256x128xbf16>, vector<128x128xbf16>, vector<256x128xf32> -> vector<256x128xf32>
    %62 = arith.addf %56, %61 : vector<256x128xf32>
    %c2_80 = arith.constant 2 : index
    %c2_81 = arith.constant 2 : index
    %c0_82 = arith.constant 0 : index
    %63 = vector.load %arg9[%c2_80, %c2_81, %c0_82] : memref<18x18x128xbf16, #tpu.memory_space<vmem>>, vector<16x16x128xbf16>
    %64 = vector.shape_cast %63 : vector<16x16x128xbf16> to vector<256x128xbf16>
    %c8 = arith.constant 8 : index
    %c0_83 = arith.constant 0 : index
    %c0_84 = arith.constant 0 : index
    %65 = vector.load %arg2[%c8, %c0_83, %c0_84] : memref<9x128x128xbf16, #tpu.memory_space<vmem>>, vector<1x128x128xbf16>
    %66 = vector.shape_cast %65 : vector<1x128x128xbf16> to vector<128x128xbf16>
    %cst_85 = arith.constant dense<0.000000e+00> : vector<256x128xf32>
    %67 = tpu.matmul %64, %66, %cst_85 {dimension_numbers = #tpu.dot_dimension_numbers<[1], [0], [0], [1], [0, 0, 1, 1], [], []>} : vector<256x128xbf16>, vector<128x128xbf16>, vector<256x128xf32> -> vector<256x128xf32>
    %68 = arith.addf %62, %67 : vector<256x128xf32>
    %c0_86 = arith.constant 0 : index
    %c0_87 = arith.constant 0 : index
    %69 = vector.load %arg3[%c0_86, %c0_87] : memref<1x128xf32, #tpu.memory_space<vmem>>, vector<1x128xf32>
    %70 = vector.broadcast %69 : vector<1x128xf32> to vector<256x128xf32>
    %71 = arith.mulf %68, %70 : vector<256x128xf32>
    %c0_88 = arith.constant 0 : index
    %c0_89 = arith.constant 0 : index
    %72 = vector.load %arg4[%c0_88, %c0_89] : memref<1x128xf32, #tpu.memory_space<vmem>>, vector<1x128xf32>
    %73 = vector.broadcast %72 : vector<1x128xf32> to vector<256x128xf32>
    %74 = arith.addf %71, %73 : vector<256x128xf32>
    %cst_90 = arith.constant 0.000000e+00 : f32
    %75 = vector.broadcast %cst_90 : f32 to vector<256x128xf32>
    %76 = arith.subf %75, %74 : vector<256x128xf32>
    %77 = math.exp %76 : vector<256x128xf32>
    %cst_91 = arith.constant 1.000000e+00 : f32
    %78 = vector.broadcast %cst_91 : f32 to vector<256x128xf32>
    %79 = arith.addf %78, %77 : vector<256x128xf32>
    %80 = tpu.reciprocal %79 : vector<256x128xf32> -> vector<256x128xf32>
    %81 = arith.mulf %74, %80 : vector<256x128xf32>
    %82 = vector.shape_cast %81 : vector<256x128xf32> to vector<16x16x128xf32>
    %83 = arith.truncf %82 : vector<16x16x128xf32> to vector<16x16x128xbf16>
    %c1_92 = arith.constant 1 : index
    %c1_93 = arith.constant 1 : index
    %c0_94 = arith.constant 0 : index
    %84 = vector.load %arg10[%c1_92, %c1_93, %c0_94] : memref<18x18x128xbf16, #tpu.memory_space<vmem>>, vector<16x16x128xbf16>
    tpu.vector_store %arg10[%c1_92, %c1_93, %c0_94], %83 {strides = array<i32>} : memref<18x18x128xbf16, #tpu.memory_space<vmem>>, vector<16x16x128xbf16>,
    %cst_95 = arith.constant 0.000000e+00 : f32
    %85 = vector.broadcast %cst_95 : f32 to vector<256x128xf32>
    %c0_96 = arith.constant 0 : index
    %c0_97 = arith.constant 0 : index
    %c0_98 = arith.constant 0 : index
    %86 = vector.load %arg10[%c0_96, %c0_97, %c0_98] : memref<18x18x128xbf16, #tpu.memory_space<vmem>>, vector<16x16x128xbf16>
    %87 = vector.shape_cast %86 : vector<16x16x128xbf16> to vector<256x128xbf16>
    %c0_99 = arith.constant 0 : index
    %c0_100 = arith.constant 0 : index
    %c0_101 = arith.constant 0 : index
    %88 = vector.load %arg5[%c0_99, %c0_100, %c0_101] : memref<9x128x128xbf16, #tpu.memory_space<vmem>>, vector<1x128x128xbf16>
    %89 = vector.shape_cast %88 : vector<1x128x128xbf16> to vector<128x128xbf16>
    %cst_102 = arith.constant dense<0.000000e+00> : vector<256x128xf32>
    %90 = tpu.matmul %87, %89, %cst_102 {dimension_numbers = #tpu.dot_dimension_numbers<[1], [0], [0], [1], [0, 0, 1, 1], [], []>} : vector<256x128xbf16>, vector<128x128xbf16>, vector<256x128xf32> -> vector<256x128xf32>
    %91 = arith.addf %85, %90 : vector<256x128xf32>
    %c0_103 = arith.constant 0 : index
    %c1_104 = arith.constant 1 : index
    %c0_105 = arith.constant 0 : index
    %92 = vector.load %arg10[%c0_103, %c1_104, %c0_105] : memref<18x18x128xbf16, #tpu.memory_space<vmem>>, vector<16x16x128xbf16>
    %93 = vector.shape_cast %92 : vector<16x16x128xbf16> to vector<256x128xbf16>
    %c1_106 = arith.constant 1 : index
    %c0_107 = arith.constant 0 : index
    %c0_108 = arith.constant 0 : index
    %94 = vector.load %arg5[%c1_106, %c0_107, %c0_108] : memref<9x128x128xbf16, #tpu.memory_space<vmem>>, vector<1x128x128xbf16>
    %95 = vector.shape_cast %94 : vector<1x128x128xbf16> to vector<128x128xbf16>
    %cst_109 = arith.constant dense<0.000000e+00> : vector<256x128xf32>
    %96 = tpu.matmul %93, %95, %cst_109 {dimension_numbers = #tpu.dot_dimension_numbers<[1], [0], [0], [1], [0, 0, 1, 1], [], []>} : vector<256x128xbf16>, vector<128x128xbf16>, vector<256x128xf32> -> vector<256x128xf32>
    %97 = arith.addf %91, %96 : vector<256x128xf32>
    %c0_110 = arith.constant 0 : index
    %c2_111 = arith.constant 2 : index
    %c0_112 = arith.constant 0 : index
    %98 = vector.load %arg10[%c0_110, %c2_111, %c0_112] : memref<18x18x128xbf16, #tpu.memory_space<vmem>>, vector<16x16x128xbf16>
    %99 = vector.shape_cast %98 : vector<16x16x128xbf16> to vector<256x128xbf16>
    %c2_113 = arith.constant 2 : index
    %c0_114 = arith.constant 0 : index
    %c0_115 = arith.constant 0 : index
    %100 = vector.load %arg5[%c2_113, %c0_114, %c0_115] : memref<9x128x128xbf16, #tpu.memory_space<vmem>>, vector<1x128x128xbf16>
    %101 = vector.shape_cast %100 : vector<1x128x128xbf16> to vector<128x128xbf16>
    %cst_116 = arith.constant dense<0.000000e+00> : vector<256x128xf32>
    %102 = tpu.matmul %99, %101, %cst_116 {dimension_numbers = #tpu.dot_dimension_numbers<[1], [0], [0], [1], [0, 0, 1, 1], [], []>} : vector<256x128xbf16>, vector<128x128xbf16>, vector<256x128xf32> -> vector<256x128xf32>
    %103 = arith.addf %97, %102 : vector<256x128xf32>
    %c1_117 = arith.constant 1 : index
    %c0_118 = arith.constant 0 : index
    %c0_119 = arith.constant 0 : index
    %104 = vector.load %arg10[%c1_117, %c0_118, %c0_119] : memref<18x18x128xbf16, #tpu.memory_space<vmem>>, vector<16x16x128xbf16>
    %105 = vector.shape_cast %104 : vector<16x16x128xbf16> to vector<256x128xbf16>
    %c3_120 = arith.constant 3 : index
    %c0_121 = arith.constant 0 : index
    %c0_122 = arith.constant 0 : index
    %106 = vector.load %arg5[%c3_120, %c0_121, %c0_122] : memref<9x128x128xbf16, #tpu.memory_space<vmem>>, vector<1x128x128xbf16>
    %107 = vector.shape_cast %106 : vector<1x128x128xbf16> to vector<128x128xbf16>
    %cst_123 = arith.constant dense<0.000000e+00> : vector<256x128xf32>
    %108 = tpu.matmul %105, %107, %cst_123 {dimension_numbers = #tpu.dot_dimension_numbers<[1], [0], [0], [1], [0, 0, 1, 1], [], []>} : vector<256x128xbf16>, vector<128x128xbf16>, vector<256x128xf32> -> vector<256x128xf32>
    %109 = arith.addf %103, %108 : vector<256x128xf32>
    %c1_124 = arith.constant 1 : index
    %c1_125 = arith.constant 1 : index
    %c0_126 = arith.constant 0 : index
    %110 = vector.load %arg10[%c1_124, %c1_125, %c0_126] : memref<18x18x128xbf16, #tpu.memory_space<vmem>>, vector<16x16x128xbf16>
    %111 = vector.shape_cast %110 : vector<16x16x128xbf16> to vector<256x128xbf16>
    %c4_127 = arith.constant 4 : index
    %c0_128 = arith.constant 0 : index
    %c0_129 = arith.constant 0 : index
    %112 = vector.load %arg5[%c4_127, %c0_128, %c0_129] : memref<9x128x128xbf16, #tpu.memory_space<vmem>>, vector<1x128x128xbf16>
    %113 = vector.shape_cast %112 : vector<1x128x128xbf16> to vector<128x128xbf16>
    %cst_130 = arith.constant dense<0.000000e+00> : vector<256x128xf32>
    %114 = tpu.matmul %111, %113, %cst_130 {dimension_numbers = #tpu.dot_dimension_numbers<[1], [0], [0], [1], [0, 0, 1, 1], [], []>} : vector<256x128xbf16>, vector<128x128xbf16>, vector<256x128xf32> -> vector<256x128xf32>
    %115 = arith.addf %109, %114 : vector<256x128xf32>
    %c1_131 = arith.constant 1 : index
    %c2_132 = arith.constant 2 : index
    %c0_133 = arith.constant 0 : index
    %116 = vector.load %arg10[%c1_131, %c2_132, %c0_133] : memref<18x18x128xbf16, #tpu.memory_space<vmem>>, vector<16x16x128xbf16>
    %117 = vector.shape_cast %116 : vector<16x16x128xbf16> to vector<256x128xbf16>
    %c5_134 = arith.constant 5 : index
    %c0_135 = arith.constant 0 : index
    %c0_136 = arith.constant 0 : index
    %118 = vector.load %arg5[%c5_134, %c0_135, %c0_136] : memref<9x128x128xbf16, #tpu.memory_space<vmem>>, vector<1x128x128xbf16>
    %119 = vector.shape_cast %118 : vector<1x128x128xbf16> to vector<128x128xbf16>
    %cst_137 = arith.constant dense<0.000000e+00> : vector<256x128xf32>
    %120 = tpu.matmul %117, %119, %cst_137 {dimension_numbers = #tpu.dot_dimension_numbers<[1], [0], [0], [1], [0, 0, 1, 1], [], []>} : vector<256x128xbf16>, vector<128x128xbf16>, vector<256x128xf32> -> vector<256x128xf32>
    %121 = arith.addf %115, %120 : vector<256x128xf32>
    %c2_138 = arith.constant 2 : index
    %c0_139 = arith.constant 0 : index
    %c0_140 = arith.constant 0 : index
    %122 = vector.load %arg10[%c2_138, %c0_139, %c0_140] : memref<18x18x128xbf16, #tpu.memory_space<vmem>>, vector<16x16x128xbf16>
    %123 = vector.shape_cast %122 : vector<16x16x128xbf16> to vector<256x128xbf16>
    %c6_141 = arith.constant 6 : index
    %c0_142 = arith.constant 0 : index
    %c0_143 = arith.constant 0 : index
    %124 = vector.load %arg5[%c6_141, %c0_142, %c0_143] : memref<9x128x128xbf16, #tpu.memory_space<vmem>>, vector<1x128x128xbf16>
    %125 = vector.shape_cast %124 : vector<1x128x128xbf16> to vector<128x128xbf16>
    %cst_144 = arith.constant dense<0.000000e+00> : vector<256x128xf32>
    %126 = tpu.matmul %123, %125, %cst_144 {dimension_numbers = #tpu.dot_dimension_numbers<[1], [0], [0], [1], [0, 0, 1, 1], [], []>} : vector<256x128xbf16>, vector<128x128xbf16>, vector<256x128xf32> -> vector<256x128xf32>
    %127 = arith.addf %121, %126 : vector<256x128xf32>
    %c2_145 = arith.constant 2 : index
    %c1_146 = arith.constant 1 : index
    %c0_147 = arith.constant 0 : index
    %128 = vector.load %arg10[%c2_145, %c1_146, %c0_147] : memref<18x18x128xbf16, #tpu.memory_space<vmem>>, vector<16x16x128xbf16>
    %129 = vector.shape_cast %128 : vector<16x16x128xbf16> to vector<256x128xbf16>
    %c7_148 = arith.constant 7 : index
    %c0_149 = arith.constant 0 : index
    %c0_150 = arith.constant 0 : index
    %130 = vector.load %arg5[%c7_148, %c0_149, %c0_150] : memref<9x128x128xbf16, #tpu.memory_space<vmem>>, vector<1x128x128xbf16>
    %131 = vector.shape_cast %130 : vector<1x128x128xbf16> to vector<128x128xbf16>
    %cst_151 = arith.constant dense<0.000000e+00> : vector<256x128xf32>
    %132 = tpu.matmul %129, %131, %cst_151 {dimension_numbers = #tpu.dot_dimension_numbers<[1], [0], [0], [1], [0, 0, 1, 1], [], []>} : vector<256x128xbf16>, vector<128x128xbf16>, vector<256x128xf32> -> vector<256x128xf32>
    %133 = arith.addf %127, %132 : vector<256x128xf32>
    %c2_152 = arith.constant 2 : index
    %c2_153 = arith.constant 2 : index
    %c0_154 = arith.constant 0 : index
    %134 = vector.load %arg10[%c2_152, %c2_153, %c0_154] : memref<18x18x128xbf16, #tpu.memory_space<vmem>>, vector<16x16x128xbf16>
    %135 = vector.shape_cast %134 : vector<16x16x128xbf16> to vector<256x128xbf16>
    %c8_155 = arith.constant 8 : index
    %c0_156 = arith.constant 0 : index
    %c0_157 = arith.constant 0 : index
    %136 = vector.load %arg5[%c8_155, %c0_156, %c0_157] : memref<9x128x128xbf16, #tpu.memory_space<vmem>>, vector<1x128x128xbf16>
    %137 = vector.shape_cast %136 : vector<1x128x128xbf16> to vector<128x128xbf16>
    %cst_158 = arith.constant dense<0.000000e+00> : vector<256x128xf32>
    %138 = tpu.matmul %135, %137, %cst_158 {dimension_numbers = #tpu.dot_dimension_numbers<[1], [0], [0], [1], [0, 0, 1, 1], [], []>} : vector<256x128xbf16>, vector<128x128xbf16>, vector<256x128xf32> -> vector<256x128xf32>
    %139 = arith.addf %133, %138 : vector<256x128xf32>
    %c0_159 = arith.constant 0 : index
    %c0_160 = arith.constant 0 : index
    %140 = vector.load %arg6[%c0_159, %c0_160] : memref<1x128xf32, #tpu.memory_space<vmem>>, vector<1x128xf32>
    %141 = vector.broadcast %140 : vector<1x128xf32> to vector<256x128xf32>
    %142 = arith.mulf %139, %141 : vector<256x128xf32>
    %c0_161 = arith.constant 0 : index
    %c0_162 = arith.constant 0 : index
    %143 = vector.load %arg7[%c0_161, %c0_162] : memref<1x128xf32, #tpu.memory_space<vmem>>, vector<1x128xf32>
    %144 = vector.broadcast %143 : vector<1x128xf32> to vector<256x128xf32>
    %145 = arith.addf %142, %144 : vector<256x128xf32>
    %c0_163 = arith.constant 0 : index
    %c0_164 = arith.constant 0 : index
    %c0_165 = arith.constant 0 : index
    %c0_166 = arith.constant 0 : index
    %146 = vector.load %arg1[%c0_163, %c0_164, %c0_165, %c0_166] : memref<1x16x16x128xf32, #tpu.memory_space<vmem>>, vector<1x16x16x128xf32>
    %147 = vector.shape_cast %146 : vector<1x16x16x128xf32> to vector<16x16x128xf32>
    %148 = vector.shape_cast %145 : vector<256x128xf32> to vector<16x16x128xf32>
    %149 = arith.addf %147, %148 : vector<16x16x128xf32>
    %c0_167 = arith.constant 0 : index
    %c0_168 = arith.constant 0 : index
    %c0_169 = arith.constant 0 : index
    %c0_170 = arith.constant 0 : index
    %150 = vector.load %arg8[%c0_167, %c0_168, %c0_169, %c0_170] : memref<1x16x16x128xf32, #tpu.memory_space<vmem>>, vector<1x16x16x128xf32>
    %151 = vector.shape_cast %150 : vector<1x16x16x128xf32> to vector<16x16x128xf32>
    %152 = vector.shape_cast %149 : vector<16x16x128xf32> to vector<1x16x16x128xf32>
    tpu.vector_store %arg8[%c0_167, %c0_168, %c0_169, %c0_170], %152 {strides = array<i32>} : memref<1x16x16x128xf32, #tpu.memory_space<vmem>>, vector<1x16x16x128xf32>,
    return
  }
  func.func @transform_0(%arg0: i32) -> (i32, i32, i32, i32) {
    %c0_i32 = arith.constant 0 : i32
    %c0_i32_0 = arith.constant 0 : i32
    %c0_i32_1 = arith.constant 0 : i32
    %c0_i32_2 = arith.constant 0 : i32
    return %arg0, %c0_i32, %c0_i32_0, %c0_i32_1 : i32, i32, i32, i32
  }
  func.func @transform_1(%arg0: i32) -> (i32, i32, i32) {
    %c0_i32 = arith.constant 0 : i32
    %c0_i32_0 = arith.constant 0 : i32
    %c0_i32_1 = arith.constant 0 : i32
    %c0_i32_2 = arith.constant 0 : i32
    return %c0_i32, %c0_i32_0, %c0_i32_1 : i32, i32, i32
  }
  func.func @transform_2(%arg0: i32) -> (i32, i32) {
    %c0_i32 = arith.constant 0 : i32
    %c0_i32_0 = arith.constant 0 : i32
    %c0_i32_1 = arith.constant 0 : i32
    return %c0_i32, %c0_i32_0 : i32, i32
  }
  func.func @transform_3(%arg0: i32) -> (i32, i32) {
    %c0_i32 = arith.constant 0 : i32
    %c0_i32_0 = arith.constant 0 : i32
    %c0_i32_1 = arith.constant 0 : i32
    return %c0_i32, %c0_i32_0 : i32, i32
  }
  func.func @transform_4(%arg0: i32) -> (i32, i32, i32) {
    %c0_i32 = arith.constant 0 : i32
    %c0_i32_0 = arith.constant 0 : i32
    %c0_i32_1 = arith.constant 0 : i32
    %c0_i32_2 = arith.constant 0 : i32
    return %c0_i32, %c0_i32_0, %c0_i32_1 : i32, i32, i32
  }
  func.func @transform_5(%arg0: i32) -> (i32, i32) {
    %c0_i32 = arith.constant 0 : i32
    %c0_i32_0 = arith.constant 0 : i32
    %c0_i32_1 = arith.constant 0 : i32
    return %c0_i32, %c0_i32_0 : i32, i32
  }
  func.func @transform_6(%arg0: i32) -> (i32, i32) {
    %c0_i32 = arith.constant 0 : i32
    %c0_i32_0 = arith.constant 0 : i32
    %c0_i32_1 = arith.constant 0 : i32
    return %c0_i32, %c0_i32_0 : i32, i32
  }
  func.func @transform_7(%arg0: i32) -> (i32, i32, i32, i32) {
    %c0_i32 = arith.constant 0 : i32
    %c0_i32_0 = arith.constant 0 : i32
    %c0_i32_1 = arith.constant 0 : i32
    %c0_i32_2 = arith.constant 0 : i32
    return %arg0, %c0_i32, %c0_i32_0, %c0_i32_1 : i32, i32, i32, i32
  }
}

</mosaic_0001>

<llo_original>
// kernel: tpu_custom_call.1
$region0: #{tpu_custom_call.1}
  #allocation0 [shape = 'u32[]', space=smem, size = 0x4, offset = 0x4, fixed_abs, tag = 'smem constant byte address 0x4 - core index']
  #allocation1 [shape = 'u32[72,128]{1,0:T(1,128)}', space=vmem, size = 0x9000, scoped, tag = 'internal scratch']
  #allocation2 [shape = 'bf16[18,18,128]{2,1,0:T(8,128)(2,1)}', space=vmem, size = 0x1b000, scoped, tag = 'scratch operand']
  #allocation3 [shape = 'bf16[18,18,128]{2,1,0:T(8,128)(2,1)}', space=vmem, size = 0x1b000, scoped, tag = 'scratch operand']
  %s0 = inlined_call_operand.hbm [shape: f32[2,16,16,128], index: 0, kind: input, shape index: {}]
  %s1 = inlined_call_operand.hbm [shape: bf16[9,128,128], index: 1, kind: input, shape index: {}]
  %s2 = inlined_call_operand.vmem [shape: f32[1,128], index: 2, kind: input, shape index: {}]
  %s3 = inlined_call_operand.vmem [shape: f32[1,128], index: 3, kind: input, shape index: {}]
  %s4 = inlined_call_operand.hbm [shape: bf16[9,128,128], index: 4, kind: input, shape index: {}]
  %s5 = inlined_call_operand.vmem [shape: f32[1,128], index: 5, kind: input, shape index: {}]
  %s6 = inlined_call_operand.vmem [shape: f32[1,128], index: 6, kind: input, shape index: {}]
  %s7 = inlined_call_operand.hbm [shape: f32[2,16,16,128], index: 7, kind: output, shape index: {}]
  %s8 = sld [smem:[#allocation0]]
  $region73: #{tpu_custom_call.1} parent=0
    _
  %s10 = ssub.s32 1, %s8
  %s11 = scalar_select 0, %s10, %s8
  $region1: #{tpu_custom_call.1} parent=0
    #allocation4 [shape = 'u8[262144]{0}', space=vmem, size = 0x40000, scoped, tag = 'input window, operand 0']
    #allocation5 [shape = 's32[2]{0}', space=sflag, size = 0x8, scoped, tag = 'scoped memory for tpu_custom_call.1']
    #allocation6 [shape = 's32[2]{0}', space=sflag, size = 0x8, scoped, tag = 'scoped memory for tpu_custom_call.1']
    #allocation7 [shape = 'u8[294912]{0}', space=vmem, size = 0x48000, scoped, tag = 'input window, operand 1, single buffered']
    #allocation8 [shape = 's32[1]{0}', space=sflag, size = 0x4, scoped, tag = 'scoped memory for tpu_custom_call.1']
    #allocation9 [shape = 'u8[294912]{0}', space=vmem, size = 0x48000, scoped, tag = 'input window, operand 4, single buffered']
    #allocation10 [shape = 'u8[262144]{0}', space=vmem, size = 0x40000, scoped, tag = 'output window, operand 0']
    %12 = vsyncpa [#allocation5], 0
    %s13 = scalar_lea.sflag [#allocation5], 1
    %14 = vsyncpa %s13, 0
    %15 = vsyncpa [#allocation8], 0
    %16 = vsyncpa [#allocation6], 0
    %s17 = scalar_lea.sflag [#allocation6], 1
    %18 = vsyncpa %s17, 0
    loop: start=0, step=1, limit=4
    $region2: #{tpu_custom_call.1} parent=1 // loop_pre_header
      _
    $region3: #{tpu_custom_call.1} parent=1 // loop_header
      %s20 = sphi 0, %s24
      %p21 = scmp.ge.s32.totalorder %s20, 4
      %s30 = sphi 0, %s32
      %s33 = sphi 0, %s30
      %s34 = sphi 0, %s33
      %s50 = sphi 0, %s34
      %s54 = sphi 0, %s54
      %s56 = sphi 0, %s54
      %s57 = sphi 0, %s56
      %s71 = sphi 0, %s57
      %s75 = sphi 0, %s75
      %s77 = sphi 0, %s75
      %s78 = sphi 0, %s77
      %s92 = sphi 0, %s78
      %s96 = sphi 0, %s96
      %s98 = sphi 0, %s96
      %s99 = sphi 0, %s98
      %s113 = sphi 0, %s99
      %s117 = sphi 0, %s117
      %s119 = sphi 0, %s117
      %s120 = sphi 0, %s119
      %s134 = sphi 0, %s120
      %s138 = sphi 0, %s138
      %s140 = sphi 0, %s138
      %s141 = sphi 0, %s140
      %s155 = sphi 0, %s141
      %s159 = sphi 0, %s159
      %s161 = sphi 0, %s159
      %s162 = sphi 0, %s161
      %s176 = sphi 0, %s162
      %s182 = sphi 0, %s184
      %s185 = sphi 0, %s182
      %s186 = sphi 0, %s185
      %s202 = sphi 0, %s186
    $region4: #{tpu_custom_call.1} parent=1 // loop_header_branch
      %23 = sbr.rel (%p21) target = $region8
    $region5: #{tpu_custom_call.1} parent=1 // loop_body
      %s25 = ssub.s32 %s20, 1
      %s26 = ssub.s32 %s20, 2
      %s27 = sadd.s32 %s20, 1
      %s28 = ssub.s32 %s20, %s27
      %p29 = scmp.eq.s32.totalorder %s28, 0
      %s31 = sadd.s32 %s30, 1
      %s32 = scalar_select %p29, %s30, %s31
      %p35 = pneg %p29
      %p36 = scmp.eq.s32.totalorder %s20, 1
      %p37 = por %p35, %p36
      %p38 = scmp.ne.s32.totalorder %s30, %s33
      %p39 = scmp.eq.s32.totalorder %s20, 0
      %p40 = por %p38, %p39
      %p41 = scmp.ne.s32.totalorder %s30, %s33
      %p42 = scmp.eq.s32.totalorder %s25, 1
      %p43 = por %p41, %p42
      %p44 = scmp.ne.s32.totalorder %s33, %s34
      %p45 = scmp.eq.s32.totalorder %s25, 0
      %p46 = por %p44, %p45
      %p47 = scmp.ne.s32.totalorder %s33, %s34
      %p48 = scmp.eq.s32.totalorder %s26, 1
      %p49 = por %p47, %p48
      %p51 = scmp.ne.s32.totalorder %s34, %s50
      %p52 = scmp.eq.s32.totalorder %s26, 0
      %p53 = por %p51, %p52
      %s55 = sadd.s32 %s54, 1
      %p58 = scmp.eq.s32.totalorder %s20, 1
      %p59 = scmp.ne.s32.totalorder %s54, %s56
      %p60 = scmp.eq.s32.totalorder %s20, 0
      %p61 = por %p59, %p60
      %p62 = scmp.ne.s32.totalorder %s54, %s56
      %p63 = scmp.eq.s32.totalorder %s25, 1
      %p64 = por %p62, %p63
      %p65 = scmp.ne.s32.totalorder %s56, %s57
      %p66 = scmp.eq.s32.totalorder %s25, 0
      %p67 = por %p65, %p66
      %p68 = scmp.ne.s32.totalorder %s56, %s57
      %p69 = scmp.eq.s32.totalorder %s26, 1
      %p70 = por %p68, %p69
      %p72 = scmp.ne.s32.totalorder %s57, %s71
      %p73 = scmp.eq.s32.totalorder %s26, 0
      %p74 = por %p72, %p73
      %s76 = sadd.s32 %s75, 1
      %p79 = scmp.eq.s32.totalorder %s20, 1
      %p80 = scmp.ne.s32.totalorder %s75, %s77
      %p81 = scmp.eq.s32.totalorder %s20, 0
      %p82 = por %p80, %p81
      %p83 = scmp.ne.s32.totalorder %s75, %s77
      %p84 = scmp.eq.s32.totalorder %s25, 1
      %p85 = por %p83, %p84
      %p86 = scmp.ne.s32.totalorder %s77, %s78
      %p87 = scmp.eq.s32.totalorder %s25, 0
      %p88 = por %p86, %p87
      %p89 = scmp.ne.s32.totalorder %s77, %s78
      %p90 = scmp.eq.s32.totalorder %s26, 1
      %p91 = por %p89, %p90
      %p93 = scmp.ne.s32.totalorder %s78, %s92
      %p94 = scmp.eq.s32.totalorder %s26, 0
      %p95 = por %p93, %p94
      %s97 = sadd.s32 %s96, 1
      %p100 = scmp.eq.s32.totalorder %s20, 1
      %p101 = scmp.ne.s32.totalorder %s96, %s98
      %p102 = scmp.eq.s32.totalorder %s20, 0
      %p103 = por %p101, %p102
      %p104 = scmp.ne.s32.totalorder %s96, %s98
      %p105 = scmp.eq.s32.totalorder %s25, 1
      %p106 = por %p104, %p105
      %p107 = scmp.ne.s32.totalorder %s98, %s99
      %p108 = scmp.eq.s32.totalorder %s25, 0
      %p109 = por %p107, %p108
      %p110 = scmp.ne.s32.totalorder %s98, %s99
      %p111 = scmp.eq.s32.totalorder %s26, 1
      %p112 = por %p110, %p111
      %p114 = scmp.ne.s32.totalorder %s99, %s113
      %p115 = scmp.eq.s32.totalorder %s26, 0
      %p116 = por %p114, %p115
      %s118 = sadd.s32 %s117, 1
      %p121 = scmp.eq.s32.totalorder %s20, 1
      %p122 = scmp.ne.s32.totalorder %s117, %s119
      %p123 = scmp.eq.s32.totalorder %s20, 0
      %p124 = por %p122, %p123
      %p125 = scmp.ne.s32.totalorder %s117, %s119
      %p126 = scmp.eq.s32.totalorder %s25, 1
      %p127 = por %p125, %p126
      %p128 = scmp.ne.s32.totalorder %s119, %s120
      %p129 = scmp.eq.s32.totalorder %s25, 0
      %p130 = por %p128, %p129
      %p131 = scmp.ne.s32.totalorder %s119, %s120
      %p132 = scmp.eq.s32.totalorder %s26, 1
      %p133 = por %p131, %p132
      %p135 = scmp.ne.s32.totalorder %s120, %s134
      %p136 = scmp.eq.s32.totalorder %s26, 0
      %p137 = por %p135, %p136
      %s139 = sadd.s32 %s138, 1
      %p142 = scmp.eq.s32.totalorder %s20, 1
      %p143 = scmp.ne.s32.totalorder %s138, %s140
      %p144 = scmp.eq.s32.totalorder %s20, 0
      %p145 = por %p143, %p144
      %p146 = scmp.ne.s32.totalorder %s138, %s140
      %p147 = scmp.eq.s32.totalorder %s25, 1
      %p148 = por %p146, %p147
      %p149 = scmp.ne.s32.totalorder %s140, %s141
      %p150 = scmp.eq.s32.totalorder %s25, 0
      %p151 = por %p149, %p150
      %p152 = scmp.ne.s32.totalorder %s140, %s141
      %p153 = scmp.eq.s32.totalorder %s26, 1
      %p154 = por %p152, %p153
      %p156 = scmp.ne.s32.totalorder %s141, %s155
      %p157 = scmp.eq.s32.totalorder %s26, 0
      %p158 = por %p156, %p157
      %s160 = sadd.s32 %s159, 1
      %p163 = scmp.eq.s32.totalorder %s20, 1
      %p164 = scmp.ne.s32.totalorder %s159, %s161
      %p165 = scmp.eq.s32.totalorder %s20, 0
      %p166 = por %p164, %p165
      %p167 = scmp.ne.s32.totalorder %s159, %s161
      %p168 = scmp.eq.s32.totalorder %s25, 1
      %p169 = por %p167, %p168
      %p170 = scmp.ne.s32.totalorder %s161, %s162
      %p171 = scmp.eq.s32.totalorder %s25, 0
      %p172 = por %p170, %p171
      %p173 = scmp.ne.s32.totalorder %s161, %s162
      %p174 = scmp.eq.s32.totalorder %s26, 1
      %p175 = por %p173, %p174
      %p177 = scmp.ne.s32.totalorder %s162, %s176
      %p178 = scmp.eq.s32.totalorder %s26, 0
      %p179 = por %p177, %p178
      %s180 = ssub.s32 %s20, %s27
      %p181 = scmp.eq.s32.totalorder %s180, 0
      %s183 = sadd.s32 %s182, 1
      %s184 = scalar_select %p181, %s182, %s183
      %p187 = pneg %p181
      %p188 = scmp.eq.s32.totalorder %s20, 1
      %p189 = por %p187, %p188
      %p190 = scmp.ne.s32.totalorder %s182, %s185
      %p191 = scmp.eq.s32.totalorder %s20, 0
      %p192 = por %p190, %p191
      %p193 = scmp.ne.s32.totalorder %s182, %s185
      %p194 = scmp.eq.s32.totalorder %s25, 1
      %p195 = por %p193, %p194
      %p196 = scmp.ne.s32.totalorder %s185, %s186
      %p197 = scmp.eq.s32.totalorder %s25, 0
      %p198 = por %p196, %p197
      %p199 = scmp.ne.s32.totalorder %s185, %s186
      %p200 = scmp.eq.s32.totalorder %s26, 1
      %p201 = por %p199, %p200
      %p203 = scmp.ne.s32.totalorder %s186, %s202
      %p204 = scmp.eq.s32.totalorder %s26, 0
      %p205 = por %p203, %p204
      %p206 = scmp.le.s32.totalorder 1, %s20
      %p207 = scmp.lt.s32.totalorder %s20, 3
      %p208 = pnand %p206, %p207
      %p209 = pneg %p208
      // Predicated region
      $region9: #{tpu_custom_call.1} parent=5 // pred_check
        _
      $region10: #{tpu_custom_call.1} parent=5 // pred_check_branch
        %211 = sbr.rel (%p208) target = $region12
      $region11: #{tpu_custom_call.1} parent=5 // pred_region
        %s212 = ssub.s32 %s20, 1
        // Predicated region
        $region13: #{tpu_custom_call.1} parent=11 // pred_check
          %p213 = pneg %p67
        $region14: #{tpu_custom_call.1} parent=11 // pred_check_branch
          %215 = sbr.rel (%p213) target = $region16
        $region15: #{tpu_custom_call.1} parent=11 // pred_region
          %217 = vsyncadd [#allocation8], 0
          %s218 = sshll.u32 %s1, 4
          %s219 = int_to_ptr.hbm [resolvable:$true] %s218
          %s220 = sshll.u32 [#allocation7], 4
          %s221 = int_to_ptr.vmem [resolvable:$true] %s220
          %226 = dma.hbm_to_vmem [thread:$0]  %s219, 9216, %s221, [#allocation8], 64, 64, 4
        $region16: #{tpu_custom_call.1} parent=11 // pred_fallthru
          _
        // Predicated region
        $region17: #{tpu_custom_call.1} parent=11 // pred_check
          %p227 = pneg %p88
        $region18: #{tpu_custom_call.1} parent=11 // pred_check_branch
          %229 = sbr.rel (%p227) target = $region20
        $region19: #{tpu_custom_call.1} parent=11 // pred_region
          _
        $region20: #{tpu_custom_call.1} parent=11 // pred_fallthru
          _
        // Predicated region
        $region21: #{tpu_custom_call.1} parent=11 // pred_check
          %p230 = pneg %p109
        $region22: #{tpu_custom_call.1} parent=11 // pred_check_branch
          %232 = sbr.rel (%p230) target = $region24
        $region23: #{tpu_custom_call.1} parent=11 // pred_region
          _
        $region24: #{tpu_custom_call.1} parent=11 // pred_fallthru
          _
        // Predicated region
        $region25: #{tpu_custom_call.1} parent=11 // pred_check
          %p233 = pneg %p130
        $region26: #{tpu_custom_call.1} parent=11 // pred_check_branch
          %235 = sbr.rel (%p233) target = $region28
        $region27: #{tpu_custom_call.1} parent=11 // pred_region
          %237 = vsyncadd [#allocation8], 0
          %s238 = sshll.u32 %s4, 4
          %s239 = int_to_ptr.hbm [resolvable:$true] %s238
          %s240 = sshll.u32 [#allocation9], 4
          %s241 = int_to_ptr.vmem [resolvable:$true] %s240
          %246 = dma.hbm_to_vmem [thread:$0]  %s239, 9216, %s241, [#allocation8], 64, 64, 4
        $region28: #{tpu_custom_call.1} parent=11 // pred_fallthru
          _
        // Predicated region
        $region29: #{tpu_custom_call.1} parent=11 // pred_check
          %p247 = pneg %p151
        $region30: #{tpu_custom_call.1} parent=11 // pred_check_branch
          %249 = sbr.rel (%p247) target = $region32
        $region31: #{tpu_custom_call.1} parent=11 // pred_region
          _
        $region32: #{tpu_custom_call.1} parent=11 // pred_fallthru
          _
        // Predicated region
        $region33: #{tpu_custom_call.1} parent=11 // pred_check
          %p250 = pneg %p172
        $region34: #{tpu_custom_call.1} parent=11 // pred_check_branch
          %252 = sbr.rel (%p250) target = $region36
        $region35: #{tpu_custom_call.1} parent=11 // pred_region
          _
        $region36: #{tpu_custom_call.1} parent=11 // pred_fallthru
          _
      $region12: #{tpu_custom_call.1} parent=5 // pred_fallthru
        _
      %p253 = scmp.lt.s32.totalorder %s20, 2
      // Predicated region
      $region37: #{tpu_custom_call.1} parent=5 // pred_check
        %p254 = pneg %p253
      $region38: #{tpu_custom_call.1} parent=5 // pred_check_branch
        %256 = sbr.rel (%p254) target = $region40
      $region39: #{tpu_custom_call.1} parent=5 // pred_region
        // Predicated region
        $region41: #{tpu_custom_call.1} parent=39 // pred_check
          %p257 = pneg %p40
        $region42: #{tpu_custom_call.1} parent=39 // pred_check_branch
          %259 = sbr.rel (%p257) target = $region44
        $region43: #{tpu_custom_call.1} parent=39 // pred_region
          %s260 = sand.u32 %s30, 1
          %s261 = scalar_lea.sflag [#allocation5], %s260
          %s262 = sand.u32 %s30, 1
          %s263 = smul.addr %s262, 256
          %s264 = scalar_lea.vmem [#allocation4], %s263
          %266 = vsyncadd %s261, 0
          %s267 = smul.addr %s20, 32
          %s268 = smul.addr %s267, 8
          %s269 = scalar_lea.hbm %s0, %s268
          %s270 = sshll.u32 %s269, 4
          %s271 = int_to_ptr.hbm [resolvable:$true] %s270
          %s272 = sshll.u32 %s264, 4
          %s273 = int_to_ptr.vmem [resolvable:$true] %s272
          %278 = dma.hbm_to_vmem [thread:$0]  %s271, 4096, %s273, %s261, 128, 128, 8
        $region44: #{tpu_custom_call.1} parent=39 // pred_fallthru
          _
      $region40: #{tpu_custom_call.1} parent=5 // pred_fallthru
        _
      %p279 = scmp.le.s32.totalorder 1, %s20
      %p280 = scmp.lt.s32.totalorder %s20, 3
      %p281 = pnand %p279, %p280
      %p282 = pneg %p281
      // Predicated region
      $region45: #{tpu_custom_call.1} parent=5 // pred_check
        _
      $region46: #{tpu_custom_call.1} parent=5 // pred_check_branch
        %284 = sbr.rel (%p281) target = $region48
      $region47: #{tpu_custom_call.1} parent=5 // pred_region
        %s285 = ssub.s32 %s20, 1
        %s286 = sand.u32 %s33, 1
        %s287 = scalar_lea.sflag [#allocation5], %s286
        %s288 = sand.u32 %s33, 1
        %s289 = smul.addr %s288, 256
        %s290 = scalar_lea.vmem [#allocation4], %s289
        // Predicated region
        $region49: #{tpu_custom_call.1} parent=47 // pred_check
          %p291 = pneg %p46
        $region50: #{tpu_custom_call.1} parent=47 // pred_check_branch
          %293 = sbr.rel (%p291) target = $region52
        $region51: #{tpu_custom_call.1} parent=47 // pred_region
          %295 = dma.done %s287, 4096
        $region52: #{tpu_custom_call.1} parent=47 // pred_fallthru
          _
        // Predicated region
        $region53: #{tpu_custom_call.1} parent=47 // pred_check
          %p296 = pneg %p67
        $region54: #{tpu_custom_call.1} parent=47 // pred_check_branch
          %298 = sbr.rel (%p296) target = $region56
        $region55: #{tpu_custom_call.1} parent=47 // pred_region
          %300 = dma.done [#allocation8], 9216
        $region56: #{tpu_custom_call.1} parent=47 // pred_fallthru
          _
        // Predicated region
        $region57: #{tpu_custom_call.1} parent=47 // pred_check
          %p301 = pneg %p130
        $region58: #{tpu_custom_call.1} parent=47 // pred_check_branch
          %303 = sbr.rel (%p301) target = $region60
        $region59: #{tpu_custom_call.1} parent=47 // pred_region
          %305 = dma.done [#allocation8], 9216
        $region60: #{tpu_custom_call.1} parent=47 // pred_fallthru
          _
        %s306 = sand.u32 %s33, 1
        %s307 = scalar_lea.sflag [#allocation5], %s306
        %s308 = sand.u32 %s33, 1
        %s309 = smul.addr %s308, 256
        %s310 = scalar_lea.vmem [#allocation4], %s309
        %p311 = pneg %p46
        %p312 = pneg %p43
        %p313 = pneg %p67
        %p314 = pneg %p64
        %p315 = pneg %p88
        %p316 = pneg %p85
        %p317 = pneg %p109
        %p318 = pneg %p106
        %p319 = pneg %p130
        %p320 = pneg %p127
        %p321 = pneg %p151
        %p322 = pneg %p148
        %p323 = pneg %p172
        %p324 = pneg %p169
        %p325 = pneg %p198
        %p326 = pneg %p195
        %s327 = sand.u32 %s185, 1
        %s328 = scalar_lea.sflag [#allocation6], %s327
        %s329 = sand.u32 %s185, 1
        %s330 = smul.addr %s329, 256
        %s331 = scalar_lea.vmem [#allocation10], %s330
        %333 = vst [vmem:[#allocation2] sm:$0xf] 0
        %334 = vst [vmem:[#allocation2 + $0x4] sm:$0xf] 0
        %335 = vst [vmem:[#allocation2 + $0x8] sm:$0x1] 0
        %s336 = scalar_lea.vmem [#allocation2], 204
        %337 = vst [vmem:[%s336] sm:$0xf] 0
        %338 = vst [vmem:[%s336 + $0x4] sm:$0xf] 0
        %339 = vst [vmem:[%s336 + $0x8] sm:$0x1] 0
        %vm340 = vcmask 1040384
        %vm341 = vsmask.f32 256
        %vm342 = vmand %vm340, %vm341
        %v343 = vld [vmem:[#allocation2] sm:$0x1]
        %v344 = vsel %vm342, 0, %v343
        %345 = vst [vmem:[#allocation2] sm:$0x1] %v344
        %v346 = vld [vmem:[#allocation2 + $0xc] sm:$0x1]
        %v347 = vsel %vm342, 0, %v346
        %348 = vst [vmem:[#allocation2 + $0xc] sm:$0x1] %v347
        %v349 = vld [vmem:[#allocation2 + $0x18] sm:$0x1]
        %v350 = vsel %vm342, 0, %v349
        %351 = vst [vmem:[#allocation2 + $0x18] sm:$0x1] %v350
        %v352 = vld [vmem:[#allocation2 + $0x24] sm:$0x1]
        %v353 = vsel %vm342, 0, %v352
        %354 = vst [vmem:[#allocation2 + $0x24] sm:$0x1] %v353
        %v355 = vld [vmem:[#allocation2 + $0x30] sm:$0x1]
        %v356 = vsel %vm342, 0, %v355
        %357 = vst [vmem:[#allocation2 + $0x30] sm:$0x1] %v356
        %v358 = vld [vmem:[#allocation2 + $0x3c] sm:$0x1]
        %v359 = vsel %vm342, 0, %v358
        %360 = vst [vmem:[#allocation2 + $0x3c] sm:$0x1] %v359
        %v361 = vld [vmem:[#allocation2 + $0x48] sm:$0x1]
        %v362 = vsel %vm342, 0, %v361
        %363 = vst [vmem:[#allocation2 + $0x48] sm:$0x1] %v362
        %v364 = vld [vmem:[#allocation2 + $0x54] sm:$0x1]
        %v365 = vsel %vm342, 0, %v364
        %366 = vst [vmem:[#allocation2 + $0x54] sm:$0x1] %v365
        %v367 = vld [vmem:[#allocation2 + $0x60] sm:$0x1]
        %v368 = vsel %vm342, 0, %v367
        %369 = vst [vmem:[#allocation2 + $0x60] sm:$0x1] %v368
        %v370 = vld [vmem:[#allocation2 + $0x6c] sm:$0x1]
        %v371 = vsel %vm342, 0, %v370
        %372 = vst [vmem:[#allocation2 + $0x6c] sm:$0x1] %v371
        %v373 = vld [vmem:[#allocation2 + $0x78] sm:$0x1]
        %v374 = vsel %vm342, 0, %v373
        %375 = vst [vmem:[#allocation2 + $0x78] sm:$0x1] %v374
        %v376 = vld [vmem:[#allocation2 + $0x84] sm:$0x1]
        %v377 = vsel %vm342, 0, %v376
        %378 = vst [vmem:[#allocation2 + $0x84] sm:$0x1] %v377
        %v379 = vld [vmem:[#allocation2 + $0x90] sm:$0x1]
        %v380 = vsel %vm342, 0, %v379
        %381 = vst [vmem:[#allocation2 + $0x90] sm:$0x1] %v380
        %v382 = vld [vmem:[#allocation2 + $0x9c] sm:$0x1]
        %v383 = vsel %vm342, 0, %v382
        %384 = vst [vmem:[#allocation2 + $0x9c] sm:$0x1] %v383
        %v385 = vld [vmem:[#allocation2 + $0xa8] sm:$0x1]
        %v386 = vsel %vm342, 0, %v385
        %387 = vst [vmem:[#allocation2 + $0xa8] sm:$0x1] %v386
        %v388 = vld [vmem:[#allocation2 + $0xb4] sm:$0x1]
        %v389 = vsel %vm342, 0, %v388
        %390 = vst [vmem:[#allocation2 + $0xb4] sm:$0x1] %v389
        %v391 = vld [vmem:[#allocation2 + $0xc0] sm:$0x1]
        %v392 = vsel %vm342, 0, %v391
        %393 = vst [vmem:[#allocation2 + $0xc0] sm:$0x1] %v392
        %v394 = vld [vmem:[#allocation2 + $0xcc] sm:$0x1]
        %v395 = vsel %vm342, 0, %v394
        %396 = vst [vmem:[#allocation2 + $0xcc] sm:$0x1] %v395
        %vm397 = vsmask.f32 7938
        %vm398 = vmand %vm340, %vm397
        %v399 = vld [vmem:[#allocation2 + $0x8] sm:$0x1]
        %v400 = vsel %vm398, 0, %v399
        %401 = vst [vmem:[#allocation2 + $0x8] sm:$0x1] %v400
        %v402 = vld [vmem:[#allocation2 + $0x14] sm:$0x1]
        %v403 = vsel %vm398, 0, %v402
        %404 = vst [vmem:[#allocation2 + $0x14] sm:$0x1] %v403
        %v405 = vld [vmem:[#allocation2 + $0x20] sm:$0x1]
        %v406 = vsel %vm398, 0, %v405
        %407 = vst [vmem:[#allocation2 + $0x20] sm:$0x1] %v406
        %v408 = vld [vmem:[#allocation2 + $0x2c] sm:$0x1]
        %v409 = vsel %vm398, 0, %v408
        %410 = vst [vmem:[#allocation2 + $0x2c] sm:$0x1] %v409
        %v411 = vld [vmem:[#allocation2 + $0x38] sm:$0x1]
        %v412 = vsel %vm398, 0, %v411
        %413 = vst [vmem:[#allocation2 + $0x38] sm:$0x1] %v412
        %v414 = vld [vmem:[#allocation2 + $0x44] sm:$0x1]
        %v415 = vsel %vm398, 0, %v414
        %416 = vst [vmem:[#allocation2 + $0x44] sm:$0x1] %v415
        %v417 = vld [vmem:[#allocation2 + $0x50] sm:$0x1]
        %v418 = vsel %vm398, 0, %v417
        %419 = vst [vmem:[#allocation2 + $0x50] sm:$0x1] %v418
        %v420 = vld [vmem:[#allocation2 + $0x5c] sm:$0x1]
        %v421 = vsel %vm398, 0, %v420
        %422 = vst [vmem:[#allocation2 + $0x5c] sm:$0x1] %v421
        %v423 = vld [vmem:[#allocation2 + $0x68] sm:$0x1]
        %v424 = vsel %vm398, 0, %v423
        %425 = vst [vmem:[#allocation2 + $0x68] sm:$0x1] %v424
        %v426 = vld [vmem:[#allocation2 + $0x74] sm:$0x1]
        %v427 = vsel %vm398, 0, %v426
        %428 = vst [vmem:[#allocation2 + $0x74] sm:$0x1] %v427
        %v429 = vld [vmem:[#allocation2 + $0x80] sm:$0x1]
        %v430 = vsel %vm398, 0, %v429
        %431 = vst [vmem:[#allocation2 + $0x80] sm:$0x1] %v430
        %v432 = vld [vmem:[#allocation2 + $0x8c] sm:$0x1]
        %v433 = vsel %vm398, 0, %v432
        %434 = vst [vmem:[#allocation2 + $0x8c] sm:$0x1] %v433
        %v435 = vld [vmem:[#allocation2 + $0x98] sm:$0x1]
        %v436 = vsel %vm398, 0, %v435
        %437 = vst [vmem:[#allocation2 + $0x98] sm:$0x1] %v436
        %v438 = vld [vmem:[#allocation2 + $0xa4] sm:$0x1]
        %v439 = vsel %vm398, 0, %v438
        %440 = vst [vmem:[#allocation2 + $0xa4] sm:$0x1] %v439
        %v441 = vld [vmem:[#allocation2 + $0xb0] sm:$0x1]
        %v442 = vsel %vm398, 0, %v441
        %443 = vst [vmem:[#allocation2 + $0xb0] sm:$0x1] %v442
        %v444 = vld [vmem:[#allocation2 + $0xbc] sm:$0x1]
        %v445 = vsel %vm398, 0, %v444
        %446 = vst [vmem:[#allocation2 + $0xbc] sm:$0x1] %v445
        %v447 = vld [vmem:[#allocation2 + $0xc8] sm:$0x1]
        %v448 = vsel %vm398, 0, %v447
        %449 = vst [vmem:[#allocation2 + $0xc8] sm:$0x1] %v448
        %v450 = vld [vmem:[#allocation2 + $0xd4] sm:$0x1]
        %v451 = vsel %vm398, 0, %v450
        %452 = vst [vmem:[#allocation2 + $0xd4] sm:$0x1] %v451
        %453 = vst [vmem:[#allocation3] sm:$0xf] 0
        %454 = vst [vmem:[#allocation3 + $0x4] sm:$0xf] 0
        %455 = vst [vmem:[#allocation3 + $0x8] sm:$0x1] 0
        %s456 = scalar_lea.vmem [#allocation3], 204
        %457 = vst [vmem:[%s456] sm:$0xf] 0
        %458 = vst [vmem:[%s456 + $0x4] sm:$0xf] 0
        %459 = vst [vmem:[%s456 + $0x8] sm:$0x1] 0
        %v460 = vld [vmem:[#allocation3] sm:$0x1]
        %v461 = vsel %vm342, 0, %v460
        %462 = vst [vmem:[#allocation3] sm:$0x1] %v461
        %v463 = vld [vmem:[#allocation3 + $0xc] sm:$0x1]
        %v464 = vsel %vm342, 0, %v463
        %465 = vst [vmem:[#allocation3 + $0xc] sm:$0x1] %v464
        %v466 = vld [vmem:[#allocation3 + $0x18] sm:$0x1]
        %v467 = vsel %vm342, 0, %v466
        %468 = vst [vmem:[#allocation3 + $0x18] sm:$0x1] %v467
        %v469 = vld [vmem:[#allocation3 + $0x24] sm:$0x1]
        %v470 = vsel %vm342, 0, %v469
        %471 = vst [vmem:[#allocation3 + $0x24] sm:$0x1] %v470
        %v472 = vld [vmem:[#allocation3 + $0x30] sm:$0x1]
        %v473 = vsel %vm342, 0, %v472
        %474 = vst [vmem:[#allocation3 + $0x30] sm:$0x1] %v473
        %v475 = vld [vmem:[#allocation3 + $0x3c] sm:$0x1]
        %v476 = vsel %vm342, 0, %v475
        %477 = vst [vmem:[#allocation3 + $0x3c] sm:$0x1] %v476
        %v478 = vld [vmem:[#allocation3 + $0x48] sm:$0x1]
        %v479 = vsel %vm342, 0, %v478
        %480 = vst [vmem:[#allocation3 + $0x48] sm:$0x1] %v479
        %v481 = vld [vmem:[#allocation3 + $0x54] sm:$0x1]
        %v482 = vsel %vm342, 0, %v481
        %483 = vst [vmem:[#allocation3 + $0x54] sm:$0x1] %v482
        %v484 = vld [vmem:[#allocation3 + $0x60] sm:$0x1]
        %v485 = vsel %vm342, 0, %v484
        %486 = vst [vmem:[#allocation3 + $0x60] sm:$0x1] %v485
        %v487 = vld [vmem:[#allocation3 + $0x6c] sm:$0x1]
        %v488 = vsel %vm342, 0, %v487
        %489 = vst [vmem:[#allocation3 + $0x6c] sm:$0x1] %v488
        %v490 = vld [vmem:[#allocation3 + $0x78] sm:$0x1]
        %v491 = vsel %vm342, 0, %v490
        %492 = vst [vmem:[#allocation3 + $0x78] sm:$0x1] %v491
        %v493 = vld [vmem:[#allocation3 + $0x84] sm:$0x1]
        %v494 = vsel %vm342, 0, %v493
        %495 = vst [vmem:[#allocation3 + $0x84] sm:$0x1] %v494
        %v496 = vld [vmem:[#allocation3 + $0x90] sm:$0x1]
        %v497 = vsel %vm342, 0, %v496
        %498 = vst [vmem:[#allocation3 + $0x90] sm:$0x1] %v497
        %v499 = vld [vmem:[#allocation3 + $0x9c] sm:$0x1]
        %v500 = vsel %vm342, 0, %v499
        %501 = vst [vmem:[#allocation3 + $0x9c] sm:$0x1] %v500
        %v502 = vld [vmem:[#allocation3 + $0xa8] sm:$0x1]
        %v503 = vsel %vm342, 0, %v502
        %504 = vst [vmem:[#allocation3 + $0xa8] sm:$0x1] %v503
        %v505 = vld [vmem:[#allocation3 + $0xb4] sm:$0x1]
        %v506 = vsel %vm342, 0, %v505
        %507 = vst [vmem:[#allocation3 + $0xb4] sm:$0x1] %v506
        %v508 = vld [vmem:[#allocation3 + $0xc0] sm:$0x1]
        %v509 = vsel %vm342, 0, %v508
        %510 = vst [vmem:[#allocation3 + $0xc0] sm:$0x1] %v509
        %v511 = vld [vmem:[#allocation3 + $0xcc] sm:$0x1]
        %v512 = vsel %vm342, 0, %v511
        %513 = vst [vmem:[#allocation3 + $0xcc] sm:$0x1] %v512
        %v514 = vld [vmem:[#allocation3 + $0x8] sm:$0x1]
        %v515 = vsel %vm398, 0, %v514
        %516 = vst [vmem:[#allocation3 + $0x8] sm:$0x1] %v515
        %v517 = vld [vmem:[#allocation3 + $0x14] sm:$0x1]
        %v518 = vsel %vm398, 0, %v517
        %519 = vst [vmem:[#allocation3 + $0x14] sm:$0x1] %v518
        %v520 = vld [vmem:[#allocation3 + $0x20] sm:$0x1]
        %v521 = vsel %vm398, 0, %v520
        %522 = vst [vmem:[#allocation3 + $0x20] sm:$0x1] %v521
        %v523 = vld [vmem:[#allocation3 + $0x2c] sm:$0x1]
        %v524 = vsel %vm398, 0, %v523
        %525 = vst [vmem:[#allocation3 + $0x2c] sm:$0x1] %v524
        %v526 = vld [vmem:[#allocation3 + $0x38] sm:$0x1]
        %v527 = vsel %vm398, 0, %v526
        %528 = vst [vmem:[#allocation3 + $0x38] sm:$0x1] %v527
        %v529 = vld [vmem:[#allocation3 + $0x44] sm:$0x1]
        %v530 = vsel %vm398, 0, %v529
        %531 = vst [vmem:[#allocation3 + $0x44] sm:$0x1] %v530
        %v532 = vld [vmem:[#allocation3 + $0x50] sm:$0x1]
        %v533 = vsel %vm398, 0, %v532
        %534 = vst [vmem:[#allocation3 + $0x50] sm:$0x1] %v533
        %v535 = vld [vmem:[#allocation3 + $0x5c] sm:$0x1]
        %v536 = vsel %vm398, 0, %v535
        %537 = vst [vmem:[#allocation3 + $0x5c] sm:$0x1] %v536
        %v538 = vld [vmem:[#allocation3 + $0x68] sm:$0x1]
        %v539 = vsel %vm398, 0, %v538
        %540 = vst [vmem:[#allocation3 + $0x68] sm:$0x1] %v539
        %v541 = vld [vmem:[#allocation3 + $0x74] sm:$0x1]
        %v542 = vsel %vm398, 0, %v541
        %543 = vst [vmem:[#allocation3 + $0x74] sm:$0x1] %v542
        %v544 = vld [vmem:[#allocation3 + $0x80] sm:$0x1]
        %v545 = vsel %vm398, 0, %v544
        %546 = vst [vmem:[#allocation3 + $0x80] sm:$0x1] %v545
        %v547 = vld [vmem:[#allocation3 + $0x8c] sm:$0x1]
        %v548 = vsel %vm398, 0, %v547
        %549 = vst [vmem:[#allocation3 + $0x8c] sm:$0x1] %v548
        %v550 = vld [vmem:[#allocation3 + $0x98] sm:$0x1]
        %v551 = vsel %vm398, 0, %v550
        %552 = vst [vmem:[#allocation3 + $0x98] sm:$0x1] %v551
        %v553 = vld [vmem:[#allocation3 + $0xa4] sm:$0x1]
        %v554 = vsel %vm398, 0, %v553
        %555 = vst [vmem:[#allocation3 + $0xa4] sm:$0x1] %v554
        %v556 = vld [vmem:[#allocation3 + $0xb0] sm:$0x1]
        %v557 = vsel %vm398, 0, %v556
        %558 = vst [vmem:[#allocation3 + $0xb0] sm:$0x1] %v557
        %v559 = vld [vmem:[#allocation3 + $0xbc] sm:$0x1]
        %v560 = vsel %vm398, 0, %v559
        %561 = vst [vmem:[#allocation3 + $0xbc] sm:$0x1] %v560
        %v562 = vld [vmem:[#allocation3 + $0xc8] sm:$0x1]
        %v563 = vsel %vm398, 0, %v562
        %564 = vst [vmem:[#allocation3 + $0xc8] sm:$0x1] %v563
        %v565 = vld [vmem:[#allocation3 + $0xd4] sm:$0x1]
        %v566 = vsel %vm398, 0, %v565
        %567 = vst [vmem:[#allocation3 + $0xd4] sm:$0x1] %v566
        %v568 = vld [vmem:[%s290] sm:$0xff]
        %v569 = vld [vmem:[%s290 + $0x8] sm:$0xff]
        %v570 = vld [vmem:[%s290 + $0x10] sm:$0xff]
        %v571 = vld [vmem:[%s290 + $0x18] sm:$0xff]
        %v572 = vld [vmem:[%s290 + $0x20] sm:$0xff]
        %v573 = vld [vmem:[%s290 + $0x28] sm:$0xff]
        %v574 = vld [vmem:[%s290 + $0x30] sm:$0xff]
        %v575 = vld [vmem:[%s290 + $0x38] sm:$0xff]
        %v576 = vld [vmem:[%s290 + $0x40] sm:$0xff]
        %v577 = vld [vmem:[%s290 + $0x48] sm:$0xff]
        %v578 = vld [vmem:[%s290 + $0x50] sm:$0xff]
        %v579 = vld [vmem:[%s290 + $0x58] sm:$0xff]
        %v580 = vld [vmem:[%s290 + $0x60] sm:$0xff]
        %v581 = vld [vmem:[%s290 + $0x68] sm:$0xff]
        %v582 = vld [vmem:[%s290 + $0x70] sm:$0xff]
        %v583 = vld [vmem:[%s290 + $0x78] sm:$0xff]
        %v584 = vld [vmem:[%s290 + $0x80] sm:$0xff]
        %v585 = vld [vmem:[%s290 + $0x88] sm:$0xff]
        %v586 = vld [vmem:[%s290 + $0x90] sm:$0xff]
        %v587 = vld [vmem:[%s290 + $0x98] sm:$0xff]
        %v588 = vld [vmem:[%s290 + $0xa0] sm:$0xff]
        %v589 = vld [vmem:[%s290 + $0xa8] sm:$0xff]
        %v590 = vld [vmem:[%s290 + $0xb0] sm:$0xff]
        %v591 = vld [vmem:[%s290 + $0xb8] sm:$0xff]
        %v592 = vld [vmem:[%s290 + $0xc0] sm:$0xff]
        %v593 = vld [vmem:[%s290 + $0xc8] sm:$0xff]
        %v594 = vld [vmem:[%s290 + $0xd0] sm:$0xff]
        %v595 = vld [vmem:[%s290 + $0xd8] sm:$0xff]
        %v596 = vld [vmem:[%s290 + $0xe0] sm:$0xff]
        %v597 = vld [vmem:[%s290 + $0xe8] sm:$0xff]
        %v598 = vld [vmem:[%s290 + $0xf0] sm:$0xff]
        %v599 = vld [vmem:[%s290 + $0xf8] sm:$0xff]
        %v600 = vpack.c.bf16 %v568, %v568
        %v601 = vpack.c.bf16 %v569, %v569
        %v602 = vpack.c.bf16 %v570, %v570
        %v603 = vpack.c.bf16 %v571, %v571
        %v604 = vpack.c.bf16 %v572, %v572
        %v605 = vpack.c.bf16 %v573, %v573
        %v606 = vpack.c.bf16 %v574, %v574
        %v607 = vpack.c.bf16 %v575, %v575
        %v608 = vpack.c.bf16 %v576, %v576
        %v609 = vpack.c.bf16 %v577, %v577
        %v610 = vpack.c.bf16 %v578, %v578
        %v611 = vpack.c.bf16 %v579, %v579
        %v612 = vpack.c.bf16 %v580, %v580
        %v613 = vpack.c.bf16 %v581, %v581
        %v614 = vpack.c.bf16 %v582, %v582
        %v615 = vpack.c.bf16 %v583, %v583
        %v616 = vpack.c.bf16 %v584, %v584
        %v617 = vpack.c.bf16 %v585, %v585
        %v618 = vpack.c.bf16 %v586, %v586
        %v619 = vpack.c.bf16 %v587, %v587
        %v620 = vpack.c.bf16 %v588, %v588
        %v621 = vpack.c.bf16 %v589, %v589
        %v622 = vpack.c.bf16 %v590, %v590
        %v623 = vpack.c.bf16 %v591, %v591
        %v624 = vpack.c.bf16 %v592, %v592
        %v625 = vpack.c.bf16 %v593, %v593
        %v626 = vpack.c.bf16 %v594, %v594
        %v627 = vpack.c.bf16 %v595, %v595
        %v628 = vpack.c.bf16 %v596, %v596
        %v629 = vpack.c.bf16 %v597, %v597
        %v630 = vpack.c.bf16 %v598, %v598
        %v631 = vpack.c.bf16 %v599, %v599
        %vm632 = vsmask.f32 4368
        %vm633 = vmor %vm341, %vm632
        %v635 = vshrl.u32 %v600, 16
        %v637 = vrot.slane %v635, 7
        %v638 = vshll.u32 %v600, 16
        %v640 = vor.u32 %v637, %v638
        %v641 = vrot.slane %v637, 4
        %v643 = vshrl.u32 %v601, 16
        %v645 = vrot.slane %v643, 7
        %v646 = vshll.u32 %v601, 16
        %v648 = vor.u32 %v645, %v646
        %v649 = vsel %vm633, %v641, %v648
        %v650 = vrot.slane %v645, 4
        %v652 = vshrl.u32 %v602, 16
        %v654 = vrot.slane %v652, 7
        %v655 = vshll.u32 %v602, 16
        %v657 = vor.u32 %v654, %v655
        %v658 = vrot.slane %v654, 4
        %v660 = vshrl.u32 %v603, 16
        %v662 = vrot.slane %v660, 7
        %v663 = vshll.u32 %v603, 16
        %v665 = vor.u32 %v662, %v663
        %v666 = vsel %vm633, %v658, %v665
        %v667 = vrot.slane %v662, 4
        %v669 = vshrl.u32 %v604, 16
        %v671 = vrot.slane %v669, 7
        %v672 = vshll.u32 %v604, 16
        %v674 = vor.u32 %v671, %v672
        %v675 = vrot.slane %v671, 4
        %v677 = vshrl.u32 %v605, 16
        %v679 = vrot.slane %v677, 7
        %v680 = vshll.u32 %v605, 16
        %v682 = vor.u32 %v679, %v680
        %v683 = vsel %vm633, %v675, %v682
        %v684 = vrot.slane %v679, 4
        %v686 = vshrl.u32 %v606, 16
        %v688 = vrot.slane %v686, 7
        %v689 = vshll.u32 %v606, 16
        %v691 = vor.u32 %v688, %v689
        %v692 = vrot.slane %v688, 4
        %v694 = vshrl.u32 %v607, 16
        %v696 = vrot.slane %v694, 7
        %v697 = vshll.u32 %v607, 16
        %v699 = vor.u32 %v696, %v697
        %v700 = vsel %vm633, %v692, %v699
        %v701 = vrot.slane %v696, 4
        %v703 = vshrl.u32 %v608, 16
        %v705 = vrot.slane %v703, 7
        %v706 = vshll.u32 %v608, 16
        %v708 = vor.u32 %v705, %v706
        %v709 = vrot.slane %v705, 4
        %v711 = vshrl.u32 %v609, 16
        %v713 = vrot.slane %v711, 7
        %v714 = vshll.u32 %v609, 16
        %v716 = vor.u32 %v713, %v714
        %v717 = vsel %vm633, %v709, %v716
        %v718 = vrot.slane %v713, 4
        %v720 = vshrl.u32 %v610, 16
        %v722 = vrot.slane %v720, 7
        %v723 = vshll.u32 %v610, 16
        %v725 = vor.u32 %v722, %v723
        %v726 = vrot.slane %v722, 4
        %v728 = vshrl.u32 %v611, 16
        %v730 = vrot.slane %v728, 7
        %v731 = vshll.u32 %v611, 16
        %v733 = vor.u32 %v730, %v731
        %v734 = vsel %vm633, %v726, %v733
        %v735 = vrot.slane %v730, 4
        %v737 = vshrl.u32 %v612, 16
        %v739 = vrot.slane %v737, 7
        %v740 = vshll.u32 %v612, 16
        %v742 = vor.u32 %v739, %v740
        %v743 = vrot.slane %v739, 4
        %v745 = vshrl.u32 %v613, 16
        %v747 = vrot.slane %v745, 7
        %v748 = vshll.u32 %v613, 16
        %v750 = vor.u32 %v747, %v748
        %v751 = vsel %vm633, %v743, %v750
        %v752 = vrot.slane %v747, 4
        %v754 = vshrl.u32 %v614, 16
        %v756 = vrot.slane %v754, 7
        %v757 = vshll.u32 %v614, 16
        %v759 = vor.u32 %v756, %v757
        %v760 = vrot.slane %v756, 4
        %v762 = vshrl.u32 %v615, 16
        %v764 = vrot.slane %v762, 7
        %v765 = vshll.u32 %v615, 16
        %v767 = vor.u32 %v764, %v765
        %v768 = vsel %vm633, %v760, %v767
        %v769 = vrot.slane %v764, 4
        %v771 = vshrl.u32 %v616, 16
        %v773 = vrot.slane %v771, 7
        %v774 = vshll.u32 %v616, 16
        %v776 = vor.u32 %v773, %v774
        %v777 = vrot.slane %v773, 4
        %v779 = vshrl.u32 %v617, 16
        %v781 = vrot.slane %v779, 7
        %v782 = vshll.u32 %v617, 16
        %v784 = vor.u32 %v781, %v782
        %v785 = vsel %vm633, %v777, %v784
        %v786 = vrot.slane %v781, 4
        %v788 = vshrl.u32 %v618, 16
        %v790 = vrot.slane %v788, 7
        %v791 = vshll.u32 %v618, 16
        %v793 = vor.u32 %v790, %v791
        %v794 = vrot.slane %v790, 4
        %v796 = vshrl.u32 %v619, 16
        %v798 = vrot.slane %v796, 7
        %v799 = vshll.u32 %v619, 16
        %v801 = vor.u32 %v798, %v799
        %v802 = vsel %vm633, %v794, %v801
        %v803 = vrot.slane %v798, 4
        %v805 = vshrl.u32 %v620, 16
        %v807 = vrot.slane %v805, 7
        %v808 = vshll.u32 %v620, 16
        %v810 = vor.u32 %v807, %v808
        %v811 = vrot.slane %v807, 4
        %v813 = vshrl.u32 %v621, 16
        %v815 = vrot.slane %v813, 7
        %v816 = vshll.u32 %v621, 16
        %v818 = vor.u32 %v815, %v816
        %v819 = vsel %vm633, %v811, %v818
        %v820 = vrot.slane %v815, 4
        %v822 = vshrl.u32 %v622, 16
        %v824 = vrot.slane %v822, 7
        %v825 = vshll.u32 %v622, 16
        %v827 = vor.u32 %v824, %v825
        %v828 = vrot.slane %v824, 4
        %v830 = vshrl.u32 %v623, 16
        %v832 = vrot.slane %v830, 7
        %v833 = vshll.u32 %v623, 16
        %v835 = vor.u32 %v832, %v833
        %v836 = vsel %vm633, %v828, %v835
        %v837 = vrot.slane %v832, 4
        %v839 = vshrl.u32 %v624, 16
        %v841 = vrot.slane %v839, 7
        %v842 = vshll.u32 %v624, 16
        %v844 = vor.u32 %v841, %v842
        %v845 = vrot.slane %v841, 4
        %v847 = vshrl.u32 %v625, 16
        %v849 = vrot.slane %v847, 7
        %v850 = vshll.u32 %v625, 16
        %v852 = vor.u32 %v849, %v850
        %v853 = vsel %vm633, %v845, %v852
        %v854 = vrot.slane %v849, 4
        %v856 = vshrl.u32 %v626, 16
        %v858 = vrot.slane %v856, 7
        %v859 = vshll.u32 %v626, 16
        %v861 = vor.u32 %v858, %v859
        %v862 = vrot.slane %v858, 4
        %v864 = vshrl.u32 %v627, 16
        %v866 = vrot.slane %v864, 7
        %v867 = vshll.u32 %v627, 16
        %v869 = vor.u32 %v866, %v867
        %v870 = vsel %vm633, %v862, %v869
        %v871 = vrot.slane %v866, 4
        %v873 = vshrl.u32 %v628, 16
        %v875 = vrot.slane %v873, 7
        %v876 = vshll.u32 %v628, 16
        %v878 = vor.u32 %v875, %v876
        %v879 = vrot.slane %v875, 4
        %v881 = vshrl.u32 %v629, 16
        %v883 = vrot.slane %v881, 7
        %v884 = vshll.u32 %v629, 16
        %v886 = vor.u32 %v883, %v884
        %v887 = vsel %vm633, %v879, %v886
        %v888 = vrot.slane %v883, 4
        %v890 = vshrl.u32 %v630, 16
        %v892 = vrot.slane %v890, 7
        %v893 = vshll.u32 %v630, 16
        %v895 = vor.u32 %v892, %v893
        %v896 = vrot.slane %v892, 4
        %v898 = vshrl.u32 %v631, 16
        %v900 = vrot.slane %v898, 7
        %v901 = vshll.u32 %v631, 16
        %v903 = vor.u32 %v900, %v901
        %v904 = vsel %vm633, %v896, %v903
        %v905 = vrot.slane %v900, 4
        %s954 = scalar_lea.vmem [#allocation2], 12
        %vm955 = vcmask 1043456
        %vm956 = vmand %vm955, %vm397
        %v957 = vld [vmem:[%s954] sm:$0xf]
        %v958 = vsel %vm956, %v640, %v957
        %959 = vst [vmem:[%s954] sm:$0xf] %v958
        %960 = vst [vmem:[%s954 + $0x4] sm:$0xf] %v649
        %v961 = vld [vmem:[%s954 + $0x8] sm:$0x1]
        %v962 = vsel %vm342, %v650, %v961
        %963 = vst [vmem:[%s954 + $0x8] sm:$0x1] %v962
        %v964 = vld [vmem:[%s954 + $0xc] sm:$0xf]
        %v965 = vsel %vm956, %v657, %v964
        %966 = vst [vmem:[%s954 + $0xc] sm:$0xf] %v965
        %967 = vst [vmem:[%s954 + $0x10] sm:$0xf] %v666
        %v968 = vld [vmem:[%s954 + $0x14] sm:$0x1]
        %v969 = vsel %vm342, %v667, %v968
        %970 = vst [vmem:[%s954 + $0x14] sm:$0x1] %v969
        %v971 = vld [vmem:[%s954 + $0x18] sm:$0xf]
        %v972 = vsel %vm956, %v674, %v971
        %973 = vst [vmem:[%s954 + $0x18] sm:$0xf] %v972
        %974 = vst [vmem:[%s954 + $0x1c] sm:$0xf] %v683
        %v975 = vld [vmem:[%s954 + $0x20] sm:$0x1]
        %v976 = vsel %vm342, %v684, %v975
        %977 = vst [vmem:[%s954 + $0x20] sm:$0x1] %v976
        %v978 = vld [vmem:[%s954 + $0x24] sm:$0xf]
        %v979 = vsel %vm956, %v691, %v978
        %980 = vst [vmem:[%s954 + $0x24] sm:$0xf] %v979
        %981 = vst [vmem:[%s954 + $0x28] sm:$0xf] %v700
        %v982 = vld [vmem:[%s954 + $0x2c] sm:$0x1]
        %v983 = vsel %vm342, %v701, %v982
        %984 = vst [vmem:[%s954 + $0x2c] sm:$0x1] %v983
        %v985 = vld [vmem:[%s954 + $0x30] sm:$0xf]
        %v986 = vsel %vm956, %v708, %v985
        %987 = vst [vmem:[%s954 + $0x30] sm:$0xf] %v986
        %988 = vst [vmem:[%s954 + $0x34] sm:$0xf] %v717
        %v989 = vld [vmem:[%s954 + $0x38] sm:$0x1]
        %v990 = vsel %vm342, %v718, %v989
        %991 = vst [vmem:[%s954 + $0x38] sm:$0x1] %v990
        %v992 = vld [vmem:[%s954 + $0x3c] sm:$0xf]
        %v993 = vsel %vm956, %v725, %v992
        %994 = vst [vmem:[%s954 + $0x3c] sm:$0xf] %v993
        %995 = vst [vmem:[%s954 + $0x40] sm:$0xf] %v734
        %v996 = vld [vmem:[%s954 + $0x44] sm:$0x1]
        %v997 = vsel %vm342, %v735, %v996
        %998 = vst [vmem:[%s954 + $0x44] sm:$0x1] %v997
        %v999 = vld [vmem:[%s954 + $0x48] sm:$0xf]
        %v1000 = vsel %vm956, %v742, %v999
        %1001 = vst [vmem:[%s954 + $0x48] sm:$0xf] %v1000
        %1002 = vst [vmem:[%s954 + $0x4c] sm:$0xf] %v751
        %v1003 = vld [vmem:[%s954 + $0x50] sm:$0x1]
        %v1004 = vsel %vm342, %v752, %v1003
        %1005 = vst [vmem:[%s954 + $0x50] sm:$0x1] %v1004
        %v1006 = vld [vmem:[%s954 + $0x54] sm:$0xf]
        %v1007 = vsel %vm956, %v759, %v1006
        %1008 = vst [vmem:[%s954 + $0x54] sm:$0xf] %v1007
        %1009 = vst [vmem:[%s954 + $0x58] sm:$0xf] %v768
        %v1010 = vld [vmem:[%s954 + $0x5c] sm:$0x1]
        %v1011 = vsel %vm342, %v769, %v1010
        %1012 = vst [vmem:[%s954 + $0x5c] sm:$0x1] %v1011
        %v1013 = vld [vmem:[%s954 + $0x60] sm:$0xf]
        %v1014 = vsel %vm956, %v776, %v1013
        %1015 = vst [vmem:[%s954 + $0x60] sm:$0xf] %v1014
        %1016 = vst [vmem:[%s954 + $0x64] sm:$0xf] %v785
        %v1017 = vld [vmem:[%s954 + $0x68] sm:$0x1]
        %v1018 = vsel %vm342, %v786, %v1017
        %1019 = vst [vmem:[%s954 + $0x68] sm:$0x1] %v1018
        %v1020 = vld [vmem:[%s954 + $0x6c] sm:$0xf]
        %v1021 = vsel %vm956, %v793, %v1020
        %1022 = vst [vmem:[%s954 + $0x6c] sm:$0xf] %v1021
        %1023 = vst [vmem:[%s954 + $0x70] sm:$0xf] %v802
        %v1024 = vld [vmem:[%s954 + $0x74] sm:$0x1]
        %v1025 = vsel %vm342, %v803, %v1024
        %1026 = vst [vmem:[%s954 + $0x74] sm:$0x1] %v1025
        %v1027 = vld [vmem:[%s954 + $0x78] sm:$0xf]
        %v1028 = vsel %vm956, %v810, %v1027
        %1029 = vst [vmem:[%s954 + $0x78] sm:$0xf] %v1028
        %1030 = vst [vmem:[%s954 + $0x7c] sm:$0xf] %v819
        %v1031 = vld [vmem:[%s954 + $0x80] sm:$0x1]
        %v1032 = vsel %vm342, %v820, %v1031
        %1033 = vst [vmem:[%s954 + $0x80] sm:$0x1] %v1032
        %v1034 = vld [vmem:[%s954 + $0x84] sm:$0xf]
        %v1035 = vsel %vm956, %v827, %v1034
        %1036 = vst [vmem:[%s954 + $0x84] sm:$0xf] %v1035
        %1037 = vst [vmem:[%s954 + $0x88] sm:$0xf] %v836
        %v1038 = vld [vmem:[%s954 + $0x8c] sm:$0x1]
        %v1039 = vsel %vm342, %v837, %v1038
        %1040 = vst [vmem:[%s954 + $0x8c] sm:$0x1] %v1039
        %v1041 = vld [vmem:[%s954 + $0x90] sm:$0xf]
        %v1042 = vsel %vm956, %v844, %v1041
        %1043 = vst [vmem:[%s954 + $0x90] sm:$0xf] %v1042
        %1044 = vst [vmem:[%s954 + $0x94] sm:$0xf] %v853
        %v1045 = vld [vmem:[%s954 + $0x98] sm:$0x1]
        %v1046 = vsel %vm342, %v854, %v1045
        %1047 = vst [vmem:[%s954 + $0x98] sm:$0x1] %v1046
        %v1048 = vld [vmem:[%s954 + $0x9c] sm:$0xf]
        %v1049 = vsel %vm956, %v861, %v1048
        %1050 = vst [vmem:[%s954 + $0x9c] sm:$0xf] %v1049
        %1051 = vst [vmem:[%s954 + $0xa0] sm:$0xf] %v870
        %v1052 = vld [vmem:[%s954 + $0xa4] sm:$0x1]
        %v1053 = vsel %vm342, %v871, %v1052
        %1054 = vst [vmem:[%s954 + $0xa4] sm:$0x1] %v1053
        %v1055 = vld [vmem:[%s954 + $0xa8] sm:$0xf]
        %v1056 = vsel %vm956, %v878, %v1055
        %1057 = vst [vmem:[%s954 + $0xa8] sm:$0xf] %v1056
        %1058 = vst [vmem:[%s954 + $0xac] sm:$0xf] %v887
        %v1059 = vld [vmem:[%s954 + $0xb0] sm:$0x1]
        %v1060 = vsel %vm342, %v888, %v1059
        %1061 = vst [vmem:[%s954 + $0xb0] sm:$0x1] %v1060
        %v1062 = vld [vmem:[%s954 + $0xb4] sm:$0xf]
        %v1063 = vsel %vm956, %v895, %v1062
        %1064 = vst [vmem:[%s954 + $0xb4] sm:$0xf] %v1063
        %1065 = vst [vmem:[%s954 + $0xb8] sm:$0xf] %v904
        %v1066 = vld [vmem:[%s954 + $0xbc] sm:$0x1]
        %v1067 = vsel %vm342, %v905, %v1066
        %1068 = vst [vmem:[%s954 + $0xbc] sm:$0x1] %v1067
        %v1069 = vld [vmem:[#allocation2] sm:$0xf]
        %v1070 = vld [vmem:[#allocation2 + $0x4] sm:$0xf]
        %v1071 = vld [vmem:[#allocation2 + $0xc] sm:$0xf]
        %v1072 = vld [vmem:[#allocation2 + $0x10] sm:$0xf]
        %v1073 = vld [vmem:[#allocation2 + $0x18] sm:$0xf]
        %v1074 = vld [vmem:[#allocation2 + $0x1c] sm:$0xf]
        %v1075 = vld [vmem:[#allocation2 + $0x24] sm:$0xf]
        %v1076 = vld [vmem:[#allocation2 + $0x28] sm:$0xf]
        %v1077 = vld [vmem:[#allocation2 + $0x30] sm:$0xf]
        %v1078 = vld [vmem:[#allocation2 + $0x34] sm:$0xf]
        %v1079 = vld [vmem:[#allocation2 + $0x3c] sm:$0xf]
        %v1080 = vld [vmem:[#allocation2 + $0x40] sm:$0xf]
        %v1081 = vld [vmem:[#allocation2 + $0x48] sm:$0xf]
        %v1082 = vld [vmem:[#allocation2 + $0x4c] sm:$0xf]
        %v1083 = vld [vmem:[#allocation2 + $0x54] sm:$0xf]
        %v1084 = vld [vmem:[#allocation2 + $0x58] sm:$0xf]
        %v1085 = vld [vmem:[#allocation2 + $0x60] sm:$0xf]
        %v1086 = vld [vmem:[#allocation2 + $0x64] sm:$0xf]
        %v1087 = vld [vmem:[#allocation2 + $0x6c] sm:$0xf]
        %v1088 = vld [vmem:[#allocation2 + $0x70] sm:$0xf]
        %v1089 = vld [vmem:[#allocation2 + $0x78] sm:$0xf]
        %v1090 = vld [vmem:[#allocation2 + $0x7c] sm:$0xf]
        %v1091 = vld [vmem:[#allocation2 + $0x84] sm:$0xf]
        %v1092 = vld [vmem:[#allocation2 + $0x88] sm:$0xf]
        %v1093 = vld [vmem:[#allocation2 + $0x90] sm:$0xf]
        %v1094 = vld [vmem:[#allocation2 + $0x94] sm:$0xf]
        %v1095 = vld [vmem:[#allocation2 + $0x9c] sm:$0xf]
        %v1096 = vld [vmem:[#allocation2 + $0xa0] sm:$0xf]
        %v1097 = vld [vmem:[#allocation2 + $0xa8] sm:$0xf]
        %v1098 = vld [vmem:[#allocation2 + $0xac] sm:$0xf]
        %v1099 = vld [vmem:[#allocation2 + $0xb4] sm:$0xf]
        %v1100 = vld [vmem:[#allocation2 + $0xb8] sm:$0xf]
        %v1101 = vld [vmem:[#allocation7] sm:$0xf]
        %v1102 = vld [vmem:[#allocation7 + $0x4] sm:$0xf]
        %v1103 = vld [vmem:[#allocation7 + $0x8] sm:$0xf]
        %v1104 = vld [vmem:[#allocation7 + $0xc] sm:$0xf]
        %v1105 = vld [vmem:[#allocation7 + $0x10] sm:$0xf]
        %v1106 = vld [vmem:[#allocation7 + $0x14] sm:$0xf]
        %v1107 = vld [vmem:[#allocation7 + $0x18] sm:$0xf]
        %v1108 = vld [vmem:[#allocation7 + $0x1c] sm:$0xf]
        %v1109 = vld [vmem:[#allocation7 + $0x20] sm:$0xf]
        %v1110 = vld [vmem:[#allocation7 + $0x24] sm:$0xf]
        %v1111 = vld [vmem:[#allocation7 + $0x28] sm:$0xf]
        %v1112 = vld [vmem:[#allocation7 + $0x2c] sm:$0xf]
        %v1113 = vld [vmem:[#allocation7 + $0x30] sm:$0xf]
        %v1114 = vld [vmem:[#allocation7 + $0x34] sm:$0xf]
        %v1115 = vld [vmem:[#allocation7 + $0x38] sm:$0xf]
        %v1116 = vld [vmem:[#allocation7 + $0x3c] sm:$0xf]
        %v1117 = vld [vmem:[#allocation2 + $0x8] sm:$0x1]
        %v1118 = vld [vmem:[#allocation2 + $0x14] sm:$0x1]
        %v1119 = vld [vmem:[#allocation2 + $0x20] sm:$0x1]
        %v1120 = vld [vmem:[#allocation2 + $0x2c] sm:$0x1]
        %v1121 = vld [vmem:[#allocation2 + $0x38] sm:$0x1]
        %v1122 = vld [vmem:[#allocation2 + $0x44] sm:$0x1]
        %v1123 = vld [vmem:[#allocation2 + $0x50] sm:$0x1]
        %v1124 = vld [vmem:[#allocation2 + $0x5c] sm:$0x1]
        %v1125 = vld [vmem:[#allocation2 + $0x68] sm:$0x1]
        %v1126 = vld [vmem:[#allocation2 + $0x74] sm:$0x1]
        %v1127 = vld [vmem:[#allocation2 + $0x80] sm:$0x1]
        %v1128 = vld [vmem:[#allocation2 + $0x8c] sm:$0x1]
        %v1129 = vld [vmem:[#allocation2 + $0x98] sm:$0x1]
        %v1130 = vld [vmem:[#allocation2 + $0xa4] sm:$0x1]
        %v1131 = vld [vmem:[#allocation2 + $0xb0] sm:$0x1]
        %v1132 = vld [vmem:[#allocation2 + $0xbc] sm:$0x1]
        %vm1133 = vsmask.f32 3328
        %vm1134 = vsmask.f32 7440
        %vm1135 = vmor %vm1133, %vm1134
        %v1137 = vshrl.u32 %v1069, 16
        %v1139 = vrot.slane %v1137, 4
        %v1140 = vshll.u32 %v1069, 16
        %v1142 = vrot.slane %v1140, 5
        %v1143 = vor.u32 %v1139, %v1142
        %v1144 = vrot.slane %v1143, 4
        %v1146 = vshll.u32 %v1070, 16
        %v1148 = vrot.slane %v1146, 5
        %v1149 = vsel %vm1135, %v1144, %v1148
        %v1150 = vshrl.u32 %v1070, 16
        %v1152 = vrot.slane %v1150, 4
        %v1153 = vor.u32 %v1152, %v1148
        %v1154 = vrot.slane %v1153, 4
        %v1156 = vshll.u32 %v1117, 16
        %v1158 = vrot.slane %v1156, 5
        %v1159 = vsel %vm1135, %v1154, %v1158
        %v1161 = vshrl.u32 %v1071, 16
        %v1163 = vrot.slane %v1161, 4
        %v1164 = vshll.u32 %v1071, 16
        %v1166 = vrot.slane %v1164, 5
        %v1167 = vor.u32 %v1163, %v1166
        %v1168 = vrot.slane %v1167, 4
        %v1170 = vshll.u32 %v1072, 16
        %v1172 = vrot.slane %v1170, 5
        %v1173 = vsel %vm1135, %v1168, %v1172
        %v1174 = vshrl.u32 %v1072, 16
        %v1176 = vrot.slane %v1174, 4
        %v1177 = vor.u32 %v1176, %v1172
        %v1178 = vrot.slane %v1177, 4
        %v1180 = vshll.u32 %v1118, 16
        %v1182 = vrot.slane %v1180, 5
        %v1183 = vsel %vm1135, %v1178, %v1182
        %v1185 = vshrl.u32 %v1073, 16
        %v1187 = vrot.slane %v1185, 4
        %v1188 = vshll.u32 %v1073, 16
        %v1190 = vrot.slane %v1188, 5
        %v1191 = vor.u32 %v1187, %v1190
        %v1192 = vrot.slane %v1191, 4
        %v1194 = vshll.u32 %v1074, 16
        %v1196 = vrot.slane %v1194, 5
        %v1197 = vsel %vm1135, %v1192, %v1196
        %v1198 = vshrl.u32 %v1074, 16
        %v1200 = vrot.slane %v1198, 4
        %v1201 = vor.u32 %v1200, %v1196
        %v1202 = vrot.slane %v1201, 4
        %v1204 = vshll.u32 %v1119, 16
        %v1206 = vrot.slane %v1204, 5
        %v1207 = vsel %vm1135, %v1202, %v1206
        %v1209 = vshrl.u32 %v1075, 16
        %v1211 = vrot.slane %v1209, 4
        %v1212 = vshll.u32 %v1075, 16
        %v1214 = vrot.slane %v1212, 5
        %v1215 = vor.u32 %v1211, %v1214
        %v1216 = vrot.slane %v1215, 4
        %v1218 = vshll.u32 %v1076, 16
        %v1220 = vrot.slane %v1218, 5
        %v1221 = vsel %vm1135, %v1216, %v1220
        %v1222 = vshrl.u32 %v1076, 16
        %v1224 = vrot.slane %v1222, 4
        %v1225 = vor.u32 %v1224, %v1220
        %v1226 = vrot.slane %v1225, 4
        %v1228 = vshll.u32 %v1120, 16
        %v1230 = vrot.slane %v1228, 5
        %v1231 = vsel %vm1135, %v1226, %v1230
        %v1233 = vshrl.u32 %v1077, 16
        %v1235 = vrot.slane %v1233, 4
        %v1236 = vshll.u32 %v1077, 16
        %v1238 = vrot.slane %v1236, 5
        %v1239 = vor.u32 %v1235, %v1238
        %v1240 = vrot.slane %v1239, 4
        %v1242 = vshll.u32 %v1078, 16
        %v1244 = vrot.slane %v1242, 5
        %v1245 = vsel %vm1135, %v1240, %v1244
        %v1246 = vshrl.u32 %v1078, 16
        %v1248 = vrot.slane %v1246, 4
        %v1249 = vor.u32 %v1248, %v1244
        %v1250 = vrot.slane %v1249, 4
        %v1252 = vshll.u32 %v1121, 16
        %v1254 = vrot.slane %v1252, 5
        %v1255 = vsel %vm1135, %v1250, %v1254
        %v1257 = vshrl.u32 %v1079, 16
        %v1259 = vrot.slane %v1257, 4
        %v1260 = vshll.u32 %v1079, 16
        %v1262 = vrot.slane %v1260, 5
        %v1263 = vor.u32 %v1259, %v1262
        %v1264 = vrot.slane %v1263, 4
        %v1266 = vshll.u32 %v1080, 16
        %v1268 = vrot.slane %v1266, 5
        %v1269 = vsel %vm1135, %v1264, %v1268
        %v1270 = vshrl.u32 %v1080, 16
        %v1272 = vrot.slane %v1270, 4
        %v1273 = vor.u32 %v1272, %v1268
        %v1274 = vrot.slane %v1273, 4
        %v1276 = vshll.u32 %v1122, 16
        %v1278 = vrot.slane %v1276, 5
        %v1279 = vsel %vm1135, %v1274, %v1278
        %v1281 = vshrl.u32 %v1081, 16
        %v1283 = vrot.slane %v1281, 4
        %v1284 = vshll.u32 %v1081, 16
        %v1286 = vrot.slane %v1284, 5
        %v1287 = vor.u32 %v1283, %v1286
        %v1288 = vrot.slane %v1287, 4
        %v1290 = vshll.u32 %v1082, 16
        %v1292 = vrot.slane %v1290, 5
        %v1293 = vsel %vm1135, %v1288, %v1292
        %v1294 = vshrl.u32 %v1082, 16
        %v1296 = vrot.slane %v1294, 4
        %v1297 = vor.u32 %v1296, %v1292
        %v1298 = vrot.slane %v1297, 4
        %v1300 = vshll.u32 %v1123, 16
        %v1302 = vrot.slane %v1300, 5
        %v1303 = vsel %vm1135, %v1298, %v1302
        %v1305 = vshrl.u32 %v1083, 16
        %v1307 = vrot.slane %v1305, 4
        %v1308 = vshll.u32 %v1083, 16
        %v1310 = vrot.slane %v1308, 5
        %v1311 = vor.u32 %v1307, %v1310
        %v1312 = vrot.slane %v1311, 4
        %v1314 = vshll.u32 %v1084, 16
        %v1316 = vrot.slane %v1314, 5
        %v1317 = vsel %vm1135, %v1312, %v1316
        %v1318 = vshrl.u32 %v1084, 16
        %v1320 = vrot.slane %v1318, 4
        %v1321 = vor.u32 %v1320, %v1316
        %v1322 = vrot.slane %v1321, 4
        %v1324 = vshll.u32 %v1124, 16
        %v1326 = vrot.slane %v1324, 5
        %v1327 = vsel %vm1135, %v1322, %v1326
        %v1329 = vshrl.u32 %v1085, 16
        %v1331 = vrot.slane %v1329, 4
        %v1332 = vshll.u32 %v1085, 16
        %v1334 = vrot.slane %v1332, 5
        %v1335 = vor.u32 %v1331, %v1334
        %v1336 = vrot.slane %v1335, 4
        %v1338 = vshll.u32 %v1086, 16
        %v1340 = vrot.slane %v1338, 5
        %v1341 = vsel %vm1135, %v1336, %v1340
        %v1342 = vshrl.u32 %v1086, 16
        %v1344 = vrot.slane %v1342, 4
        %v1345 = vor.u32 %v1344, %v1340
        %v1346 = vrot.slane %v1345, 4
        %v1348 = vshll.u32 %v1125, 16
        %v1350 = vrot.slane %v1348, 5
        %v1351 = vsel %vm1135, %v1346, %v1350
        %v1353 = vshrl.u32 %v1087, 16
        %v1355 = vrot.slane %v1353, 4
        %v1356 = vshll.u32 %v1087, 16
        %v1358 = vrot.slane %v1356, 5
        %v1359 = vor.u32 %v1355, %v1358
        %v1360 = vrot.slane %v1359, 4
        %v1362 = vshll.u32 %v1088, 16
        %v1364 = vrot.slane %v1362, 5
        %v1365 = vsel %vm1135, %v1360, %v1364
        %v1366 = vshrl.u32 %v1088, 16
        %v1368 = vrot.slane %v1366, 4
        %v1369 = vor.u32 %v1368, %v1364
        %v1370 = vrot.slane %v1369, 4
        %v1372 = vshll.u32 %v1126, 16
        %v1374 = vrot.slane %v1372, 5
        %v1375 = vsel %vm1135, %v1370, %v1374
        %v1377 = vshrl.u32 %v1089, 16
        %v1379 = vrot.slane %v1377, 4
        %v1380 = vshll.u32 %v1089, 16
        %v1382 = vrot.slane %v1380, 5
        %v1383 = vor.u32 %v1379, %v1382
        %v1384 = vrot.slane %v1383, 4
        %v1386 = vshll.u32 %v1090, 16
        %v1388 = vrot.slane %v1386, 5
        %v1389 = vsel %vm1135, %v1384, %v1388
        %v1390 = vshrl.u32 %v1090, 16
        %v1392 = vrot.slane %v1390, 4
        %v1393 = vor.u32 %v1392, %v1388
        %v1394 = vrot.slane %v1393, 4
        %v1396 = vshll.u32 %v1127, 16
        %v1398 = vrot.slane %v1396, 5
        %v1399 = vsel %vm1135, %v1394, %v1398
        %v1401 = vshrl.u32 %v1091, 16
        %v1403 = vrot.slane %v1401, 4
        %v1404 = vshll.u32 %v1091, 16
        %v1406 = vrot.slane %v1404, 5
        %v1407 = vor.u32 %v1403, %v1406
        %v1408 = vrot.slane %v1407, 4
        %v1410 = vshll.u32 %v1092, 16
        %v1412 = vrot.slane %v1410, 5
        %v1413 = vsel %vm1135, %v1408, %v1412
        %v1414 = vshrl.u32 %v1092, 16
        %v1416 = vrot.slane %v1414, 4
        %v1417 = vor.u32 %v1416, %v1412
        %v1418 = vrot.slane %v1417, 4
        %v1420 = vshll.u32 %v1128, 16
        %v1422 = vrot.slane %v1420, 5
        %v1423 = vsel %vm1135, %v1418, %v1422
        %v1425 = vshrl.u32 %v1093, 16
        %v1427 = vrot.slane %v1425, 4
        %v1428 = vshll.u32 %v1093, 16
        %v1430 = vrot.slane %v1428, 5
        %v1431 = vor.u32 %v1427, %v1430
        %v1432 = vrot.slane %v1431, 4
        %v1434 = vshll.u32 %v1094, 16
        %v1436 = vrot.slane %v1434, 5
        %v1437 = vsel %vm1135, %v1432, %v1436
        %v1438 = vshrl.u32 %v1094, 16
        %v1440 = vrot.slane %v1438, 4
        %v1441 = vor.u32 %v1440, %v1436
        %v1442 = vrot.slane %v1441, 4
        %v1444 = vshll.u32 %v1129, 16
        %v1446 = vrot.slane %v1444, 5
        %v1447 = vsel %vm1135, %v1442, %v1446
        %v1449 = vshrl.u32 %v1095, 16
        %v1451 = vrot.slane %v1449, 4
        %v1452 = vshll.u32 %v1095, 16
        %v1454 = vrot.slane %v1452, 5
        %v1455 = vor.u32 %v1451, %v1454
        %v1456 = vrot.slane %v1455, 4
        %v1458 = vshll.u32 %v1096, 16
        %v1460 = vrot.slane %v1458, 5
        %v1461 = vsel %vm1135, %v1456, %v1460
        %v1462 = vshrl.u32 %v1096, 16
        %v1464 = vrot.slane %v1462, 4
        %v1465 = vor.u32 %v1464, %v1460
        %v1466 = vrot.slane %v1465, 4
        %v1468 = vshll.u32 %v1130, 16
        %v1470 = vrot.slane %v1468, 5
        %v1471 = vsel %vm1135, %v1466, %v1470
        %v1473 = vshrl.u32 %v1097, 16
        %v1475 = vrot.slane %v1473, 4
        %v1476 = vshll.u32 %v1097, 16
        %v1478 = vrot.slane %v1476, 5
        %v1479 = vor.u32 %v1475, %v1478
        %v1480 = vrot.slane %v1479, 4
        %v1482 = vshll.u32 %v1098, 16
        %v1484 = vrot.slane %v1482, 5
        %v1485 = vsel %vm1135, %v1480, %v1484
        %v1486 = vshrl.u32 %v1098, 16
        %v1488 = vrot.slane %v1486, 4
        %v1489 = vor.u32 %v1488, %v1484
        %v1490 = vrot.slane %v1489, 4
        %v1492 = vshll.u32 %v1131, 16
        %v1494 = vrot.slane %v1492, 5
        %v1495 = vsel %vm1135, %v1490, %v1494
        %v1497 = vshrl.u32 %v1099, 16
        %v1499 = vrot.slane %v1497, 4
        %v1500 = vshll.u32 %v1099, 16
        %v1502 = vrot.slane %v1500, 5
        %v1503 = vor.u32 %v1499, %v1502
        %v1504 = vrot.slane %v1503, 4
        %v1506 = vshll.u32 %v1100, 16
        %v1508 = vrot.slane %v1506, 5
        %v1509 = vsel %vm1135, %v1504, %v1508
        %v1510 = vshrl.u32 %v1100, 16
        %v1512 = vrot.slane %v1510, 4
        %v1513 = vor.u32 %v1512, %v1508
        %v1514 = vrot.slane %v1513, 4
        %v1516 = vshll.u32 %v1132, 16
        %v1518 = vrot.slane %v1516, 5
        %v1519 = vsel %vm1135, %v1514, %v1518
        %s1520 = scalar_lea.vmem [#allocation7], 64
        %v1521 = vld [vmem:[%s1520] sm:$0xf]
        %v1522 = vld [vmem:[%s1520 + $0x4] sm:$0xf]
        %v1523 = vld [vmem:[%s1520 + $0x8] sm:$0xf]
        %v1524 = vld [vmem:[%s1520 + $0xc] sm:$0xf]
        %v1525 = vld [vmem:[%s1520 + $0x10] sm:$0xf]
        %v1526 = vld [vmem:[%s1520 + $0x14] sm:$0xf]
        %v1527 = vld [vmem:[%s1520 + $0x18] sm:$0xf]
        %v1528 = vld [vmem:[%s1520 + $0x1c] sm:$0xf]
        %v1529 = vld [vmem:[%s1520 + $0x20] sm:$0xf]
        %v1530 = vld [vmem:[%s1520 + $0x24] sm:$0xf]
        %v1531 = vld [vmem:[%s1520 + $0x28] sm:$0xf]
        %v1532 = vld [vmem:[%s1520 + $0x2c] sm:$0xf]
        %v1533 = vld [vmem:[%s1520 + $0x30] sm:$0xf]
        %v1534 = vld [vmem:[%s1520 + $0x34] sm:$0xf]
        %v1535 = vld [vmem:[%s1520 + $0x38] sm:$0xf]
        %v1536 = vld [vmem:[%s1520 + $0x3c] sm:$0xf]
        %v1537 = vunpack.c.l.b16 %v1149
        %v1538 = vunpack.c.l.b16 %v1159
        %v1539 = vunpack.c.l.b16 %v1173
        %v1540 = vunpack.c.l.b16 %v1183
        %v1541 = vunpack.c.l.b16 %v1197
        %v1542 = vunpack.c.l.b16 %v1207
        %v1543 = vunpack.c.l.b16 %v1221
        %v1544 = vunpack.c.l.b16 %v1231
        %v1545 = vunpack.c.l.b16 %v1245
        %v1546 = vunpack.c.l.b16 %v1255
        %v1547 = vunpack.c.l.b16 %v1269
        %v1548 = vunpack.c.l.b16 %v1279
        %v1549 = vunpack.c.l.b16 %v1293
        %v1550 = vunpack.c.l.b16 %v1303
        %v1551 = vunpack.c.l.b16 %v1317
        %v1552 = vunpack.c.l.b16 %v1327
        %v1553 = vunpack.c.l.b16 %v1341
        %v1554 = vunpack.c.l.b16 %v1351
        %v1555 = vunpack.c.l.b16 %v1365
        %v1556 = vunpack.c.l.b16 %v1375
        %v1557 = vunpack.c.l.b16 %v1389
        %v1558 = vunpack.c.l.b16 %v1399
        %v1559 = vunpack.c.l.b16 %v1413
        %v1560 = vunpack.c.l.b16 %v1423
        %v1561 = vunpack.c.l.b16 %v1437
        %v1562 = vunpack.c.l.b16 %v1447
        %v1563 = vunpack.c.l.b16 %v1461
        %v1564 = vunpack.c.l.b16 %v1471
        %v1565 = vunpack.c.l.b16 %v1485
        %v1566 = vunpack.c.l.b16 %v1495
        %v1567 = vunpack.c.l.b16 %v1509
        %v1568 = vunpack.c.l.b16 %v1519
        %v1569 = vpack.c.b16 %v1538, %v1537
        %v1570 = vpack.c.b16 %v1540, %v1539
        %v1571 = vpack.c.b16 %v1542, %v1541
        %v1572 = vpack.c.b16 %v1544, %v1543
        %v1573 = vpack.c.b16 %v1546, %v1545
        %v1574 = vpack.c.b16 %v1548, %v1547
        %v1575 = vpack.c.b16 %v1550, %v1549
        %v1576 = vpack.c.b16 %v1552, %v1551
        %v1577 = vpack.c.b16 %v1554, %v1553
        %v1578 = vpack.c.b16 %v1556, %v1555
        %v1579 = vpack.c.b16 %v1558, %v1557
        %v1580 = vpack.c.b16 %v1560, %v1559
        %v1581 = vpack.c.b16 %v1562, %v1561
        %v1582 = vpack.c.b16 %v1564, %v1563
        %v1583 = vpack.c.b16 %v1566, %v1565
        %v1584 = vpack.c.b16 %v1568, %v1567
        %v1617 = vunpack.c.l.b16 %v1521
        %v1618 = vunpack.c.l.b16 %v1522
        %v1619 = vunpack.c.l.b16 %v1523
        %v1620 = vunpack.c.l.b16 %v1524
        %v1621 = vunpack.c.l.b16 %v1525
        %v1622 = vunpack.c.l.b16 %v1526
        %v1623 = vunpack.c.l.b16 %v1527
        %v1624 = vunpack.c.l.b16 %v1528
        %v1625 = vunpack.c.l.b16 %v1529
        %v1626 = vunpack.c.l.b16 %v1530
        %v1627 = vunpack.c.l.b16 %v1531
        %v1628 = vunpack.c.l.b16 %v1532
        %v1629 = vunpack.c.l.b16 %v1533
        %v1630 = vunpack.c.l.b16 %v1534
        %v1631 = vunpack.c.l.b16 %v1535
        %v1632 = vunpack.c.l.b16 %v1536
        %v1633 = vpack.c.b16 %v1618, %v1617
        %v1634 = vpack.c.b16 %v1620, %v1619
        %v1635 = vpack.c.b16 %v1622, %v1621
        %v1636 = vpack.c.b16 %v1624, %v1623
        %v1637 = vpack.c.b16 %v1626, %v1625
        %v1638 = vpack.c.b16 %v1628, %v1627
        %v1639 = vpack.c.b16 %v1630, %v1629
        %v1640 = vpack.c.b16 %v1632, %v1631
        %1649 = vmatpush.bf16.msra.mxu0 %v1640
        %1650 = vmatpush.bf16.msra.mxu0 %v1639
        %1651 = vmatpush.bf16.msra.mxu0 %v1638
        %1652 = vmatpush.bf16.msra.mxu0 %v1637
        %1653 = vmatpush.bf16.msra.mxu0 %v1636
        %1654 = vmatpush.bf16.msra.mxu0 %v1635
        %1655 = vmatpush.bf16.msra.mxu0 %v1634
        %1656 = vmatpush.bf16.msra.mxu0 %v1633
        %1657 = vmatmul.bf16.gmra.mxu0 %v1569
        %v1658 = vpop.f32.mrf.mxu0
        %v1659 = vadd.f32 0.0, %v1658
        %v1660 = vpop.f32.mrf.mxu0
        %v1661 = vadd.f32 0.0, %v1660
        %1662 = vmatmul.bf16.gmra.mxu0 %v1570
        %v1663 = vpop.f32.mrf.mxu0
        %v1664 = vadd.f32 0.0, %v1663
        %v1665 = vpop.f32.mrf.mxu0
        %v1666 = vadd.f32 0.0, %v1665
        %1667 = vmatmul.bf16.gmra.mxu0 %v1571
        %v1668 = vpop.f32.mrf.mxu0
        %v1669 = vadd.f32 0.0, %v1668
        %v1670 = vpop.f32.mrf.mxu0
        %v1671 = vadd.f32 0.0, %v1670
        %1672 = vmatmul.bf16.gmra.mxu0 %v1572
        %v1673 = vpop.f32.mrf.mxu0
        %v1674 = vadd.f32 0.0, %v1673
        %v1675 = vpop.f32.mrf.mxu0
        %v1676 = vadd.f32 0.0, %v1675
        %1677 = vmatmul.bf16.gmra.mxu0 %v1573
        %v1678 = vpop.f32.mrf.mxu0
        %v1679 = vadd.f32 0.0, %v1678
        %v1680 = vpop.f32.mrf.mxu0
        %v1681 = vadd.f32 0.0, %v1680
        %1682 = vmatmul.bf16.gmra.mxu0 %v1574
        %v1683 = vpop.f32.mrf.mxu0
        %v1684 = vadd.f32 0.0, %v1683
        %v1685 = vpop.f32.mrf.mxu0
        %v1686 = vadd.f32 0.0, %v1685
        %1687 = vmatmul.bf16.gmra.mxu0 %v1575
        %v1688 = vpop.f32.mrf.mxu0
        %v1689 = vadd.f32 0.0, %v1688
        %v1690 = vpop.f32.mrf.mxu0
        %v1691 = vadd.f32 0.0, %v1690
        %1692 = vmatmul.bf16.gmra.mxu0 %v1576
        %v1693 = vpop.f32.mrf.mxu0
        %v1694 = vadd.f32 0.0, %v1693
        %v1695 = vpop.f32.mrf.mxu0
        %v1696 = vadd.f32 0.0, %v1695
        %1697 = vmatmul.bf16.gmra.mxu0 %v1577
        %v1698 = vpop.f32.mrf.mxu0
        %v1699 = vadd.f32 0.0, %v1698
        %v1700 = vpop.f32.mrf.mxu0
        %v1701 = vadd.f32 0.0, %v1700
        %1702 = vmatmul.bf16.gmra.mxu0 %v1578
        %v1703 = vpop.f32.mrf.mxu0
        %v1704 = vadd.f32 0.0, %v1703
        %v1705 = vpop.f32.mrf.mxu0
        %v1706 = vadd.f32 0.0, %v1705
        %1707 = vmatmul.bf16.gmra.mxu0 %v1579
        %v1708 = vpop.f32.mrf.mxu0
        %v1709 = vadd.f32 0.0, %v1708
        %v1710 = vpop.f32.mrf.mxu0
        %v1711 = vadd.f32 0.0, %v1710
        %1712 = vmatmul.bf16.gmra.mxu0 %v1580
        %v1713 = vpop.f32.mrf.mxu0
        %v1714 = vadd.f32 0.0, %v1713
        %v1715 = vpop.f32.mrf.mxu0
        %v1716 = vadd.f32 0.0, %v1715
        %1717 = vmatmul.bf16.gmra.mxu0 %v1581
        %v1718 = vpop.f32.mrf.mxu0
        %v1719 = vadd.f32 0.0, %v1718
        %v1720 = vpop.f32.mrf.mxu0
        %v1721 = vadd.f32 0.0, %v1720
        %1722 = vmatmul.bf16.gmra.mxu0 %v1582
        %v1723 = vpop.f32.mrf.mxu0
        %v1724 = vadd.f32 0.0, %v1723
        %v1725 = vpop.f32.mrf.mxu0
        %v1726 = vadd.f32 0.0, %v1725
        %1727 = vmatmul.bf16.gmra.mxu0 %v1583
        %v1728 = vpop.f32.mrf.mxu0
        %v1729 = vadd.f32 0.0, %v1728
        %v1730 = vpop.f32.mrf.mxu0
        %v1731 = vadd.f32 0.0, %v1730
        %1732 = vmatmul.bf16.gmra.mxu0 %v1584
        %v1733 = vpop.f32.mrf.mxu0
        %v1734 = vadd.f32 0.0, %v1733
        %v1735 = vpop.f32.mrf.mxu0
        %v1736 = vadd.f32 0.0, %v1735
        %1737 = vdwg.mxu0
        %v1770 = vunpack.c.l.b16 %v1069
        %v1771 = vunpack.c.l.b16 %v1070
        %v1772 = vunpack.c.l.b16 %v1071
        %v1773 = vunpack.c.l.b16 %v1072
        %v1774 = vunpack.c.l.b16 %v1073
        %v1775 = vunpack.c.l.b16 %v1074
        %v1776 = vunpack.c.l.b16 %v1075
        %v1777 = vunpack.c.l.b16 %v1076
        %v1778 = vunpack.c.l.b16 %v1077
        %v1779 = vunpack.c.l.b16 %v1078
        %v1780 = vunpack.c.l.b16 %v1079
        %v1781 = vunpack.c.l.b16 %v1080
        %v1782 = vunpack.c.l.b16 %v1081
        %v1783 = vunpack.c.l.b16 %v1082
        %v1784 = vunpack.c.l.b16 %v1083
        %v1785 = vunpack.c.l.b16 %v1084
        %v1786 = vunpack.c.l.b16 %v1085
        %v1787 = vunpack.c.l.b16 %v1086
        %v1788 = vunpack.c.l.b16 %v1087
        %v1789 = vunpack.c.l.b16 %v1088
        %v1790 = vunpack.c.l.b16 %v1089
        %v1791 = vunpack.c.l.b16 %v1090
        %v1792 = vunpack.c.l.b16 %v1091
        %v1793 = vunpack.c.l.b16 %v1092
        %v1794 = vunpack.c.l.b16 %v1093
        %v1795 = vunpack.c.l.b16 %v1094
        %v1796 = vunpack.c.l.b16 %v1095
        %v1797 = vunpack.c.l.b16 %v1096
        %v1798 = vunpack.c.l.b16 %v1097
        %v1799 = vunpack.c.l.b16 %v1098
        %v1800 = vunpack.c.l.b16 %v1099
        %v1801 = vunpack.c.l.b16 %v1100
        %v1802 = vpack.c.b16 %v1771, %v1770
        %v1803 = vpack.c.b16 %v1773, %v1772
        %v1804 = vpack.c.b16 %v1775, %v1774
        %v1805 = vpack.c.b16 %v1777, %v1776
        %v1806 = vpack.c.b16 %v1779, %v1778
        %v1807 = vpack.c.b16 %v1781, %v1780
        %v1808 = vpack.c.b16 %v1783, %v1782
        %v1809 = vpack.c.b16 %v1785, %v1784
        %v1810 = vpack.c.b16 %v1787, %v1786
        %v1811 = vpack.c.b16 %v1789, %v1788
        %v1812 = vpack.c.b16 %v1791, %v1790
        %v1813 = vpack.c.b16 %v1793, %v1792
        %v1814 = vpack.c.b16 %v1795, %v1794
        %v1815 = vpack.c.b16 %v1797, %v1796
        %v1816 = vpack.c.b16 %v1799, %v1798
        %v1817 = vpack.c.b16 %v1801, %v1800
        %v1850 = vunpack.c.l.b16 %v1101
        %v1851 = vunpack.c.l.b16 %v1102
        %v1852 = vunpack.c.l.b16 %v1103
        %v1853 = vunpack.c.l.b16 %v1104
        %v1854 = vunpack.c.l.b16 %v1105
        %v1855 = vunpack.c.l.b16 %v1106
        %v1856 = vunpack.c.l.b16 %v1107
        %v1857 = vunpack.c.l.b16 %v1108
        %v1858 = vunpack.c.l.b16 %v1109
        %v1859 = vunpack.c.l.b16 %v1110
        %v1860 = vunpack.c.l.b16 %v1111
        %v1861 = vunpack.c.l.b16 %v1112
        %v1862 = vunpack.c.l.b16 %v1113
        %v1863 = vunpack.c.l.b16 %v1114
        %v1864 = vunpack.c.l.b16 %v1115
        %v1865 = vunpack.c.l.b16 %v1116
        %v1866 = vpack.c.b16 %v1851, %v1850
        %v1867 = vpack.c.b16 %v1853, %v1852
        %v1868 = vpack.c.b16 %v1855, %v1854
        %v1869 = vpack.c.b16 %v1857, %v1856
        %v1870 = vpack.c.b16 %v1859, %v1858
        %v1871 = vpack.c.b16 %v1861, %v1860
        %v1872 = vpack.c.b16 %v1863, %v1862
        %v1873 = vpack.c.b16 %v1865, %v1864
        %1882 = vmatpush.bf16.msra.mxu0 %v1873
        %1883 = vmatpush.bf16.msra.mxu0 %v1872
        %1884 = vmatpush.bf16.msra.mxu0 %v1871
        %1885 = vmatpush.bf16.msra.mxu0 %v1870
        %1886 = vmatpush.bf16.msra.mxu0 %v1869
        %1887 = vmatpush.bf16.msra.mxu0 %v1868
        %1888 = vmatpush.bf16.msra.mxu0 %v1867
        %1889 = vmatpush.bf16.msra.mxu0 %v1866
        %1890 = vmatmul.bf16.gmra.mxu0 %v1802
        %v1891 = vpop.f32.mrf.mxu0
        %v1892 = vadd.f32 %v1659, %v1891
        %v1893 = vpop.f32.mrf.mxu0
        %v1894 = vadd.f32 %v1661, %v1893
        %1895 = vmatmul.bf16.gmra.mxu0 %v1803
        %v1896 = vpop.f32.mrf.mxu0
        %v1897 = vadd.f32 %v1664, %v1896
        %v1898 = vpop.f32.mrf.mxu0
        %v1899 = vadd.f32 %v1666, %v1898
        %1900 = vmatmul.bf16.gmra.mxu0 %v1804
        %v1901 = vpop.f32.mrf.mxu0
        %v1902 = vadd.f32 %v1669, %v1901
        %v1903 = vpop.f32.mrf.mxu0
        %v1904 = vadd.f32 %v1671, %v1903
        %1905 = vmatmul.bf16.gmra.mxu0 %v1805
        %v1906 = vpop.f32.mrf.mxu0
        %v1907 = vadd.f32 %v1674, %v1906
        %v1908 = vpop.f32.mrf.mxu0
        %v1909 = vadd.f32 %v1676, %v1908
        %1910 = vmatmul.bf16.gmra.mxu0 %v1806
        %v1911 = vpop.f32.mrf.mxu0
        %v1912 = vadd.f32 %v1679, %v1911
        %v1913 = vpop.f32.mrf.mxu0
        %v1914 = vadd.f32 %v1681, %v1913
        %1915 = vmatmul.bf16.gmra.mxu0 %v1807
        %v1916 = vpop.f32.mrf.mxu0
        %v1917 = vadd.f32 %v1684, %v1916
        %v1918 = vpop.f32.mrf.mxu0
        %v1919 = vadd.f32 %v1686, %v1918
        %1920 = vmatmul.bf16.gmra.mxu0 %v1808
        %v1921 = vpop.f32.mrf.mxu0
        %v1922 = vadd.f32 %v1689, %v1921
        %v1923 = vpop.f32.mrf.mxu0
        %v1924 = vadd.f32 %v1691, %v1923
        %1925 = vmatmul.bf16.gmra.mxu0 %v1809
        %v1926 = vpop.f32.mrf.mxu0
        %v1927 = vadd.f32 %v1694, %v1926
        %v1928 = vpop.f32.mrf.mxu0
        %v1929 = vadd.f32 %v1696, %v1928
        %1930 = vmatmul.bf16.gmra.mxu0 %v1810
        %v1931 = vpop.f32.mrf.mxu0
        %v1932 = vadd.f32 %v1699, %v1931
        %v1933 = vpop.f32.mrf.mxu0
        %v1934 = vadd.f32 %v1701, %v1933
        %1935 = vmatmul.bf16.gmra.mxu0 %v1811
        %v1936 = vpop.f32.mrf.mxu0
        %v1937 = vadd.f32 %v1704, %v1936
        %v1938 = vpop.f32.mrf.mxu0
        %v1939 = vadd.f32 %v1706, %v1938
        %1940 = vmatmul.bf16.gmra.mxu0 %v1812
        %v1941 = vpop.f32.mrf.mxu0
        %v1942 = vadd.f32 %v1709, %v1941
        %v1943 = vpop.f32.mrf.mxu0
        %v1944 = vadd.f32 %v1711, %v1943
        %1945 = vmatmul.bf16.gmra.mxu0 %v1813
        %v1946 = vpop.f32.mrf.mxu0
        %v1947 = vadd.f32 %v1714, %v1946
        %v1948 = vpop.f32.mrf.mxu0
        %v1949 = vadd.f32 %v1716, %v1948
        %1950 = vmatmul.bf16.gmra.mxu0 %v1814
        %v1951 = vpop.f32.mrf.mxu0
        %v1952 = vadd.f32 %v1719, %v1951
        %v1953 = vpop.f32.mrf.mxu0
        %v1954 = vadd.f32 %v1721, %v1953
        %1955 = vmatmul.bf16.gmra.mxu0 %v1815
        %v1956 = vpop.f32.mrf.mxu0
        %v1957 = vadd.f32 %v1724, %v1956
        %v1958 = vpop.f32.mrf.mxu0
        %v1959 = vadd.f32 %v1726, %v1958
        %1960 = vmatmul.bf16.gmra.mxu0 %v1816
        %v1961 = vpop.f32.mrf.mxu0
        %v1962 = vadd.f32 %v1729, %v1961
        %v1963 = vpop.f32.mrf.mxu0
        %v1964 = vadd.f32 %v1731, %v1963
        %1965 = vmatmul.bf16.gmra.mxu0 %v1817
        %v1966 = vpop.f32.mrf.mxu0
        %v1967 = vadd.f32 %v1734, %v1966
        %v1968 = vpop.f32.mrf.mxu0
        %v1969 = vadd.f32 %v1736, %v1968
        %1970 = vdwg.mxu0
        %v1971 = vld [vmem:[#allocation2] sm:$0xe]
        %v1972 = vld [vmem:[#allocation2 + $0xc] sm:$0xe]
        %v1973 = vld [vmem:[#allocation2 + $0x18] sm:$0xe]
        %v1974 = vld [vmem:[#allocation2 + $0x24] sm:$0xe]
        %v1975 = vld [vmem:[#allocation2 + $0x30] sm:$0xe]
        %v1976 = vld [vmem:[#allocation2 + $0x3c] sm:$0xe]
        %v1977 = vld [vmem:[#allocation2 + $0x48] sm:$0xe]
        %v1978 = vld [vmem:[#allocation2 + $0x54] sm:$0xe]
        %v1979 = vld [vmem:[#allocation2 + $0x60] sm:$0xe]
        %v1980 = vld [vmem:[#allocation2 + $0x6c] sm:$0xe]
        %v1981 = vld [vmem:[#allocation2 + $0x78] sm:$0xe]
        %v1982 = vld [vmem:[#allocation2 + $0x84] sm:$0xe]
        %v1983 = vld [vmem:[#allocation2 + $0x90] sm:$0xe]
        %v1984 = vld [vmem:[#allocation2 + $0x9c] sm:$0xe]
        %v1985 = vld [vmem:[#allocation2 + $0xa8] sm:$0xe]
        %v1986 = vld [vmem:[#allocation2 + $0xb4] sm:$0xe]
        %vm2019 = vcmask 1042432
        %vm2020 = vcmask 1046532
        %vm2021 = vmor %vm2019, %vm2020
        %v2022 = vrot.slane %v1971, 5
        %v2023 = vrot.slane %v2022, 4
        %v2024 = vrot.slane %v1070, 5
        %v2025 = vsel %vm2021, %v2023, %v2024
        %v2026 = vrot.slane %v2024, 4
        %v2027 = vrot.slane %v1117, 5
        %v2028 = vsel %vm2021, %v2026, %v2027
        %v2029 = vrot.slane %v1972, 5
        %v2030 = vrot.slane %v2029, 4
        %v2031 = vrot.slane %v1072, 5
        %v2032 = vsel %vm2021, %v2030, %v2031
        %v2033 = vrot.slane %v2031, 4
        %v2034 = vrot.slane %v1118, 5
        %v2035 = vsel %vm2021, %v2033, %v2034
        %v2036 = vrot.slane %v1973, 5
        %v2037 = vrot.slane %v2036, 4
        %v2038 = vrot.slane %v1074, 5
        %v2039 = vsel %vm2021, %v2037, %v2038
        %v2040 = vrot.slane %v2038, 4
        %v2041 = vrot.slane %v1119, 5
        %v2042 = vsel %vm2021, %v2040, %v2041
        %v2043 = vrot.slane %v1974, 5
        %v2044 = vrot.slane %v2043, 4
        %v2045 = vrot.slane %v1076, 5
        %v2046 = vsel %vm2021, %v2044, %v2045
        %v2047 = vrot.slane %v2045, 4
        %v2048 = vrot.slane %v1120, 5
        %v2049 = vsel %vm2021, %v2047, %v2048
        %v2050 = vrot.slane %v1975, 5
        %v2051 = vrot.slane %v2050, 4
        %v2052 = vrot.slane %v1078, 5
        %v2053 = vsel %vm2021, %v2051, %v2052
        %v2054 = vrot.slane %v2052, 4
        %v2055 = vrot.slane %v1121, 5
        %v2056 = vsel %vm2021, %v2054, %v2055
        %v2057 = vrot.slane %v1976, 5
        %v2058 = vrot.slane %v2057, 4
        %v2059 = vrot.slane %v1080, 5
        %v2060 = vsel %vm2021, %v2058, %v2059
        %v2061 = vrot.slane %v2059, 4
        %v2062 = vrot.slane %v1122, 5
        %v2063 = vsel %vm2021, %v2061, %v2062
        %v2064 = vrot.slane %v1977, 5
        %v2065 = vrot.slane %v2064, 4
        %v2066 = vrot.slane %v1082, 5
        %v2067 = vsel %vm2021, %v2065, %v2066
        %v2068 = vrot.slane %v2066, 4
        %v2069 = vrot.slane %v1123, 5
        %v2070 = vsel %vm2021, %v2068, %v2069
        %v2071 = vrot.slane %v1978, 5
        %v2072 = vrot.slane %v2071, 4
        %v2073 = vrot.slane %v1084, 5
        %v2074 = vsel %vm2021, %v2072, %v2073
        %v2075 = vrot.slane %v2073, 4
        %v2076 = vrot.slane %v1124, 5
        %v2077 = vsel %vm2021, %v2075, %v2076
        %v2078 = vrot.slane %v1979, 5
        %v2079 = vrot.slane %v2078, 4
        %v2080 = vrot.slane %v1086, 5
        %v2081 = vsel %vm2021, %v2079, %v2080
        %v2082 = vrot.slane %v2080, 4
        %v2083 = vrot.slane %v1125, 5
        %v2084 = vsel %vm2021, %v2082, %v2083
        %v2085 = vrot.slane %v1980, 5
        %v2086 = vrot.slane %v2085, 4
        %v2087 = vrot.slane %v1088, 5
        %v2088 = vsel %vm2021, %v2086, %v2087
        %v2089 = vrot.slane %v2087, 4
        %v2090 = vrot.slane %v1126, 5
        %v2091 = vsel %vm2021, %v2089, %v2090
        %v2092 = vrot.slane %v1981, 5
        %v2093 = vrot.slane %v2092, 4
        %v2094 = vrot.slane %v1090, 5
        %v2095 = vsel %vm2021, %v2093, %v2094
        %v2096 = vrot.slane %v2094, 4
        %v2097 = vrot.slane %v1127, 5
        %v2098 = vsel %vm2021, %v2096, %v2097
        %v2099 = vrot.slane %v1982, 5
        %v2100 = vrot.slane %v2099, 4
        %v2101 = vrot.slane %v1092, 5
        %v2102 = vsel %vm2021, %v2100, %v2101
        %v2103 = vrot.slane %v2101, 4
        %v2104 = vrot.slane %v1128, 5
        %v2105 = vsel %vm2021, %v2103, %v2104
        %v2106 = vrot.slane %v1983, 5
        %v2107 = vrot.slane %v2106, 4
        %v2108 = vrot.slane %v1094, 5
        %v2109 = vsel %vm2021, %v2107, %v2108
        %v2110 = vrot.slane %v2108, 4
        %v2111 = vrot.slane %v1129, 5
        %v2112 = vsel %vm2021, %v2110, %v2111
        %v2113 = vrot.slane %v1984, 5
        %v2114 = vrot.slane %v2113, 4
        %v2115 = vrot.slane %v1096, 5
        %v2116 = vsel %vm2021, %v2114, %v2115
        %v2117 = vrot.slane %v2115, 4
        %v2118 = vrot.slane %v1130, 5
        %v2119 = vsel %vm2021, %v2117, %v2118
        %v2120 = vrot.slane %v1985, 5
        %v2121 = vrot.slane %v2120, 4
        %v2122 = vrot.slane %v1098, 5
        %v2123 = vsel %vm2021, %v2121, %v2122
        %v2124 = vrot.slane %v2122, 4
        %v2125 = vrot.slane %v1131, 5
        %v2126 = vsel %vm2021, %v2124, %v2125
        %v2127 = vrot.slane %v1986, 5
        %v2128 = vrot.slane %v2127, 4
        %v2129 = vrot.slane %v1100, 5
        %v2130 = vsel %vm2021, %v2128, %v2129
        %v2131 = vrot.slane %v2129, 4
        %v2132 = vrot.slane %v1132, 5
        %v2133 = vsel %vm2021, %v2131, %v2132
        %s2134 = scalar_lea.vmem [#allocation7], 128
        %v2135 = vld [vmem:[%s2134] sm:$0xf]
        %v2136 = vld [vmem:[%s2134 + $0x4] sm:$0xf]
        %v2137 = vld [vmem:[%s2134 + $0x8] sm:$0xf]
        %v2138 = vld [vmem:[%s2134 + $0xc] sm:$0xf]
        %v2139 = vld [vmem:[%s2134 + $0x10] sm:$0xf]
        %v2140 = vld [vmem:[%s2134 + $0x14] sm:$0xf]
        %v2141 = vld [vmem:[%s2134 + $0x18] sm:$0xf]
        %v2142 = vld [vmem:[%s2134 + $0x1c] sm:$0xf]
        %v2143 = vld [vmem:[%s2134 + $0x20] sm:$0xf]
        %v2144 = vld [vmem:[%s2134 + $0x24] sm:$0xf]
        %v2145 = vld [vmem:[%s2134 + $0x28] sm:$0xf]
        %v2146 = vld [vmem:[%s2134 + $0x2c] sm:$0xf]
        %v2147 = vld [vmem:[%s2134 + $0x30] sm:$0xf]
        %v2148 = vld [vmem:[%s2134 + $0x34] sm:$0xf]
        %v2149 = vld [vmem:[%s2134 + $0x38] sm:$0xf]
        %v2150 = vld [vmem:[%s2134 + $0x3c] sm:$0xf]
        %v2151 = vunpack.c.l.b16 %v2025
        %v2152 = vunpack.c.l.b16 %v2028
        %v2153 = vunpack.c.l.b16 %v2032
        %v2154 = vunpack.c.l.b16 %v2035
        %v2155 = vunpack.c.l.b16 %v2039
        %v2156 = vunpack.c.l.b16 %v2042
        %v2157 = vunpack.c.l.b16 %v2046
        %v2158 = vunpack.c.l.b16 %v2049
        %v2159 = vunpack.c.l.b16 %v2053
        %v2160 = vunpack.c.l.b16 %v2056
        %v2161 = vunpack.c.l.b16 %v2060
        %v2162 = vunpack.c.l.b16 %v2063
        %v2163 = vunpack.c.l.b16 %v2067
        %v2164 = vunpack.c.l.b16 %v2070
        %v2165 = vunpack.c.l.b16 %v2074
        %v2166 = vunpack.c.l.b16 %v2077
        %v2167 = vunpack.c.l.b16 %v2081
        %v2168 = vunpack.c.l.b16 %v2084
        %v2169 = vunpack.c.l.b16 %v2088
        %v2170 = vunpack.c.l.b16 %v2091
        %v2171 = vunpack.c.l.b16 %v2095
        %v2172 = vunpack.c.l.b16 %v2098
        %v2173 = vunpack.c.l.b16 %v2102
        %v2174 = vunpack.c.l.b16 %v2105
        %v2175 = vunpack.c.l.b16 %v2109
        %v2176 = vunpack.c.l.b16 %v2112
        %v2177 = vunpack.c.l.b16 %v2116
        %v2178 = vunpack.c.l.b16 %v2119
        %v2179 = vunpack.c.l.b16 %v2123
        %v2180 = vunpack.c.l.b16 %v2126
        %v2181 = vunpack.c.l.b16 %v2130
        %v2182 = vunpack.c.l.b16 %v2133
        %v2183 = vpack.c.b16 %v2152, %v2151
        %v2184 = vpack.c.b16 %v2154, %v2153
        %v2185 = vpack.c.b16 %v2156, %v2155
        %v2186 = vpack.c.b16 %v2158, %v2157
        %v2187 = vpack.c.b16 %v2160, %v2159
        %v2188 = vpack.c.b16 %v2162, %v2161
        %v2189 = vpack.c.b16 %v2164, %v2163
        %v2190 = vpack.c.b16 %v2166, %v2165
        %v2191 = vpack.c.b16 %v2168, %v2167
        %v2192 = vpack.c.b16 %v2170, %v2169
        %v2193 = vpack.c.b16 %v2172, %v2171
        %v2194 = vpack.c.b16 %v2174, %v2173
        %v2195 = vpack.c.b16 %v2176, %v2175
        %v2196 = vpack.c.b16 %v2178, %v2177
        %v2197 = vpack.c.b16 %v2180, %v2179
        %v2198 = vpack.c.b16 %v2182, %v2181
        %v2231 = vunpack.c.l.b16 %v2135
        %v2232 = vunpack.c.l.b16 %v2136
        %v2233 = vunpack.c.l.b16 %v2137
        %v2234 = vunpack.c.l.b16 %v2138
        %v2235 = vunpack.c.l.b16 %v2139
        %v2236 = vunpack.c.l.b16 %v2140
        %v2237 = vunpack.c.l.b16 %v2141
        %v2238 = vunpack.c.l.b16 %v2142
        %v2239 = vunpack.c.l.b16 %v2143
        %v2240 = vunpack.c.l.b16 %v2144
        %v2241 = vunpack.c.l.b16 %v2145
        %v2242 = vunpack.c.l.b16 %v2146
        %v2243 = vunpack.c.l.b16 %v2147
        %v2244 = vunpack.c.l.b16 %v2148
        %v2245 = vunpack.c.l.b16 %v2149
        %v2246 = vunpack.c.l.b16 %v2150
        %v2247 = vpack.c.b16 %v2232, %v2231
        %v2248 = vpack.c.b16 %v2234, %v2233
        %v2249 = vpack.c.b16 %v2236, %v2235
        %v2250 = vpack.c.b16 %v2238, %v2237
        %v2251 = vpack.c.b16 %v2240, %v2239
        %v2252 = vpack.c.b16 %v2242, %v2241
        %v2253 = vpack.c.b16 %v2244, %v2243
        %v2254 = vpack.c.b16 %v2246, %v2245
        %2263 = vmatpush.bf16.msra.mxu0 %v2254
        %2264 = vmatpush.bf16.msra.mxu0 %v2253
        %2265 = vmatpush.bf16.msra.mxu0 %v2252
        %2266 = vmatpush.bf16.msra.mxu0 %v2251
        %2267 = vmatpush.bf16.msra.mxu0 %v2250
        %2268 = vmatpush.bf16.msra.mxu0 %v2249
        %2269 = vmatpush.bf16.msra.mxu0 %v2248
        %2270 = vmatpush.bf16.msra.mxu0 %v2247
        %2271 = vmatmul.bf16.gmra.mxu0 %v2183
        %v2272 = vpop.f32.mrf.mxu0
        %v2273 = vadd.f32 0.0, %v2272
        %v2274 = vpop.f32.mrf.mxu0
        %v2275 = vadd.f32 0.0, %v2274
        %2276 = vmatmul.bf16.gmra.mxu0 %v2184
        %v2277 = vpop.f32.mrf.mxu0
        %v2278 = vadd.f32 0.0, %v2277
        %v2279 = vpop.f32.mrf.mxu0
        %v2280 = vadd.f32 0.0, %v2279
        %2281 = vmatmul.bf16.gmra.mxu0 %v2185
        %v2282 = vpop.f32.mrf.mxu0
        %v2283 = vadd.f32 0.0, %v2282
        %v2284 = vpop.f32.mrf.mxu0
        %v2285 = vadd.f32 0.0, %v2284
        %2286 = vmatmul.bf16.gmra.mxu0 %v2186
        %v2287 = vpop.f32.mrf.mxu0
        %v2288 = vadd.f32 0.0, %v2287
        %v2289 = vpop.f32.mrf.mxu0
        %v2290 = vadd.f32 0.0, %v2289
        %2291 = vmatmul.bf16.gmra.mxu0 %v2187
        %v2292 = vpop.f32.mrf.mxu0
        %v2293 = vadd.f32 0.0, %v2292
        %v2294 = vpop.f32.mrf.mxu0
        %v2295 = vadd.f32 0.0, %v2294
        %2296 = vmatmul.bf16.gmra.mxu0 %v2188
        %v2297 = vpop.f32.mrf.mxu0
        %v2298 = vadd.f32 0.0, %v2297
        %v2299 = vpop.f32.mrf.mxu0
        %v2300 = vadd.f32 0.0, %v2299
        %2301 = vmatmul.bf16.gmra.mxu0 %v2189
        %v2302 = vpop.f32.mrf.mxu0
        %v2303 = vadd.f32 0.0, %v2302
        %v2304 = vpop.f32.mrf.mxu0
        %v2305 = vadd.f32 0.0, %v2304
        %2306 = vmatmul.bf16.gmra.mxu0 %v2190
        %v2307 = vpop.f32.mrf.mxu0
        %v2308 = vadd.f32 0.0, %v2307
        %v2309 = vpop.f32.mrf.mxu0
        %v2310 = vadd.f32 0.0, %v2309
        %2311 = vmatmul.bf16.gmra.mxu0 %v2191
        %v2312 = vpop.f32.mrf.mxu0
        %v2313 = vadd.f32 0.0, %v2312
        %v2314 = vpop.f32.mrf.mxu0
        %v2315 = vadd.f32 0.0, %v2314
        %2316 = vmatmul.bf16.gmra.mxu0 %v2192
        %v2317 = vpop.f32.mrf.mxu0
        %v2318 = vadd.f32 0.0, %v2317
        %v2319 = vpop.f32.mrf.mxu0
        %v2320 = vadd.f32 0.0, %v2319
        %2321 = vmatmul.bf16.gmra.mxu0 %v2193
        %v2322 = vpop.f32.mrf.mxu0
        %v2323 = vadd.f32 0.0, %v2322
        %v2324 = vpop.f32.mrf.mxu0
        %v2325 = vadd.f32 0.0, %v2324
        %2326 = vmatmul.bf16.gmra.mxu0 %v2194
        %v2327 = vpop.f32.mrf.mxu0
        %v2328 = vadd.f32 0.0, %v2327
        %v2329 = vpop.f32.mrf.mxu0
        %v2330 = vadd.f32 0.0, %v2329
        %2331 = vmatmul.bf16.gmra.mxu0 %v2195
        %v2332 = vpop.f32.mrf.mxu0
        %v2333 = vadd.f32 0.0, %v2332
        %v2334 = vpop.f32.mrf.mxu0
        %v2335 = vadd.f32 0.0, %v2334
        %2336 = vmatmul.bf16.gmra.mxu0 %v2196
        %v2337 = vpop.f32.mrf.mxu0
        %v2338 = vadd.f32 0.0, %v2337
        %v2339 = vpop.f32.mrf.mxu0
        %v2340 = vadd.f32 0.0, %v2339
        %2341 = vmatmul.bf16.gmra.mxu0 %v2197
        %v2342 = vpop.f32.mrf.mxu0
        %v2343 = vadd.f32 0.0, %v2342
        %v2344 = vpop.f32.mrf.mxu0
        %v2345 = vadd.f32 0.0, %v2344
        %2346 = vmatmul.bf16.gmra.mxu0 %v2198
        %v2347 = vpop.f32.mrf.mxu0
        %v2348 = vadd.f32 0.0, %v2347
        %v2349 = vpop.f32.mrf.mxu0
        %v2350 = vadd.f32 0.0, %v2349
        %2351 = vdwg.mxu0
        %v2352 = vadd.f32 %v1892, %v2273
        %v2353 = vadd.f32 %v1894, %v2275
        %v2354 = vadd.f32 %v1897, %v2278
        %v2355 = vadd.f32 %v1899, %v2280
        %v2356 = vadd.f32 %v1902, %v2283
        %v2357 = vadd.f32 %v1904, %v2285
        %v2358 = vadd.f32 %v1907, %v2288
        %v2359 = vadd.f32 %v1909, %v2290
        %v2360 = vadd.f32 %v1912, %v2293
        %v2361 = vadd.f32 %v1914, %v2295
        %v2362 = vadd.f32 %v1917, %v2298
        %v2363 = vadd.f32 %v1919, %v2300
        %v2364 = vadd.f32 %v1922, %v2303
        %v2365 = vadd.f32 %v1924, %v2305
        %v2366 = vadd.f32 %v1927, %v2308
        %v2367 = vadd.f32 %v1929, %v2310
        %v2368 = vadd.f32 %v1932, %v2313
        %v2369 = vadd.f32 %v1934, %v2315
        %v2370 = vadd.f32 %v1937, %v2318
        %v2371 = vadd.f32 %v1939, %v2320
        %v2372 = vadd.f32 %v1942, %v2323
        %v2373 = vadd.f32 %v1944, %v2325
        %v2374 = vadd.f32 %v1947, %v2328
        %v2375 = vadd.f32 %v1949, %v2330
        %v2376 = vadd.f32 %v1952, %v2333
        %v2377 = vadd.f32 %v1954, %v2335
        %v2378 = vadd.f32 %v1957, %v2338
        %v2379 = vadd.f32 %v1959, %v2340
        %v2380 = vadd.f32 %v1962, %v2343
        %v2381 = vadd.f32 %v1964, %v2345
        %v2382 = vadd.f32 %v1967, %v2348
        %v2383 = vadd.f32 %v1969, %v2350
        %v2384 = vld [vmem:[%s954] sm:$0xf]
        %v2385 = vld [vmem:[%s954 + $0x4] sm:$0xf]
        %v2386 = vld [vmem:[%s954 + $0xc] sm:$0xf]
        %v2387 = vld [vmem:[%s954 + $0x10] sm:$0xf]
        %v2388 = vld [vmem:[%s954 + $0x18] sm:$0xf]
        %v2389 = vld [vmem:[%s954 + $0x1c] sm:$0xf]
        %v2390 = vld [vmem:[%s954 + $0x24] sm:$0xf]
        %v2391 = vld [vmem:[%s954 + $0x28] sm:$0xf]
        %v2392 = vld [vmem:[%s954 + $0x30] sm:$0xf]
        %v2393 = vld [vmem:[%s954 + $0x34] sm:$0xf]
        %v2394 = vld [vmem:[%s954 + $0x3c] sm:$0xf]
        %v2395 = vld [vmem:[%s954 + $0x40] sm:$0xf]
        %v2396 = vld [vmem:[%s954 + $0x48] sm:$0xf]
        %v2397 = vld [vmem:[%s954 + $0x4c] sm:$0xf]
        %v2398 = vld [vmem:[%s954 + $0x54] sm:$0xf]
        %v2399 = vld [vmem:[%s954 + $0x58] sm:$0xf]
        %v2400 = vld [vmem:[%s954 + $0x60] sm:$0xf]
        %v2401 = vld [vmem:[%s954 + $0x64] sm:$0xf]
        %v2402 = vld [vmem:[%s954 + $0x6c] sm:$0xf]
        %v2403 = vld [vmem:[%s954 + $0x70] sm:$0xf]
        %v2404 = vld [vmem:[%s954 + $0x78] sm:$0xf]
        %v2405 = vld [vmem:[%s954 + $0x7c] sm:$0xf]
        %v2406 = vld [vmem:[%s954 + $0x84] sm:$0xf]
        %v2407 = vld [vmem:[%s954 + $0x88] sm:$0xf]
        %v2408 = vld [vmem:[%s954 + $0x90] sm:$0xf]
        %v2409 = vld [vmem:[%s954 + $0x94] sm:$0xf]
        %v2410 = vld [vmem:[%s954 + $0x9c] sm:$0xf]
        %v2411 = vld [vmem:[%s954 + $0xa0] sm:$0xf]
        %v2412 = vld [vmem:[%s954 + $0xa8] sm:$0xf]
        %v2413 = vld [vmem:[%s954 + $0xac] sm:$0xf]
        %v2414 = vld [vmem:[%s954 + $0xb4] sm:$0xf]
        %v2415 = vld [vmem:[%s954 + $0xb8] sm:$0xf]
        %s2416 = scalar_lea.vmem [#allocation7], 192
        %v2417 = vld [vmem:[%s2416] sm:$0xf]
        %v2418 = vld [vmem:[%s2416 + $0x4] sm:$0xf]
        %v2419 = vld [vmem:[%s2416 + $0x8] sm:$0xf]
        %v2420 = vld [vmem:[%s2416 + $0xc] sm:$0xf]
        %v2421 = vld [vmem:[%s2416 + $0x10] sm:$0xf]
        %v2422 = vld [vmem:[%s2416 + $0x14] sm:$0xf]
        %v2423 = vld [vmem:[%s2416 + $0x18] sm:$0xf]
        %v2424 = vld [vmem:[%s2416 + $0x1c] sm:$0xf]
        %v2425 = vld [vmem:[%s2416 + $0x20] sm:$0xf]
        %v2426 = vld [vmem:[%s2416 + $0x24] sm:$0xf]
        %v2427 = vld [vmem:[%s2416 + $0x28] sm:$0xf]
        %v2428 = vld [vmem:[%s2416 + $0x2c] sm:$0xf]
        %v2429 = vld [vmem:[%s2416 + $0x30] sm:$0xf]
        %v2430 = vld [vmem:[%s2416 + $0x34] sm:$0xf]
        %v2431 = vld [vmem:[%s2416 + $0x38] sm:$0xf]
        %v2432 = vld [vmem:[%s2416 + $0x3c] sm:$0xf]
        %v2465 = vunpack.c.l.b16 %v2384
        %v2466 = vunpack.c.l.b16 %v2385
        %v2467 = vunpack.c.l.b16 %v2386
        %v2468 = vunpack.c.l.b16 %v2387
        %v2469 = vunpack.c.l.b16 %v2388
        %v2470 = vunpack.c.l.b16 %v2389
        %v2471 = vunpack.c.l.b16 %v2390
        %v2472 = vunpack.c.l.b16 %v2391
        %v2473 = vunpack.c.l.b16 %v2392
        %v2474 = vunpack.c.l.b16 %v2393
        %v2475 = vunpack.c.l.b16 %v2394
        %v2476 = vunpack.c.l.b16 %v2395
        %v2477 = vunpack.c.l.b16 %v2396
        %v2478 = vunpack.c.l.b16 %v2397
        %v2479 = vunpack.c.l.b16 %v2398
        %v2480 = vunpack.c.l.b16 %v2399
        %v2481 = vunpack.c.l.b16 %v2400
        %v2482 = vunpack.c.l.b16 %v2401
        %v2483 = vunpack.c.l.b16 %v2402
        %v2484 = vunpack.c.l.b16 %v2403
        %v2485 = vunpack.c.l.b16 %v2404
        %v2486 = vunpack.c.l.b16 %v2405
        %v2487 = vunpack.c.l.b16 %v2406
        %v2488 = vunpack.c.l.b16 %v2407
        %v2489 = vunpack.c.l.b16 %v2408
        %v2490 = vunpack.c.l.b16 %v2409
        %v2491 = vunpack.c.l.b16 %v2410
        %v2492 = vunpack.c.l.b16 %v2411
        %v2493 = vunpack.c.l.b16 %v2412
        %v2494 = vunpack.c.l.b16 %v2413
        %v2495 = vunpack.c.l.b16 %v2414
        %v2496 = vunpack.c.l.b16 %v2415
        %v2497 = vpack.c.b16 %v2466, %v2465
        %v2498 = vpack.c.b16 %v2468, %v2467
        %v2499 = vpack.c.b16 %v2470, %v2469
        %v2500 = vpack.c.b16 %v2472, %v2471
        %v2501 = vpack.c.b16 %v2474, %v2473
        %v2502 = vpack.c.b16 %v2476, %v2475
        %v2503 = vpack.c.b16 %v2478, %v2477
        %v2504 = vpack.c.b16 %v2480, %v2479
        %v2505 = vpack.c.b16 %v2482, %v2481
        %v2506 = vpack.c.b16 %v2484, %v2483
        %v2507 = vpack.c.b16 %v2486, %v2485
        %v2508 = vpack.c.b16 %v2488, %v2487
        %v2509 = vpack.c.b16 %v2490, %v2489
        %v2510 = vpack.c.b16 %v2492, %v2491
        %v2511 = vpack.c.b16 %v2494, %v2493
        %v2512 = vpack.c.b16 %v2496, %v2495
        %v2545 = vunpack.c.l.b16 %v2417
        %v2546 = vunpack.c.l.b16 %v2418
        %v2547 = vunpack.c.l.b16 %v2419
        %v2548 = vunpack.c.l.b16 %v2420
        %v2549 = vunpack.c.l.b16 %v2421
        %v2550 = vunpack.c.l.b16 %v2422
        %v2551 = vunpack.c.l.b16 %v2423
        %v2552 = vunpack.c.l.b16 %v2424
        %v2553 = vunpack.c.l.b16 %v2425
        %v2554 = vunpack.c.l.b16 %v2426
        %v2555 = vunpack.c.l.b16 %v2427
        %v2556 = vunpack.c.l.b16 %v2428
        %v2557 = vunpack.c.l.b16 %v2429
        %v2558 = vunpack.c.l.b16 %v2430
        %v2559 = vunpack.c.l.b16 %v2431
        %v2560 = vunpack.c.l.b16 %v2432
        %v2561 = vpack.c.b16 %v2546, %v2545
        %v2562 = vpack.c.b16 %v2548, %v2547
        %v2563 = vpack.c.b16 %v2550, %v2549
        %v2564 = vpack.c.b16 %v2552, %v2551
        %v2565 = vpack.c.b16 %v2554, %v2553
        %v2566 = vpack.c.b16 %v2556, %v2555
        %v2567 = vpack.c.b16 %v2558, %v2557
        %v2568 = vpack.c.b16 %v2560, %v2559
        %2577 = vmatpush.bf16.msra.mxu0 %v2568
        %2578 = vmatpush.bf16.msra.mxu0 %v2567
        %2579 = vmatpush.bf16.msra.mxu0 %v2566
        %2580 = vmatpush.bf16.msra.mxu0 %v2565
        %2581 = vmatpush.bf16.msra.mxu0 %v2564
        %2582 = vmatpush.bf16.msra.mxu0 %v2563
        %2583 = vmatpush.bf16.msra.mxu0 %v2562
        %2584 = vmatpush.bf16.msra.mxu0 %v2561
        %2585 = vmatmul.bf16.gmra.mxu0 %v2497
        %v2586 = vpop.f32.mrf.mxu0
        %v2587 = vadd.f32 0.0, %v2586
        %v2588 = vpop.f32.mrf.mxu0
        %v2589 = vadd.f32 0.0, %v2588
        %2590 = vmatmul.bf16.gmra.mxu0 %v2498
        %v2591 = vpop.f32.mrf.mxu0
        %v2592 = vadd.f32 0.0, %v2591
        %v2593 = vpop.f32.mrf.mxu0
        %v2594 = vadd.f32 0.0, %v2593
        %2595 = vmatmul.bf16.gmra.mxu0 %v2499
        %v2596 = vpop.f32.mrf.mxu0
        %v2597 = vadd.f32 0.0, %v2596
        %v2598 = vpop.f32.mrf.mxu0
        %v2599 = vadd.f32 0.0, %v2598
        %2600 = vmatmul.bf16.gmra.mxu0 %v2500
        %v2601 = vpop.f32.mrf.mxu0
        %v2602 = vadd.f32 0.0, %v2601
        %v2603 = vpop.f32.mrf.mxu0
        %v2604 = vadd.f32 0.0, %v2603
        %2605 = vmatmul.bf16.gmra.mxu0 %v2501
        %v2606 = vpop.f32.mrf.mxu0
        %v2607 = vadd.f32 0.0, %v2606
        %v2608 = vpop.f32.mrf.mxu0
        %v2609 = vadd.f32 0.0, %v2608
        %2610 = vmatmul.bf16.gmra.mxu0 %v2502
        %v2611 = vpop.f32.mrf.mxu0
        %v2612 = vadd.f32 0.0, %v2611
        %v2613 = vpop.f32.mrf.mxu0
        %v2614 = vadd.f32 0.0, %v2613
        %2615 = vmatmul.bf16.gmra.mxu0 %v2503
        %v2616 = vpop.f32.mrf.mxu0
        %v2617 = vadd.f32 0.0, %v2616
        %v2618 = vpop.f32.mrf.mxu0
        %v2619 = vadd.f32 0.0, %v2618
        %2620 = vmatmul.bf16.gmra.mxu0 %v2504
        %v2621 = vpop.f32.mrf.mxu0
        %v2622 = vadd.f32 0.0, %v2621
        %v2623 = vpop.f32.mrf.mxu0
        %v2624 = vadd.f32 0.0, %v2623
        %2625 = vmatmul.bf16.gmra.mxu0 %v2505
        %v2626 = vpop.f32.mrf.mxu0
        %v2627 = vadd.f32 0.0, %v2626
        %v2628 = vpop.f32.mrf.mxu0
        %v2629 = vadd.f32 0.0, %v2628
        %2630 = vmatmul.bf16.gmra.mxu0 %v2506
        %v2631 = vpop.f32.mrf.mxu0
        %v2632 = vadd.f32 0.0, %v2631
        %v2633 = vpop.f32.mrf.mxu0
        %v2634 = vadd.f32 0.0, %v2633
        %2635 = vmatmul.bf16.gmra.mxu0 %v2507
        %v2636 = vpop.f32.mrf.mxu0
        %v2637 = vadd.f32 0.0, %v2636
        %v2638 = vpop.f32.mrf.mxu0
        %v2639 = vadd.f32 0.0, %v2638
        %2640 = vmatmul.bf16.gmra.mxu0 %v2508
        %v2641 = vpop.f32.mrf.mxu0
        %v2642 = vadd.f32 0.0, %v2641
        %v2643 = vpop.f32.mrf.mxu0
        %v2644 = vadd.f32 0.0, %v2643
        %2645 = vmatmul.bf16.gmra.mxu0 %v2509
        %v2646 = vpop.f32.mrf.mxu0
        %v2647 = vadd.f32 0.0, %v2646
        %v2648 = vpop.f32.mrf.mxu0
        %v2649 = vadd.f32 0.0, %v2648
        %2650 = vmatmul.bf16.gmra.mxu0 %v2510
        %v2651 = vpop.f32.mrf.mxu0
        %v2652 = vadd.f32 0.0, %v2651
        %v2653 = vpop.f32.mrf.mxu0
        %v2654 = vadd.f32 0.0, %v2653
        %2655 = vmatmul.bf16.gmra.mxu0 %v2511
        %v2656 = vpop.f32.mrf.mxu0
        %v2657 = vadd.f32 0.0, %v2656
        %v2658 = vpop.f32.mrf.mxu0
        %v2659 = vadd.f32 0.0, %v2658
        %2660 = vmatmul.bf16.gmra.mxu0 %v2512
        %v2661 = vpop.f32.mrf.mxu0
        %v2662 = vadd.f32 0.0, %v2661
        %v2663 = vpop.f32.mrf.mxu0
        %v2664 = vadd.f32 0.0, %v2663
        %2665 = vdwg.mxu0
        %v2666 = vadd.f32 %v2352, %v2587
        %v2667 = vadd.f32 %v2353, %v2589
        %v2668 = vadd.f32 %v2354, %v2592
        %v2669 = vadd.f32 %v2355, %v2594
        %v2670 = vadd.f32 %v2356, %v2597
        %v2671 = vadd.f32 %v2357, %v2599
        %v2672 = vadd.f32 %v2358, %v2602
        %v2673 = vadd.f32 %v2359, %v2604
        %v2674 = vadd.f32 %v2360, %v2607
        %v2675 = vadd.f32 %v2361, %v2609
        %v2676 = vadd.f32 %v2362, %v2612
        %v2677 = vadd.f32 %v2363, %v2614
        %v2678 = vadd.f32 %v2364, %v2617
        %v2679 = vadd.f32 %v2365, %v2619
        %v2680 = vadd.f32 %v2366, %v2622
        %v2681 = vadd.f32 %v2367, %v2624
        %v2682 = vadd.f32 %v2368, %v2627
        %v2683 = vadd.f32 %v2369, %v2629
        %v2684 = vadd.f32 %v2370, %v2632
        %v2685 = vadd.f32 %v2371, %v2634
        %v2686 = vadd.f32 %v2372, %v2637
        %v2687 = vadd.f32 %v2373, %v2639
        %v2688 = vadd.f32 %v2374, %v2642
        %v2689 = vadd.f32 %v2375, %v2644
        %v2690 = vadd.f32 %v2376, %v2647
        %v2691 = vadd.f32 %v2377, %v2649
        %v2692 = vadd.f32 %v2378, %v2652
        %v2693 = vadd.f32 %v2379, %v2654
        %v2694 = vadd.f32 %v2380, %v2657
        %v2695 = vadd.f32 %v2381, %v2659
        %v2696 = vadd.f32 %v2382, %v2662
        %v2697 = vadd.f32 %v2383, %v2664
        %v2698 = vld [vmem:[%s954] sm:$0xf]
        %v2699 = vld [vmem:[%s954 + $0x4] sm:$0xf]
        %v2700 = vld [vmem:[%s954 + $0x8] sm:$0x1]
        %v2701 = vld [vmem:[%s954 + $0xc] sm:$0xf]
        %v2702 = vld [vmem:[%s954 + $0x10] sm:$0xf]
        %v2703 = vld [vmem:[%s954 + $0x14] sm:$0x1]
        %v2704 = vld [vmem:[%s954 + $0x18] sm:$0xf]
        %v2705 = vld [vmem:[%s954 + $0x1c] sm:$0xf]
        %v2706 = vld [vmem:[%s954 + $0x20] sm:$0x1]
        %v2707 = vld [vmem:[%s954 + $0x24] sm:$0xf]
        %v2708 = vld [vmem:[%s954 + $0x28] sm:$0xf]
        %v2709 = vld [vmem:[%s954 + $0x2c] sm:$0x1]
        %v2710 = vld [vmem:[%s954 + $0x30] sm:$0xf]
        %v2711 = vld [vmem:[%s954 + $0x34] sm:$0xf]
        %v2712 = vld [vmem:[%s954 + $0x38] sm:$0x1]
        %v2713 = vld [vmem:[%s954 + $0x3c] sm:$0xf]
        %v2714 = vld [vmem:[%s954 + $0x40] sm:$0xf]
        %v2715 = vld [vmem:[%s954 + $0x44] sm:$0x1]
        %v2716 = vld [vmem:[%s954 + $0x48] sm:$0xf]
        %v2717 = vld [vmem:[%s954 + $0x4c] sm:$0xf]
        %v2718 = vld [vmem:[%s954 + $0x50] sm:$0x1]
        %v2719 = vld [vmem:[%s954 + $0x54] sm:$0xf]
        %v2720 = vld [vmem:[%s954 + $0x58] sm:$0xf]
        %v2721 = vld [vmem:[%s954 + $0x5c] sm:$0x1]
        %v2722 = vld [vmem:[%s954 + $0x60] sm:$0xf]
        %v2723 = vld [vmem:[%s954 + $0x64] sm:$0xf]
        %v2724 = vld [vmem:[%s954 + $0x68] sm:$0x1]
        %v2725 = vld [vmem:[%s954 + $0x6c] sm:$0xf]
        %v2726 = vld [vmem:[%s954 + $0x70] sm:$0xf]
        %v2727 = vld [vmem:[%s954 + $0x74] sm:$0x1]
        %v2728 = vld [vmem:[%s954 + $0x78] sm:$0xf]
        %v2729 = vld [vmem:[%s954 + $0x7c] sm:$0xf]
        %v2730 = vld [vmem:[%s954 + $0x80] sm:$0x1]
        %v2731 = vld [vmem:[%s954 + $0x84] sm:$0xf]
        %v2732 = vld [vmem:[%s954 + $0x88] sm:$0xf]
        %v2733 = vld [vmem:[%s954 + $0x8c] sm:$0x1]
        %v2734 = vld [vmem:[%s954 + $0x90] sm:$0xf]
        %v2735 = vld [vmem:[%s954 + $0x94] sm:$0xf]
        %v2736 = vld [vmem:[%s954 + $0x98] sm:$0x1]
        %v2737 = vld [vmem:[%s954 + $0x9c] sm:$0xf]
        %v2738 = vld [vmem:[%s954 + $0xa0] sm:$0xf]
        %v2739 = vld [vmem:[%s954 + $0xa4] sm:$0x1]
        %v2740 = vld [vmem:[%s954 + $0xa8] sm:$0xf]
        %v2741 = vld [vmem:[%s954 + $0xac] sm:$0xf]
        %v2742 = vld [vmem:[%s954 + $0xb0] sm:$0x1]
        %v2743 = vld [vmem:[%s954 + $0xb4] sm:$0xf]
        %v2744 = vld [vmem:[%s954 + $0xb8] sm:$0xf]
        %v2745 = vld [vmem:[%s954 + $0xbc] sm:$0x1]
        %v2747 = vshrl.u32 %v2698, 16
        %v2749 = vrot.slane %v2747, 4
        %v2750 = vshll.u32 %v2698, 16
        %v2752 = vrot.slane %v2750, 5
        %v2753 = vor.u32 %v2749, %v2752
        %v2754 = vrot.slane %v2753, 4
        %v2756 = vshll.u32 %v2699, 16
        %v2758 = vrot.slane %v2756, 5
        %v2759 = vsel %vm1135, %v2754, %v2758
        %v2760 = vshrl.u32 %v2699, 16
        %v2762 = vrot.slane %v2760, 4
        %v2763 = vor.u32 %v2762, %v2758
        %v2764 = vrot.slane %v2763, 4
        %v2766 = vshll.u32 %v2700, 16
        %v2768 = vrot.slane %v2766, 5
        %v2769 = vsel %vm1135, %v2764, %v2768
        %v2771 = vshrl.u32 %v2701, 16
        %v2773 = vrot.slane %v2771, 4
        %v2774 = vshll.u32 %v2701, 16
        %v2776 = vrot.slane %v2774, 5
        %v2777 = vor.u32 %v2773, %v2776
        %v2778 = vrot.slane %v2777, 4
        %v2780 = vshll.u32 %v2702, 16
        %v2782 = vrot.slane %v2780, 5
        %v2783 = vsel %vm1135, %v2778, %v2782
        %v2784 = vshrl.u32 %v2702, 16
        %v2786 = vrot.slane %v2784, 4
        %v2787 = vor.u32 %v2786, %v2782
        %v2788 = vrot.slane %v2787, 4
        %v2790 = vshll.u32 %v2703, 16
        %v2792 = vrot.slane %v2790, 5
        %v2793 = vsel %vm1135, %v2788, %v2792
        %v2795 = vshrl.u32 %v2704, 16
        %v2797 = vrot.slane %v2795, 4
        %v2798 = vshll.u32 %v2704, 16
        %v2800 = vrot.slane %v2798, 5
        %v2801 = vor.u32 %v2797, %v2800
        %v2802 = vrot.slane %v2801, 4
        %v2804 = vshll.u32 %v2705, 16
        %v2806 = vrot.slane %v2804, 5
        %v2807 = vsel %vm1135, %v2802, %v2806
        %v2808 = vshrl.u32 %v2705, 16
        %v2810 = vrot.slane %v2808, 4
        %v2811 = vor.u32 %v2810, %v2806
        %v2812 = vrot.slane %v2811, 4
        %v2814 = vshll.u32 %v2706, 16
        %v2816 = vrot.slane %v2814, 5
        %v2817 = vsel %vm1135, %v2812, %v2816
        %v2819 = vshrl.u32 %v2707, 16
        %v2821 = vrot.slane %v2819, 4
        %v2822 = vshll.u32 %v2707, 16
        %v2824 = vrot.slane %v2822, 5
        %v2825 = vor.u32 %v2821, %v2824
        %v2826 = vrot.slane %v2825, 4
        %v2828 = vshll.u32 %v2708, 16
        %v2830 = vrot.slane %v2828, 5
        %v2831 = vsel %vm1135, %v2826, %v2830
        %v2832 = vshrl.u32 %v2708, 16
        %v2834 = vrot.slane %v2832, 4
        %v2835 = vor.u32 %v2834, %v2830
        %v2836 = vrot.slane %v2835, 4
        %v2838 = vshll.u32 %v2709, 16
        %v2840 = vrot.slane %v2838, 5
        %v2841 = vsel %vm1135, %v2836, %v2840
        %v2843 = vshrl.u32 %v2710, 16
        %v2845 = vrot.slane %v2843, 4
        %v2846 = vshll.u32 %v2710, 16
        %v2848 = vrot.slane %v2846, 5
        %v2849 = vor.u32 %v2845, %v2848
        %v2850 = vrot.slane %v2849, 4
        %v2852 = vshll.u32 %v2711, 16
        %v2854 = vrot.slane %v2852, 5
        %v2855 = vsel %vm1135, %v2850, %v2854
        %v2856 = vshrl.u32 %v2711, 16
        %v2858 = vrot.slane %v2856, 4
        %v2859 = vor.u32 %v2858, %v2854
        %v2860 = vrot.slane %v2859, 4
        %v2862 = vshll.u32 %v2712, 16
        %v2864 = vrot.slane %v2862, 5
        %v2865 = vsel %vm1135, %v2860, %v2864
        %v2867 = vshrl.u32 %v2713, 16
        %v2869 = vrot.slane %v2867, 4
        %v2870 = vshll.u32 %v2713, 16
        %v2872 = vrot.slane %v2870, 5
        %v2873 = vor.u32 %v2869, %v2872
        %v2874 = vrot.slane %v2873, 4
        %v2876 = vshll.u32 %v2714, 16
        %v2878 = vrot.slane %v2876, 5
        %v2879 = vsel %vm1135, %v2874, %v2878
        %v2880 = vshrl.u32 %v2714, 16
        %v2882 = vrot.slane %v2880, 4
        %v2883 = vor.u32 %v2882, %v2878
        %v2884 = vrot.slane %v2883, 4
        %v2886 = vshll.u32 %v2715, 16
        %v2888 = vrot.slane %v2886, 5
        %v2889 = vsel %vm1135, %v2884, %v2888
        %v2891 = vshrl.u32 %v2716, 16
        %v2893 = vrot.slane %v2891, 4
        %v2894 = vshll.u32 %v2716, 16
        %v2896 = vrot.slane %v2894, 5
        %v2897 = vor.u32 %v2893, %v2896
        %v2898 = vrot.slane %v2897, 4
        %v2900 = vshll.u32 %v2717, 16
        %v2902 = vrot.slane %v2900, 5
        %v2903 = vsel %vm1135, %v2898, %v2902
        %v2904 = vshrl.u32 %v2717, 16
        %v2906 = vrot.slane %v2904, 4
        %v2907 = vor.u32 %v2906, %v2902
        %v2908 = vrot.slane %v2907, 4
        %v2910 = vshll.u32 %v2718, 16
        %v2912 = vrot.slane %v2910, 5
        %v2913 = vsel %vm1135, %v2908, %v2912
        %v2915 = vshrl.u32 %v2719, 16
        %v2917 = vrot.slane %v2915, 4
        %v2918 = vshll.u32 %v2719, 16
        %v2920 = vrot.slane %v2918, 5
        %v2921 = vor.u32 %v2917, %v2920
        %v2922 = vrot.slane %v2921, 4
        %v2924 = vshll.u32 %v2720, 16
        %v2926 = vrot.slane %v2924, 5
        %v2927 = vsel %vm1135, %v2922, %v2926
        %v2928 = vshrl.u32 %v2720, 16
        %v2930 = vrot.slane %v2928, 4
        %v2931 = vor.u32 %v2930, %v2926
        %v2932 = vrot.slane %v2931, 4
        %v2934 = vshll.u32 %v2721, 16
        %v2936 = vrot.slane %v2934, 5
        %v2937 = vsel %vm1135, %v2932, %v2936
        %v2939 = vshrl.u32 %v2722, 16
        %v2941 = vrot.slane %v2939, 4
        %v2942 = vshll.u32 %v2722, 16
        %v2944 = vrot.slane %v2942, 5
        %v2945 = vor.u32 %v2941, %v2944
        %v2946 = vrot.slane %v2945, 4
        %v2948 = vshll.u32 %v2723, 16
        %v2950 = vrot.slane %v2948, 5
        %v2951 = vsel %vm1135, %v2946, %v2950
        %v2952 = vshrl.u32 %v2723, 16
        %v2954 = vrot.slane %v2952, 4
        %v2955 = vor.u32 %v2954, %v2950
        %v2956 = vrot.slane %v2955, 4
        %v2958 = vshll.u32 %v2724, 16
        %v2960 = vrot.slane %v2958, 5
        %v2961 = vsel %vm1135, %v2956, %v2960
        %v2963 = vshrl.u32 %v2725, 16
        %v2965 = vrot.slane %v2963, 4
        %v2966 = vshll.u32 %v2725, 16
        %v2968 = vrot.slane %v2966, 5
        %v2969 = vor.u32 %v2965, %v2968
        %v2970 = vrot.slane %v2969, 4
        %v2972 = vshll.u32 %v2726, 16
        %v2974 = vrot.slane %v2972, 5
        %v2975 = vsel %vm1135, %v2970, %v2974
        %v2976 = vshrl.u32 %v2726, 16
        %v2978 = vrot.slane %v2976, 4
        %v2979 = vor.u32 %v2978, %v2974
        %v2980 = vrot.slane %v2979, 4
        %v2982 = vshll.u32 %v2727, 16
        %v2984 = vrot.slane %v2982, 5
        %v2985 = vsel %vm1135, %v2980, %v2984
        %v2987 = vshrl.u32 %v2728, 16
        %v2989 = vrot.slane %v2987, 4
        %v2990 = vshll.u32 %v2728, 16
        %v2992 = vrot.slane %v2990, 5
        %v2993 = vor.u32 %v2989, %v2992
        %v2994 = vrot.slane %v2993, 4
        %v2996 = vshll.u32 %v2729, 16
        %v2998 = vrot.slane %v2996, 5
        %v2999 = vsel %vm1135, %v2994, %v2998
        %v3000 = vshrl.u32 %v2729, 16
        %v3002 = vrot.slane %v3000, 4
        %v3003 = vor.u32 %v3002, %v2998
        %v3004 = vrot.slane %v3003, 4
        %v3006 = vshll.u32 %v2730, 16
        %v3008 = vrot.slane %v3006, 5
        %v3009 = vsel %vm1135, %v3004, %v3008
        %v3011 = vshrl.u32 %v2731, 16
        %v3013 = vrot.slane %v3011, 4
        %v3014 = vshll.u32 %v2731, 16
        %v3016 = vrot.slane %v3014, 5
        %v3017 = vor.u32 %v3013, %v3016
        %v3018 = vrot.slane %v3017, 4
        %v3020 = vshll.u32 %v2732, 16
        %v3022 = vrot.slane %v3020, 5
        %v3023 = vsel %vm1135, %v3018, %v3022
        %v3024 = vshrl.u32 %v2732, 16
        %v3026 = vrot.slane %v3024, 4
        %v3027 = vor.u32 %v3026, %v3022
        %v3028 = vrot.slane %v3027, 4
        %v3030 = vshll.u32 %v2733, 16
        %v3032 = vrot.slane %v3030, 5
        %v3033 = vsel %vm1135, %v3028, %v3032
        %v3035 = vshrl.u32 %v2734, 16
        %v3037 = vrot.slane %v3035, 4
        %v3038 = vshll.u32 %v2734, 16
        %v3040 = vrot.slane %v3038, 5
        %v3041 = vor.u32 %v3037, %v3040
        %v3042 = vrot.slane %v3041, 4
        %v3044 = vshll.u32 %v2735, 16
        %v3046 = vrot.slane %v3044, 5
        %v3047 = vsel %vm1135, %v3042, %v3046
        %v3048 = vshrl.u32 %v2735, 16
        %v3050 = vrot.slane %v3048, 4
        %v3051 = vor.u32 %v3050, %v3046
        %v3052 = vrot.slane %v3051, 4
        %v3054 = vshll.u32 %v2736, 16
        %v3056 = vrot.slane %v3054, 5
        %v3057 = vsel %vm1135, %v3052, %v3056
        %v3059 = vshrl.u32 %v2737, 16
        %v3061 = vrot.slane %v3059, 4
        %v3062 = vshll.u32 %v2737, 16
        %v3064 = vrot.slane %v3062, 5
        %v3065 = vor.u32 %v3061, %v3064
        %v3066 = vrot.slane %v3065, 4
        %v3068 = vshll.u32 %v2738, 16
        %v3070 = vrot.slane %v3068, 5
        %v3071 = vsel %vm1135, %v3066, %v3070
        %v3072 = vshrl.u32 %v2738, 16
        %v3074 = vrot.slane %v3072, 4
        %v3075 = vor.u32 %v3074, %v3070
        %v3076 = vrot.slane %v3075, 4
        %v3078 = vshll.u32 %v2739, 16
        %v3080 = vrot.slane %v3078, 5
        %v3081 = vsel %vm1135, %v3076, %v3080
        %v3083 = vshrl.u32 %v2740, 16
        %v3085 = vrot.slane %v3083, 4
        %v3086 = vshll.u32 %v2740, 16
        %v3088 = vrot.slane %v3086, 5
        %v3089 = vor.u32 %v3085, %v3088
        %v3090 = vrot.slane %v3089, 4
        %v3092 = vshll.u32 %v2741, 16
        %v3094 = vrot.slane %v3092, 5
        %v3095 = vsel %vm1135, %v3090, %v3094
        %v3096 = vshrl.u32 %v2741, 16
        %v3098 = vrot.slane %v3096, 4
        %v3099 = vor.u32 %v3098, %v3094
        %v3100 = vrot.slane %v3099, 4
        %v3102 = vshll.u32 %v2742, 16
        %v3104 = vrot.slane %v3102, 5
        %v3105 = vsel %vm1135, %v3100, %v3104
        %v3107 = vshrl.u32 %v2743, 16
        %v3109 = vrot.slane %v3107, 4
        %v3110 = vshll.u32 %v2743, 16
        %v3112 = vrot.slane %v3110, 5
        %v3113 = vor.u32 %v3109, %v3112
        %v3114 = vrot.slane %v3113, 4
        %v3116 = vshll.u32 %v2744, 16
        %v3118 = vrot.slane %v3116, 5
        %v3119 = vsel %vm1135, %v3114, %v3118
        %v3120 = vshrl.u32 %v2744, 16
        %v3122 = vrot.slane %v3120, 4
        %v3123 = vor.u32 %v3122, %v3118
        %v3124 = vrot.slane %v3123, 4
        %v3126 = vshll.u32 %v2745, 16
        %v3128 = vrot.slane %v3126, 5
        %v3129 = vsel %vm1135, %v3124, %v3128
        %s3130 = scalar_lea.vmem [#allocation7], 256
        %v3131 = vld [vmem:[%s3130] sm:$0xf]
        %v3132 = vld [vmem:[%s3130 + $0x4] sm:$0xf]
        %v3133 = vld [vmem:[%s3130 + $0x8] sm:$0xf]
        %v3134 = vld [vmem:[%s3130 + $0xc] sm:$0xf]
        %v3135 = vld [vmem:[%s3130 + $0x10] sm:$0xf]
        %v3136 = vld [vmem:[%s3130 + $0x14] sm:$0xf]
        %v3137 = vld [vmem:[%s3130 + $0x18] sm:$0xf]
        %v3138 = vld [vmem:[%s3130 + $0x1c] sm:$0xf]
        %v3139 = vld [vmem:[%s3130 + $0x20] sm:$0xf]
        %v3140 = vld [vmem:[%s3130 + $0x24] sm:$0xf]
        %v3141 = vld [vmem:[%s3130 + $0x28] sm:$0xf]
        %v3142 = vld [vmem:[%s3130 + $0x2c] sm:$0xf]
        %v3143 = vld [vmem:[%s3130 + $0x30] sm:$0xf]
        %v3144 = vld [vmem:[%s3130 + $0x34] sm:$0xf]
        %v3145 = vld [vmem:[%s3130 + $0x38] sm:$0xf]
        %v3146 = vld [vmem:[%s3130 + $0x3c] sm:$0xf]
        %v3147 = vunpack.c.l.b16 %v2759
        %v3148 = vunpack.c.l.b16 %v2769
        %v3149 = vunpack.c.l.b16 %v2783
        %v3150 = vunpack.c.l.b16 %v2793
        %v3151 = vunpack.c.l.b16 %v2807
        %v3152 = vunpack.c.l.b16 %v2817
        %v3153 = vunpack.c.l.b16 %v2831
        %v3154 = vunpack.c.l.b16 %v2841
        %v3155 = vunpack.c.l.b16 %v2855
        %v3156 = vunpack.c.l.b16 %v2865
        %v3157 = vunpack.c.l.b16 %v2879
        %v3158 = vunpack.c.l.b16 %v2889
        %v3159 = vunpack.c.l.b16 %v2903
        %v3160 = vunpack.c.l.b16 %v2913
        %v3161 = vunpack.c.l.b16 %v2927
        %v3162 = vunpack.c.l.b16 %v2937
        %v3163 = vunpack.c.l.b16 %v2951
        %v3164 = vunpack.c.l.b16 %v2961
        %v3165 = vunpack.c.l.b16 %v2975
        %v3166 = vunpack.c.l.b16 %v2985
        %v3167 = vunpack.c.l.b16 %v2999
        %v3168 = vunpack.c.l.b16 %v3009
        %v3169 = vunpack.c.l.b16 %v3023
        %v3170 = vunpack.c.l.b16 %v3033
        %v3171 = vunpack.c.l.b16 %v3047
        %v3172 = vunpack.c.l.b16 %v3057
        %v3173 = vunpack.c.l.b16 %v3071
        %v3174 = vunpack.c.l.b16 %v3081
        %v3175 = vunpack.c.l.b16 %v3095
        %v3176 = vunpack.c.l.b16 %v3105
        %v3177 = vunpack.c.l.b16 %v3119
        %v3178 = vunpack.c.l.b16 %v3129
        %v3179 = vpack.c.b16 %v3148, %v3147
        %v3180 = vpack.c.b16 %v3150, %v3149
        %v3181 = vpack.c.b16 %v3152, %v3151
        %v3182 = vpack.c.b16 %v3154, %v3153
        %v3183 = vpack.c.b16 %v3156, %v3155
        %v3184 = vpack.c.b16 %v3158, %v3157
        %v3185 = vpack.c.b16 %v3160, %v3159
        %v3186 = vpack.c.b16 %v3162, %v3161
        %v3187 = vpack.c.b16 %v3164, %v3163
        %v3188 = vpack.c.b16 %v3166, %v3165
        %v3189 = vpack.c.b16 %v3168, %v3167
        %v3190 = vpack.c.b16 %v3170, %v3169
        %v3191 = vpack.c.b16 %v3172, %v3171
        %v3192 = vpack.c.b16 %v3174, %v3173
        %v3193 = vpack.c.b16 %v3176, %v3175
        %v3194 = vpack.c.b16 %v3178, %v3177
        %v3227 = vunpack.c.l.b16 %v3131
        %v3228 = vunpack.c.l.b16 %v3132
        %v3229 = vunpack.c.l.b16 %v3133
        %v3230 = vunpack.c.l.b16 %v3134
        %v3231 = vunpack.c.l.b16 %v3135
        %v3232 = vunpack.c.l.b16 %v3136
        %v3233 = vunpack.c.l.b16 %v3137
        %v3234 = vunpack.c.l.b16 %v3138
        %v3235 = vunpack.c.l.b16 %v3139
        %v3236 = vunpack.c.l.b16 %v3140
        %v3237 = vunpack.c.l.b16 %v3141
        %v3238 = vunpack.c.l.b16 %v3142
        %v3239 = vunpack.c.l.b16 %v3143
        %v3240 = vunpack.c.l.b16 %v3144
        %v3241 = vunpack.c.l.b16 %v3145
        %v3242 = vunpack.c.l.b16 %v3146
        %v3243 = vpack.c.b16 %v3228, %v3227
        %v3244 = vpack.c.b16 %v3230, %v3229
        %v3245 = vpack.c.b16 %v3232, %v3231
        %v3246 = vpack.c.b16 %v3234, %v3233
        %v3247 = vpack.c.b16 %v3236, %v3235
        %v3248 = vpack.c.b16 %v3238, %v3237
        %v3249 = vpack.c.b16 %v3240, %v3239
        %v3250 = vpack.c.b16 %v3242, %v3241
        %3259 = vmatpush.bf16.msra.mxu0 %v3250
        %3260 = vmatpush.bf16.msra.mxu0 %v3249
        %3261 = vmatpush.bf16.msra.mxu0 %v3248
        %3262 = vmatpush.bf16.msra.mxu0 %v3247
        %3263 = vmatpush.bf16.msra.mxu0 %v3246
        %3264 = vmatpush.bf16.msra.mxu0 %v3245
        %3265 = vmatpush.bf16.msra.mxu0 %v3244
        %3266 = vmatpush.bf16.msra.mxu0 %v3243
        %3267 = vmatmul.bf16.gmra.mxu0 %v3179
        %v3268 = vpop.f32.mrf.mxu0
        %v3269 = vadd.f32 0.0, %v3268
        %v3270 = vpop.f32.mrf.mxu0
        %v3271 = vadd.f32 0.0, %v3270
        %3272 = vmatmul.bf16.gmra.mxu0 %v3180
        %v3273 = vpop.f32.mrf.mxu0
        %v3274 = vadd.f32 0.0, %v3273
        %v3275 = vpop.f32.mrf.mxu0
        %v3276 = vadd.f32 0.0, %v3275
        %3277 = vmatmul.bf16.gmra.mxu0 %v3181
        %v3278 = vpop.f32.mrf.mxu0
        %v3279 = vadd.f32 0.0, %v3278
        %v3280 = vpop.f32.mrf.mxu0
        %v3281 = vadd.f32 0.0, %v3280
        %3282 = vmatmul.bf16.gmra.mxu0 %v3182
        %v3283 = vpop.f32.mrf.mxu0
        %v3284 = vadd.f32 0.0, %v3283
        %v3285 = vpop.f32.mrf.mxu0
        %v3286 = vadd.f32 0.0, %v3285
        %3287 = vmatmul.bf16.gmra.mxu0 %v3183
        %v3288 = vpop.f32.mrf.mxu0
        %v3289 = vadd.f32 0.0, %v3288
        %v3290 = vpop.f32.mrf.mxu0
        %v3291 = vadd.f32 0.0, %v3290
        %3292 = vmatmul.bf16.gmra.mxu0 %v3184
        %v3293 = vpop.f32.mrf.mxu0
        %v3294 = vadd.f32 0.0, %v3293
        %v3295 = vpop.f32.mrf.mxu0
        %v3296 = vadd.f32 0.0, %v3295
        %3297 = vmatmul.bf16.gmra.mxu0 %v3185
        %v3298 = vpop.f32.mrf.mxu0
        %v3299 = vadd.f32 0.0, %v3298
        %v3300 = vpop.f32.mrf.mxu0
        %v3301 = vadd.f32 0.0, %v3300
        %3302 = vmatmul.bf16.gmra.mxu0 %v3186
        %v3303 = vpop.f32.mrf.mxu0
        %v3304 = vadd.f32 0.0, %v3303
        %v3305 = vpop.f32.mrf.mxu0
        %v3306 = vadd.f32 0.0, %v3305
        %3307 = vmatmul.bf16.gmra.mxu0 %v3187
        %v3308 = vpop.f32.mrf.mxu0
        %v3309 = vadd.f32 0.0, %v3308
        %v3310 = vpop.f32.mrf.mxu0
        %v3311 = vadd.f32 0.0, %v3310
        %3312 = vmatmul.bf16.gmra.mxu0 %v3188
        %v3313 = vpop.f32.mrf.mxu0
        %v3314 = vadd.f32 0.0, %v3313
        %v3315 = vpop.f32.mrf.mxu0
        %v3316 = vadd.f32 0.0, %v3315
        %3317 = vmatmul.bf16.gmra.mxu0 %v3189
        %v3318 = vpop.f32.mrf.mxu0
        %v3319 = vadd.f32 0.0, %v3318
        %v3320 = vpop.f32.mrf.mxu0
        %v3321 = vadd.f32 0.0, %v3320
        %3322 = vmatmul.bf16.gmra.mxu0 %v3190
        %v3323 = vpop.f32.mrf.mxu0
        %v3324 = vadd.f32 0.0, %v3323
        %v3325 = vpop.f32.mrf.mxu0
        %v3326 = vadd.f32 0.0, %v3325
        %3327 = vmatmul.bf16.gmra.mxu0 %v3191
        %v3328 = vpop.f32.mrf.mxu0
        %v3329 = vadd.f32 0.0, %v3328
        %v3330 = vpop.f32.mrf.mxu0
        %v3331 = vadd.f32 0.0, %v3330
        %3332 = vmatmul.bf16.gmra.mxu0 %v3192
        %v3333 = vpop.f32.mrf.mxu0
        %v3334 = vadd.f32 0.0, %v3333
        %v3335 = vpop.f32.mrf.mxu0
        %v3336 = vadd.f32 0.0, %v3335
        %3337 = vmatmul.bf16.gmra.mxu0 %v3193
        %v3338 = vpop.f32.mrf.mxu0
        %v3339 = vadd.f32 0.0, %v3338
        %v3340 = vpop.f32.mrf.mxu0
        %v3341 = vadd.f32 0.0, %v3340
        %3342 = vmatmul.bf16.gmra.mxu0 %v3194
        %v3343 = vpop.f32.mrf.mxu0
        %v3344 = vadd.f32 0.0, %v3343
        %v3345 = vpop.f32.mrf.mxu0
        %v3346 = vadd.f32 0.0, %v3345
        %3347 = vdwg.mxu0
        %v3348 = vadd.f32 %v2666, %v3269
        %v3349 = vadd.f32 %v2667, %v3271
        %v3350 = vadd.f32 %v2668, %v3274
        %v3351 = vadd.f32 %v2669, %v3276
        %v3352 = vadd.f32 %v2670, %v3279
        %v3353 = vadd.f32 %v2671, %v3281
        %v3354 = vadd.f32 %v2672, %v3284
        %v3355 = vadd.f32 %v2673, %v3286
        %v3356 = vadd.f32 %v2674, %v3289
        %v3357 = vadd.f32 %v2675, %v3291
        %v3358 = vadd.f32 %v2676, %v3294
        %v3359 = vadd.f32 %v2677, %v3296
        %v3360 = vadd.f32 %v2678, %v3299
        %v3361 = vadd.f32 %v2679, %v3301
        %v3362 = vadd.f32 %v2680, %v3304
        %v3363 = vadd.f32 %v2681, %v3306
        %v3364 = vadd.f32 %v2682, %v3309
        %v3365 = vadd.f32 %v2683, %v3311
        %v3366 = vadd.f32 %v2684, %v3314
        %v3367 = vadd.f32 %v2685, %v3316
        %v3368 = vadd.f32 %v2686, %v3319
        %v3369 = vadd.f32 %v2687, %v3321
        %v3370 = vadd.f32 %v2688, %v3324
        %v3371 = vadd.f32 %v2689, %v3326
        %v3372 = vadd.f32 %v2690, %v3329
        %v3373 = vadd.f32 %v2691, %v3331
        %v3374 = vadd.f32 %v2692, %v3334
        %v3375 = vadd.f32 %v2693, %v3336
        %v3376 = vadd.f32 %v2694, %v3339
        %v3377 = vadd.f32 %v2695, %v3341
        %v3378 = vadd.f32 %v2696, %v3344
        %v3379 = vadd.f32 %v2697, %v3346
        %v3380 = vld [vmem:[%s954] sm:$0xe]
        %v3381 = vld [vmem:[%s954 + $0xc] sm:$0xe]
        %v3382 = vld [vmem:[%s954 + $0x18] sm:$0xe]
        %v3383 = vld [vmem:[%s954 + $0x24] sm:$0xe]
        %v3384 = vld [vmem:[%s954 + $0x30] sm:$0xe]
        %v3385 = vld [vmem:[%s954 + $0x3c] sm:$0xe]
        %v3386 = vld [vmem:[%s954 + $0x48] sm:$0xe]
        %v3387 = vld [vmem:[%s954 + $0x54] sm:$0xe]
        %v3388 = vld [vmem:[%s954 + $0x60] sm:$0xe]
        %v3389 = vld [vmem:[%s954 + $0x6c] sm:$0xe]
        %v3390 = vld [vmem:[%s954 + $0x78] sm:$0xe]
        %v3391 = vld [vmem:[%s954 + $0x84] sm:$0xe]
        %v3392 = vld [vmem:[%s954 + $0x90] sm:$0xe]
        %v3393 = vld [vmem:[%s954 + $0x9c] sm:$0xe]
        %v3394 = vld [vmem:[%s954 + $0xa8] sm:$0xe]
        %v3395 = vld [vmem:[%s954 + $0xb4] sm:$0xe]
        %v3444 = vrot.slane %v3380, 5
        %v3445 = vrot.slane %v3444, 4
        %v3446 = vrot.slane %v2699, 5
        %v3447 = vsel %vm2021, %v3445, %v3446
        %v3448 = vrot.slane %v3446, 4
        %v3449 = vrot.slane %v2700, 5
        %v3450 = vsel %vm2021, %v3448, %v3449
        %v3451 = vrot.slane %v3381, 5
        %v3452 = vrot.slane %v3451, 4
        %v3453 = vrot.slane %v2702, 5
        %v3454 = vsel %vm2021, %v3452, %v3453
        %v3455 = vrot.slane %v3453, 4
        %v3456 = vrot.slane %v2703, 5
        %v3457 = vsel %vm2021, %v3455, %v3456
        %v3458 = vrot.slane %v3382, 5
        %v3459 = vrot.slane %v3458, 4
        %v3460 = vrot.slane %v2705, 5
        %v3461 = vsel %vm2021, %v3459, %v3460
        %v3462 = vrot.slane %v3460, 4
        %v3463 = vrot.slane %v2706, 5
        %v3464 = vsel %vm2021, %v3462, %v3463
        %v3465 = vrot.slane %v3383, 5
        %v3466 = vrot.slane %v3465, 4
        %v3467 = vrot.slane %v2708, 5
        %v3468 = vsel %vm2021, %v3466, %v3467
        %v3469 = vrot.slane %v3467, 4
        %v3470 = vrot.slane %v2709, 5
        %v3471 = vsel %vm2021, %v3469, %v3470
        %v3472 = vrot.slane %v3384, 5
        %v3473 = vrot.slane %v3472, 4
        %v3474 = vrot.slane %v2711, 5
        %v3475 = vsel %vm2021, %v3473, %v3474
        %v3476 = vrot.slane %v3474, 4
        %v3477 = vrot.slane %v2712, 5
        %v3478 = vsel %vm2021, %v3476, %v3477
        %v3479 = vrot.slane %v3385, 5
        %v3480 = vrot.slane %v3479, 4
        %v3481 = vrot.slane %v2714, 5
        %v3482 = vsel %vm2021, %v3480, %v3481
        %v3483 = vrot.slane %v3481, 4
        %v3484 = vrot.slane %v2715, 5
        %v3485 = vsel %vm2021, %v3483, %v3484
        %v3486 = vrot.slane %v3386, 5
        %v3487 = vrot.slane %v3486, 4
        %v3488 = vrot.slane %v2717, 5
        %v3489 = vsel %vm2021, %v3487, %v3488
        %v3490 = vrot.slane %v3488, 4
        %v3491 = vrot.slane %v2718, 5
        %v3492 = vsel %vm2021, %v3490, %v3491
        %v3493 = vrot.slane %v3387, 5
        %v3494 = vrot.slane %v3493, 4
        %v3495 = vrot.slane %v2720, 5
        %v3496 = vsel %vm2021, %v3494, %v3495
        %v3497 = vrot.slane %v3495, 4
        %v3498 = vrot.slane %v2721, 5
        %v3499 = vsel %vm2021, %v3497, %v3498
        %v3500 = vrot.slane %v3388, 5
        %v3501 = vrot.slane %v3500, 4
        %v3502 = vrot.slane %v2723, 5
        %v3503 = vsel %vm2021, %v3501, %v3502
        %v3504 = vrot.slane %v3502, 4
        %v3505 = vrot.slane %v2724, 5
        %v3506 = vsel %vm2021, %v3504, %v3505
        %v3507 = vrot.slane %v3389, 5
        %v3508 = vrot.slane %v3507, 4
        %v3509 = vrot.slane %v2726, 5
        %v3510 = vsel %vm2021, %v3508, %v3509
        %v3511 = vrot.slane %v3509, 4
        %v3512 = vrot.slane %v2727, 5
        %v3513 = vsel %vm2021, %v3511, %v3512
        %v3514 = vrot.slane %v3390, 5
        %v3515 = vrot.slane %v3514, 4
        %v3516 = vrot.slane %v2729, 5
        %v3517 = vsel %vm2021, %v3515, %v3516
        %v3518 = vrot.slane %v3516, 4
        %v3519 = vrot.slane %v2730, 5
        %v3520 = vsel %vm2021, %v3518, %v3519
        %v3521 = vrot.slane %v3391, 5
        %v3522 = vrot.slane %v3521, 4
        %v3523 = vrot.slane %v2732, 5
        %v3524 = vsel %vm2021, %v3522, %v3523
        %v3525 = vrot.slane %v3523, 4
        %v3526 = vrot.slane %v2733, 5
        %v3527 = vsel %vm2021, %v3525, %v3526
        %v3528 = vrot.slane %v3392, 5
        %v3529 = vrot.slane %v3528, 4
        %v3530 = vrot.slane %v2735, 5
        %v3531 = vsel %vm2021, %v3529, %v3530
        %v3532 = vrot.slane %v3530, 4
        %v3533 = vrot.slane %v2736, 5
        %v3534 = vsel %vm2021, %v3532, %v3533
        %v3535 = vrot.slane %v3393, 5
        %v3536 = vrot.slane %v3535, 4
        %v3537 = vrot.slane %v2738, 5
        %v3538 = vsel %vm2021, %v3536, %v3537
        %v3539 = vrot.slane %v3537, 4
        %v3540 = vrot.slane %v2739, 5
        %v3541 = vsel %vm2021, %v3539, %v3540
        %v3542 = vrot.slane %v3394, 5
        %v3543 = vrot.slane %v3542, 4
        %v3544 = vrot.slane %v2741, 5
        %v3545 = vsel %vm2021, %v3543, %v3544
        %v3546 = vrot.slane %v3544, 4
        %v3547 = vrot.slane %v2742, 5
        %v3548 = vsel %vm2021, %v3546, %v3547
        %v3549 = vrot.slane %v3395, 5
        %v3550 = vrot.slane %v3549, 4
        %v3551 = vrot.slane %v2744, 5
        %v3552 = vsel %vm2021, %v3550, %v3551
        %v3553 = vrot.slane %v3551, 4
        %v3554 = vrot.slane %v2745, 5
        %v3555 = vsel %vm2021, %v3553, %v3554
        %s3556 = scalar_lea.vmem [#allocation7], 320
        %v3557 = vld [vmem:[%s3556] sm:$0xf]
        %v3558 = vld [vmem:[%s3556 + $0x4] sm:$0xf]
        %v3559 = vld [vmem:[%s3556 + $0x8] sm:$0xf]
        %v3560 = vld [vmem:[%s3556 + $0xc] sm:$0xf]
        %v3561 = vld [vmem:[%s3556 + $0x10] sm:$0xf]
        %v3562 = vld [vmem:[%s3556 + $0x14] sm:$0xf]
        %v3563 = vld [vmem:[%s3556 + $0x18] sm:$0xf]
        %v3564 = vld [vmem:[%s3556 + $0x1c] sm:$0xf]
        %v3565 = vld [vmem:[%s3556 + $0x20] sm:$0xf]
        %v3566 = vld [vmem:[%s3556 + $0x24] sm:$0xf]
        %v3567 = vld [vmem:[%s3556 + $0x28] sm:$0xf]
        %v3568 = vld [vmem:[%s3556 + $0x2c] sm:$0xf]
        %v3569 = vld [vmem:[%s3556 + $0x30] sm:$0xf]
        %v3570 = vld [vmem:[%s3556 + $0x34] sm:$0xf]
        %v3571 = vld [vmem:[%s3556 + $0x38] sm:$0xf]
        %v3572 = vld [vmem:[%s3556 + $0x3c] sm:$0xf]
        %v3573 = vunpack.c.l.b16 %v3447
        %v3574 = vunpack.c.l.b16 %v3450
        %v3575 = vunpack.c.l.b16 %v3454
        %v3576 = vunpack.c.l.b16 %v3457
        %v3577 = vunpack.c.l.b16 %v3461
        %v3578 = vunpack.c.l.b16 %v3464
        %v3579 = vunpack.c.l.b16 %v3468
        %v3580 = vunpack.c.l.b16 %v3471
        %v3581 = vunpack.c.l.b16 %v3475
        %v3582 = vunpack.c.l.b16 %v3478
        %v3583 = vunpack.c.l.b16 %v3482
        %v3584 = vunpack.c.l.b16 %v3485
        %v3585 = vunpack.c.l.b16 %v3489
        %v3586 = vunpack.c.l.b16 %v3492
        %v3587 = vunpack.c.l.b16 %v3496
        %v3588 = vunpack.c.l.b16 %v3499
        %v3589 = vunpack.c.l.b16 %v3503
        %v3590 = vunpack.c.l.b16 %v3506
        %v3591 = vunpack.c.l.b16 %v3510
        %v3592 = vunpack.c.l.b16 %v3513
        %v3593 = vunpack.c.l.b16 %v3517
        %v3594 = vunpack.c.l.b16 %v3520
        %v3595 = vunpack.c.l.b16 %v3524
        %v3596 = vunpack.c.l.b16 %v3527
        %v3597 = vunpack.c.l.b16 %v3531
        %v3598 = vunpack.c.l.b16 %v3534
        %v3599 = vunpack.c.l.b16 %v3538
        %v3600 = vunpack.c.l.b16 %v3541
        %v3601 = vunpack.c.l.b16 %v3545
        %v3602 = vunpack.c.l.b16 %v3548
        %v3603 = vunpack.c.l.b16 %v3552
        %v3604 = vunpack.c.l.b16 %v3555
        %v3605 = vpack.c.b16 %v3574, %v3573
        %v3606 = vpack.c.b16 %v3576, %v3575
        %v3607 = vpack.c.b16 %v3578, %v3577
        %v3608 = vpack.c.b16 %v3580, %v3579
        %v3609 = vpack.c.b16 %v3582, %v3581
        %v3610 = vpack.c.b16 %v3584, %v3583
        %v3611 = vpack.c.b16 %v3586, %v3585
        %v3612 = vpack.c.b16 %v3588, %v3587
        %v3613 = vpack.c.b16 %v3590, %v3589
        %v3614 = vpack.c.b16 %v3592, %v3591
        %v3615 = vpack.c.b16 %v3594, %v3593
        %v3616 = vpack.c.b16 %v3596, %v3595
        %v3617 = vpack.c.b16 %v3598, %v3597
        %v3618 = vpack.c.b16 %v3600, %v3599
        %v3619 = vpack.c.b16 %v3602, %v3601
        %v3620 = vpack.c.b16 %v3604, %v3603
        %v3653 = vunpack.c.l.b16 %v3557
        %v3654 = vunpack.c.l.b16 %v3558
        %v3655 = vunpack.c.l.b16 %v3559
        %v3656 = vunpack.c.l.b16 %v3560
        %v3657 = vunpack.c.l.b16 %v3561
        %v3658 = vunpack.c.l.b16 %v3562
        %v3659 = vunpack.c.l.b16 %v3563
        %v3660 = vunpack.c.l.b16 %v3564
        %v3661 = vunpack.c.l.b16 %v3565
        %v3662 = vunpack.c.l.b16 %v3566
        %v3663 = vunpack.c.l.b16 %v3567
        %v3664 = vunpack.c.l.b16 %v3568
        %v3665 = vunpack.c.l.b16 %v3569
        %v3666 = vunpack.c.l.b16 %v3570
        %v3667 = vunpack.c.l.b16 %v3571
        %v3668 = vunpack.c.l.b16 %v3572
        %v3669 = vpack.c.b16 %v3654, %v3653
        %v3670 = vpack.c.b16 %v3656, %v3655
        %v3671 = vpack.c.b16 %v3658, %v3657
        %v3672 = vpack.c.b16 %v3660, %v3659
        %v3673 = vpack.c.b16 %v3662, %v3661
        %v3674 = vpack.c.b16 %v3664, %v3663
        %v3675 = vpack.c.b16 %v3666, %v3665
        %v3676 = vpack.c.b16 %v3668, %v3667
        %3685 = vmatpush.bf16.msra.mxu0 %v3676
        %3686 = vmatpush.bf16.msra.mxu0 %v3675
        %3687 = vmatpush.bf16.msra.mxu0 %v3674
        %3688 = vmatpush.bf16.msra.mxu0 %v3673
        %3689 = vmatpush.bf16.msra.mxu0 %v3672
        %3690 = vmatpush.bf16.msra.mxu0 %v3671
        %3691 = vmatpush.bf16.msra.mxu0 %v3670
        %3692 = vmatpush.bf16.msra.mxu0 %v3669
        %3693 = vmatmul.bf16.gmra.mxu0 %v3605
        %v3694 = vpop.f32.mrf.mxu0
        %v3695 = vadd.f32 0.0, %v3694
        %v3696 = vpop.f32.mrf.mxu0
        %v3697 = vadd.f32 0.0, %v3696
        %3698 = vmatmul.bf16.gmra.mxu0 %v3606
        %v3699 = vpop.f32.mrf.mxu0
        %v3700 = vadd.f32 0.0, %v3699
        %v3701 = vpop.f32.mrf.mxu0
        %v3702 = vadd.f32 0.0, %v3701
        %3703 = vmatmul.bf16.gmra.mxu0 %v3607
        %v3704 = vpop.f32.mrf.mxu0
        %v3705 = vadd.f32 0.0, %v3704
        %v3706 = vpop.f32.mrf.mxu0
        %v3707 = vadd.f32 0.0, %v3706
        %3708 = vmatmul.bf16.gmra.mxu0 %v3608
        %v3709 = vpop.f32.mrf.mxu0
        %v3710 = vadd.f32 0.0, %v3709
        %v3711 = vpop.f32.mrf.mxu0
        %v3712 = vadd.f32 0.0, %v3711
        %3713 = vmatmul.bf16.gmra.mxu0 %v3609
        %v3714 = vpop.f32.mrf.mxu0
        %v3715 = vadd.f32 0.0, %v3714
        %v3716 = vpop.f32.mrf.mxu0
        %v3717 = vadd.f32 0.0, %v3716
        %3718 = vmatmul.bf16.gmra.mxu0 %v3610
        %v3719 = vpop.f32.mrf.mxu0
        %v3720 = vadd.f32 0.0, %v3719
        %v3721 = vpop.f32.mrf.mxu0
        %v3722 = vadd.f32 0.0, %v3721
        %3723 = vmatmul.bf16.gmra.mxu0 %v3611
        %v3724 = vpop.f32.mrf.mxu0
        %v3725 = vadd.f32 0.0, %v3724
        %v3726 = vpop.f32.mrf.mxu0
        %v3727 = vadd.f32 0.0, %v3726
        %3728 = vmatmul.bf16.gmra.mxu0 %v3612
        %v3729 = vpop.f32.mrf.mxu0
        %v3730 = vadd.f32 0.0, %v3729
        %v3731 = vpop.f32.mrf.mxu0
        %v3732 = vadd.f32 0.0, %v3731
        %3733 = vmatmul.bf16.gmra.mxu0 %v3613
        %v3734 = vpop.f32.mrf.mxu0
        %v3735 = vadd.f32 0.0, %v3734
        %v3736 = vpop.f32.mrf.mxu0
        %v3737 = vadd.f32 0.0, %v3736
        %3738 = vmatmul.bf16.gmra.mxu0 %v3614
        %v3739 = vpop.f32.mrf.mxu0
        %v3740 = vadd.f32 0.0, %v3739
        %v3741 = vpop.f32.mrf.mxu0
        %v3742 = vadd.f32 0.0, %v3741
        %3743 = vmatmul.bf16.gmra.mxu0 %v3615
        %v3744 = vpop.f32.mrf.mxu0
        %v3745 = vadd.f32 0.0, %v3744
        %v3746 = vpop.f32.mrf.mxu0
        %v3747 = vadd.f32 0.0, %v3746
        %3748 = vmatmul.bf16.gmra.mxu0 %v3616
        %v3749 = vpop.f32.mrf.mxu0
        %v3750 = vadd.f32 0.0, %v3749
        %v3751 = vpop.f32.mrf.mxu0
        %v3752 = vadd.f32 0.0, %v3751
        %3753 = vmatmul.bf16.gmra.mxu0 %v3617
        %v3754 = vpop.f32.mrf.mxu0
        %v3755 = vadd.f32 0.0, %v3754
        %v3756 = vpop.f32.mrf.mxu0
        %v3757 = vadd.f32 0.0, %v3756
        %3758 = vmatmul.bf16.gmra.mxu0 %v3618
        %v3759 = vpop.f32.mrf.mxu0
        %v3760 = vadd.f32 0.0, %v3759
        %v3761 = vpop.f32.mrf.mxu0
        %v3762 = vadd.f32 0.0, %v3761
        %3763 = vmatmul.bf16.gmra.mxu0 %v3619
        %v3764 = vpop.f32.mrf.mxu0
        %v3765 = vadd.f32 0.0, %v3764
        %v3766 = vpop.f32.mrf.mxu0
        %v3767 = vadd.f32 0.0, %v3766
        %3768 = vmatmul.bf16.gmra.mxu0 %v3620
        %v3769 = vpop.f32.mrf.mxu0
        %v3770 = vadd.f32 0.0, %v3769
        %v3771 = vpop.f32.mrf.mxu0
        %v3772 = vadd.f32 0.0, %v3771
        %3773 = vdwg.mxu0
        %v3774 = vadd.f32 %v3348, %v3695
        %v3775 = vadd.f32 %v3349, %v3697
        %v3776 = vadd.f32 %v3350, %v3700
        %v3777 = vadd.f32 %v3351, %v3702
        %v3778 = vadd.f32 %v3352, %v3705
        %v3779 = vadd.f32 %v3353, %v3707
        %v3780 = vadd.f32 %v3354, %v3710
        %v3781 = vadd.f32 %v3355, %v3712
        %v3782 = vadd.f32 %v3356, %v3715
        %v3783 = vadd.f32 %v3357, %v3717
        %v3784 = vadd.f32 %v3358, %v3720
        %v3785 = vadd.f32 %v3359, %v3722
        %v3786 = vadd.f32 %v3360, %v3725
        %v3787 = vadd.f32 %v3361, %v3727
        %v3788 = vadd.f32 %v3362, %v3730
        %v3789 = vadd.f32 %v3363, %v3732
        %v3790 = vadd.f32 %v3364, %v3735
        %v3791 = vadd.f32 %v3365, %v3737
        %v3792 = vadd.f32 %v3366, %v3740
        %v3793 = vadd.f32 %v3367, %v3742
        %v3794 = vadd.f32 %v3368, %v3745
        %v3795 = vadd.f32 %v3369, %v3747
        %v3796 = vadd.f32 %v3370, %v3750
        %v3797 = vadd.f32 %v3371, %v3752
        %v3798 = vadd.f32 %v3372, %v3755
        %v3799 = vadd.f32 %v3373, %v3757
        %v3800 = vadd.f32 %v3374, %v3760
        %v3801 = vadd.f32 %v3375, %v3762
        %v3802 = vadd.f32 %v3376, %v3765
        %v3803 = vadd.f32 %v3377, %v3767
        %v3804 = vadd.f32 %v3378, %v3770
        %v3805 = vadd.f32 %v3379, %v3772
        %s3806 = scalar_lea.vmem [#allocation2], 24
        %v3807 = vld [vmem:[%s3806] sm:$0xf]
        %v3808 = vld [vmem:[%s3806 + $0x4] sm:$0xf]
        %v3809 = vld [vmem:[%s3806 + $0xc] sm:$0xf]
        %v3810 = vld [vmem:[%s3806 + $0x10] sm:$0xf]
        %v3811 = vld [vmem:[%s3806 + $0x18] sm:$0xf]
        %v3812 = vld [vmem:[%s3806 + $0x1c] sm:$0xf]
        %v3813 = vld [vmem:[%s3806 + $0x24] sm:$0xf]
        %v3814 = vld [vmem:[%s3806 + $0x28] sm:$0xf]
        %v3815 = vld [vmem:[%s3806 + $0x30] sm:$0xf]
        %v3816 = vld [vmem:[%s3806 + $0x34] sm:$0xf]
        %v3817 = vld [vmem:[%s3806 + $0x3c] sm:$0xf]
        %v3818 = vld [vmem:[%s3806 + $0x40] sm:$0xf]
        %v3819 = vld [vmem:[%s3806 + $0x48] sm:$0xf]
        %v3820 = vld [vmem:[%s3806 + $0x4c] sm:$0xf]
        %v3821 = vld [vmem:[%s3806 + $0x54] sm:$0xf]
        %v3822 = vld [vmem:[%s3806 + $0x58] sm:$0xf]
        %v3823 = vld [vmem:[%s3806 + $0x60] sm:$0xf]
        %v3824 = vld [vmem:[%s3806 + $0x64] sm:$0xf]
        %v3825 = vld [vmem:[%s3806 + $0x6c] sm:$0xf]
        %v3826 = vld [vmem:[%s3806 + $0x70] sm:$0xf]
        %v3827 = vld [vmem:[%s3806 + $0x78] sm:$0xf]
        %v3828 = vld [vmem:[%s3806 + $0x7c] sm:$0xf]
        %v3829 = vld [vmem:[%s3806 + $0x84] sm:$0xf]
        %v3830 = vld [vmem:[%s3806 + $0x88] sm:$0xf]
        %v3831 = vld [vmem:[%s3806 + $0x90] sm:$0xf]
        %v3832 = vld [vmem:[%s3806 + $0x94] sm:$0xf]
        %v3833 = vld [vmem:[%s3806 + $0x9c] sm:$0xf]
        %v3834 = vld [vmem:[%s3806 + $0xa0] sm:$0xf]
        %v3835 = vld [vmem:[%s3806 + $0xa8] sm:$0xf]
        %v3836 = vld [vmem:[%s3806 + $0xac] sm:$0xf]
        %v3837 = vld [vmem:[%s3806 + $0xb4] sm:$0xf]
        %v3838 = vld [vmem:[%s3806 + $0xb8] sm:$0xf]
        %s3839 = scalar_lea.vmem [#allocation7], 384
        %v3840 = vld [vmem:[%s3839] sm:$0xf]
        %v3841 = vld [vmem:[%s3839 + $0x4] sm:$0xf]
        %v3842 = vld [vmem:[%s3839 + $0x8] sm:$0xf]
        %v3843 = vld [vmem:[%s3839 + $0xc] sm:$0xf]
        %v3844 = vld [vmem:[%s3839 + $0x10] sm:$0xf]
        %v3845 = vld [vmem:[%s3839 + $0x14] sm:$0xf]
        %v3846 = vld [vmem:[%s3839 + $0x18] sm:$0xf]
        %v3847 = vld [vmem:[%s3839 + $0x1c] sm:$0xf]
        %v3848 = vld [vmem:[%s3839 + $0x20] sm:$0xf]
        %v3849 = vld [vmem:[%s3839 + $0x24] sm:$0xf]
        %v3850 = vld [vmem:[%s3839 + $0x28] sm:$0xf]
        %v3851 = vld [vmem:[%s3839 + $0x2c] sm:$0xf]
        %v3852 = vld [vmem:[%s3839 + $0x30] sm:$0xf]
        %v3853 = vld [vmem:[%s3839 + $0x34] sm:$0xf]
        %v3854 = vld [vmem:[%s3839 + $0x38] sm:$0xf]
        %v3855 = vld [vmem:[%s3839 + $0x3c] sm:$0xf]
        %v3888 = vunpack.c.l.b16 %v3807
        %v3889 = vunpack.c.l.b16 %v3808
        %v3890 = vunpack.c.l.b16 %v3809
        %v3891 = vunpack.c.l.b16 %v3810
        %v3892 = vunpack.c.l.b16 %v3811
        %v3893 = vunpack.c.l.b16 %v3812
        %v3894 = vunpack.c.l.b16 %v3813
        %v3895 = vunpack.c.l.b16 %v3814
        %v3896 = vunpack.c.l.b16 %v3815
        %v3897 = vunpack.c.l.b16 %v3816
        %v3898 = vunpack.c.l.b16 %v3817
        %v3899 = vunpack.c.l.b16 %v3818
        %v3900 = vunpack.c.l.b16 %v3819
        %v3901 = vunpack.c.l.b16 %v3820
        %v3902 = vunpack.c.l.b16 %v3821
        %v3903 = vunpack.c.l.b16 %v3822
        %v3904 = vunpack.c.l.b16 %v3823
        %v3905 = vunpack.c.l.b16 %v3824
        %v3906 = vunpack.c.l.b16 %v3825
        %v3907 = vunpack.c.l.b16 %v3826
        %v3908 = vunpack.c.l.b16 %v3827
        %v3909 = vunpack.c.l.b16 %v3828
        %v3910 = vunpack.c.l.b16 %v3829
        %v3911 = vunpack.c.l.b16 %v3830
        %v3912 = vunpack.c.l.b16 %v3831
        %v3913 = vunpack.c.l.b16 %v3832
        %v3914 = vunpack.c.l.b16 %v3833
        %v3915 = vunpack.c.l.b16 %v3834
        %v3916 = vunpack.c.l.b16 %v3835
        %v3917 = vunpack.c.l.b16 %v3836
        %v3918 = vunpack.c.l.b16 %v3837
        %v3919 = vunpack.c.l.b16 %v3838
        %v3920 = vpack.c.b16 %v3889, %v3888
        %v3921 = vpack.c.b16 %v3891, %v3890
        %v3922 = vpack.c.b16 %v3893, %v3892
        %v3923 = vpack.c.b16 %v3895, %v3894
        %v3924 = vpack.c.b16 %v3897, %v3896
        %v3925 = vpack.c.b16 %v3899, %v3898
        %v3926 = vpack.c.b16 %v3901, %v3900
        %v3927 = vpack.c.b16 %v3903, %v3902
        %v3928 = vpack.c.b16 %v3905, %v3904
        %v3929 = vpack.c.b16 %v3907, %v3906
        %v3930 = vpack.c.b16 %v3909, %v3908
        %v3931 = vpack.c.b16 %v3911, %v3910
        %v3932 = vpack.c.b16 %v3913, %v3912
        %v3933 = vpack.c.b16 %v3915, %v3914
        %v3934 = vpack.c.b16 %v3917, %v3916
        %v3935 = vpack.c.b16 %v3919, %v3918
        %v3968 = vunpack.c.l.b16 %v3840
        %v3969 = vunpack.c.l.b16 %v3841
        %v3970 = vunpack.c.l.b16 %v3842
        %v3971 = vunpack.c.l.b16 %v3843
        %v3972 = vunpack.c.l.b16 %v3844
        %v3973 = vunpack.c.l.b16 %v3845
        %v3974 = vunpack.c.l.b16 %v3846
        %v3975 = vunpack.c.l.b16 %v3847
        %v3976 = vunpack.c.l.b16 %v3848
        %v3977 = vunpack.c.l.b16 %v3849
        %v3978 = vunpack.c.l.b16 %v3850
        %v3979 = vunpack.c.l.b16 %v3851
        %v3980 = vunpack.c.l.b16 %v3852
        %v3981 = vunpack.c.l.b16 %v3853
        %v3982 = vunpack.c.l.b16 %v3854
        %v3983 = vunpack.c.l.b16 %v3855
        %v3984 = vpack.c.b16 %v3969, %v3968
        %v3985 = vpack.c.b16 %v3971, %v3970
        %v3986 = vpack.c.b16 %v3973, %v3972
        %v3987 = vpack.c.b16 %v3975, %v3974
        %v3988 = vpack.c.b16 %v3977, %v3976
        %v3989 = vpack.c.b16 %v3979, %v3978
        %v3990 = vpack.c.b16 %v3981, %v3980
        %v3991 = vpack.c.b16 %v3983, %v3982
        %4000 = vmatpush.bf16.msra.mxu0 %v3991
        %4001 = vmatpush.bf16.msra.mxu0 %v3990
        %4002 = vmatpush.bf16.msra.mxu0 %v3989
        %4003 = vmatpush.bf16.msra.mxu0 %v3988
        %4004 = vmatpush.bf16.msra.mxu0 %v3987
        %4005 = vmatpush.bf16.msra.mxu0 %v3986
        %4006 = vmatpush.bf16.msra.mxu0 %v3985
        %4007 = vmatpush.bf16.msra.mxu0 %v3984
        %4008 = vmatmul.bf16.gmra.mxu0 %v3920
        %v4009 = vpop.f32.mrf.mxu0
        %v4010 = vadd.f32 0.0, %v4009
        %v4011 = vpop.f32.mrf.mxu0
        %v4012 = vadd.f32 0.0, %v4011
        %4013 = vmatmul.bf16.gmra.mxu0 %v3921
        %v4014 = vpop.f32.mrf.mxu0
        %v4015 = vadd.f32 0.0, %v4014
        %v4016 = vpop.f32.mrf.mxu0
        %v4017 = vadd.f32 0.0, %v4016
        %4018 = vmatmul.bf16.gmra.mxu0 %v3922
        %v4019 = vpop.f32.mrf.mxu0
        %v4020 = vadd.f32 0.0, %v4019
        %v4021 = vpop.f32.mrf.mxu0
        %v4022 = vadd.f32 0.0, %v4021
        %4023 = vmatmul.bf16.gmra.mxu0 %v3923
        %v4024 = vpop.f32.mrf.mxu0
        %v4025 = vadd.f32 0.0, %v4024
        %v4026 = vpop.f32.mrf.mxu0
        %v4027 = vadd.f32 0.0, %v4026
        %4028 = vmatmul.bf16.gmra.mxu0 %v3924
        %v4029 = vpop.f32.mrf.mxu0
        %v4030 = vadd.f32 0.0, %v4029
        %v4031 = vpop.f32.mrf.mxu0
        %v4032 = vadd.f32 0.0, %v4031
        %4033 = vmatmul.bf16.gmra.mxu0 %v3925
        %v4034 = vpop.f32.mrf.mxu0
        %v4035 = vadd.f32 0.0, %v4034
        %v4036 = vpop.f32.mrf.mxu0
        %v4037 = vadd.f32 0.0, %v4036
        %4038 = vmatmul.bf16.gmra.mxu0 %v3926
        %v4039 = vpop.f32.mrf.mxu0
        %v4040 = vadd.f32 0.0, %v4039
        %v4041 = vpop.f32.mrf.mxu0
        %v4042 = vadd.f32 0.0, %v4041
        %4043 = vmatmul.bf16.gmra.mxu0 %v3927
        %v4044 = vpop.f32.mrf.mxu0
        %v4045 = vadd.f32 0.0, %v4044
        %v4046 = vpop.f32.mrf.mxu0
        %v4047 = vadd.f32 0.0, %v4046
        %4048 = vmatmul.bf16.gmra.mxu0 %v3928
        %v4049 = vpop.f32.mrf.mxu0
        %v4050 = vadd.f32 0.0, %v4049
        %v4051 = vpop.f32.mrf.mxu0
        %v4052 = vadd.f32 0.0, %v4051
        %4053 = vmatmul.bf16.gmra.mxu0 %v3929
        %v4054 = vpop.f32.mrf.mxu0
        %v4055 = vadd.f32 0.0, %v4054
        %v4056 = vpop.f32.mrf.mxu0
        %v4057 = vadd.f32 0.0, %v4056
        %4058 = vmatmul.bf16.gmra.mxu0 %v3930
        %v4059 = vpop.f32.mrf.mxu0
        %v4060 = vadd.f32 0.0, %v4059
        %v4061 = vpop.f32.mrf.mxu0
        %v4062 = vadd.f32 0.0, %v4061
        %4063 = vmatmul.bf16.gmra.mxu0 %v3931
        %v4064 = vpop.f32.mrf.mxu0
        %v4065 = vadd.f32 0.0, %v4064
        %v4066 = vpop.f32.mrf.mxu0
        %v4067 = vadd.f32 0.0, %v4066
        %4068 = vmatmul.bf16.gmra.mxu0 %v3932
        %v4069 = vpop.f32.mrf.mxu0
        %v4070 = vadd.f32 0.0, %v4069
        %v4071 = vpop.f32.mrf.mxu0
        %v4072 = vadd.f32 0.0, %v4071
        %4073 = vmatmul.bf16.gmra.mxu0 %v3933
        %v4074 = vpop.f32.mrf.mxu0
        %v4075 = vadd.f32 0.0, %v4074
        %v4076 = vpop.f32.mrf.mxu0
        %v4077 = vadd.f32 0.0, %v4076
        %4078 = vmatmul.bf16.gmra.mxu0 %v3934
        %v4079 = vpop.f32.mrf.mxu0
        %v4080 = vadd.f32 0.0, %v4079
        %v4081 = vpop.f32.mrf.mxu0
        %v4082 = vadd.f32 0.0, %v4081
        %4083 = vmatmul.bf16.gmra.mxu0 %v3935
        %v4084 = vpop.f32.mrf.mxu0
        %v4085 = vadd.f32 0.0, %v4084
        %v4086 = vpop.f32.mrf.mxu0
        %v4087 = vadd.f32 0.0, %v4086
        %4088 = vdwg.mxu0
        %v4089 = vadd.f32 %v3774, %v4010
        %v4090 = vadd.f32 %v3775, %v4012
        %v4091 = vadd.f32 %v3776, %v4015
        %v4092 = vadd.f32 %v3777, %v4017
        %v4093 = vadd.f32 %v3778, %v4020
        %v4094 = vadd.f32 %v3779, %v4022
        %v4095 = vadd.f32 %v3780, %v4025
        %v4096 = vadd.f32 %v3781, %v4027
        %v4097 = vadd.f32 %v3782, %v4030
        %v4098 = vadd.f32 %v3783, %v4032
        %v4099 = vadd.f32 %v3784, %v4035
        %v4100 = vadd.f32 %v3785, %v4037
        %v4101 = vadd.f32 %v3786, %v4040
        %v4102 = vadd.f32 %v3787, %v4042
        %v4103 = vadd.f32 %v3788, %v4045
        %v4104 = vadd.f32 %v3789, %v4047
        %v4105 = vadd.f32 %v3790, %v4050
        %v4106 = vadd.f32 %v3791, %v4052
        %v4107 = vadd.f32 %v3792, %v4055
        %v4108 = vadd.f32 %v3793, %v4057
        %v4109 = vadd.f32 %v3794, %v4060
        %v4110 = vadd.f32 %v3795, %v4062
        %v4111 = vadd.f32 %v3796, %v4065
        %v4112 = vadd.f32 %v3797, %v4067
        %v4113 = vadd.f32 %v3798, %v4070
        %v4114 = vadd.f32 %v3799, %v4072
        %v4115 = vadd.f32 %v3800, %v4075
        %v4116 = vadd.f32 %v3801, %v4077
        %v4117 = vadd.f32 %v3802, %v4080
        %v4118 = vadd.f32 %v3803, %v4082
        %v4119 = vadd.f32 %v3804, %v4085
        %v4120 = vadd.f32 %v3805, %v4087
        %v4121 = vld [vmem:[%s3806] sm:$0xf]
        %v4122 = vld [vmem:[%s3806 + $0x4] sm:$0xf]
        %v4123 = vld [vmem:[%s3806 + $0x8] sm:$0x1]
        %v4124 = vld [vmem:[%s3806 + $0xc] sm:$0xf]
        %v4125 = vld [vmem:[%s3806 + $0x10] sm:$0xf]
        %v4126 = vld [vmem:[%s3806 + $0x14] sm:$0x1]
        %v4127 = vld [vmem:[%s3806 + $0x18] sm:$0xf]
        %v4128 = vld [vmem:[%s3806 + $0x1c] sm:$0xf]
        %v4129 = vld [vmem:[%s3806 + $0x20] sm:$0x1]
        %v4130 = vld [vmem:[%s3806 + $0x24] sm:$0xf]
        %v4131 = vld [vmem:[%s3806 + $0x28] sm:$0xf]
        %v4132 = vld [vmem:[%s3806 + $0x2c] sm:$0x1]
        %v4133 = vld [vmem:[%s3806 + $0x30] sm:$0xf]
        %v4134 = vld [vmem:[%s3806 + $0x34] sm:$0xf]
        %v4135 = vld [vmem:[%s3806 + $0x38] sm:$0x1]
        %v4136 = vld [vmem:[%s3806 + $0x3c] sm:$0xf]
        %v4137 = vld [vmem:[%s3806 + $0x40] sm:$0xf]
        %v4138 = vld [vmem:[%s3806 + $0x44] sm:$0x1]
        %v4139 = vld [vmem:[%s3806 + $0x48] sm:$0xf]
        %v4140 = vld [vmem:[%s3806 + $0x4c] sm:$0xf]
        %v4141 = vld [vmem:[%s3806 + $0x50] sm:$0x1]
        %v4142 = vld [vmem:[%s3806 + $0x54] sm:$0xf]
        %v4143 = vld [vmem:[%s3806 + $0x58] sm:$0xf]
        %v4144 = vld [vmem:[%s3806 + $0x5c] sm:$0x1]
        %v4145 = vld [vmem:[%s3806 + $0x60] sm:$0xf]
        %v4146 = vld [vmem:[%s3806 + $0x64] sm:$0xf]
        %v4147 = vld [vmem:[%s3806 + $0x68] sm:$0x1]
        %v4148 = vld [vmem:[%s3806 + $0x6c] sm:$0xf]
        %v4149 = vld [vmem:[%s3806 + $0x70] sm:$0xf]
        %v4150 = vld [vmem:[%s3806 + $0x74] sm:$0x1]
        %v4151 = vld [vmem:[%s3806 + $0x78] sm:$0xf]
        %v4152 = vld [vmem:[%s3806 + $0x7c] sm:$0xf]
        %v4153 = vld [vmem:[%s3806 + $0x80] sm:$0x1]
        %v4154 = vld [vmem:[%s3806 + $0x84] sm:$0xf]
        %v4155 = vld [vmem:[%s3806 + $0x88] sm:$0xf]
        %v4156 = vld [vmem:[%s3806 + $0x8c] sm:$0x1]
        %v4157 = vld [vmem:[%s3806 + $0x90] sm:$0xf]
        %v4158 = vld [vmem:[%s3806 + $0x94] sm:$0xf]
        %v4159 = vld [vmem:[%s3806 + $0x98] sm:$0x1]
        %v4160 = vld [vmem:[%s3806 + $0x9c] sm:$0xf]
        %v4161 = vld [vmem:[%s3806 + $0xa0] sm:$0xf]
        %v4162 = vld [vmem:[%s3806 + $0xa4] sm:$0x1]
        %v4163 = vld [vmem:[%s3806 + $0xa8] sm:$0xf]
        %v4164 = vld [vmem:[%s3806 + $0xac] sm:$0xf]
        %v4165 = vld [vmem:[%s3806 + $0xb0] sm:$0x1]
        %v4166 = vld [vmem:[%s3806 + $0xb4] sm:$0xf]
        %v4167 = vld [vmem:[%s3806 + $0xb8] sm:$0xf]
        %v4168 = vld [vmem:[%s3806 + $0xbc] sm:$0x1]
        %v4170 = vshrl.u32 %v4121, 16
        %v4172 = vrot.slane %v4170, 4
        %v4173 = vshll.u32 %v4121, 16
        %v4175 = vrot.slane %v4173, 5
        %v4176 = vor.u32 %v4172, %v4175
        %v4177 = vrot.slane %v4176, 4
        %v4179 = vshll.u32 %v4122, 16
        %v4181 = vrot.slane %v4179, 5
        %v4182 = vsel %vm1135, %v4177, %v4181
        %v4183 = vshrl.u32 %v4122, 16
        %v4185 = vrot.slane %v4183, 4
        %v4186 = vor.u32 %v4185, %v4181
        %v4187 = vrot.slane %v4186, 4
        %v4189 = vshll.u32 %v4123, 16
        %v4191 = vrot.slane %v4189, 5
        %v4192 = vsel %vm1135, %v4187, %v4191
        %v4194 = vshrl.u32 %v4124, 16
        %v4196 = vrot.slane %v4194, 4
        %v4197 = vshll.u32 %v4124, 16
        %v4199 = vrot.slane %v4197, 5
        %v4200 = vor.u32 %v4196, %v4199
        %v4201 = vrot.slane %v4200, 4
        %v4203 = vshll.u32 %v4125, 16
        %v4205 = vrot.slane %v4203, 5
        %v4206 = vsel %vm1135, %v4201, %v4205
        %v4207 = vshrl.u32 %v4125, 16
        %v4209 = vrot.slane %v4207, 4
        %v4210 = vor.u32 %v4209, %v4205
        %v4211 = vrot.slane %v4210, 4
        %v4213 = vshll.u32 %v4126, 16
        %v4215 = vrot.slane %v4213, 5
        %v4216 = vsel %vm1135, %v4211, %v4215
        %v4218 = vshrl.u32 %v4127, 16
        %v4220 = vrot.slane %v4218, 4
        %v4221 = vshll.u32 %v4127, 16
        %v4223 = vrot.slane %v4221, 5
        %v4224 = vor.u32 %v4220, %v4223
        %v4225 = vrot.slane %v4224, 4
        %v4227 = vshll.u32 %v4128, 16
        %v4229 = vrot.slane %v4227, 5
        %v4230 = vsel %vm1135, %v4225, %v4229
        %v4231 = vshrl.u32 %v4128, 16
        %v4233 = vrot.slane %v4231, 4
        %v4234 = vor.u32 %v4233, %v4229
        %v4235 = vrot.slane %v4234, 4
        %v4237 = vshll.u32 %v4129, 16
        %v4239 = vrot.slane %v4237, 5
        %v4240 = vsel %vm1135, %v4235, %v4239
        %v4242 = vshrl.u32 %v4130, 16
        %v4244 = vrot.slane %v4242, 4
        %v4245 = vshll.u32 %v4130, 16
        %v4247 = vrot.slane %v4245, 5
        %v4248 = vor.u32 %v4244, %v4247
        %v4249 = vrot.slane %v4248, 4
        %v4251 = vshll.u32 %v4131, 16
        %v4253 = vrot.slane %v4251, 5
        %v4254 = vsel %vm1135, %v4249, %v4253
        %v4255 = vshrl.u32 %v4131, 16
        %v4257 = vrot.slane %v4255, 4
        %v4258 = vor.u32 %v4257, %v4253
        %v4259 = vrot.slane %v4258, 4
        %v4261 = vshll.u32 %v4132, 16
        %v4263 = vrot.slane %v4261, 5
        %v4264 = vsel %vm1135, %v4259, %v4263
        %v4266 = vshrl.u32 %v4133, 16
        %v4268 = vrot.slane %v4266, 4
        %v4269 = vshll.u32 %v4133, 16
        %v4271 = vrot.slane %v4269, 5
        %v4272 = vor.u32 %v4268, %v4271
        %v4273 = vrot.slane %v4272, 4
        %v4275 = vshll.u32 %v4134, 16
        %v4277 = vrot.slane %v4275, 5
        %v4278 = vsel %vm1135, %v4273, %v4277
        %v4279 = vshrl.u32 %v4134, 16
        %v4281 = vrot.slane %v4279, 4
        %v4282 = vor.u32 %v4281, %v4277
        %v4283 = vrot.slane %v4282, 4
        %v4285 = vshll.u32 %v4135, 16
        %v4287 = vrot.slane %v4285, 5
        %v4288 = vsel %vm1135, %v4283, %v4287
        %v4290 = vshrl.u32 %v4136, 16
        %v4292 = vrot.slane %v4290, 4
        %v4293 = vshll.u32 %v4136, 16
        %v4295 = vrot.slane %v4293, 5
        %v4296 = vor.u32 %v4292, %v4295
        %v4297 = vrot.slane %v4296, 4
        %v4299 = vshll.u32 %v4137, 16
        %v4301 = vrot.slane %v4299, 5
        %v4302 = vsel %vm1135, %v4297, %v4301
        %v4303 = vshrl.u32 %v4137, 16
        %v4305 = vrot.slane %v4303, 4
        %v4306 = vor.u32 %v4305, %v4301
        %v4307 = vrot.slane %v4306, 4
        %v4309 = vshll.u32 %v4138, 16
        %v4311 = vrot.slane %v4309, 5
        %v4312 = vsel %vm1135, %v4307, %v4311
        %v4314 = vshrl.u32 %v4139, 16
        %v4316 = vrot.slane %v4314, 4
        %v4317 = vshll.u32 %v4139, 16
        %v4319 = vrot.slane %v4317, 5
        %v4320 = vor.u32 %v4316, %v4319
        %v4321 = vrot.slane %v4320, 4
        %v4323 = vshll.u32 %v4140, 16
        %v4325 = vrot.slane %v4323, 5
        %v4326 = vsel %vm1135, %v4321, %v4325
        %v4327 = vshrl.u32 %v4140, 16
        %v4329 = vrot.slane %v4327, 4
        %v4330 = vor.u32 %v4329, %v4325
        %v4331 = vrot.slane %v4330, 4
        %v4333 = vshll.u32 %v4141, 16
        %v4335 = vrot.slane %v4333, 5
        %v4336 = vsel %vm1135, %v4331, %v4335
        %v4338 = vshrl.u32 %v4142, 16
        %v4340 = vrot.slane %v4338, 4
        %v4341 = vshll.u32 %v4142, 16
        %v4343 = vrot.slane %v4341, 5
        %v4344 = vor.u32 %v4340, %v4343
        %v4345 = vrot.slane %v4344, 4
        %v4347 = vshll.u32 %v4143, 16
        %v4349 = vrot.slane %v4347, 5
        %v4350 = vsel %vm1135, %v4345, %v4349
        %v4351 = vshrl.u32 %v4143, 16
        %v4353 = vrot.slane %v4351, 4
        %v4354 = vor.u32 %v4353, %v4349
        %v4355 = vrot.slane %v4354, 4
        %v4357 = vshll.u32 %v4144, 16
        %v4359 = vrot.slane %v4357, 5
        %v4360 = vsel %vm1135, %v4355, %v4359
        %v4362 = vshrl.u32 %v4145, 16
        %v4364 = vrot.slane %v4362, 4
        %v4365 = vshll.u32 %v4145, 16
        %v4367 = vrot.slane %v4365, 5
        %v4368 = vor.u32 %v4364, %v4367
        %v4369 = vrot.slane %v4368, 4
        %v4371 = vshll.u32 %v4146, 16
        %v4373 = vrot.slane %v4371, 5
        %v4374 = vsel %vm1135, %v4369, %v4373
        %v4375 = vshrl.u32 %v4146, 16
        %v4377 = vrot.slane %v4375, 4
        %v4378 = vor.u32 %v4377, %v4373
        %v4379 = vrot.slane %v4378, 4
        %v4381 = vshll.u32 %v4147, 16
        %v4383 = vrot.slane %v4381, 5
        %v4384 = vsel %vm1135, %v4379, %v4383
        %v4386 = vshrl.u32 %v4148, 16
        %v4388 = vrot.slane %v4386, 4
        %v4389 = vshll.u32 %v4148, 16
        %v4391 = vrot.slane %v4389, 5
        %v4392 = vor.u32 %v4388, %v4391
        %v4393 = vrot.slane %v4392, 4
        %v4395 = vshll.u32 %v4149, 16
        %v4397 = vrot.slane %v4395, 5
        %v4398 = vsel %vm1135, %v4393, %v4397
        %v4399 = vshrl.u32 %v4149, 16
        %v4401 = vrot.slane %v4399, 4
        %v4402 = vor.u32 %v4401, %v4397
        %v4403 = vrot.slane %v4402, 4
        %v4405 = vshll.u32 %v4150, 16
        %v4407 = vrot.slane %v4405, 5
        %v4408 = vsel %vm1135, %v4403, %v4407
        %v4410 = vshrl.u32 %v4151, 16
        %v4412 = vrot.slane %v4410, 4
        %v4413 = vshll.u32 %v4151, 16
        %v4415 = vrot.slane %v4413, 5
        %v4416 = vor.u32 %v4412, %v4415
        %v4417 = vrot.slane %v4416, 4
        %v4419 = vshll.u32 %v4152, 16
        %v4421 = vrot.slane %v4419, 5
        %v4422 = vsel %vm1135, %v4417, %v4421
        %v4423 = vshrl.u32 %v4152, 16
        %v4425 = vrot.slane %v4423, 4
        %v4426 = vor.u32 %v4425, %v4421
        %v4427 = vrot.slane %v4426, 4
        %v4429 = vshll.u32 %v4153, 16
        %v4431 = vrot.slane %v4429, 5
        %v4432 = vsel %vm1135, %v4427, %v4431
        %v4434 = vshrl.u32 %v4154, 16
        %v4436 = vrot.slane %v4434, 4
        %v4437 = vshll.u32 %v4154, 16
        %v4439 = vrot.slane %v4437, 5
        %v4440 = vor.u32 %v4436, %v4439
        %v4441 = vrot.slane %v4440, 4
        %v4443 = vshll.u32 %v4155, 16
        %v4445 = vrot.slane %v4443, 5
        %v4446 = vsel %vm1135, %v4441, %v4445
        %v4447 = vshrl.u32 %v4155, 16
        %v4449 = vrot.slane %v4447, 4
        %v4450 = vor.u32 %v4449, %v4445
        %v4451 = vrot.slane %v4450, 4
        %v4453 = vshll.u32 %v4156, 16
        %v4455 = vrot.slane %v4453, 5
        %v4456 = vsel %vm1135, %v4451, %v4455
        %v4458 = vshrl.u32 %v4157, 16
        %v4460 = vrot.slane %v4458, 4
        %v4461 = vshll.u32 %v4157, 16
        %v4463 = vrot.slane %v4461, 5
        %v4464 = vor.u32 %v4460, %v4463
        %v4465 = vrot.slane %v4464, 4
        %v4467 = vshll.u32 %v4158, 16
        %v4469 = vrot.slane %v4467, 5
        %v4470 = vsel %vm1135, %v4465, %v4469
        %v4471 = vshrl.u32 %v4158, 16
        %v4473 = vrot.slane %v4471, 4
        %v4474 = vor.u32 %v4473, %v4469
        %v4475 = vrot.slane %v4474, 4
        %v4477 = vshll.u32 %v4159, 16
        %v4479 = vrot.slane %v4477, 5
        %v4480 = vsel %vm1135, %v4475, %v4479
        %v4482 = vshrl.u32 %v4160, 16
        %v4484 = vrot.slane %v4482, 4
        %v4485 = vshll.u32 %v4160, 16
        %v4487 = vrot.slane %v4485, 5
        %v4488 = vor.u32 %v4484, %v4487
        %v4489 = vrot.slane %v4488, 4
        %v4491 = vshll.u32 %v4161, 16
        %v4493 = vrot.slane %v4491, 5
        %v4494 = vsel %vm1135, %v4489, %v4493
        %v4495 = vshrl.u32 %v4161, 16
        %v4497 = vrot.slane %v4495, 4
        %v4498 = vor.u32 %v4497, %v4493
        %v4499 = vrot.slane %v4498, 4
        %v4501 = vshll.u32 %v4162, 16
        %v4503 = vrot.slane %v4501, 5
        %v4504 = vsel %vm1135, %v4499, %v4503
        %v4506 = vshrl.u32 %v4163, 16
        %v4508 = vrot.slane %v4506, 4
        %v4509 = vshll.u32 %v4163, 16
        %v4511 = vrot.slane %v4509, 5
        %v4512 = vor.u32 %v4508, %v4511
        %v4513 = vrot.slane %v4512, 4
        %v4515 = vshll.u32 %v4164, 16
        %v4517 = vrot.slane %v4515, 5
        %v4518 = vsel %vm1135, %v4513, %v4517
        %v4519 = vshrl.u32 %v4164, 16
        %v4521 = vrot.slane %v4519, 4
        %v4522 = vor.u32 %v4521, %v4517
        %v4523 = vrot.slane %v4522, 4
        %v4525 = vshll.u32 %v4165, 16
        %v4527 = vrot.slane %v4525, 5
        %v4528 = vsel %vm1135, %v4523, %v4527
        %v4530 = vshrl.u32 %v4166, 16
        %v4532 = vrot.slane %v4530, 4
        %v4533 = vshll.u32 %v4166, 16
        %v4535 = vrot.slane %v4533, 5
        %v4536 = vor.u32 %v4532, %v4535
        %v4537 = vrot.slane %v4536, 4
        %v4539 = vshll.u32 %v4167, 16
        %v4541 = vrot.slane %v4539, 5
        %v4542 = vsel %vm1135, %v4537, %v4541
        %v4543 = vshrl.u32 %v4167, 16
        %v4545 = vrot.slane %v4543, 4
        %v4546 = vor.u32 %v4545, %v4541
        %v4547 = vrot.slane %v4546, 4
        %v4549 = vshll.u32 %v4168, 16
        %v4551 = vrot.slane %v4549, 5
        %v4552 = vsel %vm1135, %v4547, %v4551
        %s4553 = scalar_lea.vmem [#allocation7], 448
        %v4554 = vld [vmem:[%s4553] sm:$0xf]
        %v4555 = vld [vmem:[%s4553 + $0x4] sm:$0xf]
        %v4556 = vld [vmem:[%s4553 + $0x8] sm:$0xf]
        %v4557 = vld [vmem:[%s4553 + $0xc] sm:$0xf]
        %v4558 = vld [vmem:[%s4553 + $0x10] sm:$0xf]
        %v4559 = vld [vmem:[%s4553 + $0x14] sm:$0xf]
        %v4560 = vld [vmem:[%s4553 + $0x18] sm:$0xf]
        %v4561 = vld [vmem:[%s4553 + $0x1c] sm:$0xf]
        %v4562 = vld [vmem:[%s4553 + $0x20] sm:$0xf]
        %v4563 = vld [vmem:[%s4553 + $0x24] sm:$0xf]
        %v4564 = vld [vmem:[%s4553 + $0x28] sm:$0xf]
        %v4565 = vld [vmem:[%s4553 + $0x2c] sm:$0xf]
        %v4566 = vld [vmem:[%s4553 + $0x30] sm:$0xf]
        %v4567 = vld [vmem:[%s4553 + $0x34] sm:$0xf]
        %v4568 = vld [vmem:[%s4553 + $0x38] sm:$0xf]
        %v4569 = vld [vmem:[%s4553 + $0x3c] sm:$0xf]
        %v4570 = vunpack.c.l.b16 %v4182
        %v4571 = vunpack.c.l.b16 %v4192
        %v4572 = vunpack.c.l.b16 %v4206
        %v4573 = vunpack.c.l.b16 %v4216
        %v4574 = vunpack.c.l.b16 %v4230
        %v4575 = vunpack.c.l.b16 %v4240
        %v4576 = vunpack.c.l.b16 %v4254
        %v4577 = vunpack.c.l.b16 %v4264
        %v4578 = vunpack.c.l.b16 %v4278
        %v4579 = vunpack.c.l.b16 %v4288
        %v4580 = vunpack.c.l.b16 %v4302
        %v4581 = vunpack.c.l.b16 %v4312
        %v4582 = vunpack.c.l.b16 %v4326
        %v4583 = vunpack.c.l.b16 %v4336
        %v4584 = vunpack.c.l.b16 %v4350
        %v4585 = vunpack.c.l.b16 %v4360
        %v4586 = vunpack.c.l.b16 %v4374
        %v4587 = vunpack.c.l.b16 %v4384
        %v4588 = vunpack.c.l.b16 %v4398
        %v4589 = vunpack.c.l.b16 %v4408
        %v4590 = vunpack.c.l.b16 %v4422
        %v4591 = vunpack.c.l.b16 %v4432
        %v4592 = vunpack.c.l.b16 %v4446
        %v4593 = vunpack.c.l.b16 %v4456
        %v4594 = vunpack.c.l.b16 %v4470
        %v4595 = vunpack.c.l.b16 %v4480
        %v4596 = vunpack.c.l.b16 %v4494
        %v4597 = vunpack.c.l.b16 %v4504
        %v4598 = vunpack.c.l.b16 %v4518
        %v4599 = vunpack.c.l.b16 %v4528
        %v4600 = vunpack.c.l.b16 %v4542
        %v4601 = vunpack.c.l.b16 %v4552
        %v4602 = vpack.c.b16 %v4571, %v4570
        %v4603 = vpack.c.b16 %v4573, %v4572
        %v4604 = vpack.c.b16 %v4575, %v4574
        %v4605 = vpack.c.b16 %v4577, %v4576
        %v4606 = vpack.c.b16 %v4579, %v4578
        %v4607 = vpack.c.b16 %v4581, %v4580
        %v4608 = vpack.c.b16 %v4583, %v4582
        %v4609 = vpack.c.b16 %v4585, %v4584
        %v4610 = vpack.c.b16 %v4587, %v4586
        %v4611 = vpack.c.b16 %v4589, %v4588
        %v4612 = vpack.c.b16 %v4591, %v4590
        %v4613 = vpack.c.b16 %v4593, %v4592
        %v4614 = vpack.c.b16 %v4595, %v4594
        %v4615 = vpack.c.b16 %v4597, %v4596
        %v4616 = vpack.c.b16 %v4599, %v4598
        %v4617 = vpack.c.b16 %v4601, %v4600
        %v4650 = vunpack.c.l.b16 %v4554
        %v4651 = vunpack.c.l.b16 %v4555
        %v4652 = vunpack.c.l.b16 %v4556
        %v4653 = vunpack.c.l.b16 %v4557
        %v4654 = vunpack.c.l.b16 %v4558
        %v4655 = vunpack.c.l.b16 %v4559
        %v4656 = vunpack.c.l.b16 %v4560
        %v4657 = vunpack.c.l.b16 %v4561
        %v4658 = vunpack.c.l.b16 %v4562
        %v4659 = vunpack.c.l.b16 %v4563
        %v4660 = vunpack.c.l.b16 %v4564
        %v4661 = vunpack.c.l.b16 %v4565
        %v4662 = vunpack.c.l.b16 %v4566
        %v4663 = vunpack.c.l.b16 %v4567
        %v4664 = vunpack.c.l.b16 %v4568
        %v4665 = vunpack.c.l.b16 %v4569
        %v4666 = vpack.c.b16 %v4651, %v4650
        %v4667 = vpack.c.b16 %v4653, %v4652
        %v4668 = vpack.c.b16 %v4655, %v4654
        %v4669 = vpack.c.b16 %v4657, %v4656
        %v4670 = vpack.c.b16 %v4659, %v4658
        %v4671 = vpack.c.b16 %v4661, %v4660
        %v4672 = vpack.c.b16 %v4663, %v4662
        %v4673 = vpack.c.b16 %v4665, %v4664
        %4682 = vmatpush.bf16.msra.mxu0 %v4673
        %4683 = vmatpush.bf16.msra.mxu0 %v4672
        %4684 = vmatpush.bf16.msra.mxu0 %v4671
        %4685 = vmatpush.bf16.msra.mxu0 %v4670
        %4686 = vmatpush.bf16.msra.mxu0 %v4669
        %4687 = vmatpush.bf16.msra.mxu0 %v4668
        %4688 = vmatpush.bf16.msra.mxu0 %v4667
        %4689 = vmatpush.bf16.msra.mxu0 %v4666
        %4690 = vmatmul.bf16.gmra.mxu0 %v4602
        %v4691 = vpop.f32.mrf.mxu0
        %v4692 = vadd.f32 0.0, %v4691
        %v4693 = vpop.f32.mrf.mxu0
        %v4694 = vadd.f32 0.0, %v4693
        %4695 = vmatmul.bf16.gmra.mxu0 %v4603
        %v4696 = vpop.f32.mrf.mxu0
        %v4697 = vadd.f32 0.0, %v4696
        %v4698 = vpop.f32.mrf.mxu0
        %v4699 = vadd.f32 0.0, %v4698
        %4700 = vmatmul.bf16.gmra.mxu0 %v4604
        %v4701 = vpop.f32.mrf.mxu0
        %v4702 = vadd.f32 0.0, %v4701
        %v4703 = vpop.f32.mrf.mxu0
        %v4704 = vadd.f32 0.0, %v4703
        %4705 = vmatmul.bf16.gmra.mxu0 %v4605
        %v4706 = vpop.f32.mrf.mxu0
        %v4707 = vadd.f32 0.0, %v4706
        %v4708 = vpop.f32.mrf.mxu0
        %v4709 = vadd.f32 0.0, %v4708
        %4710 = vmatmul.bf16.gmra.mxu0 %v4606
        %v4711 = vpop.f32.mrf.mxu0
        %v4712 = vadd.f32 0.0, %v4711
        %v4713 = vpop.f32.mrf.mxu0
        %v4714 = vadd.f32 0.0, %v4713
        %4715 = vmatmul.bf16.gmra.mxu0 %v4607
        %v4716 = vpop.f32.mrf.mxu0
        %v4717 = vadd.f32 0.0, %v4716
        %v4718 = vpop.f32.mrf.mxu0
        %v4719 = vadd.f32 0.0, %v4718
        %4720 = vmatmul.bf16.gmra.mxu0 %v4608
        %v4721 = vpop.f32.mrf.mxu0
        %v4722 = vadd.f32 0.0, %v4721
        %v4723 = vpop.f32.mrf.mxu0
        %v4724 = vadd.f32 0.0, %v4723
        %4725 = vmatmul.bf16.gmra.mxu0 %v4609
        %v4726 = vpop.f32.mrf.mxu0
        %v4727 = vadd.f32 0.0, %v4726
        %v4728 = vpop.f32.mrf.mxu0
        %v4729 = vadd.f32 0.0, %v4728
        %4730 = vmatmul.bf16.gmra.mxu0 %v4610
        %v4731 = vpop.f32.mrf.mxu0
        %v4732 = vadd.f32 0.0, %v4731
        %v4733 = vpop.f32.mrf.mxu0
        %v4734 = vadd.f32 0.0, %v4733
        %4735 = vmatmul.bf16.gmra.mxu0 %v4611
        %v4736 = vpop.f32.mrf.mxu0
        %v4737 = vadd.f32 0.0, %v4736
        %v4738 = vpop.f32.mrf.mxu0
        %v4739 = vadd.f32 0.0, %v4738
        %4740 = vmatmul.bf16.gmra.mxu0 %v4612
        %v4741 = vpop.f32.mrf.mxu0
        %v4742 = vadd.f32 0.0, %v4741
        %v4743 = vpop.f32.mrf.mxu0
        %v4744 = vadd.f32 0.0, %v4743
        %4745 = vmatmul.bf16.gmra.mxu0 %v4613
        %v4746 = vpop.f32.mrf.mxu0
        %v4747 = vadd.f32 0.0, %v4746
        %v4748 = vpop.f32.mrf.mxu0
        %v4749 = vadd.f32 0.0, %v4748
        %4750 = vmatmul.bf16.gmra.mxu0 %v4614
        %v4751 = vpop.f32.mrf.mxu0
        %v4752 = vadd.f32 0.0, %v4751
        %v4753 = vpop.f32.mrf.mxu0
        %v4754 = vadd.f32 0.0, %v4753
        %4755 = vmatmul.bf16.gmra.mxu0 %v4615
        %v4756 = vpop.f32.mrf.mxu0
        %v4757 = vadd.f32 0.0, %v4756
        %v4758 = vpop.f32.mrf.mxu0
        %v4759 = vadd.f32 0.0, %v4758
        %4760 = vmatmul.bf16.gmra.mxu0 %v4616
        %v4761 = vpop.f32.mrf.mxu0
        %v4762 = vadd.f32 0.0, %v4761
        %v4763 = vpop.f32.mrf.mxu0
        %v4764 = vadd.f32 0.0, %v4763
        %4765 = vmatmul.bf16.gmra.mxu0 %v4617
        %v4766 = vpop.f32.mrf.mxu0
        %v4767 = vadd.f32 0.0, %v4766
        %v4768 = vpop.f32.mrf.mxu0
        %v4769 = vadd.f32 0.0, %v4768
        %4770 = vdwg.mxu0
        %v4771 = vadd.f32 %v4089, %v4692
        %v4772 = vadd.f32 %v4090, %v4694
        %v4773 = vadd.f32 %v4091, %v4697
        %v4774 = vadd.f32 %v4092, %v4699
        %v4775 = vadd.f32 %v4093, %v4702
        %v4776 = vadd.f32 %v4094, %v4704
        %v4777 = vadd.f32 %v4095, %v4707
        %v4778 = vadd.f32 %v4096, %v4709
        %v4779 = vadd.f32 %v4097, %v4712
        %v4780 = vadd.f32 %v4098, %v4714
        %v4781 = vadd.f32 %v4099, %v4717
        %v4782 = vadd.f32 %v4100, %v4719
        %v4783 = vadd.f32 %v4101, %v4722
        %v4784 = vadd.f32 %v4102, %v4724
        %v4785 = vadd.f32 %v4103, %v4727
        %v4786 = vadd.f32 %v4104, %v4729
        %v4787 = vadd.f32 %v4105, %v4732
        %v4788 = vadd.f32 %v4106, %v4734
        %v4789 = vadd.f32 %v4107, %v4737
        %v4790 = vadd.f32 %v4108, %v4739
        %v4791 = vadd.f32 %v4109, %v4742
        %v4792 = vadd.f32 %v4110, %v4744
        %v4793 = vadd.f32 %v4111, %v4747
        %v4794 = vadd.f32 %v4112, %v4749
        %v4795 = vadd.f32 %v4113, %v4752
        %v4796 = vadd.f32 %v4114, %v4754
        %v4797 = vadd.f32 %v4115, %v4757
        %v4798 = vadd.f32 %v4116, %v4759
        %v4799 = vadd.f32 %v4117, %v4762
        %v4800 = vadd.f32 %v4118, %v4764
        %v4801 = vadd.f32 %v4119, %v4767
        %v4802 = vadd.f32 %v4120, %v4769
        %v4803 = vld [vmem:[%s3806] sm:$0xe]
        %v4804 = vld [vmem:[%s3806 + $0xc] sm:$0xe]
        %v4805 = vld [vmem:[%s3806 + $0x18] sm:$0xe]
        %v4806 = vld [vmem:[%s3806 + $0x24] sm:$0xe]
        %v4807 = vld [vmem:[%s3806 + $0x30] sm:$0xe]
        %v4808 = vld [vmem:[%s3806 + $0x3c] sm:$0xe]
        %v4809 = vld [vmem:[%s3806 + $0x48] sm:$0xe]
        %v4810 = vld [vmem:[%s3806 + $0x54] sm:$0xe]
        %v4811 = vld [vmem:[%s3806 + $0x60] sm:$0xe]
        %v4812 = vld [vmem:[%s3806 + $0x6c] sm:$0xe]
        %v4813 = vld [vmem:[%s3806 + $0x78] sm:$0xe]
        %v4814 = vld [vmem:[%s3806 + $0x84] sm:$0xe]
        %v4815 = vld [vmem:[%s3806 + $0x90] sm:$0xe]
        %v4816 = vld [vmem:[%s3806 + $0x9c] sm:$0xe]
        %v4817 = vld [vmem:[%s3806 + $0xa8] sm:$0xe]
        %v4818 = vld [vmem:[%s3806 + $0xb4] sm:$0xe]
        %v4867 = vrot.slane %v4803, 5
        %v4868 = vrot.slane %v4867, 4
        %v4869 = vrot.slane %v4122, 5
        %v4870 = vsel %vm2021, %v4868, %v4869
        %v4871 = vrot.slane %v4869, 4
        %v4872 = vrot.slane %v4123, 5
        %v4873 = vsel %vm2021, %v4871, %v4872
        %v4874 = vrot.slane %v4804, 5
        %v4875 = vrot.slane %v4874, 4
        %v4876 = vrot.slane %v4125, 5
        %v4877 = vsel %vm2021, %v4875, %v4876
        %v4878 = vrot.slane %v4876, 4
        %v4879 = vrot.slane %v4126, 5
        %v4880 = vsel %vm2021, %v4878, %v4879
        %v4881 = vrot.slane %v4805, 5
        %v4882 = vrot.slane %v4881, 4
        %v4883 = vrot.slane %v4128, 5
        %v4884 = vsel %vm2021, %v4882, %v4883
        %v4885 = vrot.slane %v4883, 4
        %v4886 = vrot.slane %v4129, 5
        %v4887 = vsel %vm2021, %v4885, %v4886
        %v4888 = vrot.slane %v4806, 5
        %v4889 = vrot.slane %v4888, 4
        %v4890 = vrot.slane %v4131, 5
        %v4891 = vsel %vm2021, %v4889, %v4890
        %v4892 = vrot.slane %v4890, 4
        %v4893 = vrot.slane %v4132, 5
        %v4894 = vsel %vm2021, %v4892, %v4893
        %v4895 = vrot.slane %v4807, 5
        %v4896 = vrot.slane %v4895, 4
        %v4897 = vrot.slane %v4134, 5
        %v4898 = vsel %vm2021, %v4896, %v4897
        %v4899 = vrot.slane %v4897, 4
        %v4900 = vrot.slane %v4135, 5
        %v4901 = vsel %vm2021, %v4899, %v4900
        %v4902 = vrot.slane %v4808, 5
        %v4903 = vrot.slane %v4902, 4
        %v4904 = vrot.slane %v4137, 5
        %v4905 = vsel %vm2021, %v4903, %v4904
        %v4906 = vrot.slane %v4904, 4
        %v4907 = vrot.slane %v4138, 5
        %v4908 = vsel %vm2021, %v4906, %v4907
        %v4909 = vrot.slane %v4809, 5
        %v4910 = vrot.slane %v4909, 4
        %v4911 = vrot.slane %v4140, 5
        %v4912 = vsel %vm2021, %v4910, %v4911
        %v4913 = vrot.slane %v4911, 4
        %v4914 = vrot.slane %v4141, 5
        %v4915 = vsel %vm2021, %v4913, %v4914
        %v4916 = vrot.slane %v4810, 5
        %v4917 = vrot.slane %v4916, 4
        %v4918 = vrot.slane %v4143, 5
        %v4919 = vsel %vm2021, %v4917, %v4918
        %v4920 = vrot.slane %v4918, 4
        %v4921 = vrot.slane %v4144, 5
        %v4922 = vsel %vm2021, %v4920, %v4921
        %v4923 = vrot.slane %v4811, 5
        %v4924 = vrot.slane %v4923, 4
        %v4925 = vrot.slane %v4146, 5
        %v4926 = vsel %vm2021, %v4924, %v4925
        %v4927 = vrot.slane %v4925, 4
        %v4928 = vrot.slane %v4147, 5
        %v4929 = vsel %vm2021, %v4927, %v4928
        %v4930 = vrot.slane %v4812, 5
        %v4931 = vrot.slane %v4930, 4
        %v4932 = vrot.slane %v4149, 5
        %v4933 = vsel %vm2021, %v4931, %v4932
        %v4934 = vrot.slane %v4932, 4
        %v4935 = vrot.slane %v4150, 5
        %v4936 = vsel %vm2021, %v4934, %v4935
        %v4937 = vrot.slane %v4813, 5
        %v4938 = vrot.slane %v4937, 4
        %v4939 = vrot.slane %v4152, 5
        %v4940 = vsel %vm2021, %v4938, %v4939
        %v4941 = vrot.slane %v4939, 4
        %v4942 = vrot.slane %v4153, 5
        %v4943 = vsel %vm2021, %v4941, %v4942
        %v4944 = vrot.slane %v4814, 5
        %v4945 = vrot.slane %v4944, 4
        %v4946 = vrot.slane %v4155, 5
        %v4947 = vsel %vm2021, %v4945, %v4946
        %v4948 = vrot.slane %v4946, 4
        %v4949 = vrot.slane %v4156, 5
        %v4950 = vsel %vm2021, %v4948, %v4949
        %v4951 = vrot.slane %v4815, 5
        %v4952 = vrot.slane %v4951, 4
        %v4953 = vrot.slane %v4158, 5
        %v4954 = vsel %vm2021, %v4952, %v4953
        %v4955 = vrot.slane %v4953, 4
        %v4956 = vrot.slane %v4159, 5
        %v4957 = vsel %vm2021, %v4955, %v4956
        %v4958 = vrot.slane %v4816, 5
        %v4959 = vrot.slane %v4958, 4
        %v4960 = vrot.slane %v4161, 5
        %v4961 = vsel %vm2021, %v4959, %v4960
        %v4962 = vrot.slane %v4960, 4
        %v4963 = vrot.slane %v4162, 5
        %v4964 = vsel %vm2021, %v4962, %v4963
        %v4965 = vrot.slane %v4817, 5
        %v4966 = vrot.slane %v4965, 4
        %v4967 = vrot.slane %v4164, 5
        %v4968 = vsel %vm2021, %v4966, %v4967
        %v4969 = vrot.slane %v4967, 4
        %v4970 = vrot.slane %v4165, 5
        %v4971 = vsel %vm2021, %v4969, %v4970
        %v4972 = vrot.slane %v4818, 5
        %v4973 = vrot.slane %v4972, 4
        %v4974 = vrot.slane %v4167, 5
        %v4975 = vsel %vm2021, %v4973, %v4974
        %v4976 = vrot.slane %v4974, 4
        %v4977 = vrot.slane %v4168, 5
        %v4978 = vsel %vm2021, %v4976, %v4977
        %s4979 = scalar_lea.vmem [#allocation7], 512
        %v4980 = vld [vmem:[%s4979] sm:$0xf]
        %v4981 = vld [vmem:[%s4979 + $0x4] sm:$0xf]
        %v4982 = vld [vmem:[%s4979 + $0x8] sm:$0xf]
        %v4983 = vld [vmem:[%s4979 + $0xc] sm:$0xf]
        %v4984 = vld [vmem:[%s4979 + $0x10] sm:$0xf]
        %v4985 = vld [vmem:[%s4979 + $0x14] sm:$0xf]
        %v4986 = vld [vmem:[%s4979 + $0x18] sm:$0xf]
        %v4987 = vld [vmem:[%s4979 + $0x1c] sm:$0xf]
        %v4988 = vld [vmem:[%s4979 + $0x20] sm:$0xf]
        %v4989 = vld [vmem:[%s4979 + $0x24] sm:$0xf]
        %v4990 = vld [vmem:[%s4979 + $0x28] sm:$0xf]
        %v4991 = vld [vmem:[%s4979 + $0x2c] sm:$0xf]
        %v4992 = vld [vmem:[%s4979 + $0x30] sm:$0xf]
        %v4993 = vld [vmem:[%s4979 + $0x34] sm:$0xf]
        %v4994 = vld [vmem:[%s4979 + $0x38] sm:$0xf]
        %v4995 = vld [vmem:[%s4979 + $0x3c] sm:$0xf]
        %v4996 = vunpack.c.l.b16 %v4870
        %v4997 = vunpack.c.l.b16 %v4873
        %v4998 = vunpack.c.l.b16 %v4877
        %v4999 = vunpack.c.l.b16 %v4880
        %v5000 = vunpack.c.l.b16 %v4884
        %v5001 = vunpack.c.l.b16 %v4887
        %v5002 = vunpack.c.l.b16 %v4891
        %v5003 = vunpack.c.l.b16 %v4894
        %v5004 = vunpack.c.l.b16 %v4898
        %v5005 = vunpack.c.l.b16 %v4901
        %v5006 = vunpack.c.l.b16 %v4905
        %v5007 = vunpack.c.l.b16 %v4908
        %v5008 = vunpack.c.l.b16 %v4912
        %v5009 = vunpack.c.l.b16 %v4915
        %v5010 = vunpack.c.l.b16 %v4919
        %v5011 = vunpack.c.l.b16 %v4922
        %v5012 = vunpack.c.l.b16 %v4926
        %v5013 = vunpack.c.l.b16 %v4929
        %v5014 = vunpack.c.l.b16 %v4933
        %v5015 = vunpack.c.l.b16 %v4936
        %v5016 = vunpack.c.l.b16 %v4940
        %v5017 = vunpack.c.l.b16 %v4943
        %v5018 = vunpack.c.l.b16 %v4947
        %v5019 = vunpack.c.l.b16 %v4950
        %v5020 = vunpack.c.l.b16 %v4954
        %v5021 = vunpack.c.l.b16 %v4957
        %v5022 = vunpack.c.l.b16 %v4961
        %v5023 = vunpack.c.l.b16 %v4964
        %v5024 = vunpack.c.l.b16 %v4968
        %v5025 = vunpack.c.l.b16 %v4971
        %v5026 = vunpack.c.l.b16 %v4975
        %v5027 = vunpack.c.l.b16 %v4978
        %v5028 = vpack.c.b16 %v4997, %v4996
        %v5029 = vpack.c.b16 %v4999, %v4998
        %v5030 = vpack.c.b16 %v5001, %v5000
        %v5031 = vpack.c.b16 %v5003, %v5002
        %v5032 = vpack.c.b16 %v5005, %v5004
        %v5033 = vpack.c.b16 %v5007, %v5006
        %v5034 = vpack.c.b16 %v5009, %v5008
        %v5035 = vpack.c.b16 %v5011, %v5010
        %v5036 = vpack.c.b16 %v5013, %v5012
        %v5037 = vpack.c.b16 %v5015, %v5014
        %v5038 = vpack.c.b16 %v5017, %v5016
        %v5039 = vpack.c.b16 %v5019, %v5018
        %v5040 = vpack.c.b16 %v5021, %v5020
        %v5041 = vpack.c.b16 %v5023, %v5022
        %v5042 = vpack.c.b16 %v5025, %v5024
        %v5043 = vpack.c.b16 %v5027, %v5026
        %v5076 = vunpack.c.l.b16 %v4980
        %v5077 = vunpack.c.l.b16 %v4981
        %v5078 = vunpack.c.l.b16 %v4982
        %v5079 = vunpack.c.l.b16 %v4983
        %v5080 = vunpack.c.l.b16 %v4984
        %v5081 = vunpack.c.l.b16 %v4985
        %v5082 = vunpack.c.l.b16 %v4986
        %v5083 = vunpack.c.l.b16 %v4987
        %v5084 = vunpack.c.l.b16 %v4988
        %v5085 = vunpack.c.l.b16 %v4989
        %v5086 = vunpack.c.l.b16 %v4990
        %v5087 = vunpack.c.l.b16 %v4991
        %v5088 = vunpack.c.l.b16 %v4992
        %v5089 = vunpack.c.l.b16 %v4993
        %v5090 = vunpack.c.l.b16 %v4994
        %v5091 = vunpack.c.l.b16 %v4995
        %v5092 = vpack.c.b16 %v5077, %v5076
        %v5093 = vpack.c.b16 %v5079, %v5078
        %v5094 = vpack.c.b16 %v5081, %v5080
        %v5095 = vpack.c.b16 %v5083, %v5082
        %v5096 = vpack.c.b16 %v5085, %v5084
        %v5097 = vpack.c.b16 %v5087, %v5086
        %v5098 = vpack.c.b16 %v5089, %v5088
        %v5099 = vpack.c.b16 %v5091, %v5090
        %5108 = vmatpush.bf16.msra.mxu0 %v5099
        %5109 = vmatpush.bf16.msra.mxu0 %v5098
        %5110 = vmatpush.bf16.msra.mxu0 %v5097
        %5111 = vmatpush.bf16.msra.mxu0 %v5096
        %5112 = vmatpush.bf16.msra.mxu0 %v5095
        %5113 = vmatpush.bf16.msra.mxu0 %v5094
        %5114 = vmatpush.bf16.msra.mxu0 %v5093
        %5115 = vmatpush.bf16.msra.mxu0 %v5092
        %5116 = vmatmul.bf16.gmra.mxu0 %v5028
        %v5117 = vpop.f32.mrf.mxu0
        %v5118 = vadd.f32 0.0, %v5117
        %v5119 = vpop.f32.mrf.mxu0
        %v5120 = vadd.f32 0.0, %v5119
        %5121 = vmatmul.bf16.gmra.mxu0 %v5029
        %v5122 = vpop.f32.mrf.mxu0
        %v5123 = vadd.f32 0.0, %v5122
        %v5124 = vpop.f32.mrf.mxu0
        %v5125 = vadd.f32 0.0, %v5124
        %5126 = vmatmul.bf16.gmra.mxu0 %v5030
        %v5127 = vpop.f32.mrf.mxu0
        %v5128 = vadd.f32 0.0, %v5127
        %v5129 = vpop.f32.mrf.mxu0
        %v5130 = vadd.f32 0.0, %v5129
        %5131 = vmatmul.bf16.gmra.mxu0 %v5031
        %v5132 = vpop.f32.mrf.mxu0
        %v5133 = vadd.f32 0.0, %v5132
        %v5134 = vpop.f32.mrf.mxu0
        %v5135 = vadd.f32 0.0, %v5134
        %5136 = vmatmul.bf16.gmra.mxu0 %v5032
        %v5137 = vpop.f32.mrf.mxu0
        %v5138 = vadd.f32 0.0, %v5137
        %v5139 = vpop.f32.mrf.mxu0
        %v5140 = vadd.f32 0.0, %v5139
        %5141 = vmatmul.bf16.gmra.mxu0 %v5033
        %v5142 = vpop.f32.mrf.mxu0
        %v5143 = vadd.f32 0.0, %v5142
        %v5144 = vpop.f32.mrf.mxu0
        %v5145 = vadd.f32 0.0, %v5144
        %5146 = vmatmul.bf16.gmra.mxu0 %v5034
        %v5147 = vpop.f32.mrf.mxu0
        %v5148 = vadd.f32 0.0, %v5147
        %v5149 = vpop.f32.mrf.mxu0
        %v5150 = vadd.f32 0.0, %v5149
        %5151 = vmatmul.bf16.gmra.mxu0 %v5035
        %v5152 = vpop.f32.mrf.mxu0
        %v5153 = vadd.f32 0.0, %v5152
        %v5154 = vpop.f32.mrf.mxu0
        %v5155 = vadd.f32 0.0, %v5154
        %5156 = vmatmul.bf16.gmra.mxu0 %v5036
        %v5157 = vpop.f32.mrf.mxu0
        %v5158 = vadd.f32 0.0, %v5157
        %v5159 = vpop.f32.mrf.mxu0
        %v5160 = vadd.f32 0.0, %v5159
        %5161 = vmatmul.bf16.gmra.mxu0 %v5037
        %v5162 = vpop.f32.mrf.mxu0
        %v5163 = vadd.f32 0.0, %v5162
        %v5164 = vpop.f32.mrf.mxu0
        %v5165 = vadd.f32 0.0, %v5164
        %5166 = vmatmul.bf16.gmra.mxu0 %v5038
        %v5167 = vpop.f32.mrf.mxu0
        %v5168 = vadd.f32 0.0, %v5167
        %v5169 = vpop.f32.mrf.mxu0
        %v5170 = vadd.f32 0.0, %v5169
        %5171 = vmatmul.bf16.gmra.mxu0 %v5039
        %v5172 = vpop.f32.mrf.mxu0
        %v5173 = vadd.f32 0.0, %v5172
        %v5174 = vpop.f32.mrf.mxu0
        %v5175 = vadd.f32 0.0, %v5174
        %5176 = vmatmul.bf16.gmra.mxu0 %v5040
        %v5177 = vpop.f32.mrf.mxu0
        %v5178 = vadd.f32 0.0, %v5177
        %v5179 = vpop.f32.mrf.mxu0
        %v5180 = vadd.f32 0.0, %v5179
        %5181 = vmatmul.bf16.gmra.mxu0 %v5041
        %v5182 = vpop.f32.mrf.mxu0
        %v5183 = vadd.f32 0.0, %v5182
        %v5184 = vpop.f32.mrf.mxu0
        %v5185 = vadd.f32 0.0, %v5184
        %5186 = vmatmul.bf16.gmra.mxu0 %v5042
        %v5187 = vpop.f32.mrf.mxu0
        %v5188 = vadd.f32 0.0, %v5187
        %v5189 = vpop.f32.mrf.mxu0
        %v5190 = vadd.f32 0.0, %v5189
        %5191 = vmatmul.bf16.gmra.mxu0 %v5043
        %v5192 = vpop.f32.mrf.mxu0
        %v5193 = vadd.f32 0.0, %v5192
        %v5194 = vpop.f32.mrf.mxu0
        %v5195 = vadd.f32 0.0, %v5194
        %5196 = vdwg.mxu0
        %v5197 = vadd.f32 %v4771, %v5118
        %v5198 = vadd.f32 %v4772, %v5120
        %v5199 = vadd.f32 %v4773, %v5123
        %v5200 = vadd.f32 %v4774, %v5125
        %v5201 = vadd.f32 %v4775, %v5128
        %v5202 = vadd.f32 %v4776, %v5130
        %v5203 = vadd.f32 %v4777, %v5133
        %v5204 = vadd.f32 %v4778, %v5135
        %v5205 = vadd.f32 %v4779, %v5138
        %v5206 = vadd.f32 %v4780, %v5140
        %v5207 = vadd.f32 %v4781, %v5143
        %v5208 = vadd.f32 %v4782, %v5145
        %v5209 = vadd.f32 %v4783, %v5148
        %v5210 = vadd.f32 %v4784, %v5150
        %v5211 = vadd.f32 %v4785, %v5153
        %v5212 = vadd.f32 %v4786, %v5155
        %v5213 = vadd.f32 %v4787, %v5158
        %v5214 = vadd.f32 %v4788, %v5160
        %v5215 = vadd.f32 %v4789, %v5163
        %v5216 = vadd.f32 %v4790, %v5165
        %v5217 = vadd.f32 %v4791, %v5168
        %v5218 = vadd.f32 %v4792, %v5170
        %v5219 = vadd.f32 %v4793, %v5173
        %v5220 = vadd.f32 %v4794, %v5175
        %v5221 = vadd.f32 %v4795, %v5178
        %v5222 = vadd.f32 %v4796, %v5180
        %v5223 = vadd.f32 %v4797, %v5183
        %v5224 = vadd.f32 %v4798, %v5185
        %v5225 = vadd.f32 %v4799, %v5188
        %v5226 = vadd.f32 %v4800, %v5190
        %v5227 = vadd.f32 %v4801, %v5193
        %v5228 = vadd.f32 %v4802, %v5195
        %v5229 = vld [vmem:[%s2] sm:$0x1]
        %v5231 = vperm.slane %v5229, 0
        %v5233 = vmul.f32 %v5197, %v5231
        %v5234 = vmul.f32 %v5198, %v5231
        %v5235 = vmul.f32 %v5199, %v5231
        %v5236 = vmul.f32 %v5200, %v5231
        %v5237 = vmul.f32 %v5201, %v5231
        %v5238 = vmul.f32 %v5202, %v5231
        %v5239 = vmul.f32 %v5203, %v5231
        %v5240 = vmul.f32 %v5204, %v5231
        %v5241 = vmul.f32 %v5205, %v5231
        %v5242 = vmul.f32 %v5206, %v5231
        %v5243 = vmul.f32 %v5207, %v5231
        %v5244 = vmul.f32 %v5208, %v5231
        %v5245 = vmul.f32 %v5209, %v5231
        %v5246 = vmul.f32 %v5210, %v5231
        %v5247 = vmul.f32 %v5211, %v5231
        %v5248 = vmul.f32 %v5212, %v5231
        %v5249 = vmul.f32 %v5213, %v5231
        %v5250 = vmul.f32 %v5214, %v5231
        %v5251 = vmul.f32 %v5215, %v5231
        %v5252 = vmul.f32 %v5216, %v5231
        %v5253 = vmul.f32 %v5217, %v5231
        %v5254 = vmul.f32 %v5218, %v5231
        %v5255 = vmul.f32 %v5219, %v5231
        %v5256 = vmul.f32 %v5220, %v5231
        %v5257 = vmul.f32 %v5221, %v5231
        %v5258 = vmul.f32 %v5222, %v5231
        %v5259 = vmul.f32 %v5223, %v5231
        %v5260 = vmul.f32 %v5224, %v5231
        %v5261 = vmul.f32 %v5225, %v5231
        %v5262 = vmul.f32 %v5226, %v5231
        %v5263 = vmul.f32 %v5227, %v5231
        %v5264 = vmul.f32 %v5228, %v5231
        %v5265 = vld [vmem:[%s3] sm:$0x1]
        %v5267 = vperm.slane %v5265, 0
        %v5269 = vadd.f32 %v5233, %v5267
        %v5270 = vadd.f32 %v5234, %v5267
        %v5271 = vadd.f32 %v5235, %v5267
        %v5272 = vadd.f32 %v5236, %v5267
        %v5273 = vadd.f32 %v5237, %v5267
        %v5274 = vadd.f32 %v5238, %v5267
        %v5275 = vadd.f32 %v5239, %v5267
        %v5276 = vadd.f32 %v5240, %v5267
        %v5277 = vadd.f32 %v5241, %v5267
        %v5278 = vadd.f32 %v5242, %v5267
        %v5279 = vadd.f32 %v5243, %v5267
        %v5280 = vadd.f32 %v5244, %v5267
        %v5281 = vadd.f32 %v5245, %v5267
        %v5282 = vadd.f32 %v5246, %v5267
        %v5283 = vadd.f32 %v5247, %v5267
        %v5284 = vadd.f32 %v5248, %v5267
        %v5285 = vadd.f32 %v5249, %v5267
        %v5286 = vadd.f32 %v5250, %v5267
        %v5287 = vadd.f32 %v5251, %v5267
        %v5288 = vadd.f32 %v5252, %v5267
        %v5289 = vadd.f32 %v5253, %v5267
        %v5290 = vadd.f32 %v5254, %v5267
        %v5291 = vadd.f32 %v5255, %v5267
        %v5292 = vadd.f32 %v5256, %v5267
        %v5293 = vadd.f32 %v5257, %v5267
        %v5294 = vadd.f32 %v5258, %v5267
        %v5295 = vadd.f32 %v5259, %v5267
        %v5296 = vadd.f32 %v5260, %v5267
        %v5297 = vadd.f32 %v5261, %v5267
        %v5298 = vadd.f32 %v5262, %v5267
        %v5299 = vadd.f32 %v5263, %v5267
        %v5300 = vadd.f32 %v5264, %v5267
        %v5301 = vsub.f32 0.0, %v5269
        %v5302 = vsub.f32 0.0, %v5270
        %v5303 = vsub.f32 0.0, %v5271
        %v5304 = vsub.f32 0.0, %v5272
        %v5305 = vsub.f32 0.0, %v5273
        %v5306 = vsub.f32 0.0, %v5274
        %v5307 = vsub.f32 0.0, %v5275
        %v5308 = vsub.f32 0.0, %v5276
        %v5309 = vsub.f32 0.0, %v5277
        %v5310 = vsub.f32 0.0, %v5278
        %v5311 = vsub.f32 0.0, %v5279
        %v5312 = vsub.f32 0.0, %v5280
        %v5313 = vsub.f32 0.0, %v5281
        %v5314 = vsub.f32 0.0, %v5282
        %v5315 = vsub.f32 0.0, %v5283
        %v5316 = vsub.f32 0.0, %v5284
        %v5317 = vsub.f32 0.0, %v5285
        %v5318 = vsub.f32 0.0, %v5286
        %v5319 = vsub.f32 0.0, %v5287
        %v5320 = vsub.f32 0.0, %v5288
        %v5321 = vsub.f32 0.0, %v5289
        %v5322 = vsub.f32 0.0, %v5290
        %v5323 = vsub.f32 0.0, %v5291
        %v5324 = vsub.f32 0.0, %v5292
        %v5325 = vsub.f32 0.0, %v5293
        %v5326 = vsub.f32 0.0, %v5294
        %v5327 = vsub.f32 0.0, %v5295
        %v5328 = vsub.f32 0.0, %v5296
        %v5329 = vsub.f32 0.0, %v5297
        %v5330 = vsub.f32 0.0, %v5298
        %v5331 = vsub.f32 0.0, %v5299
        %v5332 = vsub.f32 0.0, %v5300
        %v5333 = vmul.f32 %v5301, 1.442695
        %v5334 = vpow.pop %v5333
        %v5335 = vmul.f32 %v5302, 1.442695
        %v5336 = vpow.pop %v5335
        %v5337 = vmul.f32 %v5303, 1.442695
        %v5338 = vpow.pop %v5337
        %v5339 = vmul.f32 %v5304, 1.442695
        %v5340 = vpow.pop %v5339
        %v5341 = vmul.f32 %v5305, 1.442695
        %v5342 = vpow.pop %v5341
        %v5343 = vmul.f32 %v5306, 1.442695
        %v5344 = vpow.pop %v5343
        %v5345 = vmul.f32 %v5307, 1.442695
        %v5346 = vpow.pop %v5345
        %v5347 = vmul.f32 %v5308, 1.442695
        %v5348 = vpow.pop %v5347
        %v5349 = vmul.f32 %v5309, 1.442695
        %v5350 = vpow.pop %v5349
        %v5351 = vmul.f32 %v5310, 1.442695
        %v5352 = vpow.pop %v5351
        %v5353 = vmul.f32 %v5311, 1.442695
        %v5354 = vpow.pop %v5353
        %v5355 = vmul.f32 %v5312, 1.442695
        %v5356 = vpow.pop %v5355
        %v5357 = vmul.f32 %v5313, 1.442695
        %v5358 = vpow.pop %v5357
        %v5359 = vmul.f32 %v5314, 1.442695
        %v5360 = vpow.pop %v5359
        %v5361 = vmul.f32 %v5315, 1.442695
        %v5362 = vpow.pop %v5361
        %v5363 = vmul.f32 %v5316, 1.442695
        %v5364 = vpow.pop %v5363
        %v5365 = vmul.f32 %v5317, 1.442695
        %v5366 = vpow.pop %v5365
        %v5367 = vmul.f32 %v5318, 1.442695
        %v5368 = vpow.pop %v5367
        %v5369 = vmul.f32 %v5319, 1.442695
        %v5370 = vpow.pop %v5369
        %v5371 = vmul.f32 %v5320, 1.442695
        %v5372 = vpow.pop %v5371
        %v5373 = vmul.f32 %v5321, 1.442695
        %v5374 = vpow.pop %v5373
        %v5375 = vmul.f32 %v5322, 1.442695
        %v5376 = vpow.pop %v5375
        %v5377 = vmul.f32 %v5323, 1.442695
        %v5378 = vpow.pop %v5377
        %v5379 = vmul.f32 %v5324, 1.442695
        %v5380 = vpow.pop %v5379
        %v5381 = vmul.f32 %v5325, 1.442695
        %v5382 = vpow.pop %v5381
        %v5383 = vmul.f32 %v5326, 1.442695
        %v5384 = vpow.pop %v5383
        %v5385 = vmul.f32 %v5327, 1.442695
        %v5386 = vpow.pop %v5385
        %v5387 = vmul.f32 %v5328, 1.442695
        %v5388 = vpow.pop %v5387
        %v5389 = vmul.f32 %v5329, 1.442695
        %v5390 = vpow.pop %v5389
        %v5391 = vmul.f32 %v5330, 1.442695
        %v5392 = vpow.pop %v5391
        %v5393 = vmul.f32 %v5331, 1.442695
        %v5394 = vpow.pop %v5393
        %v5395 = vmul.f32 %v5332, 1.442695
        %v5396 = vpow.pop %v5395
        %v5397 = vadd.f32 %v5334, 1.0
        %v5398 = vadd.f32 %v5336, 1.0
        %v5399 = vadd.f32 %v5338, 1.0
        %v5400 = vadd.f32 %v5340, 1.0
        %v5401 = vadd.f32 %v5342, 1.0
        %v5402 = vadd.f32 %v5344, 1.0
        %v5403 = vadd.f32 %v5346, 1.0
        %v5404 = vadd.f32 %v5348, 1.0
        %v5405 = vadd.f32 %v5350, 1.0
        %v5406 = vadd.f32 %v5352, 1.0
        %v5407 = vadd.f32 %v5354, 1.0
        %v5408 = vadd.f32 %v5356, 1.0
        %v5409 = vadd.f32 %v5358, 1.0
        %v5410 = vadd.f32 %v5360, 1.0
        %v5411 = vadd.f32 %v5362, 1.0
        %v5412 = vadd.f32 %v5364, 1.0
        %v5413 = vadd.f32 %v5366, 1.0
        %v5414 = vadd.f32 %v5368, 1.0
        %v5415 = vadd.f32 %v5370, 1.0
        %v5416 = vadd.f32 %v5372, 1.0
        %v5417 = vadd.f32 %v5374, 1.0
        %v5418 = vadd.f32 %v5376, 1.0
        %v5419 = vadd.f32 %v5378, 1.0
        %v5420 = vadd.f32 %v5380, 1.0
        %v5421 = vadd.f32 %v5382, 1.0
        %v5422 = vadd.f32 %v5384, 1.0
        %v5423 = vadd.f32 %v5386, 1.0
        %v5424 = vadd.f32 %v5388, 1.0
        %v5425 = vadd.f32 %v5390, 1.0
        %v5426 = vadd.f32 %v5392, 1.0
        %v5427 = vadd.f32 %v5394, 1.0
        %v5428 = vadd.f32 %v5396, 1.0
        %v5429 = vrcp.pop %v5397
        %v5430 = vmul.f32 %v5397, %v5429
        %v5431 = vsub.f32 1.0, %v5430
        %v5432 = vmul.f32 %v5429, %v5431
        %v5433 = vadd.f32 %v5429, %v5432
        %vm5434 = vweird.f32 %v5397
        %vm5435 = vweird.f32 %v5429
        %vm5436 = vmor %vm5434, %vm5435
        %v5437 = vsel %vm5436, %v5429, %v5433
        %v5438 = vand.u32 2147483647, %v5397
        %vm5439 = vcmp.eq.f32.partialorder %v5438, 8.507059e+37
        %v5440 = vand.u32 %v5397, 2147483648
        %v5441 = vor.u32 1.1754944e-38, %v5440
        %v5442 = vsel %vm5439, %v5441, %v5437
        %v5443 = vrcp.pop %v5398
        %v5444 = vmul.f32 %v5398, %v5443
        %v5445 = vsub.f32 1.0, %v5444
        %v5446 = vmul.f32 %v5443, %v5445
        %v5447 = vadd.f32 %v5443, %v5446
        %vm5448 = vweird.f32 %v5398
        %vm5449 = vweird.f32 %v5443
        %vm5450 = vmor %vm5448, %vm5449
        %v5451 = vsel %vm5450, %v5443, %v5447
        %v5452 = vand.u32 2147483647, %v5398
        %vm5453 = vcmp.eq.f32.partialorder %v5452, 8.507059e+37
        %v5454 = vand.u32 %v5398, 2147483648
        %v5455 = vor.u32 1.1754944e-38, %v5454
        %v5456 = vsel %vm5453, %v5455, %v5451
        %v5457 = vrcp.pop %v5399
        %v5458 = vmul.f32 %v5399, %v5457
        %v5459 = vsub.f32 1.0, %v5458
        %v5460 = vmul.f32 %v5457, %v5459
        %v5461 = vadd.f32 %v5457, %v5460
        %vm5462 = vweird.f32 %v5399
        %vm5463 = vweird.f32 %v5457
        %vm5464 = vmor %vm5462, %vm5463
        %v5465 = vsel %vm5464, %v5457, %v5461
        %v5466 = vand.u32 2147483647, %v5399
        %vm5467 = vcmp.eq.f32.partialorder %v5466, 8.507059e+37
        %v5468 = vand.u32 %v5399, 2147483648
        %v5469 = vor.u32 1.1754944e-38, %v5468
        %v5470 = vsel %vm5467, %v5469, %v5465
        %v5471 = vrcp.pop %v5400
        %v5472 = vmul.f32 %v5400, %v5471
        %v5473 = vsub.f32 1.0, %v5472
        %v5474 = vmul.f32 %v5471, %v5473
        %v5475 = vadd.f32 %v5471, %v5474
        %vm5476 = vweird.f32 %v5400
        %vm5477 = vweird.f32 %v5471
        %vm5478 = vmor %vm5476, %vm5477
        %v5479 = vsel %vm5478, %v5471, %v5475
        %v5480 = vand.u32 2147483647, %v5400
        %vm5481 = vcmp.eq.f32.partialorder %v5480, 8.507059e+37
        %v5482 = vand.u32 %v5400, 2147483648
        %v5483 = vor.u32 1.1754944e-38, %v5482
        %v5484 = vsel %vm5481, %v5483, %v5479
        %v5485 = vrcp.pop %v5401
        %v5486 = vmul.f32 %v5401, %v5485
        %v5487 = vsub.f32 1.0, %v5486
        %v5488 = vmul.f32 %v5485, %v5487
        %v5489 = vadd.f32 %v5485, %v5488
        %vm5490 = vweird.f32 %v5401
        %vm5491 = vweird.f32 %v5485
        %vm5492 = vmor %vm5490, %vm5491
        %v5493 = vsel %vm5492, %v5485, %v5489
        %v5494 = vand.u32 2147483647, %v5401
        %vm5495 = vcmp.eq.f32.partialorder %v5494, 8.507059e+37
        %v5496 = vand.u32 %v5401, 2147483648
        %v5497 = vor.u32 1.1754944e-38, %v5496
        %v5498 = vsel %vm5495, %v5497, %v5493
        %v5499 = vrcp.pop %v5402
        %v5500 = vmul.f32 %v5402, %v5499
        %v5501 = vsub.f32 1.0, %v5500
        %v5502 = vmul.f32 %v5499, %v5501
        %v5503 = vadd.f32 %v5499, %v5502
        %vm5504 = vweird.f32 %v5402
        %vm5505 = vweird.f32 %v5499
        %vm5506 = vmor %vm5504, %vm5505
        %v5507 = vsel %vm5506, %v5499, %v5503
        %v5508 = vand.u32 2147483647, %v5402
        %vm5509 = vcmp.eq.f32.partialorder %v5508, 8.507059e+37
        %v5510 = vand.u32 %v5402, 2147483648
        %v5511 = vor.u32 1.1754944e-38, %v5510
        %v5512 = vsel %vm5509, %v5511, %v5507
        %v5513 = vrcp.pop %v5403
        %v5514 = vmul.f32 %v5403, %v5513
        %v5515 = vsub.f32 1.0, %v5514
        %v5516 = vmul.f32 %v5513, %v5515
        %v5517 = vadd.f32 %v5513, %v5516
        %vm5518 = vweird.f32 %v5403
        %vm5519 = vweird.f32 %v5513
        %vm5520 = vmor %vm5518, %vm5519
        %v5521 = vsel %vm5520, %v5513, %v5517
        %v5522 = vand.u32 2147483647, %v5403
        %vm5523 = vcmp.eq.f32.partialorder %v5522, 8.507059e+37
        %v5524 = vand.u32 %v5403, 2147483648
        %v5525 = vor.u32 1.1754944e-38, %v5524
        %v5526 = vsel %vm5523, %v5525, %v5521
        %v5527 = vrcp.pop %v5404
        %v5528 = vmul.f32 %v5404, %v5527
        %v5529 = vsub.f32 1.0, %v5528
        %v5530 = vmul.f32 %v5527, %v5529
        %v5531 = vadd.f32 %v5527, %v5530
        %vm5532 = vweird.f32 %v5404
        %vm5533 = vweird.f32 %v5527
        %vm5534 = vmor %vm5532, %vm5533
        %v5535 = vsel %vm5534, %v5527, %v5531
        %v5536 = vand.u32 2147483647, %v5404
        %vm5537 = vcmp.eq.f32.partialorder %v5536, 8.507059e+37
        %v5538 = vand.u32 %v5404, 2147483648
        %v5539 = vor.u32 1.1754944e-38, %v5538
        %v5540 = vsel %vm5537, %v5539, %v5535
        %v5541 = vrcp.pop %v5405
        %v5542 = vmul.f32 %v5405, %v5541
        %v5543 = vsub.f32 1.0, %v5542
        %v5544 = vmul.f32 %v5541, %v5543
        %v5545 = vadd.f32 %v5541, %v5544
        %vm5546 = vweird.f32 %v5405
        %vm5547 = vweird.f32 %v5541
        %vm5548 = vmor %vm5546, %vm5547
        %v5549 = vsel %vm5548, %v5541, %v5545
        %v5550 = vand.u32 2147483647, %v5405
        %vm5551 = vcmp.eq.f32.partialorder %v5550, 8.507059e+37
        %v5552 = vand.u32 %v5405, 2147483648
        %v5553 = vor.u32 1.1754944e-38, %v5552
        %v5554 = vsel %vm5551, %v5553, %v5549
        %v5555 = vrcp.pop %v5406
        %v5556 = vmul.f32 %v5406, %v5555
        %v5557 = vsub.f32 1.0, %v5556
        %v5558 = vmul.f32 %v5555, %v5557
        %v5559 = vadd.f32 %v5555, %v5558
        %vm5560 = vweird.f32 %v5406
        %vm5561 = vweird.f32 %v5555
        %vm5562 = vmor %vm5560, %vm5561
        %v5563 = vsel %vm5562, %v5555, %v5559
        %v5564 = vand.u32 2147483647, %v5406
        %vm5565 = vcmp.eq.f32.partialorder %v5564, 8.507059e+37
        %v5566 = vand.u32 %v5406, 2147483648
        %v5567 = vor.u32 1.1754944e-38, %v5566
        %v5568 = vsel %vm5565, %v5567, %v5563
        %v5569 = vrcp.pop %v5407
        %v5570 = vmul.f32 %v5407, %v5569
        %v5571 = vsub.f32 1.0, %v5570
        %v5572 = vmul.f32 %v5569, %v5571
        %v5573 = vadd.f32 %v5569, %v5572
        %vm5574 = vweird.f32 %v5407
        %vm5575 = vweird.f32 %v5569
        %vm5576 = vmor %vm5574, %vm5575
        %v5577 = vsel %vm5576, %v5569, %v5573
        %v5578 = vand.u32 2147483647, %v5407
        %vm5579 = vcmp.eq.f32.partialorder %v5578, 8.507059e+37
        %v5580 = vand.u32 %v5407, 2147483648
        %v5581 = vor.u32 1.1754944e-38, %v5580
        %v5582 = vsel %vm5579, %v5581, %v5577
        %v5583 = vrcp.pop %v5408
        %v5584 = vmul.f32 %v5408, %v5583
        %v5585 = vsub.f32 1.0, %v5584
        %v5586 = vmul.f32 %v5583, %v5585
        %v5587 = vadd.f32 %v5583, %v5586
        %vm5588 = vweird.f32 %v5408
        %vm5589 = vweird.f32 %v5583
        %vm5590 = vmor %vm5588, %vm5589
        %v5591 = vsel %vm5590, %v5583, %v5587
        %v5592 = vand.u32 2147483647, %v5408
        %vm5593 = vcmp.eq.f32.partialorder %v5592, 8.507059e+37
        %v5594 = vand.u32 %v5408, 2147483648
        %v5595 = vor.u32 1.1754944e-38, %v5594
        %v5596 = vsel %vm5593, %v5595, %v5591
        %v5597 = vrcp.pop %v5409
        %v5598 = vmul.f32 %v5409, %v5597
        %v5599 = vsub.f32 1.0, %v5598
        %v5600 = vmul.f32 %v5597, %v5599
        %v5601 = vadd.f32 %v5597, %v5600
        %vm5602 = vweird.f32 %v5409
        %vm5603 = vweird.f32 %v5597
        %vm5604 = vmor %vm5602, %vm5603
        %v5605 = vsel %vm5604, %v5597, %v5601
        %v5606 = vand.u32 2147483647, %v5409
        %vm5607 = vcmp.eq.f32.partialorder %v5606, 8.507059e+37
        %v5608 = vand.u32 %v5409, 2147483648
        %v5609 = vor.u32 1.1754944e-38, %v5608
        %v5610 = vsel %vm5607, %v5609, %v5605
        %v5611 = vrcp.pop %v5410
        %v5612 = vmul.f32 %v5410, %v5611
        %v5613 = vsub.f32 1.0, %v5612
        %v5614 = vmul.f32 %v5611, %v5613
        %v5615 = vadd.f32 %v5611, %v5614
        %vm5616 = vweird.f32 %v5410
        %vm5617 = vweird.f32 %v5611
        %vm5618 = vmor %vm5616, %vm5617
        %v5619 = vsel %vm5618, %v5611, %v5615
        %v5620 = vand.u32 2147483647, %v5410
        %vm5621 = vcmp.eq.f32.partialorder %v5620, 8.507059e+37
        %v5622 = vand.u32 %v5410, 2147483648
        %v5623 = vor.u32 1.1754944e-38, %v5622
        %v5624 = vsel %vm5621, %v5623, %v5619
        %v5625 = vrcp.pop %v5411
        %v5626 = vmul.f32 %v5411, %v5625
        %v5627 = vsub.f32 1.0, %v5626
        %v5628 = vmul.f32 %v5625, %v5627
        %v5629 = vadd.f32 %v5625, %v5628
        %vm5630 = vweird.f32 %v5411
        %vm5631 = vweird.f32 %v5625
        %vm5632 = vmor %vm5630, %vm5631
        %v5633 = vsel %vm5632, %v5625, %v5629
        %v5634 = vand.u32 2147483647, %v5411
        %vm5635 = vcmp.eq.f32.partialorder %v5634, 8.507059e+37
        %v5636 = vand.u32 %v5411, 2147483648
        %v5637 = vor.u32 1.1754944e-38, %v5636
        %v5638 = vsel %vm5635, %v5637, %v5633
        %v5639 = vrcp.pop %v5412
        %v5640 = vmul.f32 %v5412, %v5639
        %v5641 = vsub.f32 1.0, %v5640
        %v5642 = vmul.f32 %v5639, %v5641
        %v5643 = vadd.f32 %v5639, %v5642
        %vm5644 = vweird.f32 %v5412
        %vm5645 = vweird.f32 %v5639
        %vm5646 = vmor %vm5644, %vm5645
        %v5647 = vsel %vm5646, %v5639, %v5643
        %v5648 = vand.u32 2147483647, %v5412
        %vm5649 = vcmp.eq.f32.partialorder %v5648, 8.507059e+37
        %v5650 = vand.u32 %v5412, 2147483648
        %v5651 = vor.u32 1.1754944e-38, %v5650
        %v5652 = vsel %vm5649, %v5651, %v5647
        %v5653 = vrcp.pop %v5413
        %v5654 = vmul.f32 %v5413, %v5653
        %v5655 = vsub.f32 1.0, %v5654
        %v5656 = vmul.f32 %v5653, %v5655
        %v5657 = vadd.f32 %v5653, %v5656
        %vm5658 = vweird.f32 %v5413
        %vm5659 = vweird.f32 %v5653
        %vm5660 = vmor %vm5658, %vm5659
        %v5661 = vsel %vm5660, %v5653, %v5657
        %v5662 = vand.u32 2147483647, %v5413
        %vm5663 = vcmp.eq.f32.partialorder %v5662, 8.507059e+37
        %v5664 = vand.u32 %v5413, 2147483648
        %v5665 = vor.u32 1.1754944e-38, %v5664
        %v5666 = vsel %vm5663, %v5665, %v5661
        %v5667 = vrcp.pop %v5414
        %v5668 = vmul.f32 %v5414, %v5667
        %v5669 = vsub.f32 1.0, %v5668
        %v5670 = vmul.f32 %v5667, %v5669
        %v5671 = vadd.f32 %v5667, %v5670
        %vm5672 = vweird.f32 %v5414
        %vm5673 = vweird.f32 %v5667
        %vm5674 = vmor %vm5672, %vm5673
        %v5675 = vsel %vm5674, %v5667, %v5671
        %v5676 = vand.u32 2147483647, %v5414
        %vm5677 = vcmp.eq.f32.partialorder %v5676, 8.507059e+37
        %v5678 = vand.u32 %v5414, 2147483648
        %v5679 = vor.u32 1.1754944e-38, %v5678
        %v5680 = vsel %vm5677, %v5679, %v5675
        %v5681 = vrcp.pop %v5415
        %v5682 = vmul.f32 %v5415, %v5681
        %v5683 = vsub.f32 1.0, %v5682
        %v5684 = vmul.f32 %v5681, %v5683
        %v5685 = vadd.f32 %v5681, %v5684
        %vm5686 = vweird.f32 %v5415
        %vm5687 = vweird.f32 %v5681
        %vm5688 = vmor %vm5686, %vm5687
        %v5689 = vsel %vm5688, %v5681, %v5685
        %v5690 = vand.u32 2147483647, %v5415
        %vm5691 = vcmp.eq.f32.partialorder %v5690, 8.507059e+37
        %v5692 = vand.u32 %v5415, 2147483648
        %v5693 = vor.u32 1.1754944e-38, %v5692
        %v5694 = vsel %vm5691, %v5693, %v5689
        %v5695 = vrcp.pop %v5416
        %v5696 = vmul.f32 %v5416, %v5695
        %v5697 = vsub.f32 1.0, %v5696
        %v5698 = vmul.f32 %v5695, %v5697
        %v5699 = vadd.f32 %v5695, %v5698
        %vm5700 = vweird.f32 %v5416
        %vm5701 = vweird.f32 %v5695
        %vm5702 = vmor %vm5700, %vm5701
        %v5703 = vsel %vm5702, %v5695, %v5699
        %v5704 = vand.u32 2147483647, %v5416
        %vm5705 = vcmp.eq.f32.partialorder %v5704, 8.507059e+37
        %v5706 = vand.u32 %v5416, 2147483648
        %v5707 = vor.u32 1.1754944e-38, %v5706
        %v5708 = vsel %vm5705, %v5707, %v5703
        %v5709 = vrcp.pop %v5417
        %v5710 = vmul.f32 %v5417, %v5709
        %v5711 = vsub.f32 1.0, %v5710
        %v5712 = vmul.f32 %v5709, %v5711
        %v5713 = vadd.f32 %v5709, %v5712
        %vm5714 = vweird.f32 %v5417
        %vm5715 = vweird.f32 %v5709
        %vm5716 = vmor %vm5714, %vm5715
        %v5717 = vsel %vm5716, %v5709, %v5713
        %v5718 = vand.u32 2147483647, %v5417
        %vm5719 = vcmp.eq.f32.partialorder %v5718, 8.507059e+37
        %v5720 = vand.u32 %v5417, 2147483648
        %v5721 = vor.u32 1.1754944e-38, %v5720
        %v5722 = vsel %vm5719, %v5721, %v5717
        %v5723 = vrcp.pop %v5418
        %v5724 = vmul.f32 %v5418, %v5723
        %v5725 = vsub.f32 1.0, %v5724
        %v5726 = vmul.f32 %v5723, %v5725
        %v5727 = vadd.f32 %v5723, %v5726
        %vm5728 = vweird.f32 %v5418
        %vm5729 = vweird.f32 %v5723
        %vm5730 = vmor %vm5728, %vm5729
        %v5731 = vsel %vm5730, %v5723, %v5727
        %v5732 = vand.u32 2147483647, %v5418
        %vm5733 = vcmp.eq.f32.partialorder %v5732, 8.507059e+37
        %v5734 = vand.u32 %v5418, 2147483648
        %v5735 = vor.u32 1.1754944e-38, %v5734
        %v5736 = vsel %vm5733, %v5735, %v5731
        %v5737 = vrcp.pop %v5419
        %v5738 = vmul.f32 %v5419, %v5737
        %v5739 = vsub.f32 1.0, %v5738
        %v5740 = vmul.f32 %v5737, %v5739
        %v5741 = vadd.f32 %v5737, %v5740
        %vm5742 = vweird.f32 %v5419
        %vm5743 = vweird.f32 %v5737
        %vm5744 = vmor %vm5742, %vm5743
        %v5745 = vsel %vm5744, %v5737, %v5741
        %v5746 = vand.u32 2147483647, %v5419
        %vm5747 = vcmp.eq.f32.partialorder %v5746, 8.507059e+37
        %v5748 = vand.u32 %v5419, 2147483648
        %v5749 = vor.u32 1.1754944e-38, %v5748
        %v5750 = vsel %vm5747, %v5749, %v5745
        %v5751 = vrcp.pop %v5420
        %v5752 = vmul.f32 %v5420, %v5751
        %v5753 = vsub.f32 1.0, %v5752
        %v5754 = vmul.f32 %v5751, %v5753
        %v5755 = vadd.f32 %v5751, %v5754
        %vm5756 = vweird.f32 %v5420
        %vm5757 = vweird.f32 %v5751
        %vm5758 = vmor %vm5756, %vm5757
        %v5759 = vsel %vm5758, %v5751, %v5755
        %v5760 = vand.u32 2147483647, %v5420
        %vm5761 = vcmp.eq.f32.partialorder %v5760, 8.507059e+37
        %v5762 = vand.u32 %v5420, 2147483648
        %v5763 = vor.u32 1.1754944e-38, %v5762
        %v5764 = vsel %vm5761, %v5763, %v5759
        %v5765 = vrcp.pop %v5421
        %v5766 = vmul.f32 %v5421, %v5765
        %v5767 = vsub.f32 1.0, %v5766
        %v5768 = vmul.f32 %v5765, %v5767
        %v5769 = vadd.f32 %v5765, %v5768
        %vm5770 = vweird.f32 %v5421
        %vm5771 = vweird.f32 %v5765
        %vm5772 = vmor %vm5770, %vm5771
        %v5773 = vsel %vm5772, %v5765, %v5769
        %v5774 = vand.u32 2147483647, %v5421
        %vm5775 = vcmp.eq.f32.partialorder %v5774, 8.507059e+37
        %v5776 = vand.u32 %v5421, 2147483648
        %v5777 = vor.u32 1.1754944e-38, %v5776
        %v5778 = vsel %vm5775, %v5777, %v5773
        %v5779 = vrcp.pop %v5422
        %v5780 = vmul.f32 %v5422, %v5779
        %v5781 = vsub.f32 1.0, %v5780
        %v5782 = vmul.f32 %v5779, %v5781
        %v5783 = vadd.f32 %v5779, %v5782
        %vm5784 = vweird.f32 %v5422
        %vm5785 = vweird.f32 %v5779
        %vm5786 = vmor %vm5784, %vm5785
        %v5787 = vsel %vm5786, %v5779, %v5783
        %v5788 = vand.u32 2147483647, %v5422
        %vm5789 = vcmp.eq.f32.partialorder %v5788, 8.507059e+37
        %v5790 = vand.u32 %v5422, 2147483648
        %v5791 = vor.u32 1.1754944e-38, %v5790
        %v5792 = vsel %vm5789, %v5791, %v5787
        %v5793 = vrcp.pop %v5423
        %v5794 = vmul.f32 %v5423, %v5793
        %v5795 = vsub.f32 1.0, %v5794
        %v5796 = vmul.f32 %v5793, %v5795
        %v5797 = vadd.f32 %v5793, %v5796
        %vm5798 = vweird.f32 %v5423
        %vm5799 = vweird.f32 %v5793
        %vm5800 = vmor %vm5798, %vm5799
        %v5801 = vsel %vm5800, %v5793, %v5797
        %v5802 = vand.u32 2147483647, %v5423
        %vm5803 = vcmp.eq.f32.partialorder %v5802, 8.507059e+37
        %v5804 = vand.u32 %v5423, 2147483648
        %v5805 = vor.u32 1.1754944e-38, %v5804
        %v5806 = vsel %vm5803, %v5805, %v5801
        %v5807 = vrcp.pop %v5424
        %v5808 = vmul.f32 %v5424, %v5807
        %v5809 = vsub.f32 1.0, %v5808
        %v5810 = vmul.f32 %v5807, %v5809
        %v5811 = vadd.f32 %v5807, %v5810
        %vm5812 = vweird.f32 %v5424
        %vm5813 = vweird.f32 %v5807
        %vm5814 = vmor %vm5812, %vm5813
        %v5815 = vsel %vm5814, %v5807, %v5811
        %v5816 = vand.u32 2147483647, %v5424
        %vm5817 = vcmp.eq.f32.partialorder %v5816, 8.507059e+37
        %v5818 = vand.u32 %v5424, 2147483648
        %v5819 = vor.u32 1.1754944e-38, %v5818
        %v5820 = vsel %vm5817, %v5819, %v5815
        %v5821 = vrcp.pop %v5425
        %v5822 = vmul.f32 %v5425, %v5821
        %v5823 = vsub.f32 1.0, %v5822
        %v5824 = vmul.f32 %v5821, %v5823
        %v5825 = vadd.f32 %v5821, %v5824
        %vm5826 = vweird.f32 %v5425
        %vm5827 = vweird.f32 %v5821
        %vm5828 = vmor %vm5826, %vm5827
        %v5829 = vsel %vm5828, %v5821, %v5825
        %v5830 = vand.u32 2147483647, %v5425
        %vm5831 = vcmp.eq.f32.partialorder %v5830, 8.507059e+37
        %v5832 = vand.u32 %v5425, 2147483648
        %v5833 = vor.u32 1.1754944e-38, %v5832
        %v5834 = vsel %vm5831, %v5833, %v5829
        %v5835 = vrcp.pop %v5426
        %v5836 = vmul.f32 %v5426, %v5835
        %v5837 = vsub.f32 1.0, %v5836
        %v5838 = vmul.f32 %v5835, %v5837
        %v5839 = vadd.f32 %v5835, %v5838
        %vm5840 = vweird.f32 %v5426
        %vm5841 = vweird.f32 %v5835
        %vm5842 = vmor %vm5840, %vm5841
        %v5843 = vsel %vm5842, %v5835, %v5839
        %v5844 = vand.u32 2147483647, %v5426
        %vm5845 = vcmp.eq.f32.partialorder %v5844, 8.507059e+37
        %v5846 = vand.u32 %v5426, 2147483648
        %v5847 = vor.u32 1.1754944e-38, %v5846
        %v5848 = vsel %vm5845, %v5847, %v5843
        %v5849 = vrcp.pop %v5427
        %v5850 = vmul.f32 %v5427, %v5849
        %v5851 = vsub.f32 1.0, %v5850
        %v5852 = vmul.f32 %v5849, %v5851
        %v5853 = vadd.f32 %v5849, %v5852
        %vm5854 = vweird.f32 %v5427
        %vm5855 = vweird.f32 %v5849
        %vm5856 = vmor %vm5854, %vm5855
        %v5857 = vsel %vm5856, %v5849, %v5853
        %v5858 = vand.u32 2147483647, %v5427
        %vm5859 = vcmp.eq.f32.partialorder %v5858, 8.507059e+37
        %v5860 = vand.u32 %v5427, 2147483648
        %v5861 = vor.u32 1.1754944e-38, %v5860
        %v5862 = vsel %vm5859, %v5861, %v5857
        %v5863 = vrcp.pop %v5428
        %v5864 = vmul.f32 %v5428, %v5863
        %v5865 = vsub.f32 1.0, %v5864
        %v5866 = vmul.f32 %v5863, %v5865
        %v5867 = vadd.f32 %v5863, %v5866
        %vm5868 = vweird.f32 %v5428
        %vm5869 = vweird.f32 %v5863
        %vm5870 = vmor %vm5868, %vm5869
        %v5871 = vsel %vm5870, %v5863, %v5867
        %v5872 = vand.u32 2147483647, %v5428
        %vm5873 = vcmp.eq.f32.partialorder %v5872, 8.507059e+37
        %v5874 = vand.u32 %v5428, 2147483648
        %v5875 = vor.u32 1.1754944e-38, %v5874
        %v5876 = vsel %vm5873, %v5875, %v5871
        %v5877 = vmul.f32 %v5269, %v5442
        %v5878 = vmul.f32 %v5270, %v5456
        %v5879 = vmul.f32 %v5271, %v5470
        %v5880 = vmul.f32 %v5272, %v5484
        %v5881 = vmul.f32 %v5273, %v5498
        %v5882 = vmul.f32 %v5274, %v5512
        %v5883 = vmul.f32 %v5275, %v5526
        %v5884 = vmul.f32 %v5276, %v5540
        %v5885 = vmul.f32 %v5277, %v5554
        %v5886 = vmul.f32 %v5278, %v5568
        %v5887 = vmul.f32 %v5279, %v5582
        %v5888 = vmul.f32 %v5280, %v5596
        %v5889 = vmul.f32 %v5281, %v5610
        %v5890 = vmul.f32 %v5282, %v5624
        %v5891 = vmul.f32 %v5283, %v5638
        %v5892 = vmul.f32 %v5284, %v5652
        %v5893 = vmul.f32 %v5285, %v5666
        %v5894 = vmul.f32 %v5286, %v5680
        %v5895 = vmul.f32 %v5287, %v5694
        %v5896 = vmul.f32 %v5288, %v5708
        %v5897 = vmul.f32 %v5289, %v5722
        %v5898 = vmul.f32 %v5290, %v5736
        %v5899 = vmul.f32 %v5291, %v5750
        %v5900 = vmul.f32 %v5292, %v5764
        %v5901 = vmul.f32 %v5293, %v5778
        %v5902 = vmul.f32 %v5294, %v5792
        %v5903 = vmul.f32 %v5295, %v5806
        %v5904 = vmul.f32 %v5296, %v5820
        %v5905 = vmul.f32 %v5297, %v5834
        %v5906 = vmul.f32 %v5298, %v5848
        %v5907 = vmul.f32 %v5299, %v5862
        %v5908 = vmul.f32 %v5300, %v5876
        %v5909 = vpack.c.bf16 %v5877, %v5877
        %v5910 = vpack.c.bf16 %v5878, %v5878
        %v5911 = vpack.c.bf16 %v5879, %v5879
        %v5912 = vpack.c.bf16 %v5880, %v5880
        %v5913 = vpack.c.bf16 %v5881, %v5881
        %v5914 = vpack.c.bf16 %v5882, %v5882
        %v5915 = vpack.c.bf16 %v5883, %v5883
        %v5916 = vpack.c.bf16 %v5884, %v5884
        %v5917 = vpack.c.bf16 %v5885, %v5885
        %v5918 = vpack.c.bf16 %v5886, %v5886
        %v5919 = vpack.c.bf16 %v5887, %v5887
        %v5920 = vpack.c.bf16 %v5888, %v5888
        %v5921 = vpack.c.bf16 %v5889, %v5889
        %v5922 = vpack.c.bf16 %v5890, %v5890
        %v5923 = vpack.c.bf16 %v5891, %v5891
        %v5924 = vpack.c.bf16 %v5892, %v5892
        %v5925 = vpack.c.bf16 %v5893, %v5893
        %v5926 = vpack.c.bf16 %v5894, %v5894
        %v5927 = vpack.c.bf16 %v5895, %v5895
        %v5928 = vpack.c.bf16 %v5896, %v5896
        %v5929 = vpack.c.bf16 %v5897, %v5897
        %v5930 = vpack.c.bf16 %v5898, %v5898
        %v5931 = vpack.c.bf16 %v5899, %v5899
        %v5932 = vpack.c.bf16 %v5900, %v5900
        %v5933 = vpack.c.bf16 %v5901, %v5901
        %v5934 = vpack.c.bf16 %v5902, %v5902
        %v5935 = vpack.c.bf16 %v5903, %v5903
        %v5936 = vpack.c.bf16 %v5904, %v5904
        %v5937 = vpack.c.bf16 %v5905, %v5905
        %v5938 = vpack.c.bf16 %v5906, %v5906
        %v5939 = vpack.c.bf16 %v5907, %v5907
        %v5940 = vpack.c.bf16 %v5908, %v5908
        %v5942 = vshrl.u32 %v5909, 16
        %v5944 = vrot.slane %v5942, 7
        %v5945 = vshll.u32 %v5909, 16
        %v5947 = vor.u32 %v5944, %v5945
        %v5948 = vrot.slane %v5944, 4
        %v5950 = vshrl.u32 %v5910, 16
        %v5952 = vrot.slane %v5950, 7
        %v5953 = vshll.u32 %v5910, 16
        %v5955 = vor.u32 %v5952, %v5953
        %v5956 = vsel %vm633, %v5948, %v5955
        %v5957 = vrot.slane %v5952, 4
        %v5959 = vshrl.u32 %v5911, 16
        %v5961 = vrot.slane %v5959, 7
        %v5962 = vshll.u32 %v5911, 16
        %v5964 = vor.u32 %v5961, %v5962
        %v5965 = vrot.slane %v5961, 4
        %v5967 = vshrl.u32 %v5912, 16
        %v5969 = vrot.slane %v5967, 7
        %v5970 = vshll.u32 %v5912, 16
        %v5972 = vor.u32 %v5969, %v5970
        %v5973 = vsel %vm633, %v5965, %v5972
        %v5974 = vrot.slane %v5969, 4
        %v5976 = vshrl.u32 %v5913, 16
        %v5978 = vrot.slane %v5976, 7
        %v5979 = vshll.u32 %v5913, 16
        %v5981 = vor.u32 %v5978, %v5979
        %v5982 = vrot.slane %v5978, 4
        %v5984 = vshrl.u32 %v5914, 16
        %v5986 = vrot.slane %v5984, 7
        %v5987 = vshll.u32 %v5914, 16
        %v5989 = vor.u32 %v5986, %v5987
        %v5990 = vsel %vm633, %v5982, %v5989
        %v5991 = vrot.slane %v5986, 4
        %v5993 = vshrl.u32 %v5915, 16
        %v5995 = vrot.slane %v5993, 7
        %v5996 = vshll.u32 %v5915, 16
        %v5998 = vor.u32 %v5995, %v5996
        %v5999 = vrot.slane %v5995, 4
        %v6001 = vshrl.u32 %v5916, 16
        %v6003 = vrot.slane %v6001, 7
        %v6004 = vshll.u32 %v5916, 16
        %v6006 = vor.u32 %v6003, %v6004
        %v6007 = vsel %vm633, %v5999, %v6006
        %v6008 = vrot.slane %v6003, 4
        %v6010 = vshrl.u32 %v5917, 16
        %v6012 = vrot.slane %v6010, 7
        %v6013 = vshll.u32 %v5917, 16
        %v6015 = vor.u32 %v6012, %v6013
        %v6016 = vrot.slane %v6012, 4
        %v6018 = vshrl.u32 %v5918, 16
        %v6020 = vrot.slane %v6018, 7
        %v6021 = vshll.u32 %v5918, 16
        %v6023 = vor.u32 %v6020, %v6021
        %v6024 = vsel %vm633, %v6016, %v6023
        %v6025 = vrot.slane %v6020, 4
        %v6027 = vshrl.u32 %v5919, 16
        %v6029 = vrot.slane %v6027, 7
        %v6030 = vshll.u32 %v5919, 16
        %v6032 = vor.u32 %v6029, %v6030
        %v6033 = vrot.slane %v6029, 4
        %v6035 = vshrl.u32 %v5920, 16
        %v6037 = vrot.slane %v6035, 7
        %v6038 = vshll.u32 %v5920, 16
        %v6040 = vor.u32 %v6037, %v6038
        %v6041 = vsel %vm633, %v6033, %v6040
        %v6042 = vrot.slane %v6037, 4
        %v6044 = vshrl.u32 %v5921, 16
        %v6046 = vrot.slane %v6044, 7
        %v6047 = vshll.u32 %v5921, 16
        %v6049 = vor.u32 %v6046, %v6047
        %v6050 = vrot.slane %v6046, 4
        %v6052 = vshrl.u32 %v5922, 16
        %v6054 = vrot.slane %v6052, 7
        %v6055 = vshll.u32 %v5922, 16
        %v6057 = vor.u32 %v6054, %v6055
        %v6058 = vsel %vm633, %v6050, %v6057
        %v6059 = vrot.slane %v6054, 4
        %v6061 = vshrl.u32 %v5923, 16
        %v6063 = vrot.slane %v6061, 7
        %v6064 = vshll.u32 %v5923, 16
        %v6066 = vor.u32 %v6063, %v6064
        %v6067 = vrot.slane %v6063, 4
        %v6069 = vshrl.u32 %v5924, 16
        %v6071 = vrot.slane %v6069, 7
        %v6072 = vshll.u32 %v5924, 16
        %v6074 = vor.u32 %v6071, %v6072
        %v6075 = vsel %vm633, %v6067, %v6074
        %v6076 = vrot.slane %v6071, 4
        %v6078 = vshrl.u32 %v5925, 16
        %v6080 = vrot.slane %v6078, 7
        %v6081 = vshll.u32 %v5925, 16
        %v6083 = vor.u32 %v6080, %v6081
        %v6084 = vrot.slane %v6080, 4
        %v6086 = vshrl.u32 %v5926, 16
        %v6088 = vrot.slane %v6086, 7
        %v6089 = vshll.u32 %v5926, 16
        %v6091 = vor.u32 %v6088, %v6089
        %v6092 = vsel %vm633, %v6084, %v6091
        %v6093 = vrot.slane %v6088, 4
        %v6095 = vshrl.u32 %v5927, 16
        %v6097 = vrot.slane %v6095, 7
        %v6098 = vshll.u32 %v5927, 16
        %v6100 = vor.u32 %v6097, %v6098
        %v6101 = vrot.slane %v6097, 4
        %v6103 = vshrl.u32 %v5928, 16
        %v6105 = vrot.slane %v6103, 7
        %v6106 = vshll.u32 %v5928, 16
        %v6108 = vor.u32 %v6105, %v6106
        %v6109 = vsel %vm633, %v6101, %v6108
        %v6110 = vrot.slane %v6105, 4
        %v6112 = vshrl.u32 %v5929, 16
        %v6114 = vrot.slane %v6112, 7
        %v6115 = vshll.u32 %v5929, 16
        %v6117 = vor.u32 %v6114, %v6115
        %v6118 = vrot.slane %v6114, 4
        %v6120 = vshrl.u32 %v5930, 16
        %v6122 = vrot.slane %v6120, 7
        %v6123 = vshll.u32 %v5930, 16
        %v6125 = vor.u32 %v6122, %v6123
        %v6126 = vsel %vm633, %v6118, %v6125
        %v6127 = vrot.slane %v6122, 4
        %v6129 = vshrl.u32 %v5931, 16
        %v6131 = vrot.slane %v6129, 7
        %v6132 = vshll.u32 %v5931, 16
        %v6134 = vor.u32 %v6131, %v6132
        %v6135 = vrot.slane %v6131, 4
        %v6137 = vshrl.u32 %v5932, 16
        %v6139 = vrot.slane %v6137, 7
        %v6140 = vshll.u32 %v5932, 16
        %v6142 = vor.u32 %v6139, %v6140
        %v6143 = vsel %vm633, %v6135, %v6142
        %v6144 = vrot.slane %v6139, 4
        %v6146 = vshrl.u32 %v5933, 16
        %v6148 = vrot.slane %v6146, 7
        %v6149 = vshll.u32 %v5933, 16
        %v6151 = vor.u32 %v6148, %v6149
        %v6152 = vrot.slane %v6148, 4
        %v6154 = vshrl.u32 %v5934, 16
        %v6156 = vrot.slane %v6154, 7
        %v6157 = vshll.u32 %v5934, 16
        %v6159 = vor.u32 %v6156, %v6157
        %v6160 = vsel %vm633, %v6152, %v6159
        %v6161 = vrot.slane %v6156, 4
        %v6163 = vshrl.u32 %v5935, 16
        %v6165 = vrot.slane %v6163, 7
        %v6166 = vshll.u32 %v5935, 16
        %v6168 = vor.u32 %v6165, %v6166
        %v6169 = vrot.slane %v6165, 4
        %v6171 = vshrl.u32 %v5936, 16
        %v6173 = vrot.slane %v6171, 7
        %v6174 = vshll.u32 %v5936, 16
        %v6176 = vor.u32 %v6173, %v6174
        %v6177 = vsel %vm633, %v6169, %v6176
        %v6178 = vrot.slane %v6173, 4
        %v6180 = vshrl.u32 %v5937, 16
        %v6182 = vrot.slane %v6180, 7
        %v6183 = vshll.u32 %v5937, 16
        %v6185 = vor.u32 %v6182, %v6183
        %v6186 = vrot.slane %v6182, 4
        %v6188 = vshrl.u32 %v5938, 16
        %v6190 = vrot.slane %v6188, 7
        %v6191 = vshll.u32 %v5938, 16
        %v6193 = vor.u32 %v6190, %v6191
        %v6194 = vsel %vm633, %v6186, %v6193
        %v6195 = vrot.slane %v6190, 4
        %v6197 = vshrl.u32 %v5939, 16
        %v6199 = vrot.slane %v6197, 7
        %v6200 = vshll.u32 %v5939, 16
        %v6202 = vor.u32 %v6199, %v6200
        %v6203 = vrot.slane %v6199, 4
        %v6205 = vshrl.u32 %v5940, 16
        %v6207 = vrot.slane %v6205, 7
        %v6208 = vshll.u32 %v5940, 16
        %v6210 = vor.u32 %v6207, %v6208
        %v6211 = vsel %vm633, %v6203, %v6210
        %v6212 = vrot.slane %v6207, 4
        %s6261 = scalar_lea.vmem [#allocation3], 12
        %v6262 = vld [vmem:[%s6261] sm:$0xf]
        %v6263 = vsel %vm956, %v5947, %v6262
        %6264 = vst [vmem:[%s6261] sm:$0xf] %v6263
        %6265 = vst [vmem:[%s6261 + $0x4] sm:$0xf] %v5956
        %v6266 = vld [vmem:[%s6261 + $0x8] sm:$0x1]
        %v6267 = vsel %vm342, %v5957, %v6266
        %6268 = vst [vmem:[%s6261 + $0x8] sm:$0x1] %v6267
        %v6269 = vld [vmem:[%s6261 + $0xc] sm:$0xf]
        %v6270 = vsel %vm956, %v5964, %v6269
        %6271 = vst [vmem:[%s6261 + $0xc] sm:$0xf] %v6270
        %6272 = vst [vmem:[%s6261 + $0x10] sm:$0xf] %v5973
        %v6273 = vld [vmem:[%s6261 + $0x14] sm:$0x1]
        %v6274 = vsel %vm342, %v5974, %v6273
        %6275 = vst [vmem:[%s6261 + $0x14] sm:$0x1] %v6274
        %v6276 = vld [vmem:[%s6261 + $0x18] sm:$0xf]
        %v6277 = vsel %vm956, %v5981, %v6276
        %6278 = vst [vmem:[%s6261 + $0x18] sm:$0xf] %v6277
        %6279 = vst [vmem:[%s6261 + $0x1c] sm:$0xf] %v5990
        %v6280 = vld [vmem:[%s6261 + $0x20] sm:$0x1]
        %v6281 = vsel %vm342, %v5991, %v6280
        %6282 = vst [vmem:[%s6261 + $0x20] sm:$0x1] %v6281
        %v6283 = vld [vmem:[%s6261 + $0x24] sm:$0xf]
        %v6284 = vsel %vm956, %v5998, %v6283
        %6285 = vst [vmem:[%s6261 + $0x24] sm:$0xf] %v6284
        %6286 = vst [vmem:[%s6261 + $0x28] sm:$0xf] %v6007
        %v6287 = vld [vmem:[%s6261 + $0x2c] sm:$0x1]
        %v6288 = vsel %vm342, %v6008, %v6287
        %6289 = vst [vmem:[%s6261 + $0x2c] sm:$0x1] %v6288
        %v6290 = vld [vmem:[%s6261 + $0x30] sm:$0xf]
        %v6291 = vsel %vm956, %v6015, %v6290
        %6292 = vst [vmem:[%s6261 + $0x30] sm:$0xf] %v6291
        %6293 = vst [vmem:[%s6261 + $0x34] sm:$0xf] %v6024
        %v6294 = vld [vmem:[%s6261 + $0x38] sm:$0x1]
        %v6295 = vsel %vm342, %v6025, %v6294
        %6296 = vst [vmem:[%s6261 + $0x38] sm:$0x1] %v6295
        %v6297 = vld [vmem:[%s6261 + $0x3c] sm:$0xf]
        %v6298 = vsel %vm956, %v6032, %v6297
        %6299 = vst [vmem:[%s6261 + $0x3c] sm:$0xf] %v6298
        %6300 = vst [vmem:[%s6261 + $0x40] sm:$0xf] %v6041
        %v6301 = vld [vmem:[%s6261 + $0x44] sm:$0x1]
        %v6302 = vsel %vm342, %v6042, %v6301
        %6303 = vst [vmem:[%s6261 + $0x44] sm:$0x1] %v6302
        %v6304 = vld [vmem:[%s6261 + $0x48] sm:$0xf]
        %v6305 = vsel %vm956, %v6049, %v6304
        %6306 = vst [vmem:[%s6261 + $0x48] sm:$0xf] %v6305
        %6307 = vst [vmem:[%s6261 + $0x4c] sm:$0xf] %v6058
        %v6308 = vld [vmem:[%s6261 + $0x50] sm:$0x1]
        %v6309 = vsel %vm342, %v6059, %v6308
        %6310 = vst [vmem:[%s6261 + $0x50] sm:$0x1] %v6309
        %v6311 = vld [vmem:[%s6261 + $0x54] sm:$0xf]
        %v6312 = vsel %vm956, %v6066, %v6311
        %6313 = vst [vmem:[%s6261 + $0x54] sm:$0xf] %v6312
        %6314 = vst [vmem:[%s6261 + $0x58] sm:$0xf] %v6075
        %v6315 = vld [vmem:[%s6261 + $0x5c] sm:$0x1]
        %v6316 = vsel %vm342, %v6076, %v6315
        %6317 = vst [vmem:[%s6261 + $0x5c] sm:$0x1] %v6316
        %v6318 = vld [vmem:[%s6261 + $0x60] sm:$0xf]
        %v6319 = vsel %vm956, %v6083, %v6318
        %6320 = vst [vmem:[%s6261 + $0x60] sm:$0xf] %v6319
        %6321 = vst [vmem:[%s6261 + $0x64] sm:$0xf] %v6092
        %v6322 = vld [vmem:[%s6261 + $0x68] sm:$0x1]
        %v6323 = vsel %vm342, %v6093, %v6322
        %6324 = vst [vmem:[%s6261 + $0x68] sm:$0x1] %v6323
        %v6325 = vld [vmem:[%s6261 + $0x6c] sm:$0xf]
        %v6326 = vsel %vm956, %v6100, %v6325
        %6327 = vst [vmem:[%s6261 + $0x6c] sm:$0xf] %v6326
        %6328 = vst [vmem:[%s6261 + $0x70] sm:$0xf] %v6109
        %v6329 = vld [vmem:[%s6261 + $0x74] sm:$0x1]
        %v6330 = vsel %vm342, %v6110, %v6329
        %6331 = vst [vmem:[%s6261 + $0x74] sm:$0x1] %v6330
        %v6332 = vld [vmem:[%s6261 + $0x78] sm:$0xf]
        %v6333 = vsel %vm956, %v6117, %v6332
        %6334 = vst [vmem:[%s6261 + $0x78] sm:$0xf] %v6333
        %6335 = vst [vmem:[%s6261 + $0x7c] sm:$0xf] %v6126
        %v6336 = vld [vmem:[%s6261 + $0x80] sm:$0x1]
        %v6337 = vsel %vm342, %v6127, %v6336
        %6338 = vst [vmem:[%s6261 + $0x80] sm:$0x1] %v6337
        %v6339 = vld [vmem:[%s6261 + $0x84] sm:$0xf]
        %v6340 = vsel %vm956, %v6134, %v6339
        %6341 = vst [vmem:[%s6261 + $0x84] sm:$0xf] %v6340
        %6342 = vst [vmem:[%s6261 + $0x88] sm:$0xf] %v6143
        %v6343 = vld [vmem:[%s6261 + $0x8c] sm:$0x1]
        %v6344 = vsel %vm342, %v6144, %v6343
        %6345 = vst [vmem:[%s6261 + $0x8c] sm:$0x1] %v6344
        %v6346 = vld [vmem:[%s6261 + $0x90] sm:$0xf]
        %v6347 = vsel %vm956, %v6151, %v6346
        %6348 = vst [vmem:[%s6261 + $0x90] sm:$0xf] %v6347
        %6349 = vst [vmem:[%s6261 + $0x94] sm:$0xf] %v6160
        %v6350 = vld [vmem:[%s6261 + $0x98] sm:$0x1]
        %v6351 = vsel %vm342, %v6161, %v6350
        %6352 = vst [vmem:[%s6261 + $0x98] sm:$0x1] %v6351
        %v6353 = vld [vmem:[%s6261 + $0x9c] sm:$0xf]
        %v6354 = vsel %vm956, %v6168, %v6353
        %6355 = vst [vmem:[%s6261 + $0x9c] sm:$0xf] %v6354
        %6356 = vst [vmem:[%s6261 + $0xa0] sm:$0xf] %v6177
        %v6357 = vld [vmem:[%s6261 + $0xa4] sm:$0x1]
        %v6358 = vsel %vm342, %v6178, %v6357
        %6359 = vst [vmem:[%s6261 + $0xa4] sm:$0x1] %v6358
        %v6360 = vld [vmem:[%s6261 + $0xa8] sm:$0xf]
        %v6361 = vsel %vm956, %v6185, %v6360
        %6362 = vst [vmem:[%s6261 + $0xa8] sm:$0xf] %v6361
        %6363 = vst [vmem:[%s6261 + $0xac] sm:$0xf] %v6194
        %v6364 = vld [vmem:[%s6261 + $0xb0] sm:$0x1]
        %v6365 = vsel %vm342, %v6195, %v6364
        %6366 = vst [vmem:[%s6261 + $0xb0] sm:$0x1] %v6365
        %v6367 = vld [vmem:[%s6261 + $0xb4] sm:$0xf]
        %v6368 = vsel %vm956, %v6202, %v6367
        %6369 = vst [vmem:[%s6261 + $0xb4] sm:$0xf] %v6368
        %6370 = vst [vmem:[%s6261 + $0xb8] sm:$0xf] %v6211
        %v6371 = vld [vmem:[%s6261 + $0xbc] sm:$0x1]
        %v6372 = vsel %vm342, %v6212, %v6371
        %6373 = vst [vmem:[%s6261 + $0xbc] sm:$0x1] %v6372
        %v6374 = vld [vmem:[#allocation3] sm:$0xf]
        %v6375 = vld [vmem:[#allocation3 + $0x4] sm:$0xf]
        %v6376 = vld [vmem:[#allocation3 + $0xc] sm:$0xf]
        %v6377 = vld [vmem:[#allocation3 + $0x10] sm:$0xf]
        %v6378 = vld [vmem:[#allocation3 + $0x18] sm:$0xf]
        %v6379 = vld [vmem:[#allocation3 + $0x1c] sm:$0xf]
        %v6380 = vld [vmem:[#allocation3 + $0x24] sm:$0xf]
        %v6381 = vld [vmem:[#allocation3 + $0x28] sm:$0xf]
        %v6382 = vld [vmem:[#allocation3 + $0x30] sm:$0xf]
        %v6383 = vld [vmem:[#allocation3 + $0x34] sm:$0xf]
        %v6384 = vld [vmem:[#allocation3 + $0x3c] sm:$0xf]
        %v6385 = vld [vmem:[#allocation3 + $0x40] sm:$0xf]
        %v6386 = vld [vmem:[#allocation3 + $0x48] sm:$0xf]
        %v6387 = vld [vmem:[#allocation3 + $0x4c] sm:$0xf]
        %v6388 = vld [vmem:[#allocation3 + $0x54] sm:$0xf]
        %v6389 = vld [vmem:[#allocation3 + $0x58] sm:$0xf]
        %v6390 = vld [vmem:[#allocation3 + $0x60] sm:$0xf]
        %v6391 = vld [vmem:[#allocation3 + $0x64] sm:$0xf]
        %v6392 = vld [vmem:[#allocation3 + $0x6c] sm:$0xf]
        %v6393 = vld [vmem:[#allocation3 + $0x70] sm:$0xf]
        %v6394 = vld [vmem:[#allocation3 + $0x78] sm:$0xf]
        %v6395 = vld [vmem:[#allocation3 + $0x7c] sm:$0xf]
        %v6396 = vld [vmem:[#allocation3 + $0x84] sm:$0xf]
        %v6397 = vld [vmem:[#allocation3 + $0x88] sm:$0xf]
        %v6398 = vld [vmem:[#allocation3 + $0x90] sm:$0xf]
        %v6399 = vld [vmem:[#allocation3 + $0x94] sm:$0xf]
        %v6400 = vld [vmem:[#allocation3 + $0x9c] sm:$0xf]
        %v6401 = vld [vmem:[#allocation3 + $0xa0] sm:$0xf]
        %v6402 = vld [vmem:[#allocation3 + $0xa8] sm:$0xf]
        %v6403 = vld [vmem:[#allocation3 + $0xac] sm:$0xf]
        %v6404 = vld [vmem:[#allocation3 + $0xb4] sm:$0xf]
        %v6405 = vld [vmem:[#allocation3 + $0xb8] sm:$0xf]
        %v6406 = vld [vmem:[#allocation9] sm:$0xf]
        %v6407 = vld [vmem:[#allocation9 + $0x4] sm:$0xf]
        %v6408 = vld [vmem:[#allocation9 + $0x8] sm:$0xf]
        %v6409 = vld [vmem:[#allocation9 + $0xc] sm:$0xf]
        %v6410 = vld [vmem:[#allocation9 + $0x10] sm:$0xf]
        %v6411 = vld [vmem:[#allocation9 + $0x14] sm:$0xf]
        %v6412 = vld [vmem:[#allocation9 + $0x18] sm:$0xf]
        %v6413 = vld [vmem:[#allocation9 + $0x1c] sm:$0xf]
        %v6414 = vld [vmem:[#allocation9 + $0x20] sm:$0xf]
        %v6415 = vld [vmem:[#allocation9 + $0x24] sm:$0xf]
        %v6416 = vld [vmem:[#allocation9 + $0x28] sm:$0xf]
        %v6417 = vld [vmem:[#allocation9 + $0x2c] sm:$0xf]
        %v6418 = vld [vmem:[#allocation9 + $0x30] sm:$0xf]
        %v6419 = vld [vmem:[#allocation9 + $0x34] sm:$0xf]
        %v6420 = vld [vmem:[#allocation9 + $0x38] sm:$0xf]
        %v6421 = vld [vmem:[#allocation9 + $0x3c] sm:$0xf]
        %v6422 = vld [vmem:[#allocation3 + $0x8] sm:$0x1]
        %v6423 = vld [vmem:[#allocation3 + $0x14] sm:$0x1]
        %v6424 = vld [vmem:[#allocation3 + $0x20] sm:$0x1]
        %v6425 = vld [vmem:[#allocation3 + $0x2c] sm:$0x1]
        %v6426 = vld [vmem:[#allocation3 + $0x38] sm:$0x1]
        %v6427 = vld [vmem:[#allocation3 + $0x44] sm:$0x1]
        %v6428 = vld [vmem:[#allocation3 + $0x50] sm:$0x1]
        %v6429 = vld [vmem:[#allocation3 + $0x5c] sm:$0x1]
        %v6430 = vld [vmem:[#allocation3 + $0x68] sm:$0x1]
        %v6431 = vld [vmem:[#allocation3 + $0x74] sm:$0x1]
        %v6432 = vld [vmem:[#allocation3 + $0x80] sm:$0x1]
        %v6433 = vld [vmem:[#allocation3 + $0x8c] sm:$0x1]
        %v6434 = vld [vmem:[#allocation3 + $0x98] sm:$0x1]
        %v6435 = vld [vmem:[#allocation3 + $0xa4] sm:$0x1]
        %v6436 = vld [vmem:[#allocation3 + $0xb0] sm:$0x1]
        %v6437 = vld [vmem:[#allocation3 + $0xbc] sm:$0x1]
        %v6439 = vshrl.u32 %v6374, 16
        %v6441 = vrot.slane %v6439, 4
        %v6442 = vshll.u32 %v6374, 16
        %v6444 = vrot.slane %v6442, 5
        %v6445 = vor.u32 %v6441, %v6444
        %v6446 = vrot.slane %v6445, 4
        %v6448 = vshll.u32 %v6375, 16
        %v6450 = vrot.slane %v6448, 5
        %v6451 = vsel %vm1135, %v6446, %v6450
        %v6452 = vshrl.u32 %v6375, 16
        %v6454 = vrot.slane %v6452, 4
        %v6455 = vor.u32 %v6454, %v6450
        %v6456 = vrot.slane %v6455, 4
        %v6458 = vshll.u32 %v6422, 16
        %v6460 = vrot.slane %v6458, 5
        %v6461 = vsel %vm1135, %v6456, %v6460
        %v6463 = vshrl.u32 %v6376, 16
        %v6465 = vrot.slane %v6463, 4
        %v6466 = vshll.u32 %v6376, 16
        %v6468 = vrot.slane %v6466, 5
        %v6469 = vor.u32 %v6465, %v6468
        %v6470 = vrot.slane %v6469, 4
        %v6472 = vshll.u32 %v6377, 16
        %v6474 = vrot.slane %v6472, 5
        %v6475 = vsel %vm1135, %v6470, %v6474
        %v6476 = vshrl.u32 %v6377, 16
        %v6478 = vrot.slane %v6476, 4
        %v6479 = vor.u32 %v6478, %v6474
        %v6480 = vrot.slane %v6479, 4
        %v6482 = vshll.u32 %v6423, 16
        %v6484 = vrot.slane %v6482, 5
        %v6485 = vsel %vm1135, %v6480, %v6484
        %v6487 = vshrl.u32 %v6378, 16
        %v6489 = vrot.slane %v6487, 4
        %v6490 = vshll.u32 %v6378, 16
        %v6492 = vrot.slane %v6490, 5
        %v6493 = vor.u32 %v6489, %v6492
        %v6494 = vrot.slane %v6493, 4
        %v6496 = vshll.u32 %v6379, 16
        %v6498 = vrot.slane %v6496, 5
        %v6499 = vsel %vm1135, %v6494, %v6498
        %v6500 = vshrl.u32 %v6379, 16
        %v6502 = vrot.slane %v6500, 4
        %v6503 = vor.u32 %v6502, %v6498
        %v6504 = vrot.slane %v6503, 4
        %v6506 = vshll.u32 %v6424, 16
        %v6508 = vrot.slane %v6506, 5
        %v6509 = vsel %vm1135, %v6504, %v6508
        %v6511 = vshrl.u32 %v6380, 16
        %v6513 = vrot.slane %v6511, 4
        %v6514 = vshll.u32 %v6380, 16
        %v6516 = vrot.slane %v6514, 5
        %v6517 = vor.u32 %v6513, %v6516
        %v6518 = vrot.slane %v6517, 4
        %v6520 = vshll.u32 %v6381, 16
        %v6522 = vrot.slane %v6520, 5
        %v6523 = vsel %vm1135, %v6518, %v6522
        %v6524 = vshrl.u32 %v6381, 16
        %v6526 = vrot.slane %v6524, 4
        %v6527 = vor.u32 %v6526, %v6522
        %v6528 = vrot.slane %v6527, 4
        %v6530 = vshll.u32 %v6425, 16
        %v6532 = vrot.slane %v6530, 5
        %v6533 = vsel %vm1135, %v6528, %v6532
        %v6535 = vshrl.u32 %v6382, 16
        %v6537 = vrot.slane %v6535, 4
        %v6538 = vshll.u32 %v6382, 16
        %v6540 = vrot.slane %v6538, 5
        %v6541 = vor.u32 %v6537, %v6540
        %v6542 = vrot.slane %v6541, 4
        %v6544 = vshll.u32 %v6383, 16
        %v6546 = vrot.slane %v6544, 5
        %v6547 = vsel %vm1135, %v6542, %v6546
        %v6548 = vshrl.u32 %v6383, 16
        %v6550 = vrot.slane %v6548, 4
        %v6551 = vor.u32 %v6550, %v6546
        %v6552 = vrot.slane %v6551, 4
        %v6554 = vshll.u32 %v6426, 16
        %v6556 = vrot.slane %v6554, 5
        %v6557 = vsel %vm1135, %v6552, %v6556
        %v6559 = vshrl.u32 %v6384, 16
        %v6561 = vrot.slane %v6559, 4
        %v6562 = vshll.u32 %v6384, 16
        %v6564 = vrot.slane %v6562, 5
        %v6565 = vor.u32 %v6561, %v6564
        %v6566 = vrot.slane %v6565, 4
        %v6568 = vshll.u32 %v6385, 16
        %v6570 = vrot.slane %v6568, 5
        %v6571 = vsel %vm1135, %v6566, %v6570
        %v6572 = vshrl.u32 %v6385, 16
        %v6574 = vrot.slane %v6572, 4
        %v6575 = vor.u32 %v6574, %v6570
        %v6576 = vrot.slane %v6575, 4
        %v6578 = vshll.u32 %v6427, 16
        %v6580 = vrot.slane %v6578, 5
        %v6581 = vsel %vm1135, %v6576, %v6580
        %v6583 = vshrl.u32 %v6386, 16
        %v6585 = vrot.slane %v6583, 4
        %v6586 = vshll.u32 %v6386, 16
        %v6588 = vrot.slane %v6586, 5
        %v6589 = vor.u32 %v6585, %v6588
        %v6590 = vrot.slane %v6589, 4
        %v6592 = vshll.u32 %v6387, 16
        %v6594 = vrot.slane %v6592, 5
        %v6595 = vsel %vm1135, %v6590, %v6594
        %v6596 = vshrl.u32 %v6387, 16
        %v6598 = vrot.slane %v6596, 4
        %v6599 = vor.u32 %v6598, %v6594
        %v6600 = vrot.slane %v6599, 4
        %v6602 = vshll.u32 %v6428, 16
        %v6604 = vrot.slane %v6602, 5
        %v6605 = vsel %vm1135, %v6600, %v6604
        %v6607 = vshrl.u32 %v6388, 16
        %v6609 = vrot.slane %v6607, 4
        %v6610 = vshll.u32 %v6388, 16
        %v6612 = vrot.slane %v6610, 5
        %v6613 = vor.u32 %v6609, %v6612
        %v6614 = vrot.slane %v6613, 4
        %v6616 = vshll.u32 %v6389, 16
        %v6618 = vrot.slane %v6616, 5
        %v6619 = vsel %vm1135, %v6614, %v6618
        %v6620 = vshrl.u32 %v6389, 16
        %v6622 = vrot.slane %v6620, 4
        %v6623 = vor.u32 %v6622, %v6618
        %v6624 = vrot.slane %v6623, 4
        %v6626 = vshll.u32 %v6429, 16
        %v6628 = vrot.slane %v6626, 5
        %v6629 = vsel %vm1135, %v6624, %v6628
        %v6631 = vshrl.u32 %v6390, 16
        %v6633 = vrot.slane %v6631, 4
        %v6634 = vshll.u32 %v6390, 16
        %v6636 = vrot.slane %v6634, 5
        %v6637 = vor.u32 %v6633, %v6636
        %v6638 = vrot.slane %v6637, 4
        %v6640 = vshll.u32 %v6391, 16
        %v6642 = vrot.slane %v6640, 5
        %v6643 = vsel %vm1135, %v6638, %v6642
        %v6644 = vshrl.u32 %v6391, 16
        %v6646 = vrot.slane %v6644, 4
        %v6647 = vor.u32 %v6646, %v6642
        %v6648 = vrot.slane %v6647, 4
        %v6650 = vshll.u32 %v6430, 16
        %v6652 = vrot.slane %v6650, 5
        %v6653 = vsel %vm1135, %v6648, %v6652
        %v6655 = vshrl.u32 %v6392, 16
        %v6657 = vrot.slane %v6655, 4
        %v6658 = vshll.u32 %v6392, 16
        %v6660 = vrot.slane %v6658, 5
        %v6661 = vor.u32 %v6657, %v6660
        %v6662 = vrot.slane %v6661, 4
        %v6664 = vshll.u32 %v6393, 16
        %v6666 = vrot.slane %v6664, 5
        %v6667 = vsel %vm1135, %v6662, %v6666
        %v6668 = vshrl.u32 %v6393, 16
        %v6670 = vrot.slane %v6668, 4
        %v6671 = vor.u32 %v6670, %v6666
        %v6672 = vrot.slane %v6671, 4
        %v6674 = vshll.u32 %v6431, 16
        %v6676 = vrot.slane %v6674, 5
        %v6677 = vsel %vm1135, %v6672, %v6676
        %v6679 = vshrl.u32 %v6394, 16
        %v6681 = vrot.slane %v6679, 4
        %v6682 = vshll.u32 %v6394, 16
        %v6684 = vrot.slane %v6682, 5
        %v6685 = vor.u32 %v6681, %v6684
        %v6686 = vrot.slane %v6685, 4
        %v6688 = vshll.u32 %v6395, 16
        %v6690 = vrot.slane %v6688, 5
        %v6691 = vsel %vm1135, %v6686, %v6690
        %v6692 = vshrl.u32 %v6395, 16
        %v6694 = vrot.slane %v6692, 4
        %v6695 = vor.u32 %v6694, %v6690
        %v6696 = vrot.slane %v6695, 4
        %v6698 = vshll.u32 %v6432, 16
        %v6700 = vrot.slane %v6698, 5
        %v6701 = vsel %vm1135, %v6696, %v6700
        %v6703 = vshrl.u32 %v6396, 16
        %v6705 = vrot.slane %v6703, 4
        %v6706 = vshll.u32 %v6396, 16
        %v6708 = vrot.slane %v6706, 5
        %v6709 = vor.u32 %v6705, %v6708
        %v6710 = vrot.slane %v6709, 4
        %v6712 = vshll.u32 %v6397, 16
        %v6714 = vrot.slane %v6712, 5
        %v6715 = vsel %vm1135, %v6710, %v6714
        %v6716 = vshrl.u32 %v6397, 16
        %v6718 = vrot.slane %v6716, 4
        %v6719 = vor.u32 %v6718, %v6714
        %v6720 = vrot.slane %v6719, 4
        %v6722 = vshll.u32 %v6433, 16
        %v6724 = vrot.slane %v6722, 5
        %v6725 = vsel %vm1135, %v6720, %v6724
        %v6727 = vshrl.u32 %v6398, 16
        %v6729 = vrot.slane %v6727, 4
        %v6730 = vshll.u32 %v6398, 16
        %v6732 = vrot.slane %v6730, 5
        %v6733 = vor.u32 %v6729, %v6732
        %v6734 = vrot.slane %v6733, 4
        %v6736 = vshll.u32 %v6399, 16
        %v6738 = vrot.slane %v6736, 5
        %v6739 = vsel %vm1135, %v6734, %v6738
        %v6740 = vshrl.u32 %v6399, 16
        %v6742 = vrot.slane %v6740, 4
        %v6743 = vor.u32 %v6742, %v6738
        %v6744 = vrot.slane %v6743, 4
        %v6746 = vshll.u32 %v6434, 16
        %v6748 = vrot.slane %v6746, 5
        %v6749 = vsel %vm1135, %v6744, %v6748
        %v6751 = vshrl.u32 %v6400, 16
        %v6753 = vrot.slane %v6751, 4
        %v6754 = vshll.u32 %v6400, 16
        %v6756 = vrot.slane %v6754, 5
        %v6757 = vor.u32 %v6753, %v6756
        %v6758 = vrot.slane %v6757, 4
        %v6760 = vshll.u32 %v6401, 16
        %v6762 = vrot.slane %v6760, 5
        %v6763 = vsel %vm1135, %v6758, %v6762
        %v6764 = vshrl.u32 %v6401, 16
        %v6766 = vrot.slane %v6764, 4
        %v6767 = vor.u32 %v6766, %v6762
        %v6768 = vrot.slane %v6767, 4
        %v6770 = vshll.u32 %v6435, 16
        %v6772 = vrot.slane %v6770, 5
        %v6773 = vsel %vm1135, %v6768, %v6772
        %v6775 = vshrl.u32 %v6402, 16
        %v6777 = vrot.slane %v6775, 4
        %v6778 = vshll.u32 %v6402, 16
        %v6780 = vrot.slane %v6778, 5
        %v6781 = vor.u32 %v6777, %v6780
        %v6782 = vrot.slane %v6781, 4
        %v6784 = vshll.u32 %v6403, 16
        %v6786 = vrot.slane %v6784, 5
        %v6787 = vsel %vm1135, %v6782, %v6786
        %v6788 = vshrl.u32 %v6403, 16
        %v6790 = vrot.slane %v6788, 4
        %v6791 = vor.u32 %v6790, %v6786
        %v6792 = vrot.slane %v6791, 4
        %v6794 = vshll.u32 %v6436, 16
        %v6796 = vrot.slane %v6794, 5
        %v6797 = vsel %vm1135, %v6792, %v6796
        %v6799 = vshrl.u32 %v6404, 16
        %v6801 = vrot.slane %v6799, 4
        %v6802 = vshll.u32 %v6404, 16
        %v6804 = vrot.slane %v6802, 5
        %v6805 = vor.u32 %v6801, %v6804
        %v6806 = vrot.slane %v6805, 4
        %v6808 = vshll.u32 %v6405, 16
        %v6810 = vrot.slane %v6808, 5
        %v6811 = vsel %vm1135, %v6806, %v6810
        %v6812 = vshrl.u32 %v6405, 16
        %v6814 = vrot.slane %v6812, 4
        %v6815 = vor.u32 %v6814, %v6810
        %v6816 = vrot.slane %v6815, 4
        %v6818 = vshll.u32 %v6437, 16
        %v6820 = vrot.slane %v6818, 5
        %v6821 = vsel %vm1135, %v6816, %v6820
        %s6822 = scalar_lea.vmem [#allocation9], 64
        %v6823 = vld [vmem:[%s6822] sm:$0xf]
        %v6824 = vld [vmem:[%s6822 + $0x4] sm:$0xf]
        %v6825 = vld [vmem:[%s6822 + $0x8] sm:$0xf]
        %v6826 = vld [vmem:[%s6822 + $0xc] sm:$0xf]
        %v6827 = vld [vmem:[%s6822 + $0x10] sm:$0xf]
        %v6828 = vld [vmem:[%s6822 + $0x14] sm:$0xf]
        %v6829 = vld [vmem:[%s6822 + $0x18] sm:$0xf]
        %v6830 = vld [vmem:[%s6822 + $0x1c] sm:$0xf]
        %v6831 = vld [vmem:[%s6822 + $0x20] sm:$0xf]
        %v6832 = vld [vmem:[%s6822 + $0x24] sm:$0xf]
        %v6833 = vld [vmem:[%s6822 + $0x28] sm:$0xf]
        %v6834 = vld [vmem:[%s6822 + $0x2c] sm:$0xf]
        %v6835 = vld [vmem:[%s6822 + $0x30] sm:$0xf]
        %v6836 = vld [vmem:[%s6822 + $0x34] sm:$0xf]
        %v6837 = vld [vmem:[%s6822 + $0x38] sm:$0xf]
        %v6838 = vld [vmem:[%s6822 + $0x3c] sm:$0xf]
        %v6839 = vunpack.c.l.b16 %v6451
        %v6840 = vunpack.c.l.b16 %v6461
        %v6841 = vunpack.c.l.b16 %v6475
        %v6842 = vunpack.c.l.b16 %v6485
        %v6843 = vunpack.c.l.b16 %v6499
        %v6844 = vunpack.c.l.b16 %v6509
        %v6845 = vunpack.c.l.b16 %v6523
        %v6846 = vunpack.c.l.b16 %v6533
        %v6847 = vunpack.c.l.b16 %v6547
        %v6848 = vunpack.c.l.b16 %v6557
        %v6849 = vunpack.c.l.b16 %v6571
        %v6850 = vunpack.c.l.b16 %v6581
        %v6851 = vunpack.c.l.b16 %v6595
        %v6852 = vunpack.c.l.b16 %v6605
        %v6853 = vunpack.c.l.b16 %v6619
        %v6854 = vunpack.c.l.b16 %v6629
        %v6855 = vunpack.c.l.b16 %v6643
        %v6856 = vunpack.c.l.b16 %v6653
        %v6857 = vunpack.c.l.b16 %v6667
        %v6858 = vunpack.c.l.b16 %v6677
        %v6859 = vunpack.c.l.b16 %v6691
        %v6860 = vunpack.c.l.b16 %v6701
        %v6861 = vunpack.c.l.b16 %v6715
        %v6862 = vunpack.c.l.b16 %v6725
        %v6863 = vunpack.c.l.b16 %v6739
        %v6864 = vunpack.c.l.b16 %v6749
        %v6865 = vunpack.c.l.b16 %v6763
        %v6866 = vunpack.c.l.b16 %v6773
        %v6867 = vunpack.c.l.b16 %v6787
        %v6868 = vunpack.c.l.b16 %v6797
        %v6869 = vunpack.c.l.b16 %v6811
        %v6870 = vunpack.c.l.b16 %v6821
        %v6871 = vpack.c.b16 %v6840, %v6839
        %v6872 = vpack.c.b16 %v6842, %v6841
        %v6873 = vpack.c.b16 %v6844, %v6843
        %v6874 = vpack.c.b16 %v6846, %v6845
        %v6875 = vpack.c.b16 %v6848, %v6847
        %v6876 = vpack.c.b16 %v6850, %v6849
        %v6877 = vpack.c.b16 %v6852, %v6851
        %v6878 = vpack.c.b16 %v6854, %v6853
        %v6879 = vpack.c.b16 %v6856, %v6855
        %v6880 = vpack.c.b16 %v6858, %v6857
        %v6881 = vpack.c.b16 %v6860, %v6859
        %v6882 = vpack.c.b16 %v6862, %v6861
        %v6883 = vpack.c.b16 %v6864, %v6863
        %v6884 = vpack.c.b16 %v6866, %v6865
        %v6885 = vpack.c.b16 %v6868, %v6867
        %v6886 = vpack.c.b16 %v6870, %v6869
        %v6919 = vunpack.c.l.b16 %v6823
        %v6920 = vunpack.c.l.b16 %v6824
        %v6921 = vunpack.c.l.b16 %v6825
        %v6922 = vunpack.c.l.b16 %v6826
        %v6923 = vunpack.c.l.b16 %v6827
        %v6924 = vunpack.c.l.b16 %v6828
        %v6925 = vunpack.c.l.b16 %v6829
        %v6926 = vunpack.c.l.b16 %v6830
        %v6927 = vunpack.c.l.b16 %v6831
        %v6928 = vunpack.c.l.b16 %v6832
        %v6929 = vunpack.c.l.b16 %v6833
        %v6930 = vunpack.c.l.b16 %v6834
        %v6931 = vunpack.c.l.b16 %v6835
        %v6932 = vunpack.c.l.b16 %v6836
        %v6933 = vunpack.c.l.b16 %v6837
        %v6934 = vunpack.c.l.b16 %v6838
        %v6935 = vpack.c.b16 %v6920, %v6919
        %v6936 = vpack.c.b16 %v6922, %v6921
        %v6937 = vpack.c.b16 %v6924, %v6923
        %v6938 = vpack.c.b16 %v6926, %v6925
        %v6939 = vpack.c.b16 %v6928, %v6927
        %v6940 = vpack.c.b16 %v6930, %v6929
        %v6941 = vpack.c.b16 %v6932, %v6931
        %v6942 = vpack.c.b16 %v6934, %v6933
        %6951 = vmatpush.bf16.msra.mxu0 %v6942
        %6952 = vmatpush.bf16.msra.mxu0 %v6941
        %6953 = vmatpush.bf16.msra.mxu0 %v6940
        %6954 = vmatpush.bf16.msra.mxu0 %v6939
        %6955 = vmatpush.bf16.msra.mxu0 %v6938
        %6956 = vmatpush.bf16.msra.mxu0 %v6937
        %6957 = vmatpush.bf16.msra.mxu0 %v6936
        %6958 = vmatpush.bf16.msra.mxu0 %v6935
        %6959 = vmatmul.bf16.gmra.mxu0 %v6871
        %v6960 = vpop.f32.mrf.mxu0
        %v6961 = vadd.f32 0.0, %v6960
        %v6962 = vpop.f32.mrf.mxu0
        %v6963 = vadd.f32 0.0, %v6962
        %6964 = vmatmul.bf16.gmra.mxu0 %v6872
        %v6965 = vpop.f32.mrf.mxu0
        %v6966 = vadd.f32 0.0, %v6965
        %v6967 = vpop.f32.mrf.mxu0
        %v6968 = vadd.f32 0.0, %v6967
        %6969 = vmatmul.bf16.gmra.mxu0 %v6873
        %v6970 = vpop.f32.mrf.mxu0
        %v6971 = vadd.f32 0.0, %v6970
        %v6972 = vpop.f32.mrf.mxu0
        %v6973 = vadd.f32 0.0, %v6972
        %6974 = vmatmul.bf16.gmra.mxu0 %v6874
        %v6975 = vpop.f32.mrf.mxu0
        %v6976 = vadd.f32 0.0, %v6975
        %v6977 = vpop.f32.mrf.mxu0
        %v6978 = vadd.f32 0.0, %v6977
        %6979 = vmatmul.bf16.gmra.mxu0 %v6875
        %v6980 = vpop.f32.mrf.mxu0
        %v6981 = vadd.f32 0.0, %v6980
        %v6982 = vpop.f32.mrf.mxu0
        %v6983 = vadd.f32 0.0, %v6982
        %6984 = vmatmul.bf16.gmra.mxu0 %v6876
        %v6985 = vpop.f32.mrf.mxu0
        %v6986 = vadd.f32 0.0, %v6985
        %v6987 = vpop.f32.mrf.mxu0
        %v6988 = vadd.f32 0.0, %v6987
        %6989 = vmatmul.bf16.gmra.mxu0 %v6877
        %v6990 = vpop.f32.mrf.mxu0
        %v6991 = vadd.f32 0.0, %v6990
        %v6992 = vpop.f32.mrf.mxu0
        %v6993 = vadd.f32 0.0, %v6992
        %6994 = vmatmul.bf16.gmra.mxu0 %v6878
        %v6995 = vpop.f32.mrf.mxu0
        %v6996 = vadd.f32 0.0, %v6995
        %v6997 = vpop.f32.mrf.mxu0
        %v6998 = vadd.f32 0.0, %v6997
        %6999 = vmatmul.bf16.gmra.mxu0 %v6879
        %v7000 = vpop.f32.mrf.mxu0
        %v7001 = vadd.f32 0.0, %v7000
        %v7002 = vpop.f32.mrf.mxu0
        %v7003 = vadd.f32 0.0, %v7002
        %7004 = vmatmul.bf16.gmra.mxu0 %v6880
        %v7005 = vpop.f32.mrf.mxu0
        %v7006 = vadd.f32 0.0, %v7005
        %v7007 = vpop.f32.mrf.mxu0
        %v7008 = vadd.f32 0.0, %v7007
        %7009 = vmatmul.bf16.gmra.mxu0 %v6881
        %v7010 = vpop.f32.mrf.mxu0
        %v7011 = vadd.f32 0.0, %v7010
        %v7012 = vpop.f32.mrf.mxu0
        %v7013 = vadd.f32 0.0, %v7012
        %7014 = vmatmul.bf16.gmra.mxu0 %v6882
        %v7015 = vpop.f32.mrf.mxu0
        %v7016 = vadd.f32 0.0, %v7015
        %v7017 = vpop.f32.mrf.mxu0
        %v7018 = vadd.f32 0.0, %v7017
        %7019 = vmatmul.bf16.gmra.mxu0 %v6883
        %v7020 = vpop.f32.mrf.mxu0
        %v7021 = vadd.f32 0.0, %v7020
        %v7022 = vpop.f32.mrf.mxu0
        %v7023 = vadd.f32 0.0, %v7022
        %7024 = vmatmul.bf16.gmra.mxu0 %v6884
        %v7025 = vpop.f32.mrf.mxu0
        %v7026 = vadd.f32 0.0, %v7025
        %v7027 = vpop.f32.mrf.mxu0
        %v7028 = vadd.f32 0.0, %v7027
        %7029 = vmatmul.bf16.gmra.mxu0 %v6885
        %v7030 = vpop.f32.mrf.mxu0
        %v7031 = vadd.f32 0.0, %v7030
        %v7032 = vpop.f32.mrf.mxu0
        %v7033 = vadd.f32 0.0, %v7032
        %7034 = vmatmul.bf16.gmra.mxu0 %v6886
        %v7035 = vpop.f32.mrf.mxu0
        %v7036 = vadd.f32 0.0, %v7035
        %v7037 = vpop.f32.mrf.mxu0
        %v7038 = vadd.f32 0.0, %v7037
        %7039 = vdwg.mxu0
        %v7072 = vunpack.c.l.b16 %v6374
        %v7073 = vunpack.c.l.b16 %v6375
        %v7074 = vunpack.c.l.b16 %v6376
        %v7075 = vunpack.c.l.b16 %v6377
        %v7076 = vunpack.c.l.b16 %v6378
        %v7077 = vunpack.c.l.b16 %v6379
        %v7078 = vunpack.c.l.b16 %v6380
        %v7079 = vunpack.c.l.b16 %v6381
        %v7080 = vunpack.c.l.b16 %v6382
        %v7081 = vunpack.c.l.b16 %v6383
        %v7082 = vunpack.c.l.b16 %v6384
        %v7083 = vunpack.c.l.b16 %v6385
        %v7084 = vunpack.c.l.b16 %v6386
        %v7085 = vunpack.c.l.b16 %v6387
        %v7086 = vunpack.c.l.b16 %v6388
        %v7087 = vunpack.c.l.b16 %v6389
        %v7088 = vunpack.c.l.b16 %v6390
        %v7089 = vunpack.c.l.b16 %v6391
        %v7090 = vunpack.c.l.b16 %v6392
        %v7091 = vunpack.c.l.b16 %v6393
        %v7092 = vunpack.c.l.b16 %v6394
        %v7093 = vunpack.c.l.b16 %v6395
        %v7094 = vunpack.c.l.b16 %v6396
        %v7095 = vunpack.c.l.b16 %v6397
        %v7096 = vunpack.c.l.b16 %v6398
        %v7097 = vunpack.c.l.b16 %v6399
        %v7098 = vunpack.c.l.b16 %v6400
        %v7099 = vunpack.c.l.b16 %v6401
        %v7100 = vunpack.c.l.b16 %v6402
        %v7101 = vunpack.c.l.b16 %v6403
        %v7102 = vunpack.c.l.b16 %v6404
        %v7103 = vunpack.c.l.b16 %v6405
        %v7104 = vpack.c.b16 %v7073, %v7072
        %v7105 = vpack.c.b16 %v7075, %v7074
        %v7106 = vpack.c.b16 %v7077, %v7076
        %v7107 = vpack.c.b16 %v7079, %v7078
        %v7108 = vpack.c.b16 %v7081, %v7080
        %v7109 = vpack.c.b16 %v7083, %v7082
        %v7110 = vpack.c.b16 %v7085, %v7084
        %v7111 = vpack.c.b16 %v7087, %v7086
        %v7112 = vpack.c.b16 %v7089, %v7088
        %v7113 = vpack.c.b16 %v7091, %v7090
        %v7114 = vpack.c.b16 %v7093, %v7092
        %v7115 = vpack.c.b16 %v7095, %v7094
        %v7116 = vpack.c.b16 %v7097, %v7096
        %v7117 = vpack.c.b16 %v7099, %v7098
        %v7118 = vpack.c.b16 %v7101, %v7100
        %v7119 = vpack.c.b16 %v7103, %v7102
        %v7152 = vunpack.c.l.b16 %v6406
        %v7153 = vunpack.c.l.b16 %v6407
        %v7154 = vunpack.c.l.b16 %v6408
        %v7155 = vunpack.c.l.b16 %v6409
        %v7156 = vunpack.c.l.b16 %v6410
        %v7157 = vunpack.c.l.b16 %v6411
        %v7158 = vunpack.c.l.b16 %v6412
        %v7159 = vunpack.c.l.b16 %v6413
        %v7160 = vunpack.c.l.b16 %v6414
        %v7161 = vunpack.c.l.b16 %v6415
        %v7162 = vunpack.c.l.b16 %v6416
        %v7163 = vunpack.c.l.b16 %v6417
        %v7164 = vunpack.c.l.b16 %v6418
        %v7165 = vunpack.c.l.b16 %v6419
        %v7166 = vunpack.c.l.b16 %v6420
        %v7167 = vunpack.c.l.b16 %v6421
        %v7168 = vpack.c.b16 %v7153, %v7152
        %v7169 = vpack.c.b16 %v7155, %v7154
        %v7170 = vpack.c.b16 %v7157, %v7156
        %v7171 = vpack.c.b16 %v7159, %v7158
        %v7172 = vpack.c.b16 %v7161, %v7160
        %v7173 = vpack.c.b16 %v7163, %v7162
        %v7174 = vpack.c.b16 %v7165, %v7164
        %v7175 = vpack.c.b16 %v7167, %v7166
        %7184 = vmatpush.bf16.msra.mxu0 %v7175
        %7185 = vmatpush.bf16.msra.mxu0 %v7174
        %7186 = vmatpush.bf16.msra.mxu0 %v7173
        %7187 = vmatpush.bf16.msra.mxu0 %v7172
        %7188 = vmatpush.bf16.msra.mxu0 %v7171
        %7189 = vmatpush.bf16.msra.mxu0 %v7170
        %7190 = vmatpush.bf16.msra.mxu0 %v7169
        %7191 = vmatpush.bf16.msra.mxu0 %v7168
        %7192 = vmatmul.bf16.gmra.mxu0 %v7104
        %v7193 = vpop.f32.mrf.mxu0
        %v7194 = vadd.f32 %v6961, %v7193
        %v7195 = vpop.f32.mrf.mxu0
        %v7196 = vadd.f32 %v6963, %v7195
        %7197 = vmatmul.bf16.gmra.mxu0 %v7105
        %v7198 = vpop.f32.mrf.mxu0
        %v7199 = vadd.f32 %v6966, %v7198
        %v7200 = vpop.f32.mrf.mxu0
        %v7201 = vadd.f32 %v6968, %v7200
        %7202 = vmatmul.bf16.gmra.mxu0 %v7106
        %v7203 = vpop.f32.mrf.mxu0
        %v7204 = vadd.f32 %v6971, %v7203
        %v7205 = vpop.f32.mrf.mxu0
        %v7206 = vadd.f32 %v6973, %v7205
        %7207 = vmatmul.bf16.gmra.mxu0 %v7107
        %v7208 = vpop.f32.mrf.mxu0
        %v7209 = vadd.f32 %v6976, %v7208
        %v7210 = vpop.f32.mrf.mxu0
        %v7211 = vadd.f32 %v6978, %v7210
        %7212 = vmatmul.bf16.gmra.mxu0 %v7108
        %v7213 = vpop.f32.mrf.mxu0
        %v7214 = vadd.f32 %v6981, %v7213
        %v7215 = vpop.f32.mrf.mxu0
        %v7216 = vadd.f32 %v6983, %v7215
        %7217 = vmatmul.bf16.gmra.mxu0 %v7109
        %v7218 = vpop.f32.mrf.mxu0
        %v7219 = vadd.f32 %v6986, %v7218
        %v7220 = vpop.f32.mrf.mxu0
        %v7221 = vadd.f32 %v6988, %v7220
        %7222 = vmatmul.bf16.gmra.mxu0 %v7110
        %v7223 = vpop.f32.mrf.mxu0
        %v7224 = vadd.f32 %v6991, %v7223
        %v7225 = vpop.f32.mrf.mxu0
        %v7226 = vadd.f32 %v6993, %v7225
        %7227 = vmatmul.bf16.gmra.mxu0 %v7111
        %v7228 = vpop.f32.mrf.mxu0
        %v7229 = vadd.f32 %v6996, %v7228
        %v7230 = vpop.f32.mrf.mxu0
        %v7231 = vadd.f32 %v6998, %v7230
        %7232 = vmatmul.bf16.gmra.mxu0 %v7112
        %v7233 = vpop.f32.mrf.mxu0
        %v7234 = vadd.f32 %v7001, %v7233
        %v7235 = vpop.f32.mrf.mxu0
        %v7236 = vadd.f32 %v7003, %v7235
        %7237 = vmatmul.bf16.gmra.mxu0 %v7113
        %v7238 = vpop.f32.mrf.mxu0
        %v7239 = vadd.f32 %v7006, %v7238
        %v7240 = vpop.f32.mrf.mxu0
        %v7241 = vadd.f32 %v7008, %v7240
        %7242 = vmatmul.bf16.gmra.mxu0 %v7114
        %v7243 = vpop.f32.mrf.mxu0
        %v7244 = vadd.f32 %v7011, %v7243
        %v7245 = vpop.f32.mrf.mxu0
        %v7246 = vadd.f32 %v7013, %v7245
        %7247 = vmatmul.bf16.gmra.mxu0 %v7115
        %v7248 = vpop.f32.mrf.mxu0
        %v7249 = vadd.f32 %v7016, %v7248
        %v7250 = vpop.f32.mrf.mxu0
        %v7251 = vadd.f32 %v7018, %v7250
        %7252 = vmatmul.bf16.gmra.mxu0 %v7116
        %v7253 = vpop.f32.mrf.mxu0
        %v7254 = vadd.f32 %v7021, %v7253
        %v7255 = vpop.f32.mrf.mxu0
        %v7256 = vadd.f32 %v7023, %v7255
        %7257 = vmatmul.bf16.gmra.mxu0 %v7117
        %v7258 = vpop.f32.mrf.mxu0
        %v7259 = vadd.f32 %v7026, %v7258
        %v7260 = vpop.f32.mrf.mxu0
        %v7261 = vadd.f32 %v7028, %v7260
        %7262 = vmatmul.bf16.gmra.mxu0 %v7118
        %v7263 = vpop.f32.mrf.mxu0
        %v7264 = vadd.f32 %v7031, %v7263
        %v7265 = vpop.f32.mrf.mxu0
        %v7266 = vadd.f32 %v7033, %v7265
        %7267 = vmatmul.bf16.gmra.mxu0 %v7119
        %v7268 = vpop.f32.mrf.mxu0
        %v7269 = vadd.f32 %v7036, %v7268
        %v7270 = vpop.f32.mrf.mxu0
        %v7271 = vadd.f32 %v7038, %v7270
        %7272 = vdwg.mxu0
        %v7273 = vld [vmem:[#allocation3] sm:$0xe]
        %v7274 = vld [vmem:[#allocation3 + $0xc] sm:$0xe]
        %v7275 = vld [vmem:[#allocation3 + $0x18] sm:$0xe]
        %v7276 = vld [vmem:[#allocation3 + $0x24] sm:$0xe]
        %v7277 = vld [vmem:[#allocation3 + $0x30] sm:$0xe]
        %v7278 = vld [vmem:[#allocation3 + $0x3c] sm:$0xe]
        %v7279 = vld [vmem:[#allocation3 + $0x48] sm:$0xe]
        %v7280 = vld [vmem:[#allocation3 + $0x54] sm:$0xe]
        %v7281 = vld [vmem:[#allocation3 + $0x60] sm:$0xe]
        %v7282 = vld [vmem:[#allocation3 + $0x6c] sm:$0xe]
        %v7283 = vld [vmem:[#allocation3 + $0x78] sm:$0xe]
        %v7284 = vld [vmem:[#allocation3 + $0x84] sm:$0xe]
        %v7285 = vld [vmem:[#allocation3 + $0x90] sm:$0xe]
        %v7286 = vld [vmem:[#allocation3 + $0x9c] sm:$0xe]
        %v7287 = vld [vmem:[#allocation3 + $0xa8] sm:$0xe]
        %v7288 = vld [vmem:[#allocation3 + $0xb4] sm:$0xe]
        %v7321 = vrot.slane %v7273, 5
        %v7322 = vrot.slane %v7321, 4
        %v7323 = vrot.slane %v6375, 5
        %v7324 = vsel %vm2021, %v7322, %v7323
        %v7325 = vrot.slane %v7323, 4
        %v7326 = vrot.slane %v6422, 5
        %v7327 = vsel %vm2021, %v7325, %v7326
        %v7328 = vrot.slane %v7274, 5
        %v7329 = vrot.slane %v7328, 4
        %v7330 = vrot.slane %v6377, 5
        %v7331 = vsel %vm2021, %v7329, %v7330
        %v7332 = vrot.slane %v7330, 4
        %v7333 = vrot.slane %v6423, 5
        %v7334 = vsel %vm2021, %v7332, %v7333
        %v7335 = vrot.slane %v7275, 5
        %v7336 = vrot.slane %v7335, 4
        %v7337 = vrot.slane %v6379, 5
        %v7338 = vsel %vm2021, %v7336, %v7337
        %v7339 = vrot.slane %v7337, 4
        %v7340 = vrot.slane %v6424, 5
        %v7341 = vsel %vm2021, %v7339, %v7340
        %v7342 = vrot.slane %v7276, 5
        %v7343 = vrot.slane %v7342, 4
        %v7344 = vrot.slane %v6381, 5
        %v7345 = vsel %vm2021, %v7343, %v7344
        %v7346 = vrot.slane %v7344, 4
        %v7347 = vrot.slane %v6425, 5
        %v7348 = vsel %vm2021, %v7346, %v7347
        %v7349 = vrot.slane %v7277, 5
        %v7350 = vrot.slane %v7349, 4
        %v7351 = vrot.slane %v6383, 5
        %v7352 = vsel %vm2021, %v7350, %v7351
        %v7353 = vrot.slane %v7351, 4
        %v7354 = vrot.slane %v6426, 5
        %v7355 = vsel %vm2021, %v7353, %v7354
        %v7356 = vrot.slane %v7278, 5
        %v7357 = vrot.slane %v7356, 4
        %v7358 = vrot.slane %v6385, 5
        %v7359 = vsel %vm2021, %v7357, %v7358
        %v7360 = vrot.slane %v7358, 4
        %v7361 = vrot.slane %v6427, 5
        %v7362 = vsel %vm2021, %v7360, %v7361
        %v7363 = vrot.slane %v7279, 5
        %v7364 = vrot.slane %v7363, 4
        %v7365 = vrot.slane %v6387, 5
        %v7366 = vsel %vm2021, %v7364, %v7365
        %v7367 = vrot.slane %v7365, 4
        %v7368 = vrot.slane %v6428, 5
        %v7369 = vsel %vm2021, %v7367, %v7368
        %v7370 = vrot.slane %v7280, 5
        %v7371 = vrot.slane %v7370, 4
        %v7372 = vrot.slane %v6389, 5
        %v7373 = vsel %vm2021, %v7371, %v7372
        %v7374 = vrot.slane %v7372, 4
        %v7375 = vrot.slane %v6429, 5
        %v7376 = vsel %vm2021, %v7374, %v7375
        %v7377 = vrot.slane %v7281, 5
        %v7378 = vrot.slane %v7377, 4
        %v7379 = vrot.slane %v6391, 5
        %v7380 = vsel %vm2021, %v7378, %v7379
        %v7381 = vrot.slane %v7379, 4
        %v7382 = vrot.slane %v6430, 5
        %v7383 = vsel %vm2021, %v7381, %v7382
        %v7384 = vrot.slane %v7282, 5
        %v7385 = vrot.slane %v7384, 4
        %v7386 = vrot.slane %v6393, 5
        %v7387 = vsel %vm2021, %v7385, %v7386
        %v7388 = vrot.slane %v7386, 4
        %v7389 = vrot.slane %v6431, 5
        %v7390 = vsel %vm2021, %v7388, %v7389
        %v7391 = vrot.slane %v7283, 5
        %v7392 = vrot.slane %v7391, 4
        %v7393 = vrot.slane %v6395, 5
        %v7394 = vsel %vm2021, %v7392, %v7393
        %v7395 = vrot.slane %v7393, 4
        %v7396 = vrot.slane %v6432, 5
        %v7397 = vsel %vm2021, %v7395, %v7396
        %v7398 = vrot.slane %v7284, 5
        %v7399 = vrot.slane %v7398, 4
        %v7400 = vrot.slane %v6397, 5
        %v7401 = vsel %vm2021, %v7399, %v7400
        %v7402 = vrot.slane %v7400, 4
        %v7403 = vrot.slane %v6433, 5
        %v7404 = vsel %vm2021, %v7402, %v7403
        %v7405 = vrot.slane %v7285, 5
        %v7406 = vrot.slane %v7405, 4
        %v7407 = vrot.slane %v6399, 5
        %v7408 = vsel %vm2021, %v7406, %v7407
        %v7409 = vrot.slane %v7407, 4
        %v7410 = vrot.slane %v6434, 5
        %v7411 = vsel %vm2021, %v7409, %v7410
        %v7412 = vrot.slane %v7286, 5
        %v7413 = vrot.slane %v7412, 4
        %v7414 = vrot.slane %v6401, 5
        %v7415 = vsel %vm2021, %v7413, %v7414
        %v7416 = vrot.slane %v7414, 4
        %v7417 = vrot.slane %v6435, 5
        %v7418 = vsel %vm2021, %v7416, %v7417
        %v7419 = vrot.slane %v7287, 5
        %v7420 = vrot.slane %v7419, 4
        %v7421 = vrot.slane %v6403, 5
        %v7422 = vsel %vm2021, %v7420, %v7421
        %v7423 = vrot.slane %v7421, 4
        %v7424 = vrot.slane %v6436, 5
        %v7425 = vsel %vm2021, %v7423, %v7424
        %v7426 = vrot.slane %v7288, 5
        %v7427 = vrot.slane %v7426, 4
        %v7428 = vrot.slane %v6405, 5
        %v7429 = vsel %vm2021, %v7427, %v7428
        %v7430 = vrot.slane %v7428, 4
        %v7431 = vrot.slane %v6437, 5
        %v7432 = vsel %vm2021, %v7430, %v7431
        %s7433 = scalar_lea.vmem [#allocation9], 128
        %v7434 = vld [vmem:[%s7433] sm:$0xf]
        %v7435 = vld [vmem:[%s7433 + $0x4] sm:$0xf]
        %v7436 = vld [vmem:[%s7433 + $0x8] sm:$0xf]
        %v7437 = vld [vmem:[%s7433 + $0xc] sm:$0xf]
        %v7438 = vld [vmem:[%s7433 + $0x10] sm:$0xf]
        %v7439 = vld [vmem:[%s7433 + $0x14] sm:$0xf]
        %v7440 = vld [vmem:[%s7433 + $0x18] sm:$0xf]
        %v7441 = vld [vmem:[%s7433 + $0x1c] sm:$0xf]
        %v7442 = vld [vmem:[%s7433 + $0x20] sm:$0xf]
        %v7443 = vld [vmem:[%s7433 + $0x24] sm:$0xf]
        %v7444 = vld [vmem:[%s7433 + $0x28] sm:$0xf]
        %v7445 = vld [vmem:[%s7433 + $0x2c] sm:$0xf]
        %v7446 = vld [vmem:[%s7433 + $0x30] sm:$0xf]
        %v7447 = vld [vmem:[%s7433 + $0x34] sm:$0xf]
        %v7448 = vld [vmem:[%s7433 + $0x38] sm:$0xf]
        %v7449 = vld [vmem:[%s7433 + $0x3c] sm:$0xf]
        %v7450 = vunpack.c.l.b16 %v7324
        %v7451 = vunpack.c.l.b16 %v7327
        %v7452 = vunpack.c.l.b16 %v7331
        %v7453 = vunpack.c.l.b16 %v7334
        %v7454 = vunpack.c.l.b16 %v7338
        %v7455 = vunpack.c.l.b16 %v7341
        %v7456 = vunpack.c.l.b16 %v7345
        %v7457 = vunpack.c.l.b16 %v7348
        %v7458 = vunpack.c.l.b16 %v7352
        %v7459 = vunpack.c.l.b16 %v7355
        %v7460 = vunpack.c.l.b16 %v7359
        %v7461 = vunpack.c.l.b16 %v7362
        %v7462 = vunpack.c.l.b16 %v7366
        %v7463 = vunpack.c.l.b16 %v7369
        %v7464 = vunpack.c.l.b16 %v7373
        %v7465 = vunpack.c.l.b16 %v7376
        %v7466 = vunpack.c.l.b16 %v7380
        %v7467 = vunpack.c.l.b16 %v7383
        %v7468 = vunpack.c.l.b16 %v7387
        %v7469 = vunpack.c.l.b16 %v7390
        %v7470 = vunpack.c.l.b16 %v7394
        %v7471 = vunpack.c.l.b16 %v7397
        %v7472 = vunpack.c.l.b16 %v7401
        %v7473 = vunpack.c.l.b16 %v7404
        %v7474 = vunpack.c.l.b16 %v7408
        %v7475 = vunpack.c.l.b16 %v7411
        %v7476 = vunpack.c.l.b16 %v7415
        %v7477 = vunpack.c.l.b16 %v7418
        %v7478 = vunpack.c.l.b16 %v7422
        %v7479 = vunpack.c.l.b16 %v7425
        %v7480 = vunpack.c.l.b16 %v7429
        %v7481 = vunpack.c.l.b16 %v7432
        %v7482 = vpack.c.b16 %v7451, %v7450
        %v7483 = vpack.c.b16 %v7453, %v7452
        %v7484 = vpack.c.b16 %v7455, %v7454
        %v7485 = vpack.c.b16 %v7457, %v7456
        %v7486 = vpack.c.b16 %v7459, %v7458
        %v7487 = vpack.c.b16 %v7461, %v7460
        %v7488 = vpack.c.b16 %v7463, %v7462
        %v7489 = vpack.c.b16 %v7465, %v7464
        %v7490 = vpack.c.b16 %v7467, %v7466
        %v7491 = vpack.c.b16 %v7469, %v7468
        %v7492 = vpack.c.b16 %v7471, %v7470
        %v7493 = vpack.c.b16 %v7473, %v7472
        %v7494 = vpack.c.b16 %v7475, %v7474
        %v7495 = vpack.c.b16 %v7477, %v7476
        %v7496 = vpack.c.b16 %v7479, %v7478
        %v7497 = vpack.c.b16 %v7481, %v7480
        %v7530 = vunpack.c.l.b16 %v7434
        %v7531 = vunpack.c.l.b16 %v7435
        %v7532 = vunpack.c.l.b16 %v7436
        %v7533 = vunpack.c.l.b16 %v7437
        %v7534 = vunpack.c.l.b16 %v7438
        %v7535 = vunpack.c.l.b16 %v7439
        %v7536 = vunpack.c.l.b16 %v7440
        %v7537 = vunpack.c.l.b16 %v7441
        %v7538 = vunpack.c.l.b16 %v7442
        %v7539 = vunpack.c.l.b16 %v7443
        %v7540 = vunpack.c.l.b16 %v7444
        %v7541 = vunpack.c.l.b16 %v7445
        %v7542 = vunpack.c.l.b16 %v7446
        %v7543 = vunpack.c.l.b16 %v7447
        %v7544 = vunpack.c.l.b16 %v7448
        %v7545 = vunpack.c.l.b16 %v7449
        %v7546 = vpack.c.b16 %v7531, %v7530
        %v7547 = vpack.c.b16 %v7533, %v7532
        %v7548 = vpack.c.b16 %v7535, %v7534
        %v7549 = vpack.c.b16 %v7537, %v7536
        %v7550 = vpack.c.b16 %v7539, %v7538
        %v7551 = vpack.c.b16 %v7541, %v7540
        %v7552 = vpack.c.b16 %v7543, %v7542
        %v7553 = vpack.c.b16 %v7545, %v7544
        %7562 = vmatpush.bf16.msra.mxu0 %v7553
        %7563 = vmatpush.bf16.msra.mxu0 %v7552
        %7564 = vmatpush.bf16.msra.mxu0 %v7551
        %7565 = vmatpush.bf16.msra.mxu0 %v7550
        %7566 = vmatpush.bf16.msra.mxu0 %v7549
        %7567 = vmatpush.bf16.msra.mxu0 %v7548
        %7568 = vmatpush.bf16.msra.mxu0 %v7547
        %7569 = vmatpush.bf16.msra.mxu0 %v7546
        %7570 = vmatmul.bf16.gmra.mxu0 %v7482
        %v7571 = vpop.f32.mrf.mxu0
        %v7572 = vadd.f32 0.0, %v7571
        %v7573 = vpop.f32.mrf.mxu0
        %v7574 = vadd.f32 0.0, %v7573
        %7575 = vmatmul.bf16.gmra.mxu0 %v7483
        %v7576 = vpop.f32.mrf.mxu0
        %v7577 = vadd.f32 0.0, %v7576
        %v7578 = vpop.f32.mrf.mxu0
        %v7579 = vadd.f32 0.0, %v7578
        %7580 = vmatmul.bf16.gmra.mxu0 %v7484
        %v7581 = vpop.f32.mrf.mxu0
        %v7582 = vadd.f32 0.0, %v7581
        %v7583 = vpop.f32.mrf.mxu0
        %v7584 = vadd.f32 0.0, %v7583
        %7585 = vmatmul.bf16.gmra.mxu0 %v7485
        %v7586 = vpop.f32.mrf.mxu0
        %v7587 = vadd.f32 0.0, %v7586
        %v7588 = vpop.f32.mrf.mxu0
        %v7589 = vadd.f32 0.0, %v7588
        %7590 = vmatmul.bf16.gmra.mxu0 %v7486
        %v7591 = vpop.f32.mrf.mxu0
        %v7592 = vadd.f32 0.0, %v7591
        %v7593 = vpop.f32.mrf.mxu0
        %v7594 = vadd.f32 0.0, %v7593
        %7595 = vmatmul.bf16.gmra.mxu0 %v7487
        %v7596 = vpop.f32.mrf.mxu0
        %v7597 = vadd.f32 0.0, %v7596
        %v7598 = vpop.f32.mrf.mxu0
        %v7599 = vadd.f32 0.0, %v7598
        %7600 = vmatmul.bf16.gmra.mxu0 %v7488
        %v7601 = vpop.f32.mrf.mxu0
        %v7602 = vadd.f32 0.0, %v7601
        %v7603 = vpop.f32.mrf.mxu0
        %v7604 = vadd.f32 0.0, %v7603
        %7605 = vmatmul.bf16.gmra.mxu0 %v7489
        %v7606 = vpop.f32.mrf.mxu0
        %v7607 = vadd.f32 0.0, %v7606
        %v7608 = vpop.f32.mrf.mxu0
        %v7609 = vadd.f32 0.0, %v7608
        %7610 = vmatmul.bf16.gmra.mxu0 %v7490
        %v7611 = vpop.f32.mrf.mxu0
        %v7612 = vadd.f32 0.0, %v7611
        %v7613 = vpop.f32.mrf.mxu0
        %v7614 = vadd.f32 0.0, %v7613
        %7615 = vmatmul.bf16.gmra.mxu0 %v7491
        %v7616 = vpop.f32.mrf.mxu0
        %v7617 = vadd.f32 0.0, %v7616
        %v7618 = vpop.f32.mrf.mxu0
        %v7619 = vadd.f32 0.0, %v7618
        %7620 = vmatmul.bf16.gmra.mxu0 %v7492
        %v7621 = vpop.f32.mrf.mxu0
        %v7622 = vadd.f32 0.0, %v7621
        %v7623 = vpop.f32.mrf.mxu0
        %v7624 = vadd.f32 0.0, %v7623
        %7625 = vmatmul.bf16.gmra.mxu0 %v7493
        %v7626 = vpop.f32.mrf.mxu0
        %v7627 = vadd.f32 0.0, %v7626
        %v7628 = vpop.f32.mrf.mxu0
        %v7629 = vadd.f32 0.0, %v7628
        %7630 = vmatmul.bf16.gmra.mxu0 %v7494
        %v7631 = vpop.f32.mrf.mxu0
        %v7632 = vadd.f32 0.0, %v7631
        %v7633 = vpop.f32.mrf.mxu0
        %v7634 = vadd.f32 0.0, %v7633
        %7635 = vmatmul.bf16.gmra.mxu0 %v7495
        %v7636 = vpop.f32.mrf.mxu0
        %v7637 = vadd.f32 0.0, %v7636
        %v7638 = vpop.f32.mrf.mxu0
        %v7639 = vadd.f32 0.0, %v7638
        %7640 = vmatmul.bf16.gmra.mxu0 %v7496
        %v7641 = vpop.f32.mrf.mxu0
        %v7642 = vadd.f32 0.0, %v7641
        %v7643 = vpop.f32.mrf.mxu0
        %v7644 = vadd.f32 0.0, %v7643
        %7645 = vmatmul.bf16.gmra.mxu0 %v7497
        %v7646 = vpop.f32.mrf.mxu0
        %v7647 = vadd.f32 0.0, %v7646
        %v7648 = vpop.f32.mrf.mxu0
        %v7649 = vadd.f32 0.0, %v7648
        %7650 = vdwg.mxu0
        %v7651 = vadd.f32 %v7194, %v7572
        %v7652 = vadd.f32 %v7196, %v7574
        %v7653 = vadd.f32 %v7199, %v7577
        %v7654 = vadd.f32 %v7201, %v7579
        %v7655 = vadd.f32 %v7204, %v7582
        %v7656 = vadd.f32 %v7206, %v7584
        %v7657 = vadd.f32 %v7209, %v7587
        %v7658 = vadd.f32 %v7211, %v7589
        %v7659 = vadd.f32 %v7214, %v7592
        %v7660 = vadd.f32 %v7216, %v7594
        %v7661 = vadd.f32 %v7219, %v7597
        %v7662 = vadd.f32 %v7221, %v7599
        %v7663 = vadd.f32 %v7224, %v7602
        %v7664 = vadd.f32 %v7226, %v7604
        %v7665 = vadd.f32 %v7229, %v7607
        %v7666 = vadd.f32 %v7231, %v7609
        %v7667 = vadd.f32 %v7234, %v7612
        %v7668 = vadd.f32 %v7236, %v7614
        %v7669 = vadd.f32 %v7239, %v7617
        %v7670 = vadd.f32 %v7241, %v7619
        %v7671 = vadd.f32 %v7244, %v7622
        %v7672 = vadd.f32 %v7246, %v7624
        %v7673 = vadd.f32 %v7249, %v7627
        %v7674 = vadd.f32 %v7251, %v7629
        %v7675 = vadd.f32 %v7254, %v7632
        %v7676 = vadd.f32 %v7256, %v7634
        %v7677 = vadd.f32 %v7259, %v7637
        %v7678 = vadd.f32 %v7261, %v7639
        %v7679 = vadd.f32 %v7264, %v7642
        %v7680 = vadd.f32 %v7266, %v7644
        %v7681 = vadd.f32 %v7269, %v7647
        %v7682 = vadd.f32 %v7271, %v7649
        %v7683 = vld [vmem:[%s6261] sm:$0xf]
        %v7684 = vld [vmem:[%s6261 + $0x4] sm:$0xf]
        %v7685 = vld [vmem:[%s6261 + $0xc] sm:$0xf]
        %v7686 = vld [vmem:[%s6261 + $0x10] sm:$0xf]
        %v7687 = vld [vmem:[%s6261 + $0x18] sm:$0xf]
        %v7688 = vld [vmem:[%s6261 + $0x1c] sm:$0xf]
        %v7689 = vld [vmem:[%s6261 + $0x24] sm:$0xf]
        %v7690 = vld [vmem:[%s6261 + $0x28] sm:$0xf]
        %v7691 = vld [vmem:[%s6261 + $0x30] sm:$0xf]
        %v7692 = vld [vmem:[%s6261 + $0x34] sm:$0xf]
        %v7693 = vld [vmem:[%s6261 + $0x3c] sm:$0xf]
        %v7694 = vld [vmem:[%s6261 + $0x40] sm:$0xf]
        %v7695 = vld [vmem:[%s6261 + $0x48] sm:$0xf]
        %v7696 = vld [vmem:[%s6261 + $0x4c] sm:$0xf]
        %v7697 = vld [vmem:[%s6261 + $0x54] sm:$0xf]
        %v7698 = vld [vmem:[%s6261 + $0x58] sm:$0xf]
        %v7699 = vld [vmem:[%s6261 + $0x60] sm:$0xf]
        %v7700 = vld [vmem:[%s6261 + $0x64] sm:$0xf]
        %v7701 = vld [vmem:[%s6261 + $0x6c] sm:$0xf]
        %v7702 = vld [vmem:[%s6261 + $0x70] sm:$0xf]
        %v7703 = vld [vmem:[%s6261 + $0x78] sm:$0xf]
        %v7704 = vld [vmem:[%s6261 + $0x7c] sm:$0xf]
        %v7705 = vld [vmem:[%s6261 + $0x84] sm:$0xf]
        %v7706 = vld [vmem:[%s6261 + $0x88] sm:$0xf]
        %v7707 = vld [vmem:[%s6261 + $0x90] sm:$0xf]
        %v7708 = vld [vmem:[%s6261 + $0x94] sm:$0xf]
        %v7709 = vld [vmem:[%s6261 + $0x9c] sm:$0xf]
        %v7710 = vld [vmem:[%s6261 + $0xa0] sm:$0xf]
        %v7711 = vld [vmem:[%s6261 + $0xa8] sm:$0xf]
        %v7712 = vld [vmem:[%s6261 + $0xac] sm:$0xf]
        %v7713 = vld [vmem:[%s6261 + $0xb4] sm:$0xf]
        %v7714 = vld [vmem:[%s6261 + $0xb8] sm:$0xf]
        %s7715 = scalar_lea.vmem [#allocation9], 192
        %v7716 = vld [vmem:[%s7715] sm:$0xf]
        %v7717 = vld [vmem:[%s7715 + $0x4] sm:$0xf]
        %v7718 = vld [vmem:[%s7715 + $0x8] sm:$0xf]
        %v7719 = vld [vmem:[%s7715 + $0xc] sm:$0xf]
        %v7720 = vld [vmem:[%s7715 + $0x10] sm:$0xf]
        %v7721 = vld [vmem:[%s7715 + $0x14] sm:$0xf]
        %v7722 = vld [vmem:[%s7715 + $0x18] sm:$0xf]
        %v7723 = vld [vmem:[%s7715 + $0x1c] sm:$0xf]
        %v7724 = vld [vmem:[%s7715 + $0x20] sm:$0xf]
        %v7725 = vld [vmem:[%s7715 + $0x24] sm:$0xf]
        %v7726 = vld [vmem:[%s7715 + $0x28] sm:$0xf]
        %v7727 = vld [vmem:[%s7715 + $0x2c] sm:$0xf]
        %v7728 = vld [vmem:[%s7715 + $0x30] sm:$0xf]
        %v7729 = vld [vmem:[%s7715 + $0x34] sm:$0xf]
        %v7730 = vld [vmem:[%s7715 + $0x38] sm:$0xf]
        %v7731 = vld [vmem:[%s7715 + $0x3c] sm:$0xf]
        %v7764 = vunpack.c.l.b16 %v7683
        %v7765 = vunpack.c.l.b16 %v7684
        %v7766 = vunpack.c.l.b16 %v7685
        %v7767 = vunpack.c.l.b16 %v7686
        %v7768 = vunpack.c.l.b16 %v7687
        %v7769 = vunpack.c.l.b16 %v7688
        %v7770 = vunpack.c.l.b16 %v7689
        %v7771 = vunpack.c.l.b16 %v7690
        %v7772 = vunpack.c.l.b16 %v7691
        %v7773 = vunpack.c.l.b16 %v7692
        %v7774 = vunpack.c.l.b16 %v7693
        %v7775 = vunpack.c.l.b16 %v7694
        %v7776 = vunpack.c.l.b16 %v7695
        %v7777 = vunpack.c.l.b16 %v7696
        %v7778 = vunpack.c.l.b16 %v7697
        %v7779 = vunpack.c.l.b16 %v7698
        %v7780 = vunpack.c.l.b16 %v7699
        %v7781 = vunpack.c.l.b16 %v7700
        %v7782 = vunpack.c.l.b16 %v7701
        %v7783 = vunpack.c.l.b16 %v7702
        %v7784 = vunpack.c.l.b16 %v7703
        %v7785 = vunpack.c.l.b16 %v7704
        %v7786 = vunpack.c.l.b16 %v7705
        %v7787 = vunpack.c.l.b16 %v7706
        %v7788 = vunpack.c.l.b16 %v7707
        %v7789 = vunpack.c.l.b16 %v7708
        %v7790 = vunpack.c.l.b16 %v7709
        %v7791 = vunpack.c.l.b16 %v7710
        %v7792 = vunpack.c.l.b16 %v7711
        %v7793 = vunpack.c.l.b16 %v7712
        %v7794 = vunpack.c.l.b16 %v7713
        %v7795 = vunpack.c.l.b16 %v7714
        %v7796 = vpack.c.b16 %v7765, %v7764
        %v7797 = vpack.c.b16 %v7767, %v7766
        %v7798 = vpack.c.b16 %v7769, %v7768
        %v7799 = vpack.c.b16 %v7771, %v7770
        %v7800 = vpack.c.b16 %v7773, %v7772
        %v7801 = vpack.c.b16 %v7775, %v7774
        %v7802 = vpack.c.b16 %v7777, %v7776
        %v7803 = vpack.c.b16 %v7779, %v7778
        %v7804 = vpack.c.b16 %v7781, %v7780
        %v7805 = vpack.c.b16 %v7783, %v7782
        %v7806 = vpack.c.b16 %v7785, %v7784
        %v7807 = vpack.c.b16 %v7787, %v7786
        %v7808 = vpack.c.b16 %v7789, %v7788
        %v7809 = vpack.c.b16 %v7791, %v7790
        %v7810 = vpack.c.b16 %v7793, %v7792
        %v7811 = vpack.c.b16 %v7795, %v7794
        %v7844 = vunpack.c.l.b16 %v7716
        %v7845 = vunpack.c.l.b16 %v7717
        %v7846 = vunpack.c.l.b16 %v7718
        %v7847 = vunpack.c.l.b16 %v7719
        %v7848 = vunpack.c.l.b16 %v7720
        %v7849 = vunpack.c.l.b16 %v7721
        %v7850 = vunpack.c.l.b16 %v7722
        %v7851 = vunpack.c.l.b16 %v7723
        %v7852 = vunpack.c.l.b16 %v7724
        %v7853 = vunpack.c.l.b16 %v7725
        %v7854 = vunpack.c.l.b16 %v7726
        %v7855 = vunpack.c.l.b16 %v7727
        %v7856 = vunpack.c.l.b16 %v7728
        %v7857 = vunpack.c.l.b16 %v7729
        %v7858 = vunpack.c.l.b16 %v7730
        %v7859 = vunpack.c.l.b16 %v7731
        %v7860 = vpack.c.b16 %v7845, %v7844
        %v7861 = vpack.c.b16 %v7847, %v7846
        %v7862 = vpack.c.b16 %v7849, %v7848
        %v7863 = vpack.c.b16 %v7851, %v7850
        %v7864 = vpack.c.b16 %v7853, %v7852
        %v7865 = vpack.c.b16 %v7855, %v7854
        %v7866 = vpack.c.b16 %v7857, %v7856
        %v7867 = vpack.c.b16 %v7859, %v7858
        %7876 = vmatpush.bf16.msra.mxu0 %v7867
        %7877 = vmatpush.bf16.msra.mxu0 %v7866
        %7878 = vmatpush.bf16.msra.mxu0 %v7865
        %7879 = vmatpush.bf16.msra.mxu0 %v7864
        %7880 = vmatpush.bf16.msra.mxu0 %v7863
        %7881 = vmatpush.bf16.msra.mxu0 %v7862
        %7882 = vmatpush.bf16.msra.mxu0 %v7861
        %7883 = vmatpush.bf16.msra.mxu0 %v7860
        %7884 = vmatmul.bf16.gmra.mxu0 %v7796
        %v7885 = vpop.f32.mrf.mxu0
        %v7886 = vadd.f32 0.0, %v7885
        %v7887 = vpop.f32.mrf.mxu0
        %v7888 = vadd.f32 0.0, %v7887
        %7889 = vmatmul.bf16.gmra.mxu0 %v7797
        %v7890 = vpop.f32.mrf.mxu0
        %v7891 = vadd.f32 0.0, %v7890
        %v7892 = vpop.f32.mrf.mxu0
        %v7893 = vadd.f32 0.0, %v7892
        %7894 = vmatmul.bf16.gmra.mxu0 %v7798
        %v7895 = vpop.f32.mrf.mxu0
        %v7896 = vadd.f32 0.0, %v7895
        %v7897 = vpop.f32.mrf.mxu0
        %v7898 = vadd.f32 0.0, %v7897
        %7899 = vmatmul.bf16.gmra.mxu0 %v7799
        %v7900 = vpop.f32.mrf.mxu0
        %v7901 = vadd.f32 0.0, %v7900
        %v7902 = vpop.f32.mrf.mxu0
        %v7903 = vadd.f32 0.0, %v7902
        %7904 = vmatmul.bf16.gmra.mxu0 %v7800
        %v7905 = vpop.f32.mrf.mxu0
        %v7906 = vadd.f32 0.0, %v7905
        %v7907 = vpop.f32.mrf.mxu0
        %v7908 = vadd.f32 0.0, %v7907
        %7909 = vmatmul.bf16.gmra.mxu0 %v7801
        %v7910 = vpop.f32.mrf.mxu0
        %v7911 = vadd.f32 0.0, %v7910
        %v7912 = vpop.f32.mrf.mxu0
        %v7913 = vadd.f32 0.0, %v7912
        %7914 = vmatmul.bf16.gmra.mxu0 %v7802
        %v7915 = vpop.f32.mrf.mxu0
        %v7916 = vadd.f32 0.0, %v7915
        %v7917 = vpop.f32.mrf.mxu0
        %v7918 = vadd.f32 0.0, %v7917
        %7919 = vmatmul.bf16.gmra.mxu0 %v7803
        %v7920 = vpop.f32.mrf.mxu0
        %v7921 = vadd.f32 0.0, %v7920
        %v7922 = vpop.f32.mrf.mxu0
        %v7923 = vadd.f32 0.0, %v7922
        %7924 = vmatmul.bf16.gmra.mxu0 %v7804
        %v7925 = vpop.f32.mrf.mxu0
        %v7926 = vadd.f32 0.0, %v7925
        %v7927 = vpop.f32.mrf.mxu0
        %v7928 = vadd.f32 0.0, %v7927
        %7929 = vmatmul.bf16.gmra.mxu0 %v7805
        %v7930 = vpop.f32.mrf.mxu0
        %v7931 = vadd.f32 0.0, %v7930
        %v7932 = vpop.f32.mrf.mxu0
        %v7933 = vadd.f32 0.0, %v7932
        %7934 = vmatmul.bf16.gmra.mxu0 %v7806
        %v7935 = vpop.f32.mrf.mxu0
        %v7936 = vadd.f32 0.0, %v7935
        %v7937 = vpop.f32.mrf.mxu0
        %v7938 = vadd.f32 0.0, %v7937
        %7939 = vmatmul.bf16.gmra.mxu0 %v7807
        %v7940 = vpop.f32.mrf.mxu0
        %v7941 = vadd.f32 0.0, %v7940
        %v7942 = vpop.f32.mrf.mxu0
        %v7943 = vadd.f32 0.0, %v7942
        %7944 = vmatmul.bf16.gmra.mxu0 %v7808
        %v7945 = vpop.f32.mrf.mxu0
        %v7946 = vadd.f32 0.0, %v7945
        %v7947 = vpop.f32.mrf.mxu0
        %v7948 = vadd.f32 0.0, %v7947
        %7949 = vmatmul.bf16.gmra.mxu0 %v7809
        %v7950 = vpop.f32.mrf.mxu0
        %v7951 = vadd.f32 0.0, %v7950
        %v7952 = vpop.f32.mrf.mxu0
        %v7953 = vadd.f32 0.0, %v7952
        %7954 = vmatmul.bf16.gmra.mxu0 %v7810
        %v7955 = vpop.f32.mrf.mxu0
        %v7956 = vadd.f32 0.0, %v7955
        %v7957 = vpop.f32.mrf.mxu0
        %v7958 = vadd.f32 0.0, %v7957
        %7959 = vmatmul.bf16.gmra.mxu0 %v7811
        %v7960 = vpop.f32.mrf.mxu0
        %v7961 = vadd.f32 0.0, %v7960
        %v7962 = vpop.f32.mrf.mxu0
        %v7963 = vadd.f32 0.0, %v7962
        %7964 = vdwg.mxu0
        %v7965 = vadd.f32 %v7651, %v7886
        %v7966 = vadd.f32 %v7652, %v7888
        %v7967 = vadd.f32 %v7653, %v7891
        %v7968 = vadd.f32 %v7654, %v7893
        %v7969 = vadd.f32 %v7655, %v7896
        %v7970 = vadd.f32 %v7656, %v7898
        %v7971 = vadd.f32 %v7657, %v7901
        %v7972 = vadd.f32 %v7658, %v7903
        %v7973 = vadd.f32 %v7659, %v7906
        %v7974 = vadd.f32 %v7660, %v7908
        %v7975 = vadd.f32 %v7661, %v7911
        %v7976 = vadd.f32 %v7662, %v7913
        %v7977 = vadd.f32 %v7663, %v7916
        %v7978 = vadd.f32 %v7664, %v7918
        %v7979 = vadd.f32 %v7665, %v7921
        %v7980 = vadd.f32 %v7666, %v7923
        %v7981 = vadd.f32 %v7667, %v7926
        %v7982 = vadd.f32 %v7668, %v7928
        %v7983 = vadd.f32 %v7669, %v7931
        %v7984 = vadd.f32 %v7670, %v7933
        %v7985 = vadd.f32 %v7671, %v7936
        %v7986 = vadd.f32 %v7672, %v7938
        %v7987 = vadd.f32 %v7673, %v7941
        %v7988 = vadd.f32 %v7674, %v7943
        %v7989 = vadd.f32 %v7675, %v7946
        %v7990 = vadd.f32 %v7676, %v7948
        %v7991 = vadd.f32 %v7677, %v7951
        %v7992 = vadd.f32 %v7678, %v7953
        %v7993 = vadd.f32 %v7679, %v7956
        %v7994 = vadd.f32 %v7680, %v7958
        %v7995 = vadd.f32 %v7681, %v7961
        %v7996 = vadd.f32 %v7682, %v7963
        %v7997 = vld [vmem:[%s6261] sm:$0xf]
        %v7998 = vld [vmem:[%s6261 + $0x4] sm:$0xf]
        %v7999 = vld [vmem:[%s6261 + $0x8] sm:$0x1]
        %v8000 = vld [vmem:[%s6261 + $0xc] sm:$0xf]
        %v8001 = vld [vmem:[%s6261 + $0x10] sm:$0xf]
        %v8002 = vld [vmem:[%s6261 + $0x14] sm:$0x1]
        %v8003 = vld [vmem:[%s6261 + $0x18] sm:$0xf]
        %v8004 = vld [vmem:[%s6261 + $0x1c] sm:$0xf]
        %v8005 = vld [vmem:[%s6261 + $0x20] sm:$0x1]
        %v8006 = vld [vmem:[%s6261 + $0x24] sm:$0xf]
        %v8007 = vld [vmem:[%s6261 + $0x28] sm:$0xf]
        %v8008 = vld [vmem:[%s6261 + $0x2c] sm:$0x1]
        %v8009 = vld [vmem:[%s6261 + $0x30] sm:$0xf]
        %v8010 = vld [vmem:[%s6261 + $0x34] sm:$0xf]
        %v8011 = vld [vmem:[%s6261 + $0x38] sm:$0x1]
        %v8012 = vld [vmem:[%s6261 + $0x3c] sm:$0xf]
        %v8013 = vld [vmem:[%s6261 + $0x40] sm:$0xf]
        %v8014 = vld [vmem:[%s6261 + $0x44] sm:$0x1]
        %v8015 = vld [vmem:[%s6261 + $0x48] sm:$0xf]
        %v8016 = vld [vmem:[%s6261 + $0x4c] sm:$0xf]
        %v8017 = vld [vmem:[%s6261 + $0x50] sm:$0x1]
        %v8018 = vld [vmem:[%s6261 + $0x54] sm:$0xf]
        %v8019 = vld [vmem:[%s6261 + $0x58] sm:$0xf]
        %v8020 = vld [vmem:[%s6261 + $0x5c] sm:$0x1]
        %v8021 = vld [vmem:[%s6261 + $0x60] sm:$0xf]
        %v8022 = vld [vmem:[%s6261 + $0x64] sm:$0xf]
        %v8023 = vld [vmem:[%s6261 + $0x68] sm:$0x1]
        %v8024 = vld [vmem:[%s6261 + $0x6c] sm:$0xf]
        %v8025 = vld [vmem:[%s6261 + $0x70] sm:$0xf]
        %v8026 = vld [vmem:[%s6261 + $0x74] sm:$0x1]
        %v8027 = vld [vmem:[%s6261 + $0x78] sm:$0xf]
        %v8028 = vld [vmem:[%s6261 + $0x7c] sm:$0xf]
        %v8029 = vld [vmem:[%s6261 + $0x80] sm:$0x1]
        %v8030 = vld [vmem:[%s6261 + $0x84] sm:$0xf]
        %v8031 = vld [vmem:[%s6261 + $0x88] sm:$0xf]
        %v8032 = vld [vmem:[%s6261 + $0x8c] sm:$0x1]
        %v8033 = vld [vmem:[%s6261 + $0x90] sm:$0xf]
        %v8034 = vld [vmem:[%s6261 + $0x94] sm:$0xf]
        %v8035 = vld [vmem:[%s6261 + $0x98] sm:$0x1]
        %v8036 = vld [vmem:[%s6261 + $0x9c] sm:$0xf]
        %v8037 = vld [vmem:[%s6261 + $0xa0] sm:$0xf]
        %v8038 = vld [vmem:[%s6261 + $0xa4] sm:$0x1]
        %v8039 = vld [vmem:[%s6261 + $0xa8] sm:$0xf]
        %v8040 = vld [vmem:[%s6261 + $0xac] sm:$0xf]
        %v8041 = vld [vmem:[%s6261 + $0xb0] sm:$0x1]
        %v8042 = vld [vmem:[%s6261 + $0xb4] sm:$0xf]
        %v8043 = vld [vmem:[%s6261 + $0xb8] sm:$0xf]
        %v8044 = vld [vmem:[%s6261 + $0xbc] sm:$0x1]
        %v8046 = vshrl.u32 %v7997, 16
        %v8048 = vrot.slane %v8046, 4
        %v8049 = vshll.u32 %v7997, 16
        %v8051 = vrot.slane %v8049, 5
        %v8052 = vor.u32 %v8048, %v8051
        %v8053 = vrot.slane %v8052, 4
        %v8055 = vshll.u32 %v7998, 16
        %v8057 = vrot.slane %v8055, 5
        %v8058 = vsel %vm1135, %v8053, %v8057
        %v8059 = vshrl.u32 %v7998, 16
        %v8061 = vrot.slane %v8059, 4
        %v8062 = vor.u32 %v8061, %v8057
        %v8063 = vrot.slane %v8062, 4
        %v8065 = vshll.u32 %v7999, 16
        %v8067 = vrot.slane %v8065, 5
        %v8068 = vsel %vm1135, %v8063, %v8067
        %v8070 = vshrl.u32 %v8000, 16
        %v8072 = vrot.slane %v8070, 4
        %v8073 = vshll.u32 %v8000, 16
        %v8075 = vrot.slane %v8073, 5
        %v8076 = vor.u32 %v8072, %v8075
        %v8077 = vrot.slane %v8076, 4
        %v8079 = vshll.u32 %v8001, 16
        %v8081 = vrot.slane %v8079, 5
        %v8082 = vsel %vm1135, %v8077, %v8081
        %v8083 = vshrl.u32 %v8001, 16
        %v8085 = vrot.slane %v8083, 4
        %v8086 = vor.u32 %v8085, %v8081
        %v8087 = vrot.slane %v8086, 4
        %v8089 = vshll.u32 %v8002, 16
        %v8091 = vrot.slane %v8089, 5
        %v8092 = vsel %vm1135, %v8087, %v8091
        %v8094 = vshrl.u32 %v8003, 16
        %v8096 = vrot.slane %v8094, 4
        %v8097 = vshll.u32 %v8003, 16
        %v8099 = vrot.slane %v8097, 5
        %v8100 = vor.u32 %v8096, %v8099
        %v8101 = vrot.slane %v8100, 4
        %v8103 = vshll.u32 %v8004, 16
        %v8105 = vrot.slane %v8103, 5
        %v8106 = vsel %vm1135, %v8101, %v8105
        %v8107 = vshrl.u32 %v8004, 16
        %v8109 = vrot.slane %v8107, 4
        %v8110 = vor.u32 %v8109, %v8105
        %v8111 = vrot.slane %v8110, 4
        %v8113 = vshll.u32 %v8005, 16
        %v8115 = vrot.slane %v8113, 5
        %v8116 = vsel %vm1135, %v8111, %v8115
        %v8118 = vshrl.u32 %v8006, 16
        %v8120 = vrot.slane %v8118, 4
        %v8121 = vshll.u32 %v8006, 16
        %v8123 = vrot.slane %v8121, 5
        %v8124 = vor.u32 %v8120, %v8123
        %v8125 = vrot.slane %v8124, 4
        %v8127 = vshll.u32 %v8007, 16
        %v8129 = vrot.slane %v8127, 5
        %v8130 = vsel %vm1135, %v8125, %v8129
        %v8131 = vshrl.u32 %v8007, 16
        %v8133 = vrot.slane %v8131, 4
        %v8134 = vor.u32 %v8133, %v8129
        %v8135 = vrot.slane %v8134, 4
        %v8137 = vshll.u32 %v8008, 16
        %v8139 = vrot.slane %v8137, 5
        %v8140 = vsel %vm1135, %v8135, %v8139
        %v8142 = vshrl.u32 %v8009, 16
        %v8144 = vrot.slane %v8142, 4
        %v8145 = vshll.u32 %v8009, 16
        %v8147 = vrot.slane %v8145, 5
        %v8148 = vor.u32 %v8144, %v8147
        %v8149 = vrot.slane %v8148, 4
        %v8151 = vshll.u32 %v8010, 16
        %v8153 = vrot.slane %v8151, 5
        %v8154 = vsel %vm1135, %v8149, %v8153
        %v8155 = vshrl.u32 %v8010, 16
        %v8157 = vrot.slane %v8155, 4
        %v8158 = vor.u32 %v8157, %v8153
        %v8159 = vrot.slane %v8158, 4
        %v8161 = vshll.u32 %v8011, 16
        %v8163 = vrot.slane %v8161, 5
        %v8164 = vsel %vm1135, %v8159, %v8163
        %v8166 = vshrl.u32 %v8012, 16
        %v8168 = vrot.slane %v8166, 4
        %v8169 = vshll.u32 %v8012, 16
        %v8171 = vrot.slane %v8169, 5
        %v8172 = vor.u32 %v8168, %v8171
        %v8173 = vrot.slane %v8172, 4
        %v8175 = vshll.u32 %v8013, 16
        %v8177 = vrot.slane %v8175, 5
        %v8178 = vsel %vm1135, %v8173, %v8177
        %v8179 = vshrl.u32 %v8013, 16
        %v8181 = vrot.slane %v8179, 4
        %v8182 = vor.u32 %v8181, %v8177
        %v8183 = vrot.slane %v8182, 4
        %v8185 = vshll.u32 %v8014, 16
        %v8187 = vrot.slane %v8185, 5
        %v8188 = vsel %vm1135, %v8183, %v8187
        %v8190 = vshrl.u32 %v8015, 16
        %v8192 = vrot.slane %v8190, 4
        %v8193 = vshll.u32 %v8015, 16
        %v8195 = vrot.slane %v8193, 5
        %v8196 = vor.u32 %v8192, %v8195
        %v8197 = vrot.slane %v8196, 4
        %v8199 = vshll.u32 %v8016, 16
        %v8201 = vrot.slane %v8199, 5
        %v8202 = vsel %vm1135, %v8197, %v8201
        %v8203 = vshrl.u32 %v8016, 16
        %v8205 = vrot.slane %v8203, 4
        %v8206 = vor.u32 %v8205, %v8201
        %v8207 = vrot.slane %v8206, 4
        %v8209 = vshll.u32 %v8017, 16
        %v8211 = vrot.slane %v8209, 5
        %v8212 = vsel %vm1135, %v8207, %v8211
        %v8214 = vshrl.u32 %v8018, 16
        %v8216 = vrot.slane %v8214, 4
        %v8217 = vshll.u32 %v8018, 16
        %v8219 = vrot.slane %v8217, 5
        %v8220 = vor.u32 %v8216, %v8219
        %v8221 = vrot.slane %v8220, 4
        %v8223 = vshll.u32 %v8019, 16
        %v8225 = vrot.slane %v8223, 5
        %v8226 = vsel %vm1135, %v8221, %v8225
        %v8227 = vshrl.u32 %v8019, 16
        %v8229 = vrot.slane %v8227, 4
        %v8230 = vor.u32 %v8229, %v8225
        %v8231 = vrot.slane %v8230, 4
        %v8233 = vshll.u32 %v8020, 16
        %v8235 = vrot.slane %v8233, 5
        %v8236 = vsel %vm1135, %v8231, %v8235
        %v8238 = vshrl.u32 %v8021, 16
        %v8240 = vrot.slane %v8238, 4
        %v8241 = vshll.u32 %v8021, 16
        %v8243 = vrot.slane %v8241, 5
        %v8244 = vor.u32 %v8240, %v8243
        %v8245 = vrot.slane %v8244, 4
        %v8247 = vshll.u32 %v8022, 16
        %v8249 = vrot.slane %v8247, 5
        %v8250 = vsel %vm1135, %v8245, %v8249
        %v8251 = vshrl.u32 %v8022, 16
        %v8253 = vrot.slane %v8251, 4
        %v8254 = vor.u32 %v8253, %v8249
        %v8255 = vrot.slane %v8254, 4
        %v8257 = vshll.u32 %v8023, 16
        %v8259 = vrot.slane %v8257, 5
        %v8260 = vsel %vm1135, %v8255, %v8259
        %v8262 = vshrl.u32 %v8024, 16
        %v8264 = vrot.slane %v8262, 4
        %v8265 = vshll.u32 %v8024, 16
        %v8267 = vrot.slane %v8265, 5
        %v8268 = vor.u32 %v8264, %v8267
        %v8269 = vrot.slane %v8268, 4
        %v8271 = vshll.u32 %v8025, 16
        %v8273 = vrot.slane %v8271, 5
        %v8274 = vsel %vm1135, %v8269, %v8273
        %v8275 = vshrl.u32 %v8025, 16
        %v8277 = vrot.slane %v8275, 4
        %v8278 = vor.u32 %v8277, %v8273
        %v8279 = vrot.slane %v8278, 4
        %v8281 = vshll.u32 %v8026, 16
        %v8283 = vrot.slane %v8281, 5
        %v8284 = vsel %vm1135, %v8279, %v8283
        %v8286 = vshrl.u32 %v8027, 16
        %v8288 = vrot.slane %v8286, 4
        %v8289 = vshll.u32 %v8027, 16
        %v8291 = vrot.slane %v8289, 5
        %v8292 = vor.u32 %v8288, %v8291
        %v8293 = vrot.slane %v8292, 4
        %v8295 = vshll.u32 %v8028, 16
        %v8297 = vrot.slane %v8295, 5
        %v8298 = vsel %vm1135, %v8293, %v8297
        %v8299 = vshrl.u32 %v8028, 16
        %v8301 = vrot.slane %v8299, 4
        %v8302 = vor.u32 %v8301, %v8297
        %v8303 = vrot.slane %v8302, 4
        %v8305 = vshll.u32 %v8029, 16
        %v8307 = vrot.slane %v8305, 5
        %v8308 = vsel %vm1135, %v8303, %v8307
        %v8310 = vshrl.u32 %v8030, 16
        %v8312 = vrot.slane %v8310, 4
        %v8313 = vshll.u32 %v8030, 16
        %v8315 = vrot.slane %v8313, 5
        %v8316 = vor.u32 %v8312, %v8315
        %v8317 = vrot.slane %v8316, 4
        %v8319 = vshll.u32 %v8031, 16
        %v8321 = vrot.slane %v8319, 5
        %v8322 = vsel %vm1135, %v8317, %v8321
        %v8323 = vshrl.u32 %v8031, 16
        %v8325 = vrot.slane %v8323, 4
        %v8326 = vor.u32 %v8325, %v8321
        %v8327 = vrot.slane %v8326, 4
        %v8329 = vshll.u32 %v8032, 16
        %v8331 = vrot.slane %v8329, 5
        %v8332 = vsel %vm1135, %v8327, %v8331
        %v8334 = vshrl.u32 %v8033, 16
        %v8336 = vrot.slane %v8334, 4
        %v8337 = vshll.u32 %v8033, 16
        %v8339 = vrot.slane %v8337, 5
        %v8340 = vor.u32 %v8336, %v8339
        %v8341 = vrot.slane %v8340, 4
        %v8343 = vshll.u32 %v8034, 16
        %v8345 = vrot.slane %v8343, 5
        %v8346 = vsel %vm1135, %v8341, %v8345
        %v8347 = vshrl.u32 %v8034, 16
        %v8349 = vrot.slane %v8347, 4
        %v8350 = vor.u32 %v8349, %v8345
        %v8351 = vrot.slane %v8350, 4
        %v8353 = vshll.u32 %v8035, 16
        %v8355 = vrot.slane %v8353, 5
        %v8356 = vsel %vm1135, %v8351, %v8355
        %v8358 = vshrl.u32 %v8036, 16
        %v8360 = vrot.slane %v8358, 4
        %v8361 = vshll.u32 %v8036, 16
        %v8363 = vrot.slane %v8361, 5
        %v8364 = vor.u32 %v8360, %v8363
        %v8365 = vrot.slane %v8364, 4
        %v8367 = vshll.u32 %v8037, 16
        %v8369 = vrot.slane %v8367, 5
        %v8370 = vsel %vm1135, %v8365, %v8369
        %v8371 = vshrl.u32 %v8037, 16
        %v8373 = vrot.slane %v8371, 4
        %v8374 = vor.u32 %v8373, %v8369
        %v8375 = vrot.slane %v8374, 4
        %v8377 = vshll.u32 %v8038, 16
        %v8379 = vrot.slane %v8377, 5
        %v8380 = vsel %vm1135, %v8375, %v8379
        %v8382 = vshrl.u32 %v8039, 16
        %v8384 = vrot.slane %v8382, 4
        %v8385 = vshll.u32 %v8039, 16
        %v8387 = vrot.slane %v8385, 5
        %v8388 = vor.u32 %v8384, %v8387
        %v8389 = vrot.slane %v8388, 4
        %v8391 = vshll.u32 %v8040, 16
        %v8393 = vrot.slane %v8391, 5
        %v8394 = vsel %vm1135, %v8389, %v8393
        %v8395 = vshrl.u32 %v8040, 16
        %v8397 = vrot.slane %v8395, 4
        %v8398 = vor.u32 %v8397, %v8393
        %v8399 = vrot.slane %v8398, 4
        %v8401 = vshll.u32 %v8041, 16
        %v8403 = vrot.slane %v8401, 5
        %v8404 = vsel %vm1135, %v8399, %v8403
        %v8406 = vshrl.u32 %v8042, 16
        %v8408 = vrot.slane %v8406, 4
        %v8409 = vshll.u32 %v8042, 16
        %v8411 = vrot.slane %v8409, 5
        %v8412 = vor.u32 %v8408, %v8411
        %v8413 = vrot.slane %v8412, 4
        %v8415 = vshll.u32 %v8043, 16
        %v8417 = vrot.slane %v8415, 5
        %v8418 = vsel %vm1135, %v8413, %v8417
        %v8419 = vshrl.u32 %v8043, 16
        %v8421 = vrot.slane %v8419, 4
        %v8422 = vor.u32 %v8421, %v8417
        %v8423 = vrot.slane %v8422, 4
        %v8425 = vshll.u32 %v8044, 16
        %v8427 = vrot.slane %v8425, 5
        %v8428 = vsel %vm1135, %v8423, %v8427
        %s8429 = scalar_lea.vmem [#allocation9], 256
        %v8430 = vld [vmem:[%s8429] sm:$0xf]
        %v8431 = vld [vmem:[%s8429 + $0x4] sm:$0xf]
        %v8432 = vld [vmem:[%s8429 + $0x8] sm:$0xf]
        %v8433 = vld [vmem:[%s8429 + $0xc] sm:$0xf]
        %v8434 = vld [vmem:[%s8429 + $0x10] sm:$0xf]
        %v8435 = vld [vmem:[%s8429 + $0x14] sm:$0xf]
        %v8436 = vld [vmem:[%s8429 + $0x18] sm:$0xf]
        %v8437 = vld [vmem:[%s8429 + $0x1c] sm:$0xf]
        %v8438 = vld [vmem:[%s8429 + $0x20] sm:$0xf]
        %v8439 = vld [vmem:[%s8429 + $0x24] sm:$0xf]
        %v8440 = vld [vmem:[%s8429 + $0x28] sm:$0xf]
        %v8441 = vld [vmem:[%s8429 + $0x2c] sm:$0xf]
        %v8442 = vld [vmem:[%s8429 + $0x30] sm:$0xf]
        %v8443 = vld [vmem:[%s8429 + $0x34] sm:$0xf]
        %v8444 = vld [vmem:[%s8429 + $0x38] sm:$0xf]
        %v8445 = vld [vmem:[%s8429 + $0x3c] sm:$0xf]
        %v8446 = vunpack.c.l.b16 %v8058
        %v8447 = vunpack.c.l.b16 %v8068
        %v8448 = vunpack.c.l.b16 %v8082
        %v8449 = vunpack.c.l.b16 %v8092
        %v8450 = vunpack.c.l.b16 %v8106
        %v8451 = vunpack.c.l.b16 %v8116
        %v8452 = vunpack.c.l.b16 %v8130
        %v8453 = vunpack.c.l.b16 %v8140
        %v8454 = vunpack.c.l.b16 %v8154
        %v8455 = vunpack.c.l.b16 %v8164
        %v8456 = vunpack.c.l.b16 %v8178
        %v8457 = vunpack.c.l.b16 %v8188
        %v8458 = vunpack.c.l.b16 %v8202
        %v8459 = vunpack.c.l.b16 %v8212
        %v8460 = vunpack.c.l.b16 %v8226
        %v8461 = vunpack.c.l.b16 %v8236
        %v8462 = vunpack.c.l.b16 %v8250
        %v8463 = vunpack.c.l.b16 %v8260
        %v8464 = vunpack.c.l.b16 %v8274
        %v8465 = vunpack.c.l.b16 %v8284
        %v8466 = vunpack.c.l.b16 %v8298
        %v8467 = vunpack.c.l.b16 %v8308
        %v8468 = vunpack.c.l.b16 %v8322
        %v8469 = vunpack.c.l.b16 %v8332
        %v8470 = vunpack.c.l.b16 %v8346
        %v8471 = vunpack.c.l.b16 %v8356
        %v8472 = vunpack.c.l.b16 %v8370
        %v8473 = vunpack.c.l.b16 %v8380
        %v8474 = vunpack.c.l.b16 %v8394
        %v8475 = vunpack.c.l.b16 %v8404
        %v8476 = vunpack.c.l.b16 %v8418
        %v8477 = vunpack.c.l.b16 %v8428
        %v8478 = vpack.c.b16 %v8447, %v8446
        %v8479 = vpack.c.b16 %v8449, %v8448
        %v8480 = vpack.c.b16 %v8451, %v8450
        %v8481 = vpack.c.b16 %v8453, %v8452
        %v8482 = vpack.c.b16 %v8455, %v8454
        %v8483 = vpack.c.b16 %v8457, %v8456
        %v8484 = vpack.c.b16 %v8459, %v8458
        %v8485 = vpack.c.b16 %v8461, %v8460
        %v8486 = vpack.c.b16 %v8463, %v8462
        %v8487 = vpack.c.b16 %v8465, %v8464
        %v8488 = vpack.c.b16 %v8467, %v8466
        %v8489 = vpack.c.b16 %v8469, %v8468
        %v8490 = vpack.c.b16 %v8471, %v8470
        %v8491 = vpack.c.b16 %v8473, %v8472
        %v8492 = vpack.c.b16 %v8475, %v8474
        %v8493 = vpack.c.b16 %v8477, %v8476
        %v8526 = vunpack.c.l.b16 %v8430
        %v8527 = vunpack.c.l.b16 %v8431
        %v8528 = vunpack.c.l.b16 %v8432
        %v8529 = vunpack.c.l.b16 %v8433
        %v8530 = vunpack.c.l.b16 %v8434
        %v8531 = vunpack.c.l.b16 %v8435
        %v8532 = vunpack.c.l.b16 %v8436
        %v8533 = vunpack.c.l.b16 %v8437
        %v8534 = vunpack.c.l.b16 %v8438
        %v8535 = vunpack.c.l.b16 %v8439
        %v8536 = vunpack.c.l.b16 %v8440
        %v8537 = vunpack.c.l.b16 %v8441
        %v8538 = vunpack.c.l.b16 %v8442
        %v8539 = vunpack.c.l.b16 %v8443
        %v8540 = vunpack.c.l.b16 %v8444
        %v8541 = vunpack.c.l.b16 %v8445
        %v8542 = vpack.c.b16 %v8527, %v8526
        %v8543 = vpack.c.b16 %v8529, %v8528
        %v8544 = vpack.c.b16 %v8531, %v8530
        %v8545 = vpack.c.b16 %v8533, %v8532
        %v8546 = vpack.c.b16 %v8535, %v8534
        %v8547 = vpack.c.b16 %v8537, %v8536
        %v8548 = vpack.c.b16 %v8539, %v8538
        %v8549 = vpack.c.b16 %v8541, %v8540
        %8558 = vmatpush.bf16.msra.mxu0 %v8549
        %8559 = vmatpush.bf16.msra.mxu0 %v8548
        %8560 = vmatpush.bf16.msra.mxu0 %v8547
        %8561 = vmatpush.bf16.msra.mxu0 %v8546
        %8562 = vmatpush.bf16.msra.mxu0 %v8545
        %8563 = vmatpush.bf16.msra.mxu0 %v8544
        %8564 = vmatpush.bf16.msra.mxu0 %v8543
        %8565 = vmatpush.bf16.msra.mxu0 %v8542
        %8566 = vmatmul.bf16.gmra.mxu0 %v8478
        %v8567 = vpop.f32.mrf.mxu0
        %v8568 = vadd.f32 0.0, %v8567
        %v8569 = vpop.f32.mrf.mxu0
        %v8570 = vadd.f32 0.0, %v8569
        %8571 = vmatmul.bf16.gmra.mxu0 %v8479
        %v8572 = vpop.f32.mrf.mxu0
        %v8573 = vadd.f32 0.0, %v8572
        %v8574 = vpop.f32.mrf.mxu0
        %v8575 = vadd.f32 0.0, %v8574
        %8576 = vmatmul.bf16.gmra.mxu0 %v8480
        %v8577 = vpop.f32.mrf.mxu0
        %v8578 = vadd.f32 0.0, %v8577
        %v8579 = vpop.f32.mrf.mxu0
        %v8580 = vadd.f32 0.0, %v8579
        %8581 = vmatmul.bf16.gmra.mxu0 %v8481
        %v8582 = vpop.f32.mrf.mxu0
        %v8583 = vadd.f32 0.0, %v8582
        %v8584 = vpop.f32.mrf.mxu0
        %v8585 = vadd.f32 0.0, %v8584
        %8586 = vmatmul.bf16.gmra.mxu0 %v8482
        %v8587 = vpop.f32.mrf.mxu0
        %v8588 = vadd.f32 0.0, %v8587
        %v8589 = vpop.f32.mrf.mxu0
        %v8590 = vadd.f32 0.0, %v8589
        %8591 = vmatmul.bf16.gmra.mxu0 %v8483
        %v8592 = vpop.f32.mrf.mxu0
        %v8593 = vadd.f32 0.0, %v8592
        %v8594 = vpop.f32.mrf.mxu0
        %v8595 = vadd.f32 0.0, %v8594
        %8596 = vmatmul.bf16.gmra.mxu0 %v8484
        %v8597 = vpop.f32.mrf.mxu0
        %v8598 = vadd.f32 0.0, %v8597
        %v8599 = vpop.f32.mrf.mxu0
        %v8600 = vadd.f32 0.0, %v8599
        %8601 = vmatmul.bf16.gmra.mxu0 %v8485
        %v8602 = vpop.f32.mrf.mxu0
        %v8603 = vadd.f32 0.0, %v8602
        %v8604 = vpop.f32.mrf.mxu0
        %v8605 = vadd.f32 0.0, %v8604
        %8606 = vmatmul.bf16.gmra.mxu0 %v8486
        %v8607 = vpop.f32.mrf.mxu0
        %v8608 = vadd.f32 0.0, %v8607
        %v8609 = vpop.f32.mrf.mxu0
        %v8610 = vadd.f32 0.0, %v8609
        %8611 = vmatmul.bf16.gmra.mxu0 %v8487
        %v8612 = vpop.f32.mrf.mxu0
        %v8613 = vadd.f32 0.0, %v8612
        %v8614 = vpop.f32.mrf.mxu0
        %v8615 = vadd.f32 0.0, %v8614
        %8616 = vmatmul.bf16.gmra.mxu0 %v8488
        %v8617 = vpop.f32.mrf.mxu0
        %v8618 = vadd.f32 0.0, %v8617
        %v8619 = vpop.f32.mrf.mxu0
        %v8620 = vadd.f32 0.0, %v8619
        %8621 = vmatmul.bf16.gmra.mxu0 %v8489
        %v8622 = vpop.f32.mrf.mxu0
        %v8623 = vadd.f32 0.0, %v8622
        %v8624 = vpop.f32.mrf.mxu0
        %v8625 = vadd.f32 0.0, %v8624
        %8626 = vmatmul.bf16.gmra.mxu0 %v8490
        %v8627 = vpop.f32.mrf.mxu0
        %v8628 = vadd.f32 0.0, %v8627
        %v8629 = vpop.f32.mrf.mxu0
        %v8630 = vadd.f32 0.0, %v8629
        %8631 = vmatmul.bf16.gmra.mxu0 %v8491
        %v8632 = vpop.f32.mrf.mxu0
        %v8633 = vadd.f32 0.0, %v8632
        %v8634 = vpop.f32.mrf.mxu0
        %v8635 = vadd.f32 0.0, %v8634
        %8636 = vmatmul.bf16.gmra.mxu0 %v8492
        %v8637 = vpop.f32.mrf.mxu0
        %v8638 = vadd.f32 0.0, %v8637
        %v8639 = vpop.f32.mrf.mxu0
        %v8640 = vadd.f32 0.0, %v8639
        %8641 = vmatmul.bf16.gmra.mxu0 %v8493
        %v8642 = vpop.f32.mrf.mxu0
        %v8643 = vadd.f32 0.0, %v8642
        %v8644 = vpop.f32.mrf.mxu0
        %v8645 = vadd.f32 0.0, %v8644
        %8646 = vdwg.mxu0
        %v8647 = vadd.f32 %v7965, %v8568
        %v8648 = vadd.f32 %v7966, %v8570
        %v8649 = vadd.f32 %v7967, %v8573
        %v8650 = vadd.f32 %v7968, %v8575
        %v8651 = vadd.f32 %v7969, %v8578
        %v8652 = vadd.f32 %v7970, %v8580
        %v8653 = vadd.f32 %v7971, %v8583
        %v8654 = vadd.f32 %v7972, %v8585
        %v8655 = vadd.f32 %v7973, %v8588
        %v8656 = vadd.f32 %v7974, %v8590
        %v8657 = vadd.f32 %v7975, %v8593
        %v8658 = vadd.f32 %v7976, %v8595
        %v8659 = vadd.f32 %v7977, %v8598
        %v8660 = vadd.f32 %v7978, %v8600
        %v8661 = vadd.f32 %v7979, %v8603
        %v8662 = vadd.f32 %v7980, %v8605
        %v8663 = vadd.f32 %v7981, %v8608
        %v8664 = vadd.f32 %v7982, %v8610
        %v8665 = vadd.f32 %v7983, %v8613
        %v8666 = vadd.f32 %v7984, %v8615
        %v8667 = vadd.f32 %v7985, %v8618
        %v8668 = vadd.f32 %v7986, %v8620
        %v8669 = vadd.f32 %v7987, %v8623
        %v8670 = vadd.f32 %v7988, %v8625
        %v8671 = vadd.f32 %v7989, %v8628
        %v8672 = vadd.f32 %v7990, %v8630
        %v8673 = vadd.f32 %v7991, %v8633
        %v8674 = vadd.f32 %v7992, %v8635
        %v8675 = vadd.f32 %v7993, %v8638
        %v8676 = vadd.f32 %v7994, %v8640
        %v8677 = vadd.f32 %v7995, %v8643
        %v8678 = vadd.f32 %v7996, %v8645
        %v8679 = vld [vmem:[%s6261] sm:$0xe]
        %v8680 = vld [vmem:[%s6261 + $0xc] sm:$0xe]
        %v8681 = vld [vmem:[%s6261 + $0x18] sm:$0xe]
        %v8682 = vld [vmem:[%s6261 + $0x24] sm:$0xe]
        %v8683 = vld [vmem:[%s6261 + $0x30] sm:$0xe]
        %v8684 = vld [vmem:[%s6261 + $0x3c] sm:$0xe]
        %v8685 = vld [vmem:[%s6261 + $0x48] sm:$0xe]
        %v8686 = vld [vmem:[%s6261 + $0x54] sm:$0xe]
        %v8687 = vld [vmem:[%s6261 + $0x60] sm:$0xe]
        %v8688 = vld [vmem:[%s6261 + $0x6c] sm:$0xe]
        %v8689 = vld [vmem:[%s6261 + $0x78] sm:$0xe]
        %v8690 = vld [vmem:[%s6261 + $0x84] sm:$0xe]
        %v8691 = vld [vmem:[%s6261 + $0x90] sm:$0xe]
        %v8692 = vld [vmem:[%s6261 + $0x9c] sm:$0xe]
        %v8693 = vld [vmem:[%s6261 + $0xa8] sm:$0xe]
        %v8694 = vld [vmem:[%s6261 + $0xb4] sm:$0xe]
        %v8743 = vrot.slane %v8679, 5
        %v8744 = vrot.slane %v8743, 4
        %v8745 = vrot.slane %v7998, 5
        %v8746 = vsel %vm2021, %v8744, %v8745
        %v8747 = vrot.slane %v8745, 4
        %v8748 = vrot.slane %v7999, 5
        %v8749 = vsel %vm2021, %v8747, %v8748
        %v8750 = vrot.slane %v8680, 5
        %v8751 = vrot.slane %v8750, 4
        %v8752 = vrot.slane %v8001, 5
        %v8753 = vsel %vm2021, %v8751, %v8752
        %v8754 = vrot.slane %v8752, 4
        %v8755 = vrot.slane %v8002, 5
        %v8756 = vsel %vm2021, %v8754, %v8755
        %v8757 = vrot.slane %v8681, 5
        %v8758 = vrot.slane %v8757, 4
        %v8759 = vrot.slane %v8004, 5
        %v8760 = vsel %vm2021, %v8758, %v8759
        %v8761 = vrot.slane %v8759, 4
        %v8762 = vrot.slane %v8005, 5
        %v8763 = vsel %vm2021, %v8761, %v8762
        %v8764 = vrot.slane %v8682, 5
        %v8765 = vrot.slane %v8764, 4
        %v8766 = vrot.slane %v8007, 5
        %v8767 = vsel %vm2021, %v8765, %v8766
        %v8768 = vrot.slane %v8766, 4
        %v8769 = vrot.slane %v8008, 5
        %v8770 = vsel %vm2021, %v8768, %v8769
        %v8771 = vrot.slane %v8683, 5
        %v8772 = vrot.slane %v8771, 4
        %v8773 = vrot.slane %v8010, 5
        %v8774 = vsel %vm2021, %v8772, %v8773
        %v8775 = vrot.slane %v8773, 4
        %v8776 = vrot.slane %v8011, 5
        %v8777 = vsel %vm2021, %v8775, %v8776
        %v8778 = vrot.slane %v8684, 5
        %v8779 = vrot.slane %v8778, 4
        %v8780 = vrot.slane %v8013, 5
        %v8781 = vsel %vm2021, %v8779, %v8780
        %v8782 = vrot.slane %v8780, 4
        %v8783 = vrot.slane %v8014, 5
        %v8784 = vsel %vm2021, %v8782, %v8783
        %v8785 = vrot.slane %v8685, 5
        %v8786 = vrot.slane %v8785, 4
        %v8787 = vrot.slane %v8016, 5
        %v8788 = vsel %vm2021, %v8786, %v8787
        %v8789 = vrot.slane %v8787, 4
        %v8790 = vrot.slane %v8017, 5
        %v8791 = vsel %vm2021, %v8789, %v8790
        %v8792 = vrot.slane %v8686, 5
        %v8793 = vrot.slane %v8792, 4
        %v8794 = vrot.slane %v8019, 5
        %v8795 = vsel %vm2021, %v8793, %v8794
        %v8796 = vrot.slane %v8794, 4
        %v8797 = vrot.slane %v8020, 5
        %v8798 = vsel %vm2021, %v8796, %v8797
        %v8799 = vrot.slane %v8687, 5
        %v8800 = vrot.slane %v8799, 4
        %v8801 = vrot.slane %v8022, 5
        %v8802 = vsel %vm2021, %v8800, %v8801
        %v8803 = vrot.slane %v8801, 4
        %v8804 = vrot.slane %v8023, 5
        %v8805 = vsel %vm2021, %v8803, %v8804
        %v8806 = vrot.slane %v8688, 5
        %v8807 = vrot.slane %v8806, 4
        %v8808 = vrot.slane %v8025, 5
        %v8809 = vsel %vm2021, %v8807, %v8808
        %v8810 = vrot.slane %v8808, 4
        %v8811 = vrot.slane %v8026, 5
        %v8812 = vsel %vm2021, %v8810, %v8811
        %v8813 = vrot.slane %v8689, 5
        %v8814 = vrot.slane %v8813, 4
        %v8815 = vrot.slane %v8028, 5
        %v8816 = vsel %vm2021, %v8814, %v8815
        %v8817 = vrot.slane %v8815, 4
        %v8818 = vrot.slane %v8029, 5
        %v8819 = vsel %vm2021, %v8817, %v8818
        %v8820 = vrot.slane %v8690, 5
        %v8821 = vrot.slane %v8820, 4
        %v8822 = vrot.slane %v8031, 5
        %v8823 = vsel %vm2021, %v8821, %v8822
        %v8824 = vrot.slane %v8822, 4
        %v8825 = vrot.slane %v8032, 5
        %v8826 = vsel %vm2021, %v8824, %v8825
        %v8827 = vrot.slane %v8691, 5
        %v8828 = vrot.slane %v8827, 4
        %v8829 = vrot.slane %v8034, 5
        %v8830 = vsel %vm2021, %v8828, %v8829
        %v8831 = vrot.slane %v8829, 4
        %v8832 = vrot.slane %v8035, 5
        %v8833 = vsel %vm2021, %v8831, %v8832
        %v8834 = vrot.slane %v8692, 5
        %v8835 = vrot.slane %v8834, 4
        %v8836 = vrot.slane %v8037, 5
        %v8837 = vsel %vm2021, %v8835, %v8836
        %v8838 = vrot.slane %v8836, 4
        %v8839 = vrot.slane %v8038, 5
        %v8840 = vsel %vm2021, %v8838, %v8839
        %v8841 = vrot.slane %v8693, 5
        %v8842 = vrot.slane %v8841, 4
        %v8843 = vrot.slane %v8040, 5
        %v8844 = vsel %vm2021, %v8842, %v8843
        %v8845 = vrot.slane %v8843, 4
        %v8846 = vrot.slane %v8041, 5
        %v8847 = vsel %vm2021, %v8845, %v8846
        %v8848 = vrot.slane %v8694, 5
        %v8849 = vrot.slane %v8848, 4
        %v8850 = vrot.slane %v8043, 5
        %v8851 = vsel %vm2021, %v8849, %v8850
        %v8852 = vrot.slane %v8850, 4
        %v8853 = vrot.slane %v8044, 5
        %v8854 = vsel %vm2021, %v8852, %v8853
        %s8855 = scalar_lea.vmem [#allocation9], 320
        %v8856 = vld [vmem:[%s8855] sm:$0xf]
        %v8857 = vld [vmem:[%s8855 + $0x4] sm:$0xf]
        %v8858 = vld [vmem:[%s8855 + $0x8] sm:$0xf]
        %v8859 = vld [vmem:[%s8855 + $0xc] sm:$0xf]
        %v8860 = vld [vmem:[%s8855 + $0x10] sm:$0xf]
        %v8861 = vld [vmem:[%s8855 + $0x14] sm:$0xf]
        %v8862 = vld [vmem:[%s8855 + $0x18] sm:$0xf]
        %v8863 = vld [vmem:[%s8855 + $0x1c] sm:$0xf]
        %v8864 = vld [vmem:[%s8855 + $0x20] sm:$0xf]
        %v8865 = vld [vmem:[%s8855 + $0x24] sm:$0xf]
        %v8866 = vld [vmem:[%s8855 + $0x28] sm:$0xf]
        %v8867 = vld [vmem:[%s8855 + $0x2c] sm:$0xf]
        %v8868 = vld [vmem:[%s8855 + $0x30] sm:$0xf]
        %v8869 = vld [vmem:[%s8855 + $0x34] sm:$0xf]
        %v8870 = vld [vmem:[%s8855 + $0x38] sm:$0xf]
        %v8871 = vld [vmem:[%s8855 + $0x3c] sm:$0xf]
        %v8872 = vunpack.c.l.b16 %v8746
        %v8873 = vunpack.c.l.b16 %v8749
        %v8874 = vunpack.c.l.b16 %v8753
        %v8875 = vunpack.c.l.b16 %v8756
        %v8876 = vunpack.c.l.b16 %v8760
        %v8877 = vunpack.c.l.b16 %v8763
        %v8878 = vunpack.c.l.b16 %v8767
        %v8879 = vunpack.c.l.b16 %v8770
        %v8880 = vunpack.c.l.b16 %v8774
        %v8881 = vunpack.c.l.b16 %v8777
        %v8882 = vunpack.c.l.b16 %v8781
        %v8883 = vunpack.c.l.b16 %v8784
        %v8884 = vunpack.c.l.b16 %v8788
        %v8885 = vunpack.c.l.b16 %v8791
        %v8886 = vunpack.c.l.b16 %v8795
        %v8887 = vunpack.c.l.b16 %v8798
        %v8888 = vunpack.c.l.b16 %v8802
        %v8889 = vunpack.c.l.b16 %v8805
        %v8890 = vunpack.c.l.b16 %v8809
        %v8891 = vunpack.c.l.b16 %v8812
        %v8892 = vunpack.c.l.b16 %v8816
        %v8893 = vunpack.c.l.b16 %v8819
        %v8894 = vunpack.c.l.b16 %v8823
        %v8895 = vunpack.c.l.b16 %v8826
        %v8896 = vunpack.c.l.b16 %v8830
        %v8897 = vunpack.c.l.b16 %v8833
        %v8898 = vunpack.c.l.b16 %v8837
        %v8899 = vunpack.c.l.b16 %v8840
        %v8900 = vunpack.c.l.b16 %v8844
        %v8901 = vunpack.c.l.b16 %v8847
        %v8902 = vunpack.c.l.b16 %v8851
        %v8903 = vunpack.c.l.b16 %v8854
        %v8904 = vpack.c.b16 %v8873, %v8872
        %v8905 = vpack.c.b16 %v8875, %v8874
        %v8906 = vpack.c.b16 %v8877, %v8876
        %v8907 = vpack.c.b16 %v8879, %v8878
        %v8908 = vpack.c.b16 %v8881, %v8880
        %v8909 = vpack.c.b16 %v8883, %v8882
        %v8910 = vpack.c.b16 %v8885, %v8884
        %v8911 = vpack.c.b16 %v8887, %v8886
        %v8912 = vpack.c.b16 %v8889, %v8888
        %v8913 = vpack.c.b16 %v8891, %v8890
        %v8914 = vpack.c.b16 %v8893, %v8892
        %v8915 = vpack.c.b16 %v8895, %v8894
        %v8916 = vpack.c.b16 %v8897, %v8896
        %v8917 = vpack.c.b16 %v8899, %v8898
        %v8918 = vpack.c.b16 %v8901, %v8900
        %v8919 = vpack.c.b16 %v8903, %v8902
        %v8952 = vunpack.c.l.b16 %v8856
        %v8953 = vunpack.c.l.b16 %v8857
        %v8954 = vunpack.c.l.b16 %v8858
        %v8955 = vunpack.c.l.b16 %v8859
        %v8956 = vunpack.c.l.b16 %v8860
        %v8957 = vunpack.c.l.b16 %v8861
        %v8958 = vunpack.c.l.b16 %v8862
        %v8959 = vunpack.c.l.b16 %v8863
        %v8960 = vunpack.c.l.b16 %v8864
        %v8961 = vunpack.c.l.b16 %v8865
        %v8962 = vunpack.c.l.b16 %v8866
        %v8963 = vunpack.c.l.b16 %v8867
        %v8964 = vunpack.c.l.b16 %v8868
        %v8965 = vunpack.c.l.b16 %v8869
        %v8966 = vunpack.c.l.b16 %v8870
        %v8967 = vunpack.c.l.b16 %v8871
        %v8968 = vpack.c.b16 %v8953, %v8952
        %v8969 = vpack.c.b16 %v8955, %v8954
        %v8970 = vpack.c.b16 %v8957, %v8956
        %v8971 = vpack.c.b16 %v8959, %v8958
        %v8972 = vpack.c.b16 %v8961, %v8960
        %v8973 = vpack.c.b16 %v8963, %v8962
        %v8974 = vpack.c.b16 %v8965, %v8964
        %v8975 = vpack.c.b16 %v8967, %v8966
        %8984 = vmatpush.bf16.msra.mxu0 %v8975
        %8985 = vmatpush.bf16.msra.mxu0 %v8974
        %8986 = vmatpush.bf16.msra.mxu0 %v8973
        %8987 = vmatpush.bf16.msra.mxu0 %v8972
        %8988 = vmatpush.bf16.msra.mxu0 %v8971
        %8989 = vmatpush.bf16.msra.mxu0 %v8970
        %8990 = vmatpush.bf16.msra.mxu0 %v8969
        %8991 = vmatpush.bf16.msra.mxu0 %v8968
        %8992 = vmatmul.bf16.gmra.mxu0 %v8904
        %v8993 = vpop.f32.mrf.mxu0
        %v8994 = vadd.f32 0.0, %v8993
        %v8995 = vpop.f32.mrf.mxu0
        %v8996 = vadd.f32 0.0, %v8995
        %8997 = vmatmul.bf16.gmra.mxu0 %v8905
        %v8998 = vpop.f32.mrf.mxu0
        %v8999 = vadd.f32 0.0, %v8998
        %v9000 = vpop.f32.mrf.mxu0
        %v9001 = vadd.f32 0.0, %v9000
        %9002 = vmatmul.bf16.gmra.mxu0 %v8906
        %v9003 = vpop.f32.mrf.mxu0
        %v9004 = vadd.f32 0.0, %v9003
        %v9005 = vpop.f32.mrf.mxu0
        %v9006 = vadd.f32 0.0, %v9005
        %9007 = vmatmul.bf16.gmra.mxu0 %v8907
        %v9008 = vpop.f32.mrf.mxu0
        %v9009 = vadd.f32 0.0, %v9008
        %v9010 = vpop.f32.mrf.mxu0
        %v9011 = vadd.f32 0.0, %v9010
        %9012 = vmatmul.bf16.gmra.mxu0 %v8908
        %v9013 = vpop.f32.mrf.mxu0
        %v9014 = vadd.f32 0.0, %v9013
        %v9015 = vpop.f32.mrf.mxu0
        %v9016 = vadd.f32 0.0, %v9015
        %9017 = vmatmul.bf16.gmra.mxu0 %v8909
        %v9018 = vpop.f32.mrf.mxu0
        %v9019 = vadd.f32 0.0, %v9018
        %v9020 = vpop.f32.mrf.mxu0
        %v9021 = vadd.f32 0.0, %v9020
        %9022 = vmatmul.bf16.gmra.mxu0 %v8910
        %v9023 = vpop.f32.mrf.mxu0
        %v9024 = vadd.f32 0.0, %v9023
        %v9025 = vpop.f32.mrf.mxu0
        %v9026 = vadd.f32 0.0, %v9025
        %9027 = vmatmul.bf16.gmra.mxu0 %v8911
        %v9028 = vpop.f32.mrf.mxu0
        %v9029 = vadd.f32 0.0, %v9028
        %v9030 = vpop.f32.mrf.mxu0
        %v9031 = vadd.f32 0.0, %v9030
        %9032 = vmatmul.bf16.gmra.mxu0 %v8912
        %v9033 = vpop.f32.mrf.mxu0
        %v9034 = vadd.f32 0.0, %v9033
        %v9035 = vpop.f32.mrf.mxu0
        %v9036 = vadd.f32 0.0, %v9035
        %9037 = vmatmul.bf16.gmra.mxu0 %v8913
        %v9038 = vpop.f32.mrf.mxu0
        %v9039 = vadd.f32 0.0, %v9038
        %v9040 = vpop.f32.mrf.mxu0
        %v9041 = vadd.f32 0.0, %v9040
        %9042 = vmatmul.bf16.gmra.mxu0 %v8914
        %v9043 = vpop.f32.mrf.mxu0
        %v9044 = vadd.f32 0.0, %v9043
        %v9045 = vpop.f32.mrf.mxu0
        %v9046 = vadd.f32 0.0, %v9045
        %9047 = vmatmul.bf16.gmra.mxu0 %v8915
        %v9048 = vpop.f32.mrf.mxu0
        %v9049 = vadd.f32 0.0, %v9048
        %v9050 = vpop.f32.mrf.mxu0
        %v9051 = vadd.f32 0.0, %v9050
        %9052 = vmatmul.bf16.gmra.mxu0 %v8916
        %v9053 = vpop.f32.mrf.mxu0
        %v9054 = vadd.f32 0.0, %v9053
        %v9055 = vpop.f32.mrf.mxu0
        %v9056 = vadd.f32 0.0, %v9055
        %9057 = vmatmul.bf16.gmra.mxu0 %v8917
        %v9058 = vpop.f32.mrf.mxu0
        %v9059 = vadd.f32 0.0, %v9058
        %v9060 = vpop.f32.mrf.mxu0
        %v9061 = vadd.f32 0.0, %v9060
        %9062 = vmatmul.bf16.gmra.mxu0 %v8918
        %v9063 = vpop.f32.mrf.mxu0
        %v9064 = vadd.f32 0.0, %v9063
        %v9065 = vpop.f32.mrf.mxu0
        %v9066 = vadd.f32 0.0, %v9065
        %9067 = vmatmul.bf16.gmra.mxu0 %v8919
        %v9068 = vpop.f32.mrf.mxu0
        %v9069 = vadd.f32 0.0, %v9068
        %v9070 = vpop.f32.mrf.mxu0
        %v9071 = vadd.f32 0.0, %v9070
        %9072 = vdwg.mxu0
        %v9073 = vadd.f32 %v8647, %v8994
        %v9074 = vadd.f32 %v8648, %v8996
        %v9075 = vadd.f32 %v8649, %v8999
        %v9076 = vadd.f32 %v8650, %v9001
        %v9077 = vadd.f32 %v8651, %v9004
        %v9078 = vadd.f32 %v8652, %v9006
        %v9079 = vadd.f32 %v8653, %v9009
        %v9080 = vadd.f32 %v8654, %v9011
        %v9081 = vadd.f32 %v8655, %v9014
        %v9082 = vadd.f32 %v8656, %v9016
        %v9083 = vadd.f32 %v8657, %v9019
        %v9084 = vadd.f32 %v8658, %v9021
        %v9085 = vadd.f32 %v8659, %v9024
        %v9086 = vadd.f32 %v8660, %v9026
        %v9087 = vadd.f32 %v8661, %v9029
        %v9088 = vadd.f32 %v8662, %v9031
        %v9089 = vadd.f32 %v8663, %v9034
        %v9090 = vadd.f32 %v8664, %v9036
        %v9091 = vadd.f32 %v8665, %v9039
        %v9092 = vadd.f32 %v8666, %v9041
        %v9093 = vadd.f32 %v8667, %v9044
        %v9094 = vadd.f32 %v8668, %v9046
        %v9095 = vadd.f32 %v8669, %v9049
        %v9096 = vadd.f32 %v8670, %v9051
        %v9097 = vadd.f32 %v8671, %v9054
        %v9098 = vadd.f32 %v8672, %v9056
        %v9099 = vadd.f32 %v8673, %v9059
        %v9100 = vadd.f32 %v8674, %v9061
        %v9101 = vadd.f32 %v8675, %v9064
        %v9102 = vadd.f32 %v8676, %v9066
        %v9103 = vadd.f32 %v8677, %v9069
        %v9104 = vadd.f32 %v8678, %v9071
        %s9105 = scalar_lea.vmem [#allocation3], 24
        %v9106 = vld [vmem:[%s9105] sm:$0xf]
        %v9107 = vld [vmem:[%s9105 + $0x4] sm:$0xf]
        %v9108 = vld [vmem:[%s9105 + $0xc] sm:$0xf]
        %v9109 = vld [vmem:[%s9105 + $0x10] sm:$0xf]
        %v9110 = vld [vmem:[%s9105 + $0x18] sm:$0xf]
        %v9111 = vld [vmem:[%s9105 + $0x1c] sm:$0xf]
        %v9112 = vld [vmem:[%s9105 + $0x24] sm:$0xf]
        %v9113 = vld [vmem:[%s9105 + $0x28] sm:$0xf]
        %v9114 = vld [vmem:[%s9105 + $0x30] sm:$0xf]
        %v9115 = vld [vmem:[%s9105 + $0x34] sm:$0xf]
        %v9116 = vld [vmem:[%s9105 + $0x3c] sm:$0xf]
        %v9117 = vld [vmem:[%s9105 + $0x40] sm:$0xf]
        %v9118 = vld [vmem:[%s9105 + $0x48] sm:$0xf]
        %v9119 = vld [vmem:[%s9105 + $0x4c] sm:$0xf]
        %v9120 = vld [vmem:[%s9105 + $0x54] sm:$0xf]
        %v9121 = vld [vmem:[%s9105 + $0x58] sm:$0xf]
        %v9122 = vld [vmem:[%s9105 + $0x60] sm:$0xf]
        %v9123 = vld [vmem:[%s9105 + $0x64] sm:$0xf]
        %v9124 = vld [vmem:[%s9105 + $0x6c] sm:$0xf]
        %v9125 = vld [vmem:[%s9105 + $0x70] sm:$0xf]
        %v9126 = vld [vmem:[%s9105 + $0x78] sm:$0xf]
        %v9127 = vld [vmem:[%s9105 + $0x7c] sm:$0xf]
        %v9128 = vld [vmem:[%s9105 + $0x84] sm:$0xf]
        %v9129 = vld [vmem:[%s9105 + $0x88] sm:$0xf]
        %v9130 = vld [vmem:[%s9105 + $0x90] sm:$0xf]
        %v9131 = vld [vmem:[%s9105 + $0x94] sm:$0xf]
        %v9132 = vld [vmem:[%s9105 + $0x9c] sm:$0xf]
        %v9133 = vld [vmem:[%s9105 + $0xa0] sm:$0xf]
        %v9134 = vld [vmem:[%s9105 + $0xa8] sm:$0xf]
        %v9135 = vld [vmem:[%s9105 + $0xac] sm:$0xf]
        %v9136 = vld [vmem:[%s9105 + $0xb4] sm:$0xf]
        %v9137 = vld [vmem:[%s9105 + $0xb8] sm:$0xf]
        %s9138 = scalar_lea.vmem [#allocation9], 384
        %v9139 = vld [vmem:[%s9138] sm:$0xf]
        %v9140 = vld [vmem:[%s9138 + $0x4] sm:$0xf]
        %v9141 = vld [vmem:[%s9138 + $0x8] sm:$0xf]
        %v9142 = vld [vmem:[%s9138 + $0xc] sm:$0xf]
        %v9143 = vld [vmem:[%s9138 + $0x10] sm:$0xf]
        %v9144 = vld [vmem:[%s9138 + $0x14] sm:$0xf]
        %v9145 = vld [vmem:[%s9138 + $0x18] sm:$0xf]
        %v9146 = vld [vmem:[%s9138 + $0x1c] sm:$0xf]
        %v9147 = vld [vmem:[%s9138 + $0x20] sm:$0xf]
        %v9148 = vld [vmem:[%s9138 + $0x24] sm:$0xf]
        %v9149 = vld [vmem:[%s9138 + $0x28] sm:$0xf]
        %v9150 = vld [vmem:[%s9138 + $0x2c] sm:$0xf]
        %v9151 = vld [vmem:[%s9138 + $0x30] sm:$0xf]
        %v9152 = vld [vmem:[%s9138 + $0x34] sm:$0xf]
        %v9153 = vld [vmem:[%s9138 + $0x38] sm:$0xf]
        %v9154 = vld [vmem:[%s9138 + $0x3c] sm:$0xf]
        %v9187 = vunpack.c.l.b16 %v9106
        %v9188 = vunpack.c.l.b16 %v9107
        %v9189 = vunpack.c.l.b16 %v9108
        %v9190 = vunpack.c.l.b16 %v9109
        %v9191 = vunpack.c.l.b16 %v9110
        %v9192 = vunpack.c.l.b16 %v9111
        %v9193 = vunpack.c.l.b16 %v9112
        %v9194 = vunpack.c.l.b16 %v9113
        %v9195 = vunpack.c.l.b16 %v9114
        %v9196 = vunpack.c.l.b16 %v9115
        %v9197 = vunpack.c.l.b16 %v9116
        %v9198 = vunpack.c.l.b16 %v9117
        %v9199 = vunpack.c.l.b16 %v9118
        %v9200 = vunpack.c.l.b16 %v9119
        %v9201 = vunpack.c.l.b16 %v9120
        %v9202 = vunpack.c.l.b16 %v9121
        %v9203 = vunpack.c.l.b16 %v9122
        %v9204 = vunpack.c.l.b16 %v9123
        %v9205 = vunpack.c.l.b16 %v9124
        %v9206 = vunpack.c.l.b16 %v9125
        %v9207 = vunpack.c.l.b16 %v9126
        %v9208 = vunpack.c.l.b16 %v9127
        %v9209 = vunpack.c.l.b16 %v9128
        %v9210 = vunpack.c.l.b16 %v9129
        %v9211 = vunpack.c.l.b16 %v9130
        %v9212 = vunpack.c.l.b16 %v9131
        %v9213 = vunpack.c.l.b16 %v9132
        %v9214 = vunpack.c.l.b16 %v9133
        %v9215 = vunpack.c.l.b16 %v9134
        %v9216 = vunpack.c.l.b16 %v9135
        %v9217 = vunpack.c.l.b16 %v9136
        %v9218 = vunpack.c.l.b16 %v9137
        %v9219 = vpack.c.b16 %v9188, %v9187
        %v9220 = vpack.c.b16 %v9190, %v9189
        %v9221 = vpack.c.b16 %v9192, %v9191
        %v9222 = vpack.c.b16 %v9194, %v9193
        %v9223 = vpack.c.b16 %v9196, %v9195
        %v9224 = vpack.c.b16 %v9198, %v9197
        %v9225 = vpack.c.b16 %v9200, %v9199
        %v9226 = vpack.c.b16 %v9202, %v9201
        %v9227 = vpack.c.b16 %v9204, %v9203
        %v9228 = vpack.c.b16 %v9206, %v9205
        %v9229 = vpack.c.b16 %v9208, %v9207
        %v9230 = vpack.c.b16 %v9210, %v9209
        %v9231 = vpack.c.b16 %v9212, %v9211
        %v9232 = vpack.c.b16 %v9214, %v9213
        %v9233 = vpack.c.b16 %v9216, %v9215
        %v9234 = vpack.c.b16 %v9218, %v9217
        %v9267 = vunpack.c.l.b16 %v9139
        %v9268 = vunpack.c.l.b16 %v9140
        %v9269 = vunpack.c.l.b16 %v9141
        %v9270 = vunpack.c.l.b16 %v9142
        %v9271 = vunpack.c.l.b16 %v9143
        %v9272 = vunpack.c.l.b16 %v9144
        %v9273 = vunpack.c.l.b16 %v9145
        %v9274 = vunpack.c.l.b16 %v9146
        %v9275 = vunpack.c.l.b16 %v9147
        %v9276 = vunpack.c.l.b16 %v9148
        %v9277 = vunpack.c.l.b16 %v9149
        %v9278 = vunpack.c.l.b16 %v9150
        %v9279 = vunpack.c.l.b16 %v9151
        %v9280 = vunpack.c.l.b16 %v9152
        %v9281 = vunpack.c.l.b16 %v9153
        %v9282 = vunpack.c.l.b16 %v9154
        %v9283 = vpack.c.b16 %v9268, %v9267
        %v9284 = vpack.c.b16 %v9270, %v9269
        %v9285 = vpack.c.b16 %v9272, %v9271
        %v9286 = vpack.c.b16 %v9274, %v9273
        %v9287 = vpack.c.b16 %v9276, %v9275
        %v9288 = vpack.c.b16 %v9278, %v9277
        %v9289 = vpack.c.b16 %v9280, %v9279
        %v9290 = vpack.c.b16 %v9282, %v9281
        %9299 = vmatpush.bf16.msra.mxu0 %v9290
        %9300 = vmatpush.bf16.msra.mxu0 %v9289
        %9301 = vmatpush.bf16.msra.mxu0 %v9288
        %9302 = vmatpush.bf16.msra.mxu0 %v9287
        %9303 = vmatpush.bf16.msra.mxu0 %v9286
        %9304 = vmatpush.bf16.msra.mxu0 %v9285
        %9305 = vmatpush.bf16.msra.mxu0 %v9284
        %9306 = vmatpush.bf16.msra.mxu0 %v9283
        %9307 = vmatmul.bf16.gmra.mxu0 %v9219
        %v9308 = vpop.f32.mrf.mxu0
        %v9309 = vadd.f32 0.0, %v9308
        %v9310 = vpop.f32.mrf.mxu0
        %v9311 = vadd.f32 0.0, %v9310
        %9312 = vmatmul.bf16.gmra.mxu0 %v9220
        %v9313 = vpop.f32.mrf.mxu0
        %v9314 = vadd.f32 0.0, %v9313
        %v9315 = vpop.f32.mrf.mxu0
        %v9316 = vadd.f32 0.0, %v9315
        %9317 = vmatmul.bf16.gmra.mxu0 %v9221
        %v9318 = vpop.f32.mrf.mxu0
        %v9319 = vadd.f32 0.0, %v9318
        %v9320 = vpop.f32.mrf.mxu0
        %v9321 = vadd.f32 0.0, %v9320
        %9322 = vmatmul.bf16.gmra.mxu0 %v9222
        %v9323 = vpop.f32.mrf.mxu0
        %v9324 = vadd.f32 0.0, %v9323
        %v9325 = vpop.f32.mrf.mxu0
        %v9326 = vadd.f32 0.0, %v9325
        %9327 = vmatmul.bf16.gmra.mxu0 %v9223
        %v9328 = vpop.f32.mrf.mxu0
        %v9329 = vadd.f32 0.0, %v9328
        %v9330 = vpop.f32.mrf.mxu0
        %v9331 = vadd.f32 0.0, %v9330
        %9332 = vmatmul.bf16.gmra.mxu0 %v9224
        %v9333 = vpop.f32.mrf.mxu0
        %v9334 = vadd.f32 0.0, %v9333
        %v9335 = vpop.f32.mrf.mxu0
        %v9336 = vadd.f32 0.0, %v9335
        %9337 = vmatmul.bf16.gmra.mxu0 %v9225
        %v9338 = vpop.f32.mrf.mxu0
        %v9339 = vadd.f32 0.0, %v9338
        %v9340 = vpop.f32.mrf.mxu0
        %v9341 = vadd.f32 0.0, %v9340
        %9342 = vmatmul.bf16.gmra.mxu0 %v9226
        %v9343 = vpop.f32.mrf.mxu0
        %v9344 = vadd.f32 0.0, %v9343
        %v9345 = vpop.f32.mrf.mxu0
        %v9346 = vadd.f32 0.0, %v9345
        %9347 = vmatmul.bf16.gmra.mxu0 %v9227
        %v9348 = vpop.f32.mrf.mxu0
        %v9349 = vadd.f32 0.0, %v9348
        %v9350 = vpop.f32.mrf.mxu0
        %v9351 = vadd.f32 0.0, %v9350
        %9352 = vmatmul.bf16.gmra.mxu0 %v9228
        %v9353 = vpop.f32.mrf.mxu0
        %v9354 = vadd.f32 0.0, %v9353
        %v9355 = vpop.f32.mrf.mxu0
        %v9356 = vadd.f32 0.0, %v9355
        %9357 = vmatmul.bf16.gmra.mxu0 %v9229
        %v9358 = vpop.f32.mrf.mxu0
        %v9359 = vadd.f32 0.0, %v9358
        %v9360 = vpop.f32.mrf.mxu0
        %v9361 = vadd.f32 0.0, %v9360
        %9362 = vmatmul.bf16.gmra.mxu0 %v9230
        %v9363 = vpop.f32.mrf.mxu0
        %v9364 = vadd.f32 0.0, %v9363
        %v9365 = vpop.f32.mrf.mxu0
        %v9366 = vadd.f32 0.0, %v9365
        %9367 = vmatmul.bf16.gmra.mxu0 %v9231
        %v9368 = vpop.f32.mrf.mxu0
        %v9369 = vadd.f32 0.0, %v9368
        %v9370 = vpop.f32.mrf.mxu0
        %v9371 = vadd.f32 0.0, %v9370
        %9372 = vmatmul.bf16.gmra.mxu0 %v9232
        %v9373 = vpop.f32.mrf.mxu0
        %v9374 = vadd.f32 0.0, %v9373
        %v9375 = vpop.f32.mrf.mxu0
        %v9376 = vadd.f32 0.0, %v9375
        %9377 = vmatmul.bf16.gmra.mxu0 %v9233
        %v9378 = vpop.f32.mrf.mxu0
        %v9379 = vadd.f32 0.0, %v9378
        %v9380 = vpop.f32.mrf.mxu0
        %v9381 = vadd.f32 0.0, %v9380
        %9382 = vmatmul.bf16.gmra.mxu0 %v9234
        %v9383 = vpop.f32.mrf.mxu0
        %v9384 = vadd.f32 0.0, %v9383
        %v9385 = vpop.f32.mrf.mxu0
        %v9386 = vadd.f32 0.0, %v9385
        %9387 = vdwg.mxu0
        %v9388 = vadd.f32 %v9073, %v9309
        %v9389 = vadd.f32 %v9074, %v9311
        %v9390 = vadd.f32 %v9075, %v9314
        %v9391 = vadd.f32 %v9076, %v9316
        %v9392 = vadd.f32 %v9077, %v9319
        %v9393 = vadd.f32 %v9078, %v9321
        %v9394 = vadd.f32 %v9079, %v9324
        %v9395 = vadd.f32 %v9080, %v9326
        %v9396 = vadd.f32 %v9081, %v9329
        %v9397 = vadd.f32 %v9082, %v9331
        %v9398 = vadd.f32 %v9083, %v9334
        %v9399 = vadd.f32 %v9084, %v9336
        %v9400 = vadd.f32 %v9085, %v9339
        %v9401 = vadd.f32 %v9086, %v9341
        %v9402 = vadd.f32 %v9087, %v9344
        %v9403 = vadd.f32 %v9088, %v9346
        %v9404 = vadd.f32 %v9089, %v9349
        %v9405 = vadd.f32 %v9090, %v9351
        %v9406 = vadd.f32 %v9091, %v9354
        %v9407 = vadd.f32 %v9092, %v9356
        %v9408 = vadd.f32 %v9093, %v9359
        %v9409 = vadd.f32 %v9094, %v9361
        %v9410 = vadd.f32 %v9095, %v9364
        %v9411 = vadd.f32 %v9096, %v9366
        %v9412 = vadd.f32 %v9097, %v9369
        %v9413 = vadd.f32 %v9098, %v9371
        %v9414 = vadd.f32 %v9099, %v9374
        %v9415 = vadd.f32 %v9100, %v9376
        %v9416 = vadd.f32 %v9101, %v9379
        %v9417 = vadd.f32 %v9102, %v9381
        %v9418 = vadd.f32 %v9103, %v9384
        %v9419 = vadd.f32 %v9104, %v9386
        %v9420 = vld [vmem:[%s9105] sm:$0xf]
        %v9421 = vld [vmem:[%s9105 + $0x4] sm:$0xf]
        %v9422 = vld [vmem:[%s9105 + $0x8] sm:$0x1]
        %v9423 = vld [vmem:[%s9105 + $0xc] sm:$0xf]
        %v9424 = vld [vmem:[%s9105 + $0x10] sm:$0xf]
        %v9425 = vld [vmem:[%s9105 + $0x14] sm:$0x1]
        %v9426 = vld [vmem:[%s9105 + $0x18] sm:$0xf]
        %v9427 = vld [vmem:[%s9105 + $0x1c] sm:$0xf]
        %v9428 = vld [vmem:[%s9105 + $0x20] sm:$0x1]
        %v9429 = vld [vmem:[%s9105 + $0x24] sm:$0xf]
        %v9430 = vld [vmem:[%s9105 + $0x28] sm:$0xf]
        %v9431 = vld [vmem:[%s9105 + $0x2c] sm:$0x1]
        %v9432 = vld [vmem:[%s9105 + $0x30] sm:$0xf]
        %v9433 = vld [vmem:[%s9105 + $0x34] sm:$0xf]
        %v9434 = vld [vmem:[%s9105 + $0x38] sm:$0x1]
        %v9435 = vld [vmem:[%s9105 + $0x3c] sm:$0xf]
        %v9436 = vld [vmem:[%s9105 + $0x40] sm:$0xf]
        %v9437 = vld [vmem:[%s9105 + $0x44] sm:$0x1]
        %v9438 = vld [vmem:[%s9105 + $0x48] sm:$0xf]
        %v9439 = vld [vmem:[%s9105 + $0x4c] sm:$0xf]
        %v9440 = vld [vmem:[%s9105 + $0x50] sm:$0x1]
        %v9441 = vld [vmem:[%s9105 + $0x54] sm:$0xf]
        %v9442 = vld [vmem:[%s9105 + $0x58] sm:$0xf]
        %v9443 = vld [vmem:[%s9105 + $0x5c] sm:$0x1]
        %v9444 = vld [vmem:[%s9105 + $0x60] sm:$0xf]
        %v9445 = vld [vmem:[%s9105 + $0x64] sm:$0xf]
        %v9446 = vld [vmem:[%s9105 + $0x68] sm:$0x1]
        %v9447 = vld [vmem:[%s9105 + $0x6c] sm:$0xf]
        %v9448 = vld [vmem:[%s9105 + $0x70] sm:$0xf]
        %v9449 = vld [vmem:[%s9105 + $0x74] sm:$0x1]
        %v9450 = vld [vmem:[%s9105 + $0x78] sm:$0xf]
        %v9451 = vld [vmem:[%s9105 + $0x7c] sm:$0xf]
        %v9452 = vld [vmem:[%s9105 + $0x80] sm:$0x1]
        %v9453 = vld [vmem:[%s9105 + $0x84] sm:$0xf]
        %v9454 = vld [vmem:[%s9105 + $0x88] sm:$0xf]
        %v9455 = vld [vmem:[%s9105 + $0x8c] sm:$0x1]
        %v9456 = vld [vmem:[%s9105 + $0x90] sm:$0xf]
        %v9457 = vld [vmem:[%s9105 + $0x94] sm:$0xf]
        %v9458 = vld [vmem:[%s9105 + $0x98] sm:$0x1]
        %v9459 = vld [vmem:[%s9105 + $0x9c] sm:$0xf]
        %v9460 = vld [vmem:[%s9105 + $0xa0] sm:$0xf]
        %v9461 = vld [vmem:[%s9105 + $0xa4] sm:$0x1]
        %v9462 = vld [vmem:[%s9105 + $0xa8] sm:$0xf]
        %v9463 = vld [vmem:[%s9105 + $0xac] sm:$0xf]
        %v9464 = vld [vmem:[%s9105 + $0xb0] sm:$0x1]
        %v9465 = vld [vmem:[%s9105 + $0xb4] sm:$0xf]
        %v9466 = vld [vmem:[%s9105 + $0xb8] sm:$0xf]
        %v9467 = vld [vmem:[%s9105 + $0xbc] sm:$0x1]
        %v9469 = vshrl.u32 %v9420, 16
        %v9471 = vrot.slane %v9469, 4
        %v9472 = vshll.u32 %v9420, 16
        %v9474 = vrot.slane %v9472, 5
        %v9475 = vor.u32 %v9471, %v9474
        %v9476 = vrot.slane %v9475, 4
        %v9478 = vshll.u32 %v9421, 16
        %v9480 = vrot.slane %v9478, 5
        %v9481 = vsel %vm1135, %v9476, %v9480
        %v9482 = vshrl.u32 %v9421, 16
        %v9484 = vrot.slane %v9482, 4
        %v9485 = vor.u32 %v9484, %v9480
        %v9486 = vrot.slane %v9485, 4
        %v9488 = vshll.u32 %v9422, 16
        %v9490 = vrot.slane %v9488, 5
        %v9491 = vsel %vm1135, %v9486, %v9490
        %v9493 = vshrl.u32 %v9423, 16
        %v9495 = vrot.slane %v9493, 4
        %v9496 = vshll.u32 %v9423, 16
        %v9498 = vrot.slane %v9496, 5
        %v9499 = vor.u32 %v9495, %v9498
        %v9500 = vrot.slane %v9499, 4
        %v9502 = vshll.u32 %v9424, 16
        %v9504 = vrot.slane %v9502, 5
        %v9505 = vsel %vm1135, %v9500, %v9504
        %v9506 = vshrl.u32 %v9424, 16
        %v9508 = vrot.slane %v9506, 4
        %v9509 = vor.u32 %v9508, %v9504
        %v9510 = vrot.slane %v9509, 4
        %v9512 = vshll.u32 %v9425, 16
        %v9514 = vrot.slane %v9512, 5
        %v9515 = vsel %vm1135, %v9510, %v9514
        %v9517 = vshrl.u32 %v9426, 16
        %v9519 = vrot.slane %v9517, 4
        %v9520 = vshll.u32 %v9426, 16
        %v9522 = vrot.slane %v9520, 5
        %v9523 = vor.u32 %v9519, %v9522
        %v9524 = vrot.slane %v9523, 4
        %v9526 = vshll.u32 %v9427, 16
        %v9528 = vrot.slane %v9526, 5
        %v9529 = vsel %vm1135, %v9524, %v9528
        %v9530 = vshrl.u32 %v9427, 16
        %v9532 = vrot.slane %v9530, 4
        %v9533 = vor.u32 %v9532, %v9528
        %v9534 = vrot.slane %v9533, 4
        %v9536 = vshll.u32 %v9428, 16
        %v9538 = vrot.slane %v9536, 5
        %v9539 = vsel %vm1135, %v9534, %v9538
        %v9541 = vshrl.u32 %v9429, 16
        %v9543 = vrot.slane %v9541, 4
        %v9544 = vshll.u32 %v9429, 16
        %v9546 = vrot.slane %v9544, 5
        %v9547 = vor.u32 %v9543, %v9546
        %v9548 = vrot.slane %v9547, 4
        %v9550 = vshll.u32 %v9430, 16
        %v9552 = vrot.slane %v9550, 5
        %v9553 = vsel %vm1135, %v9548, %v9552
        %v9554 = vshrl.u32 %v9430, 16
        %v9556 = vrot.slane %v9554, 4
        %v9557 = vor.u32 %v9556, %v9552
        %v9558 = vrot.slane %v9557, 4
        %v9560 = vshll.u32 %v9431, 16
        %v9562 = vrot.slane %v9560, 5
        %v9563 = vsel %vm1135, %v9558, %v9562
        %v9565 = vshrl.u32 %v9432, 16
        %v9567 = vrot.slane %v9565, 4
        %v9568 = vshll.u32 %v9432, 16
        %v9570 = vrot.slane %v9568, 5
        %v9571 = vor.u32 %v9567, %v9570
        %v9572 = vrot.slane %v9571, 4
        %v9574 = vshll.u32 %v9433, 16
        %v9576 = vrot.slane %v9574, 5
        %v9577 = vsel %vm1135, %v9572, %v9576
        %v9578 = vshrl.u32 %v9433, 16
        %v9580 = vrot.slane %v9578, 4
        %v9581 = vor.u32 %v9580, %v9576
        %v9582 = vrot.slane %v9581, 4
        %v9584 = vshll.u32 %v9434, 16
        %v9586 = vrot.slane %v9584, 5
        %v9587 = vsel %vm1135, %v9582, %v9586
        %v9589 = vshrl.u32 %v9435, 16
        %v9591 = vrot.slane %v9589, 4
        %v9592 = vshll.u32 %v9435, 16
        %v9594 = vrot.slane %v9592, 5
        %v9595 = vor.u32 %v9591, %v9594
        %v9596 = vrot.slane %v9595, 4
        %v9598 = vshll.u32 %v9436, 16
        %v9600 = vrot.slane %v9598, 5
        %v9601 = vsel %vm1135, %v9596, %v9600
        %v9602 = vshrl.u32 %v9436, 16
        %v9604 = vrot.slane %v9602, 4
        %v9605 = vor.u32 %v9604, %v9600
        %v9606 = vrot.slane %v9605, 4
        %v9608 = vshll.u32 %v9437, 16
        %v9610 = vrot.slane %v9608, 5
        %v9611 = vsel %vm1135, %v9606, %v9610
        %v9613 = vshrl.u32 %v9438, 16
        %v9615 = vrot.slane %v9613, 4
        %v9616 = vshll.u32 %v9438, 16
        %v9618 = vrot.slane %v9616, 5
        %v9619 = vor.u32 %v9615, %v9618
        %v9620 = vrot.slane %v9619, 4
        %v9622 = vshll.u32 %v9439, 16
        %v9624 = vrot.slane %v9622, 5
        %v9625 = vsel %vm1135, %v9620, %v9624
        %v9626 = vshrl.u32 %v9439, 16
        %v9628 = vrot.slane %v9626, 4
        %v9629 = vor.u32 %v9628, %v9624
        %v9630 = vrot.slane %v9629, 4
        %v9632 = vshll.u32 %v9440, 16
        %v9634 = vrot.slane %v9632, 5
        %v9635 = vsel %vm1135, %v9630, %v9634
        %v9637 = vshrl.u32 %v9441, 16
        %v9639 = vrot.slane %v9637, 4
        %v9640 = vshll.u32 %v9441, 16
        %v9642 = vrot.slane %v9640, 5
        %v9643 = vor.u32 %v9639, %v9642
        %v9644 = vrot.slane %v9643, 4
        %v9646 = vshll.u32 %v9442, 16
        %v9648 = vrot.slane %v9646, 5
        %v9649 = vsel %vm1135, %v9644, %v9648
        %v9650 = vshrl.u32 %v9442, 16
        %v9652 = vrot.slane %v9650, 4
        %v9653 = vor.u32 %v9652, %v9648
        %v9654 = vrot.slane %v9653, 4
        %v9656 = vshll.u32 %v9443, 16
        %v9658 = vrot.slane %v9656, 5
        %v9659 = vsel %vm1135, %v9654, %v9658
        %v9661 = vshrl.u32 %v9444, 16
        %v9663 = vrot.slane %v9661, 4
        %v9664 = vshll.u32 %v9444, 16
        %v9666 = vrot.slane %v9664, 5
        %v9667 = vor.u32 %v9663, %v9666
        %v9668 = vrot.slane %v9667, 4
        %v9670 = vshll.u32 %v9445, 16
        %v9672 = vrot.slane %v9670, 5
        %v9673 = vsel %vm1135, %v9668, %v9672
        %v9674 = vshrl.u32 %v9445, 16
        %v9676 = vrot.slane %v9674, 4
        %v9677 = vor.u32 %v9676, %v9672
        %v9678 = vrot.slane %v9677, 4
        %v9680 = vshll.u32 %v9446, 16
        %v9682 = vrot.slane %v9680, 5
        %v9683 = vsel %vm1135, %v9678, %v9682
        %v9685 = vshrl.u32 %v9447, 16
        %v9687 = vrot.slane %v9685, 4
        %v9688 = vshll.u32 %v9447, 16
        %v9690 = vrot.slane %v9688, 5
        %v9691 = vor.u32 %v9687, %v9690
        %v9692 = vrot.slane %v9691, 4
        %v9694 = vshll.u32 %v9448, 16
        %v9696 = vrot.slane %v9694, 5
        %v9697 = vsel %vm1135, %v9692, %v9696
        %v9698 = vshrl.u32 %v9448, 16
        %v9700 = vrot.slane %v9698, 4
        %v9701 = vor.u32 %v9700, %v9696
        %v9702 = vrot.slane %v9701, 4
        %v9704 = vshll.u32 %v9449, 16
        %v9706 = vrot.slane %v9704, 5
        %v9707 = vsel %vm1135, %v9702, %v9706
        %v9709 = vshrl.u32 %v9450, 16
        %v9711 = vrot.slane %v9709, 4
        %v9712 = vshll.u32 %v9450, 16
        %v9714 = vrot.slane %v9712, 5
        %v9715 = vor.u32 %v9711, %v9714
        %v9716 = vrot.slane %v9715, 4
        %v9718 = vshll.u32 %v9451, 16
        %v9720 = vrot.slane %v9718, 5
        %v9721 = vsel %vm1135, %v9716, %v9720
        %v9722 = vshrl.u32 %v9451, 16
        %v9724 = vrot.slane %v9722, 4
        %v9725 = vor.u32 %v9724, %v9720
        %v9726 = vrot.slane %v9725, 4
        %v9728 = vshll.u32 %v9452, 16
        %v9730 = vrot.slane %v9728, 5
        %v9731 = vsel %vm1135, %v9726, %v9730
        %v9733 = vshrl.u32 %v9453, 16
        %v9735 = vrot.slane %v9733, 4
        %v9736 = vshll.u32 %v9453, 16
        %v9738 = vrot.slane %v9736, 5
        %v9739 = vor.u32 %v9735, %v9738
        %v9740 = vrot.slane %v9739, 4
        %v9742 = vshll.u32 %v9454, 16
        %v9744 = vrot.slane %v9742, 5
        %v9745 = vsel %vm1135, %v9740, %v9744
        %v9746 = vshrl.u32 %v9454, 16
        %v9748 = vrot.slane %v9746, 4
        %v9749 = vor.u32 %v9748, %v9744
        %v9750 = vrot.slane %v9749, 4
        %v9752 = vshll.u32 %v9455, 16
        %v9754 = vrot.slane %v9752, 5
        %v9755 = vsel %vm1135, %v9750, %v9754
        %v9757 = vshrl.u32 %v9456, 16
        %v9759 = vrot.slane %v9757, 4
        %v9760 = vshll.u32 %v9456, 16
        %v9762 = vrot.slane %v9760, 5
        %v9763 = vor.u32 %v9759, %v9762
        %v9764 = vrot.slane %v9763, 4
        %v9766 = vshll.u32 %v9457, 16
        %v9768 = vrot.slane %v9766, 5
        %v9769 = vsel %vm1135, %v9764, %v9768
        %v9770 = vshrl.u32 %v9457, 16
        %v9772 = vrot.slane %v9770, 4
        %v9773 = vor.u32 %v9772, %v9768
        %v9774 = vrot.slane %v9773, 4
        %v9776 = vshll.u32 %v9458, 16
        %v9778 = vrot.slane %v9776, 5
        %v9779 = vsel %vm1135, %v9774, %v9778
        %v9781 = vshrl.u32 %v9459, 16
        %v9783 = vrot.slane %v9781, 4
        %v9784 = vshll.u32 %v9459, 16
        %v9786 = vrot.slane %v9784, 5
        %v9787 = vor.u32 %v9783, %v9786
        %v9788 = vrot.slane %v9787, 4
        %v9790 = vshll.u32 %v9460, 16
        %v9792 = vrot.slane %v9790, 5
        %v9793 = vsel %vm1135, %v9788, %v9792
        %v9794 = vshrl.u32 %v9460, 16
        %v9796 = vrot.slane %v9794, 4
        %v9797 = vor.u32 %v9796, %v9792
        %v9798 = vrot.slane %v9797, 4
        %v9800 = vshll.u32 %v9461, 16
        %v9802 = vrot.slane %v9800, 5
        %v9803 = vsel %vm1135, %v9798, %v9802
        %v9805 = vshrl.u32 %v9462, 16
        %v9807 = vrot.slane %v9805, 4
        %v9808 = vshll.u32 %v9462, 16
        %v9810 = vrot.slane %v9808, 5
        %v9811 = vor.u32 %v9807, %v9810
        %v9812 = vrot.slane %v9811, 4
        %v9814 = vshll.u32 %v9463, 16
        %v9816 = vrot.slane %v9814, 5
        %v9817 = vsel %vm1135, %v9812, %v9816
        %v9818 = vshrl.u32 %v9463, 16
        %v9820 = vrot.slane %v9818, 4
        %v9821 = vor.u32 %v9820, %v9816
        %v9822 = vrot.slane %v9821, 4
        %v9824 = vshll.u32 %v9464, 16
        %v9826 = vrot.slane %v9824, 5
        %v9827 = vsel %vm1135, %v9822, %v9826
        %v9829 = vshrl.u32 %v9465, 16
        %v9831 = vrot.slane %v9829, 4
        %v9832 = vshll.u32 %v9465, 16
        %v9834 = vrot.slane %v9832, 5
        %v9835 = vor.u32 %v9831, %v9834
        %v9836 = vrot.slane %v9835, 4
        %v9838 = vshll.u32 %v9466, 16
        %v9840 = vrot.slane %v9838, 5
        %v9841 = vsel %vm1135, %v9836, %v9840
        %v9842 = vshrl.u32 %v9466, 16
        %v9844 = vrot.slane %v9842, 4
        %v9845 = vor.u32 %v9844, %v9840
        %v9846 = vrot.slane %v9845, 4
        %v9848 = vshll.u32 %v9467, 16
        %v9850 = vrot.slane %v9848, 5
        %v9851 = vsel %vm1135, %v9846, %v9850
        %s9852 = scalar_lea.vmem [#allocation9], 448
        %v9853 = vld [vmem:[%s9852] sm:$0xf]
        %v9854 = vld [vmem:[%s9852 + $0x4] sm:$0xf]
        %v9855 = vld [vmem:[%s9852 + $0x8] sm:$0xf]
        %v9856 = vld [vmem:[%s9852 + $0xc] sm:$0xf]
        %v9857 = vld [vmem:[%s9852 + $0x10] sm:$0xf]
        %v9858 = vld [vmem:[%s9852 + $0x14] sm:$0xf]
        %v9859 = vld [vmem:[%s9852 + $0x18] sm:$0xf]
        %v9860 = vld [vmem:[%s9852 + $0x1c] sm:$0xf]
        %v9861 = vld [vmem:[%s9852 + $0x20] sm:$0xf]
        %v9862 = vld [vmem:[%s9852 + $0x24] sm:$0xf]
        %v9863 = vld [vmem:[%s9852 + $0x28] sm:$0xf]
        %v9864 = vld [vmem:[%s9852 + $0x2c] sm:$0xf]
        %v9865 = vld [vmem:[%s9852 + $0x30] sm:$0xf]
        %v9866 = vld [vmem:[%s9852 + $0x34] sm:$0xf]
        %v9867 = vld [vmem:[%s9852 + $0x38] sm:$0xf]
        %v9868 = vld [vmem:[%s9852 + $0x3c] sm:$0xf]
        %v9869 = vunpack.c.l.b16 %v9481
        %v9870 = vunpack.c.l.b16 %v9491
        %v9871 = vunpack.c.l.b16 %v9505
        %v9872 = vunpack.c.l.b16 %v9515
        %v9873 = vunpack.c.l.b16 %v9529
        %v9874 = vunpack.c.l.b16 %v9539
        %v9875 = vunpack.c.l.b16 %v9553
        %v9876 = vunpack.c.l.b16 %v9563
        %v9877 = vunpack.c.l.b16 %v9577
        %v9878 = vunpack.c.l.b16 %v9587
        %v9879 = vunpack.c.l.b16 %v9601
        %v9880 = vunpack.c.l.b16 %v9611
        %v9881 = vunpack.c.l.b16 %v9625
        %v9882 = vunpack.c.l.b16 %v9635
        %v9883 = vunpack.c.l.b16 %v9649
        %v9884 = vunpack.c.l.b16 %v9659
        %v9885 = vunpack.c.l.b16 %v9673
        %v9886 = vunpack.c.l.b16 %v9683
        %v9887 = vunpack.c.l.b16 %v9697
        %v9888 = vunpack.c.l.b16 %v9707
        %v9889 = vunpack.c.l.b16 %v9721
        %v9890 = vunpack.c.l.b16 %v9731
        %v9891 = vunpack.c.l.b16 %v9745
        %v9892 = vunpack.c.l.b16 %v9755
        %v9893 = vunpack.c.l.b16 %v9769
        %v9894 = vunpack.c.l.b16 %v9779
        %v9895 = vunpack.c.l.b16 %v9793
        %v9896 = vunpack.c.l.b16 %v9803
        %v9897 = vunpack.c.l.b16 %v9817
        %v9898 = vunpack.c.l.b16 %v9827
        %v9899 = vunpack.c.l.b16 %v9841
        %v9900 = vunpack.c.l.b16 %v9851
        %v9901 = vpack.c.b16 %v9870, %v9869
        %v9902 = vpack.c.b16 %v9872, %v9871
        %v9903 = vpack.c.b16 %v9874, %v9873
        %v9904 = vpack.c.b16 %v9876, %v9875
        %v9905 = vpack.c.b16 %v9878, %v9877
        %v9906 = vpack.c.b16 %v9880, %v9879
        %v9907 = vpack.c.b16 %v9882, %v9881
        %v9908 = vpack.c.b16 %v9884, %v9883
        %v9909 = vpack.c.b16 %v9886, %v9885
        %v9910 = vpack.c.b16 %v9888, %v9887
        %v9911 = vpack.c.b16 %v9890, %v9889
        %v9912 = vpack.c.b16 %v9892, %v9891
        %v9913 = vpack.c.b16 %v9894, %v9893
        %v9914 = vpack.c.b16 %v9896, %v9895
        %v9915 = vpack.c.b16 %v9898, %v9897
        %v9916 = vpack.c.b16 %v9900, %v9899
        %v9949 = vunpack.c.l.b16 %v9853
        %v9950 = vunpack.c.l.b16 %v9854
        %v9951 = vunpack.c.l.b16 %v9855
        %v9952 = vunpack.c.l.b16 %v9856
        %v9953 = vunpack.c.l.b16 %v9857
        %v9954 = vunpack.c.l.b16 %v9858
        %v9955 = vunpack.c.l.b16 %v9859
        %v9956 = vunpack.c.l.b16 %v9860
        %v9957 = vunpack.c.l.b16 %v9861
        %v9958 = vunpack.c.l.b16 %v9862
        %v9959 = vunpack.c.l.b16 %v9863
        %v9960 = vunpack.c.l.b16 %v9864
        %v9961 = vunpack.c.l.b16 %v9865
        %v9962 = vunpack.c.l.b16 %v9866
        %v9963 = vunpack.c.l.b16 %v9867
        %v9964 = vunpack.c.l.b16 %v9868
        %v9965 = vpack.c.b16 %v9950, %v9949
        %v9966 = vpack.c.b16 %v9952, %v9951
        %v9967 = vpack.c.b16 %v9954, %v9953
        %v9968 = vpack.c.b16 %v9956, %v9955
        %v9969 = vpack.c.b16 %v9958, %v9957
        %v9970 = vpack.c.b16 %v9960, %v9959
        %v9971 = vpack.c.b16 %v9962, %v9961
        %v9972 = vpack.c.b16 %v9964, %v9963
        %9981 = vmatpush.bf16.msra.mxu0 %v9972
        %9982 = vmatpush.bf16.msra.mxu0 %v9971
        %9983 = vmatpush.bf16.msra.mxu0 %v9970
        %9984 = vmatpush.bf16.msra.mxu0 %v9969
        %9985 = vmatpush.bf16.msra.mxu0 %v9968
        %9986 = vmatpush.bf16.msra.mxu0 %v9967
        %9987 = vmatpush.bf16.msra.mxu0 %v9966
        %9988 = vmatpush.bf16.msra.mxu0 %v9965
        %9989 = vmatmul.bf16.gmra.mxu0 %v9901
        %v9990 = vpop.f32.mrf.mxu0
        %v9991 = vadd.f32 0.0, %v9990
        %v9992 = vpop.f32.mrf.mxu0
        %v9993 = vadd.f32 0.0, %v9992
        %9994 = vmatmul.bf16.gmra.mxu0 %v9902
        %v9995 = vpop.f32.mrf.mxu0
        %v9996 = vadd.f32 0.0, %v9995
        %v9997 = vpop.f32.mrf.mxu0
        %v9998 = vadd.f32 0.0, %v9997
        %9999 = vmatmul.bf16.gmra.mxu0 %v9903
        %v10000 = vpop.f32.mrf.mxu0
        %v10001 = vadd.f32 0.0, %v10000
        %v10002 = vpop.f32.mrf.mxu0
        %v10003 = vadd.f32 0.0, %v10002
        %10004 = vmatmul.bf16.gmra.mxu0 %v9904
        %v10005 = vpop.f32.mrf.mxu0
        %v10006 = vadd.f32 0.0, %v10005
        %v10007 = vpop.f32.mrf.mxu0
        %v10008 = vadd.f32 0.0, %v10007
        %10009 = vmatmul.bf16.gmra.mxu0 %v9905
        %v10010 = vpop.f32.mrf.mxu0
        %v10011 = vadd.f32 0.0, %v10010
        %v10012 = vpop.f32.mrf.mxu0
        %v10013 = vadd.f32 0.0, %v10012
        %10014 = vmatmul.bf16.gmra.mxu0 %v9906
        %v10015 = vpop.f32.mrf.mxu0
        %v10016 = vadd.f32 0.0, %v10015
        %v10017 = vpop.f32.mrf.mxu0
        %v10018 = vadd.f32 0.0, %v10017
        %10019 = vmatmul.bf16.gmra.mxu0 %v9907
        %v10020 = vpop.f32.mrf.mxu0
        %v10021 = vadd.f32 0.0, %v10020
        %v10022 = vpop.f32.mrf.mxu0
        %v10023 = vadd.f32 0.0, %v10022
        %10024 = vmatmul.bf16.gmra.mxu0 %v9908
        %v10025 = vpop.f32.mrf.mxu0
        %v10026 = vadd.f32 0.0, %v10025
        %v10027 = vpop.f32.mrf.mxu0
        %v10028 = vadd.f32 0.0, %v10027
        %10029 = vmatmul.bf16.gmra.mxu0 %v9909
        %v10030 = vpop.f32.mrf.mxu0
        %v10031 = vadd.f32 0.0, %v10030
        %v10032 = vpop.f32.mrf.mxu0
        %v10033 = vadd.f32 0.0, %v10032
        %10034 = vmatmul.bf16.gmra.mxu0 %v9910
        %v10035 = vpop.f32.mrf.mxu0
        %v10036 = vadd.f32 0.0, %v10035
        %v10037 = vpop.f32.mrf.mxu0
        %v10038 = vadd.f32 0.0, %v10037
        %10039 = vmatmul.bf16.gmra.mxu0 %v9911
        %v10040 = vpop.f32.mrf.mxu0
        %v10041 = vadd.f32 0.0, %v10040
        %v10042 = vpop.f32.mrf.mxu0
        %v10043 = vadd.f32 0.0, %v10042
        %10044 = vmatmul.bf16.gmra.mxu0 %v9912
        %v10045 = vpop.f32.mrf.mxu0
        %v10046 = vadd.f32 0.0, %v10045
        %v10047 = vpop.f32.mrf.mxu0
        %v10048 = vadd.f32 0.0, %v10047
        %10049 = vmatmul.bf16.gmra.mxu0 %v9913
        %v10050 = vpop.f32.mrf.mxu0
        %v10051 = vadd.f32 0.0, %v10050
        %v10052 = vpop.f32.mrf.mxu0
        %v10053 = vadd.f32 0.0, %v10052
        %10054 = vmatmul.bf16.gmra.mxu0 %v9914
        %v10055 = vpop.f32.mrf.mxu0
        %v10056 = vadd.f32 0.0, %v10055
        %v10057 = vpop.f32.mrf.mxu0
        %v10058 = vadd.f32 0.0, %v10057
        %10059 = vmatmul.bf16.gmra.mxu0 %v9915
        %v10060 = vpop.f32.mrf.mxu0
        %v10061 = vadd.f32 0.0, %v10060
        %v10062 = vpop.f32.mrf.mxu0
        %v10063 = vadd.f32 0.0, %v10062
        %10064 = vmatmul.bf16.gmra.mxu0 %v9916
        %v10065 = vpop.f32.mrf.mxu0
        %v10066 = vadd.f32 0.0, %v10065
        %v10067 = vpop.f32.mrf.mxu0
        %v10068 = vadd.f32 0.0, %v10067
        %10069 = vdwg.mxu0
        %v10070 = vadd.f32 %v9388, %v9991
        %v10071 = vadd.f32 %v9389, %v9993
        %v10072 = vadd.f32 %v9390, %v9996
        %v10073 = vadd.f32 %v9391, %v9998
        %v10074 = vadd.f32 %v9392, %v10001
        %v10075 = vadd.f32 %v9393, %v10003
        %v10076 = vadd.f32 %v9394, %v10006
        %v10077 = vadd.f32 %v9395, %v10008
        %v10078 = vadd.f32 %v9396, %v10011
        %v10079 = vadd.f32 %v9397, %v10013
        %v10080 = vadd.f32 %v9398, %v10016
        %v10081 = vadd.f32 %v9399, %v10018
        %v10082 = vadd.f32 %v9400, %v10021
        %v10083 = vadd.f32 %v9401, %v10023
        %v10084 = vadd.f32 %v9402, %v10026
        %v10085 = vadd.f32 %v9403, %v10028
        %v10086 = vadd.f32 %v9404, %v10031
        %v10087 = vadd.f32 %v9405, %v10033
        %v10088 = vadd.f32 %v9406, %v10036
        %v10089 = vadd.f32 %v9407, %v10038
        %v10090 = vadd.f32 %v9408, %v10041
        %v10091 = vadd.f32 %v9409, %v10043
        %v10092 = vadd.f32 %v9410, %v10046
        %v10093 = vadd.f32 %v9411, %v10048
        %v10094 = vadd.f32 %v9412, %v10051
        %v10095 = vadd.f32 %v9413, %v10053
        %v10096 = vadd.f32 %v9414, %v10056
        %v10097 = vadd.f32 %v9415, %v10058
        %v10098 = vadd.f32 %v9416, %v10061
        %v10099 = vadd.f32 %v9417, %v10063
        %v10100 = vadd.f32 %v9418, %v10066
        %v10101 = vadd.f32 %v9419, %v10068
        %v10102 = vld [vmem:[%s9105] sm:$0xe]
        %v10103 = vld [vmem:[%s9105 + $0xc] sm:$0xe]
        %v10104 = vld [vmem:[%s9105 + $0x18] sm:$0xe]
        %v10105 = vld [vmem:[%s9105 + $0x24] sm:$0xe]
        %v10106 = vld [vmem:[%s9105 + $0x30] sm:$0xe]
        %v10107 = vld [vmem:[%s9105 + $0x3c] sm:$0xe]
        %v10108 = vld [vmem:[%s9105 + $0x48] sm:$0xe]
        %v10109 = vld [vmem:[%s9105 + $0x54] sm:$0xe]
        %v10110 = vld [vmem:[%s9105 + $0x60] sm:$0xe]
        %v10111 = vld [vmem:[%s9105 + $0x6c] sm:$0xe]
        %v10112 = vld [vmem:[%s9105 + $0x78] sm:$0xe]
        %v10113 = vld [vmem:[%s9105 + $0x84] sm:$0xe]
        %v10114 = vld [vmem:[%s9105 + $0x90] sm:$0xe]
        %v10115 = vld [vmem:[%s9105 + $0x9c] sm:$0xe]
        %v10116 = vld [vmem:[%s9105 + $0xa8] sm:$0xe]
        %v10117 = vld [vmem:[%s9105 + $0xb4] sm:$0xe]
        %v10166 = vrot.slane %v10102, 5
        %v10167 = vrot.slane %v10166, 4
        %v10168 = vrot.slane %v9421, 5
        %v10169 = vsel %vm2021, %v10167, %v10168
        %v10170 = vrot.slane %v10168, 4
        %v10171 = vrot.slane %v9422, 5
        %v10172 = vsel %vm2021, %v10170, %v10171
        %v10173 = vrot.slane %v10103, 5
        %v10174 = vrot.slane %v10173, 4
        %v10175 = vrot.slane %v9424, 5
        %v10176 = vsel %vm2021, %v10174, %v10175
        %v10177 = vrot.slane %v10175, 4
        %v10178 = vrot.slane %v9425, 5
        %v10179 = vsel %vm2021, %v10177, %v10178
        %v10180 = vrot.slane %v10104, 5
        %v10181 = vrot.slane %v10180, 4
        %v10182 = vrot.slane %v9427, 5
        %v10183 = vsel %vm2021, %v10181, %v10182
        %v10184 = vrot.slane %v10182, 4
        %v10185 = vrot.slane %v9428, 5
        %v10186 = vsel %vm2021, %v10184, %v10185
        %v10187 = vrot.slane %v10105, 5
        %v10188 = vrot.slane %v10187, 4
        %v10189 = vrot.slane %v9430, 5
        %v10190 = vsel %vm2021, %v10188, %v10189
        %v10191 = vrot.slane %v10189, 4
        %v10192 = vrot.slane %v9431, 5
        %v10193 = vsel %vm2021, %v10191, %v10192
        %v10194 = vrot.slane %v10106, 5
        %v10195 = vrot.slane %v10194, 4
        %v10196 = vrot.slane %v9433, 5
        %v10197 = vsel %vm2021, %v10195, %v10196
        %v10198 = vrot.slane %v10196, 4
        %v10199 = vrot.slane %v9434, 5
        %v10200 = vsel %vm2021, %v10198, %v10199
        %v10201 = vrot.slane %v10107, 5
        %v10202 = vrot.slane %v10201, 4
        %v10203 = vrot.slane %v9436, 5
        %v10204 = vsel %vm2021, %v10202, %v10203
        %v10205 = vrot.slane %v10203, 4
        %v10206 = vrot.slane %v9437, 5
        %v10207 = vsel %vm2021, %v10205, %v10206
        %v10208 = vrot.slane %v10108, 5
        %v10209 = vrot.slane %v10208, 4
        %v10210 = vrot.slane %v9439, 5
        %v10211 = vsel %vm2021, %v10209, %v10210
        %v10212 = vrot.slane %v10210, 4
        %v10213 = vrot.slane %v9440, 5
        %v10214 = vsel %vm2021, %v10212, %v10213
        %v10215 = vrot.slane %v10109, 5
        %v10216 = vrot.slane %v10215, 4
        %v10217 = vrot.slane %v9442, 5
        %v10218 = vsel %vm2021, %v10216, %v10217
        %v10219 = vrot.slane %v10217, 4
        %v10220 = vrot.slane %v9443, 5
        %v10221 = vsel %vm2021, %v10219, %v10220
        %v10222 = vrot.slane %v10110, 5
        %v10223 = vrot.slane %v10222, 4
        %v10224 = vrot.slane %v9445, 5
        %v10225 = vsel %vm2021, %v10223, %v10224
        %v10226 = vrot.slane %v10224, 4
        %v10227 = vrot.slane %v9446, 5
        %v10228 = vsel %vm2021, %v10226, %v10227
        %v10229 = vrot.slane %v10111, 5
        %v10230 = vrot.slane %v10229, 4
        %v10231 = vrot.slane %v9448, 5
        %v10232 = vsel %vm2021, %v10230, %v10231
        %v10233 = vrot.slane %v10231, 4
        %v10234 = vrot.slane %v9449, 5
        %v10235 = vsel %vm2021, %v10233, %v10234
        %v10236 = vrot.slane %v10112, 5
        %v10237 = vrot.slane %v10236, 4
        %v10238 = vrot.slane %v9451, 5
        %v10239 = vsel %vm2021, %v10237, %v10238
        %v10240 = vrot.slane %v10238, 4
        %v10241 = vrot.slane %v9452, 5
        %v10242 = vsel %vm2021, %v10240, %v10241
        %v10243 = vrot.slane %v10113, 5
        %v10244 = vrot.slane %v10243, 4
        %v10245 = vrot.slane %v9454, 5
        %v10246 = vsel %vm2021, %v10244, %v10245
        %v10247 = vrot.slane %v10245, 4
        %v10248 = vrot.slane %v9455, 5
        %v10249 = vsel %vm2021, %v10247, %v10248
        %v10250 = vrot.slane %v10114, 5
        %v10251 = vrot.slane %v10250, 4
        %v10252 = vrot.slane %v9457, 5
        %v10253 = vsel %vm2021, %v10251, %v10252
        %v10254 = vrot.slane %v10252, 4
        %v10255 = vrot.slane %v9458, 5
        %v10256 = vsel %vm2021, %v10254, %v10255
        %v10257 = vrot.slane %v10115, 5
        %v10258 = vrot.slane %v10257, 4
        %v10259 = vrot.slane %v9460, 5
        %v10260 = vsel %vm2021, %v10258, %v10259
        %v10261 = vrot.slane %v10259, 4
        %v10262 = vrot.slane %v9461, 5
        %v10263 = vsel %vm2021, %v10261, %v10262
        %v10264 = vrot.slane %v10116, 5
        %v10265 = vrot.slane %v10264, 4
        %v10266 = vrot.slane %v9463, 5
        %v10267 = vsel %vm2021, %v10265, %v10266
        %v10268 = vrot.slane %v10266, 4
        %v10269 = vrot.slane %v9464, 5
        %v10270 = vsel %vm2021, %v10268, %v10269
        %v10271 = vrot.slane %v10117, 5
        %v10272 = vrot.slane %v10271, 4
        %v10273 = vrot.slane %v9466, 5
        %v10274 = vsel %vm2021, %v10272, %v10273
        %v10275 = vrot.slane %v10273, 4
        %v10276 = vrot.slane %v9467, 5
        %v10277 = vsel %vm2021, %v10275, %v10276
        %s10278 = scalar_lea.vmem [#allocation9], 512
        %v10279 = vld [vmem:[%s10278] sm:$0xf]
        %v10280 = vld [vmem:[%s10278 + $0x4] sm:$0xf]
        %v10281 = vld [vmem:[%s10278 + $0x8] sm:$0xf]
        %v10282 = vld [vmem:[%s10278 + $0xc] sm:$0xf]
        %v10283 = vld [vmem:[%s10278 + $0x10] sm:$0xf]
        %v10284 = vld [vmem:[%s10278 + $0x14] sm:$0xf]
        %v10285 = vld [vmem:[%s10278 + $0x18] sm:$0xf]
        %v10286 = vld [vmem:[%s10278 + $0x1c] sm:$0xf]
        %v10287 = vld [vmem:[%s10278 + $0x20] sm:$0xf]
        %v10288 = vld [vmem:[%s10278 + $0x24] sm:$0xf]
        %v10289 = vld [vmem:[%s10278 + $0x28] sm:$0xf]
        %v10290 = vld [vmem:[%s10278 + $0x2c] sm:$0xf]
        %v10291 = vld [vmem:[%s10278 + $0x30] sm:$0xf]
        %v10292 = vld [vmem:[%s10278 + $0x34] sm:$0xf]
        %v10293 = vld [vmem:[%s10278 + $0x38] sm:$0xf]
        %v10294 = vld [vmem:[%s10278 + $0x3c] sm:$0xf]
        %v10295 = vunpack.c.l.b16 %v10169
        %v10296 = vunpack.c.l.b16 %v10172
        %v10297 = vunpack.c.l.b16 %v10176
        %v10298 = vunpack.c.l.b16 %v10179
        %v10299 = vunpack.c.l.b16 %v10183
        %v10300 = vunpack.c.l.b16 %v10186
        %v10301 = vunpack.c.l.b16 %v10190
        %v10302 = vunpack.c.l.b16 %v10193
        %v10303 = vunpack.c.l.b16 %v10197
        %v10304 = vunpack.c.l.b16 %v10200
        %v10305 = vunpack.c.l.b16 %v10204
        %v10306 = vunpack.c.l.b16 %v10207
        %v10307 = vunpack.c.l.b16 %v10211
        %v10308 = vunpack.c.l.b16 %v10214
        %v10309 = vunpack.c.l.b16 %v10218
        %v10310 = vunpack.c.l.b16 %v10221
        %v10311 = vunpack.c.l.b16 %v10225
        %v10312 = vunpack.c.l.b16 %v10228
        %v10313 = vunpack.c.l.b16 %v10232
        %v10314 = vunpack.c.l.b16 %v10235
        %v10315 = vunpack.c.l.b16 %v10239
        %v10316 = vunpack.c.l.b16 %v10242
        %v10317 = vunpack.c.l.b16 %v10246
        %v10318 = vunpack.c.l.b16 %v10249
        %v10319 = vunpack.c.l.b16 %v10253
        %v10320 = vunpack.c.l.b16 %v10256
        %v10321 = vunpack.c.l.b16 %v10260
        %v10322 = vunpack.c.l.b16 %v10263
        %v10323 = vunpack.c.l.b16 %v10267
        %v10324 = vunpack.c.l.b16 %v10270
        %v10325 = vunpack.c.l.b16 %v10274
        %v10326 = vunpack.c.l.b16 %v10277
        %v10327 = vpack.c.b16 %v10296, %v10295
        %v10328 = vpack.c.b16 %v10298, %v10297
        %v10329 = vpack.c.b16 %v10300, %v10299
        %v10330 = vpack.c.b16 %v10302, %v10301
        %v10331 = vpack.c.b16 %v10304, %v10303
        %v10332 = vpack.c.b16 %v10306, %v10305
        %v10333 = vpack.c.b16 %v10308, %v10307
        %v10334 = vpack.c.b16 %v10310, %v10309
        %v10335 = vpack.c.b16 %v10312, %v10311
        %v10336 = vpack.c.b16 %v10314, %v10313
        %v10337 = vpack.c.b16 %v10316, %v10315
        %v10338 = vpack.c.b16 %v10318, %v10317
        %v10339 = vpack.c.b16 %v10320, %v10319
        %v10340 = vpack.c.b16 %v10322, %v10321
        %v10341 = vpack.c.b16 %v10324, %v10323
        %v10342 = vpack.c.b16 %v10326, %v10325
        %v10375 = vunpack.c.l.b16 %v10279
        %v10376 = vunpack.c.l.b16 %v10280
        %v10377 = vunpack.c.l.b16 %v10281
        %v10378 = vunpack.c.l.b16 %v10282
        %v10379 = vunpack.c.l.b16 %v10283
        %v10380 = vunpack.c.l.b16 %v10284
        %v10381 = vunpack.c.l.b16 %v10285
        %v10382 = vunpack.c.l.b16 %v10286
        %v10383 = vunpack.c.l.b16 %v10287
        %v10384 = vunpack.c.l.b16 %v10288
        %v10385 = vunpack.c.l.b16 %v10289
        %v10386 = vunpack.c.l.b16 %v10290
        %v10387 = vunpack.c.l.b16 %v10291
        %v10388 = vunpack.c.l.b16 %v10292
        %v10389 = vunpack.c.l.b16 %v10293
        %v10390 = vunpack.c.l.b16 %v10294
        %v10391 = vpack.c.b16 %v10376, %v10375
        %v10392 = vpack.c.b16 %v10378, %v10377
        %v10393 = vpack.c.b16 %v10380, %v10379
        %v10394 = vpack.c.b16 %v10382, %v10381
        %v10395 = vpack.c.b16 %v10384, %v10383
        %v10396 = vpack.c.b16 %v10386, %v10385
        %v10397 = vpack.c.b16 %v10388, %v10387
        %v10398 = vpack.c.b16 %v10390, %v10389
        %10407 = vmatpush.bf16.msra.mxu0 %v10398
        %10408 = vmatpush.bf16.msra.mxu0 %v10397
        %10409 = vmatpush.bf16.msra.mxu0 %v10396
        %10410 = vmatpush.bf16.msra.mxu0 %v10395
        %10411 = vmatpush.bf16.msra.mxu0 %v10394
        %10412 = vmatpush.bf16.msra.mxu0 %v10393
        %10413 = vmatpush.bf16.msra.mxu0 %v10392
        %10414 = vmatpush.bf16.msra.mxu0 %v10391
        %10415 = vmatmul.bf16.gmra.mxu0 %v10327
        %v10416 = vpop.f32.mrf.mxu0
        %v10417 = vadd.f32 0.0, %v10416
        %v10418 = vpop.f32.mrf.mxu0
        %v10419 = vadd.f32 0.0, %v10418
        %10420 = vmatmul.bf16.gmra.mxu0 %v10328
        %v10421 = vpop.f32.mrf.mxu0
        %v10422 = vadd.f32 0.0, %v10421
        %v10423 = vpop.f32.mrf.mxu0
        %v10424 = vadd.f32 0.0, %v10423
        %10425 = vmatmul.bf16.gmra.mxu0 %v10329
        %v10426 = vpop.f32.mrf.mxu0
        %v10427 = vadd.f32 0.0, %v10426
        %v10428 = vpop.f32.mrf.mxu0
        %v10429 = vadd.f32 0.0, %v10428
        %10430 = vmatmul.bf16.gmra.mxu0 %v10330
        %v10431 = vpop.f32.mrf.mxu0
        %v10432 = vadd.f32 0.0, %v10431
        %v10433 = vpop.f32.mrf.mxu0
        %v10434 = vadd.f32 0.0, %v10433
        %10435 = vmatmul.bf16.gmra.mxu0 %v10331
        %v10436 = vpop.f32.mrf.mxu0
        %v10437 = vadd.f32 0.0, %v10436
        %v10438 = vpop.f32.mrf.mxu0
        %v10439 = vadd.f32 0.0, %v10438
        %10440 = vmatmul.bf16.gmra.mxu0 %v10332
        %v10441 = vpop.f32.mrf.mxu0
        %v10442 = vadd.f32 0.0, %v10441
        %v10443 = vpop.f32.mrf.mxu0
        %v10444 = vadd.f32 0.0, %v10443
        %10445 = vmatmul.bf16.gmra.mxu0 %v10333
        %v10446 = vpop.f32.mrf.mxu0
        %v10447 = vadd.f32 0.0, %v10446
        %v10448 = vpop.f32.mrf.mxu0
        %v10449 = vadd.f32 0.0, %v10448
        %10450 = vmatmul.bf16.gmra.mxu0 %v10334
        %v10451 = vpop.f32.mrf.mxu0
        %v10452 = vadd.f32 0.0, %v10451
        %v10453 = vpop.f32.mrf.mxu0
        %v10454 = vadd.f32 0.0, %v10453
        %10455 = vmatmul.bf16.gmra.mxu0 %v10335
        %v10456 = vpop.f32.mrf.mxu0
        %v10457 = vadd.f32 0.0, %v10456
        %v10458 = vpop.f32.mrf.mxu0
        %v10459 = vadd.f32 0.0, %v10458
        %10460 = vmatmul.bf16.gmra.mxu0 %v10336
        %v10461 = vpop.f32.mrf.mxu0
        %v10462 = vadd.f32 0.0, %v10461
        %v10463 = vpop.f32.mrf.mxu0
        %v10464 = vadd.f32 0.0, %v10463
        %10465 = vmatmul.bf16.gmra.mxu0 %v10337
        %v10466 = vpop.f32.mrf.mxu0
        %v10467 = vadd.f32 0.0, %v10466
        %v10468 = vpop.f32.mrf.mxu0
        %v10469 = vadd.f32 0.0, %v10468
        %10470 = vmatmul.bf16.gmra.mxu0 %v10338
        %v10471 = vpop.f32.mrf.mxu0
        %v10472 = vadd.f32 0.0, %v10471
        %v10473 = vpop.f32.mrf.mxu0
        %v10474 = vadd.f32 0.0, %v10473
        %10475 = vmatmul.bf16.gmra.mxu0 %v10339
        %v10476 = vpop.f32.mrf.mxu0
        %v10477 = vadd.f32 0.0, %v10476
        %v10478 = vpop.f32.mrf.mxu0
        %v10479 = vadd.f32 0.0, %v10478
        %10480 = vmatmul.bf16.gmra.mxu0 %v10340
        %v10481 = vpop.f32.mrf.mxu0
        %v10482 = vadd.f32 0.0, %v10481
        %v10483 = vpop.f32.mrf.mxu0
        %v10484 = vadd.f32 0.0, %v10483
        %10485 = vmatmul.bf16.gmra.mxu0 %v10341
        %v10486 = vpop.f32.mrf.mxu0
        %v10487 = vadd.f32 0.0, %v10486
        %v10488 = vpop.f32.mrf.mxu0
        %v10489 = vadd.f32 0.0, %v10488
        %10490 = vmatmul.bf16.gmra.mxu0 %v10342
        %v10491 = vpop.f32.mrf.mxu0
        %v10492 = vadd.f32 0.0, %v10491
        %v10493 = vpop.f32.mrf.mxu0
        %v10494 = vadd.f32 0.0, %v10493
        %10495 = vdwg.mxu0
        %v10496 = vadd.f32 %v10070, %v10417
        %v10497 = vadd.f32 %v10071, %v10419
        %v10498 = vadd.f32 %v10072, %v10422
        %v10499 = vadd.f32 %v10073, %v10424
        %v10500 = vadd.f32 %v10074, %v10427
        %v10501 = vadd.f32 %v10075, %v10429
        %v10502 = vadd.f32 %v10076, %v10432
        %v10503 = vadd.f32 %v10077, %v10434
        %v10504 = vadd.f32 %v10078, %v10437
        %v10505 = vadd.f32 %v10079, %v10439
        %v10506 = vadd.f32 %v10080, %v10442
        %v10507 = vadd.f32 %v10081, %v10444
        %v10508 = vadd.f32 %v10082, %v10447
        %v10509 = vadd.f32 %v10083, %v10449
        %v10510 = vadd.f32 %v10084, %v10452
        %v10511 = vadd.f32 %v10085, %v10454
        %v10512 = vadd.f32 %v10086, %v10457
        %v10513 = vadd.f32 %v10087, %v10459
        %v10514 = vadd.f32 %v10088, %v10462
        %v10515 = vadd.f32 %v10089, %v10464
        %v10516 = vadd.f32 %v10090, %v10467
        %v10517 = vadd.f32 %v10091, %v10469
        %v10518 = vadd.f32 %v10092, %v10472
        %v10519 = vadd.f32 %v10093, %v10474
        %v10520 = vadd.f32 %v10094, %v10477
        %v10521 = vadd.f32 %v10095, %v10479
        %v10522 = vadd.f32 %v10096, %v10482
        %v10523 = vadd.f32 %v10097, %v10484
        %v10524 = vadd.f32 %v10098, %v10487
        %v10525 = vadd.f32 %v10099, %v10489
        %v10526 = vadd.f32 %v10100, %v10492
        %v10527 = vadd.f32 %v10101, %v10494
        %v10528 = vld [vmem:[%s5] sm:$0x1]
        %v10530 = vperm.slane %v10528, 0
        %v10532 = vmul.f32 %v10496, %v10530
        %v10533 = vmul.f32 %v10497, %v10530
        %v10534 = vmul.f32 %v10498, %v10530
        %v10535 = vmul.f32 %v10499, %v10530
        %v10536 = vmul.f32 %v10500, %v10530
        %v10537 = vmul.f32 %v10501, %v10530
        %v10538 = vmul.f32 %v10502, %v10530
        %v10539 = vmul.f32 %v10503, %v10530
        %v10540 = vmul.f32 %v10504, %v10530
        %v10541 = vmul.f32 %v10505, %v10530
        %v10542 = vmul.f32 %v10506, %v10530
        %v10543 = vmul.f32 %v10507, %v10530
        %v10544 = vmul.f32 %v10508, %v10530
        %v10545 = vmul.f32 %v10509, %v10530
        %v10546 = vmul.f32 %v10510, %v10530
        %v10547 = vmul.f32 %v10511, %v10530
        %v10548 = vmul.f32 %v10512, %v10530
        %v10549 = vmul.f32 %v10513, %v10530
        %v10550 = vmul.f32 %v10514, %v10530
        %v10551 = vmul.f32 %v10515, %v10530
        %v10552 = vmul.f32 %v10516, %v10530
        %v10553 = vmul.f32 %v10517, %v10530
        %v10554 = vmul.f32 %v10518, %v10530
        %v10555 = vmul.f32 %v10519, %v10530
        %v10556 = vmul.f32 %v10520, %v10530
        %v10557 = vmul.f32 %v10521, %v10530
        %v10558 = vmul.f32 %v10522, %v10530
        %v10559 = vmul.f32 %v10523, %v10530
        %v10560 = vmul.f32 %v10524, %v10530
        %v10561 = vmul.f32 %v10525, %v10530
        %v10562 = vmul.f32 %v10526, %v10530
        %v10563 = vmul.f32 %v10527, %v10530
        %v10564 = vld [vmem:[%s6] sm:$0x1]
        %v10566 = vperm.slane %v10564, 0
        %v10568 = vadd.f32 %v10532, %v10566
        %v10569 = vadd.f32 %v10533, %v10566
        %v10570 = vadd.f32 %v10534, %v10566
        %v10571 = vadd.f32 %v10535, %v10566
        %v10572 = vadd.f32 %v10536, %v10566
        %v10573 = vadd.f32 %v10537, %v10566
        %v10574 = vadd.f32 %v10538, %v10566
        %v10575 = vadd.f32 %v10539, %v10566
        %v10576 = vadd.f32 %v10540, %v10566
        %v10577 = vadd.f32 %v10541, %v10566
        %v10578 = vadd.f32 %v10542, %v10566
        %v10579 = vadd.f32 %v10543, %v10566
        %v10580 = vadd.f32 %v10544, %v10566
        %v10581 = vadd.f32 %v10545, %v10566
        %v10582 = vadd.f32 %v10546, %v10566
        %v10583 = vadd.f32 %v10547, %v10566
        %v10584 = vadd.f32 %v10548, %v10566
        %v10585 = vadd.f32 %v10549, %v10566
        %v10586 = vadd.f32 %v10550, %v10566
        %v10587 = vadd.f32 %v10551, %v10566
        %v10588 = vadd.f32 %v10552, %v10566
        %v10589 = vadd.f32 %v10553, %v10566
        %v10590 = vadd.f32 %v10554, %v10566
        %v10591 = vadd.f32 %v10555, %v10566
        %v10592 = vadd.f32 %v10556, %v10566
        %v10593 = vadd.f32 %v10557, %v10566
        %v10594 = vadd.f32 %v10558, %v10566
        %v10595 = vadd.f32 %v10559, %v10566
        %v10596 = vadd.f32 %v10560, %v10566
        %v10597 = vadd.f32 %v10561, %v10566
        %v10598 = vadd.f32 %v10562, %v10566
        %v10599 = vadd.f32 %v10563, %v10566
        %v10600 = vld [vmem:[%s290] sm:$0xff]
        %v10601 = vld [vmem:[%s290 + $0x8] sm:$0xff]
        %v10602 = vld [vmem:[%s290 + $0x10] sm:$0xff]
        %v10603 = vld [vmem:[%s290 + $0x18] sm:$0xff]
        %v10604 = vld [vmem:[%s290 + $0x20] sm:$0xff]
        %v10605 = vld [vmem:[%s290 + $0x28] sm:$0xff]
        %v10606 = vld [vmem:[%s290 + $0x30] sm:$0xff]
        %v10607 = vld [vmem:[%s290 + $0x38] sm:$0xff]
        %v10608 = vld [vmem:[%s290 + $0x40] sm:$0xff]
        %v10609 = vld [vmem:[%s290 + $0x48] sm:$0xff]
        %v10610 = vld [vmem:[%s290 + $0x50] sm:$0xff]
        %v10611 = vld [vmem:[%s290 + $0x58] sm:$0xff]
        %v10612 = vld [vmem:[%s290 + $0x60] sm:$0xff]
        %v10613 = vld [vmem:[%s290 + $0x68] sm:$0xff]
        %v10614 = vld [vmem:[%s290 + $0x70] sm:$0xff]
        %v10615 = vld [vmem:[%s290 + $0x78] sm:$0xff]
        %v10616 = vld [vmem:[%s290 + $0x80] sm:$0xff]
        %v10617 = vld [vmem:[%s290 + $0x88] sm:$0xff]
        %v10618 = vld [vmem:[%s290 + $0x90] sm:$0xff]
        %v10619 = vld [vmem:[%s290 + $0x98] sm:$0xff]
        %v10620 = vld [vmem:[%s290 + $0xa0] sm:$0xff]
        %v10621 = vld [vmem:[%s290 + $0xa8] sm:$0xff]
        %v10622 = vld [vmem:[%s290 + $0xb0] sm:$0xff]
        %v10623 = vld [vmem:[%s290 + $0xb8] sm:$0xff]
        %v10624 = vld [vmem:[%s290 + $0xc0] sm:$0xff]
        %v10625 = vld [vmem:[%s290 + $0xc8] sm:$0xff]
        %v10626 = vld [vmem:[%s290 + $0xd0] sm:$0xff]
        %v10627 = vld [vmem:[%s290 + $0xd8] sm:$0xff]
        %v10628 = vld [vmem:[%s290 + $0xe0] sm:$0xff]
        %v10629 = vld [vmem:[%s290 + $0xe8] sm:$0xff]
        %v10630 = vld [vmem:[%s290 + $0xf0] sm:$0xff]
        %v10631 = vld [vmem:[%s290 + $0xf8] sm:$0xff]
        %v10632 = vadd.f32 %v10600, %v10568
        %v10633 = vadd.f32 %v10601, %v10569
        %v10634 = vadd.f32 %v10602, %v10570
        %v10635 = vadd.f32 %v10603, %v10571
        %v10636 = vadd.f32 %v10604, %v10572
        %v10637 = vadd.f32 %v10605, %v10573
        %v10638 = vadd.f32 %v10606, %v10574
        %v10639 = vadd.f32 %v10607, %v10575
        %v10640 = vadd.f32 %v10608, %v10576
        %v10641 = vadd.f32 %v10609, %v10577
        %v10642 = vadd.f32 %v10610, %v10578
        %v10643 = vadd.f32 %v10611, %v10579
        %v10644 = vadd.f32 %v10612, %v10580
        %v10645 = vadd.f32 %v10613, %v10581
        %v10646 = vadd.f32 %v10614, %v10582
        %v10647 = vadd.f32 %v10615, %v10583
        %v10648 = vadd.f32 %v10616, %v10584
        %v10649 = vadd.f32 %v10617, %v10585
        %v10650 = vadd.f32 %v10618, %v10586
        %v10651 = vadd.f32 %v10619, %v10587
        %v10652 = vadd.f32 %v10620, %v10588
        %v10653 = vadd.f32 %v10621, %v10589
        %v10654 = vadd.f32 %v10622, %v10590
        %v10655 = vadd.f32 %v10623, %v10591
        %v10656 = vadd.f32 %v10624, %v10592
        %v10657 = vadd.f32 %v10625, %v10593
        %v10658 = vadd.f32 %v10626, %v10594
        %v10659 = vadd.f32 %v10627, %v10595
        %v10660 = vadd.f32 %v10628, %v10596
        %v10661 = vadd.f32 %v10629, %v10597
        %v10662 = vadd.f32 %v10630, %v10598
        %v10663 = vadd.f32 %v10631, %v10599
        %10664 = vst [vmem:[%s331] sm:$0xff] %v10632
        %10665 = vst [vmem:[%s331 + $0x8] sm:$0xff] %v10633
        %10666 = vst [vmem:[%s331 + $0x10] sm:$0xff] %v10634
        %10667 = vst [vmem:[%s331 + $0x18] sm:$0xff] %v10635
        %10668 = vst [vmem:[%s331 + $0x20] sm:$0xff] %v10636
        %10669 = vst [vmem:[%s331 + $0x28] sm:$0xff] %v10637
        %10670 = vst [vmem:[%s331 + $0x30] sm:$0xff] %v10638
        %10671 = vst [vmem:[%s331 + $0x38] sm:$0xff] %v10639
        %10672 = vst [vmem:[%s331 + $0x40] sm:$0xff] %v10640
        %10673 = vst [vmem:[%s331 + $0x48] sm:$0xff] %v10641
        %10674 = vst [vmem:[%s331 + $0x50] sm:$0xff] %v10642
        %10675 = vst [vmem:[%s331 + $0x58] sm:$0xff] %v10643
        %10676 = vst [vmem:[%s331 + $0x60] sm:$0xff] %v10644
        %10677 = vst [vmem:[%s331 + $0x68] sm:$0xff] %v10645
        %10678 = vst [vmem:[%s331 + $0x70] sm:$0xff] %v10646
        %10679 = vst [vmem:[%s331 + $0x78] sm:$0xff] %v10647
        %10680 = vst [vmem:[%s331 + $0x80] sm:$0xff] %v10648
        %10681 = vst [vmem:[%s331 + $0x88] sm:$0xff] %v10649
        %10682 = vst [vmem:[%s331 + $0x90] sm:$0xff] %v10650
        %10683 = vst [vmem:[%s331 + $0x98] sm:$0xff] %v10651
        %10684 = vst [vmem:[%s331 + $0xa0] sm:$0xff] %v10652
        %10685 = vst [vmem:[%s331 + $0xa8] sm:$0xff] %v10653
        %10686 = vst [vmem:[%s331 + $0xb0] sm:$0xff] %v10654
        %10687 = vst [vmem:[%s331 + $0xb8] sm:$0xff] %v10655
        %10688 = vst [vmem:[%s331 + $0xc0] sm:$0xff] %v10656
        %10689 = vst [vmem:[%s331 + $0xc8] sm:$0xff] %v10657
        %10690 = vst [vmem:[%s331 + $0xd0] sm:$0xff] %v10658
        %10691 = vst [vmem:[%s331 + $0xd8] sm:$0xff] %v10659
        %10692 = vst [vmem:[%s331 + $0xe0] sm:$0xff] %v10660
        %10693 = vst [vmem:[%s331 + $0xe8] sm:$0xff] %v10661
        %10694 = vst [vmem:[%s331 + $0xf0] sm:$0xff] %v10662
        %10695 = vst [vmem:[%s331 + $0xf8] sm:$0xff] %v10663
        %s10696 = sand.u32 %s185, 1
        %s10697 = scalar_lea.sflag [#allocation6], %s10696
        %s10698 = sand.u32 %s185, 1
        %s10699 = smul.addr %s10698, 256
        %s10700 = scalar_lea.vmem [#allocation10], %s10699
        // Predicated region
        $region61: #{tpu_custom_call.1} parent=47 // pred_check
          %p10701 = pneg %p195
        $region62: #{tpu_custom_call.1} parent=47 // pred_check_branch
          %10703 = sbr.rel (%p10701) target = $region64
        $region63: #{tpu_custom_call.1} parent=47 // pred_region
          %10705 = vsyncadd %s10697, 0
          %s10706 = smul.addr %s25, 32
          %s10707 = smul.addr %s10706, 8
          %s10708 = scalar_lea.hbm %s7, %s10707
          %s10709 = sshll.u32 %s10700, 4
          %s10710 = int_to_ptr.vmem [resolvable:$true] %s10709
          %s10711 = sshll.u32 %s10708, 4
          %s10712 = int_to_ptr.hbm [resolvable:$true] %s10711
          %10717 = dma.vmem_to_hbm [thread:$0]  %s10710, 4096, %s10712, %s10697, 128, 128, 8
        $region64: #{tpu_custom_call.1} parent=47 // pred_fallthru
          _
      $region48: #{tpu_custom_call.1} parent=5 // pred_fallthru
        _
      %p10718 = scmp.le.s32.totalorder 2, %s20
      // Predicated region
      $region65: #{tpu_custom_call.1} parent=5 // pred_check
        %p10719 = pneg %p10718
      $region66: #{tpu_custom_call.1} parent=5 // pred_check_branch
        %10721 = sbr.rel (%p10719) target = $region68
      $region67: #{tpu_custom_call.1} parent=5 // pred_region
        %s10722 = ssub.s32 %s20, 2
        // Predicated region
        $region69: #{tpu_custom_call.1} parent=67 // pred_check
          %p10723 = pneg %p201
        $region70: #{tpu_custom_call.1} parent=67 // pred_check_branch
          %10725 = sbr.rel (%p10723) target = $region72
        $region71: #{tpu_custom_call.1} parent=67 // pred_region
          %s10726 = sand.u32 %s186, 1
          %s10727 = scalar_lea.sflag [#allocation6], %s10726
          %s10728 = sand.u32 %s186, 1
          %s10729 = smul.addr %s10728, 256
          %s10730 = scalar_lea.vmem [#allocation10], %s10729
          %10732 = dma.done %s10727, 4096
        $region72: #{tpu_custom_call.1} parent=67 // pred_fallthru
          _
      $region68: #{tpu_custom_call.1} parent=5 // pred_fallthru
        _
    $region6: #{tpu_custom_call.1} parent=1 // loop_footer
      %s24 = sadd.s32 1, %s20
    $region7: #{tpu_custom_call.1} parent=1 // loop_footer_branch
      %19 = sbr.rel target = $region3
    $region8: #{tpu_custom_call.1} parent=1 // loop_exit
      _
    %10733 = vsyncpa [#allocation5], 1
    %s10734 = scalar_lea.sflag [#allocation5], 1
    %10735 = vsyncpa %s10734, 1
    %10736 = vsyncpa [#allocation8], 1
    %10737 = vsyncpa [#allocation6], 1
    %s10738 = scalar_lea.sflag [#allocation6], 1
    %10739 = vsyncpa %s10738, 1

</llo_original>
